<compile_context>
chip_gen: v7x
topology: tpu7x:2x2x1
jax: 0.10.0
libtpu: 0.0.40
codegen_flags: <defaults>
</compile_context>

<pallas_src>
import numpy as np

import jax
import jax.numpy as jnp
from jax.experimental import pallas as pl
from jax.experimental.pallas import tpu as pltpu


_BN_EPS = 1e-5

_LAYER_ORDER = ("enc1", "enc2", "enc3", "enc4", "bottleneck",
                "up4", "up3", "up2", "up1", "up0", "final_conv")


# --------------------------------------------------------------------------
# Fused Pallas kernel: entire UNet1D forward in a single pallas_call.
# --------------------------------------------------------------------------
def _conv_apply(h_b16, a_ref, w_ref):
    """y = sum_j A_j @ h @ W_j   (bf16 MXU operands, f32 accumulation).

    a_ref: (K, R_out, R_in)  constant 0/1 tap-selection matrices (bf16, exact)
    w_ref: (K, Cin,  Cout)   per-tap weight slices (bf16, pre-transformed)
    h_b16: (R_in, Cin)       channels-last activation (bf16)
    """
    k = a_ref.shape[0]
    acc = None
    for j in range(k):
        # Row selection via 0/1 matmul: exact, runs on the MXU, no gathers.
        patches = jnp.dot(a_ref[j], h_b16,
                          preferred_element_type=jnp.float32).astype(jnp.bfloat16)
        term = jnp.dot(patches, w_ref[j], preferred_element_type=jnp.float32)
        acc = term if acc is None else acc + term
    return acc


def _conv_relu_bn(h_b16, a_ref, w_ref, b_ref, g_ref, beta_ref):
    """Conv / ConvTranspose  ->  bias  ->  ReLU  ->  BatchNorm1d (batch stats)."""
    y = _conv_apply(h_b16, a_ref, w_ref) + b_ref[...]
    y = jnp.maximum(y, 0.0)                                   # ReLU
    # Single-pass batch statistics over all (batch*length) rows, biased var.
    inv_m = 1.0 / y.shape[0]
    mean = jnp.sum(y, axis=0, keepdims=True) * inv_m
    ex2 = jnp.sum(y * y, axis=0, keepdims=True) * inv_m
    var = jnp.maximum(ex2 - mean * mean, 0.0)
    y = (y - mean) * jax.lax.rsqrt(var + _BN_EPS) * g_ref[...] + beta_ref[...]
    # TODO(synk): BatchNorm1d running_mean/running_var buffers are not updated
    # (training-mode batch statistics only) — forward output matches PyTorch.
    return y.astype(jnp.bfloat16)


def _unet1d_kernel(*refs):
    x_ref, temb_ref = refs[0], refs[1]
    out_ref = refs[-1]
    prm = refs[2:-1]
    pos = 0

    def take(n):
        nonlocal pos
        r = prm[pos:pos + n]
        pos += n
        return r

    # Time-embedding add fused in-kernel; bf16 MXU operands from here on.
    h = (x_ref[...] + temb_ref[...]).astype(jnp.bfloat16)

    enc1 = _conv_relu_bn(h, *take(5))
    enc2 = _conv_relu_bn(enc1, *take(5))
    enc3 = _conv_relu_bn(enc2, *take(5))
    enc4 = _conv_relu_bn(enc3, *take(5))
    bott = _conv_relu_bn(enc4, *take(5))
    up4 = _conv_relu_bn(bott, *take(5))
    up3 = _conv_relu_bn(up4 + enc4, *take(5))     # skip adds fused in-kernel
    up2 = _conv_relu_bn(up3 + enc3, *take(5))
    up1 = _conv_relu_bn(up2 + enc2, *take(5))
    up0 = _conv_relu_bn(up1 + enc1, *take(5))
    a_f, w_f, b_f = take(3)                       # final conv: no ReLU / BN
    out_ref[...] = (_conv_apply(up0, a_f, w_f) + b_f[...]).astype(out_ref.dtype)


# --------------------------------------------------------------------------
# Wrapper: layout plumbing only (one transpose in, one transpose out).
# --------------------------------------------------------------------------
def unet1d_forward(packed, x, time_emb):
    """x, time_emb: (N, C_in, L) NCL (PyTorch layout); returns (N, C_out, L)."""
    n, cin, l = x.shape
    cout = packed["final_conv"]["W"].shape[2]
    # Channels-last: rows = batch*length (sublane axis), cols = channels (lanes).
    x2 = x.transpose(0, 2, 1).reshape(n * l, cin)
    t2 = time_emb.transpose(0, 2, 1).reshape(n * l, cin)

    flat = [x2, t2]
    for name in _LAYER_ORDER:
        lp = packed[name]
        flat.extend([lp["A"], lp["W"], lp["b"]])
        if name != "final_conv":
            flat.extend([lp["gamma"], lp["beta"]])

    # Single grid-less call: all operands + activations (< ~1 MiB total) fit in
    # VMEM on v5e / v6e / v7x, so one launch replaces the previous 12.
    # TODO(synk): at production sizes (L in the thousands, num_filters >= 128)
    # switch to an M-tiled grid with streaming BN stats and split across v7x's
    # two TensorCores; unnecessary at these shapes.
    y2 = pl.pallas_call(
        _unet1d_kernel,
        out_shape=jax.ShapeDtypeStruct((n * l, cout), jnp.float32),
        in_specs=[pl.BlockSpec(memory_space=pltpu.MemorySpace.VMEM)
                  for _ in flat],
        out_specs=pl.BlockSpec(memory_space=pltpu.MemorySpace.VMEM),
    )(*flat)
    return y2.reshape(n, l, cout).transpose(0, 2, 1)   # back to (N, C_out, L)


# --------------------------------------------------------------------------
# Layer configuration, deterministic init, one-time weight packing.
# --------------------------------------------------------------------------
def _layer_cfgs(in_channels, out_channels, f):
    return {
        "enc1":       dict(cin=in_channels, cout=f,      k=3, s=2, p=1, tr=False, bn=True),
        "enc2":       dict(cin=f,           cout=2 * f,  k=3, s=2, p=1, tr=False, bn=True),
        "enc3":       dict(cin=2 * f,       cout=4 * f,  k=3, s=2, p=1, tr=False, bn=True),
        "enc4":       dict(cin=4 * f,       cout=8 * f,  k=3, s=2, p=1, tr=False, bn=True),
        "bottleneck": dict(cin=8 * f,       cout=16 * f, k=3, s=2, p=1, tr=False, bn=True),
        "up4":        dict(cin=16 * f,      cout=8 * f,  k=3, s=2, p=1, tr=True,  bn=True),
        "up3":        dict(cin=8 * f,       cout=4 * f,  k=4, s=2, p=1, tr=True,  bn=True),
        "up2":        dict(cin=4 * f,       cout=2 * f,  k=3, s=2, p=1, tr=True,  bn=True),
        "up1":        dict(cin=2 * f,       cout=f,      k=3, s=2, p=1, tr=True,  bn=True),
        "up0":        dict(cin=f,           cout=f // 2, k=4, s=2, p=1, tr=True,  bn=True),
        "final_conv": dict(cin=in_channels, cout=out_channels,
                           k=3, s=1, p=1, tr=False, bn=False),
    }


def _conv_out_len(l, k, s, p):
    return (l + 2 * p - k) // s + 1


def _deconv_out_len(l, k, s, p):
    return (l - 1) * s - 2 * p + k


def _selection_matrix(l_in, l_out, k, stride, padding, batch, transposed):
    """A[j]: (batch*l_out, batch*l_in) 0/1 matrix such that
         sum_j A[j] @ X @ W[j]  ==  Conv1d / ConvTranspose1d on channels-last X.
    Zero padding (conv) and zero dilation (transposed conv) become all-zero
    rows/columns; block-diagonal over the batch so batches never mix."""
    a = np.zeros((k, l_out, l_in), np.float32)
    for j in range(k):
        for t in range(l_out):
            if transposed:
                num = t + j - (k - 1 - padding)     # flipped-kernel tap j
                if num < 0 or num % stride:
                    continue
                src = num // stride
            else:
                src = t * stride + j - padding
            if 0 <= src < l_in:
                a[j, t, src] = 1.0
    eye = np.eye(batch, dtype=np.float32)
    a = np.stack([np.kron(eye, a[j]) for j in range(k)], axis=0)
    return jnp.asarray(a, jnp.bfloat16)             # 0/1 values -> exact in bf16


def init_params(key, in_channels, out_channels, num_filters):
    """Deterministic parameters in PyTorch layout (Conv1d: (Cout,Cin,K),
    ConvTranspose1d: (Cin,Cout,K))."""
    cfgs = _layer_cfgs(in_channels, out_channels, num_filters)
    params = {}
    for kk, name in zip(jax.random.split(key, len(_LAYER_ORDER)), _LAYER_ORDER):
        c = cfgs[name]
        k1, k2, k3, k4 = jax.random.split(kk, 4)
        w_shape = ((c["cin"], c["cout"], c["k"]) if c["tr"]
                   else (c["cout"], c["cin"], c["k"]))
        p = {"w": 0.05 * jax.random.normal(k1, w_shape, jnp.float32),
             "b": 0.05 * jax.random.normal(k2, (c["cout"],), jnp.float32)}
        if c["bn"]:
            p["gamma"] = 1.0 + 0.01 * jax.random.normal(k3, (c["cout"],), jnp.float32)
            p["beta"] = 0.01 * jax.random.normal(k4, (c["cout"],), jnp.float32)
        params[name] = p
    return params


def pack_params(params, in_channels, out_channels, num_filters, batch, length):
    """One-time pre-transform: pre-flipped / per-tap-split bf16 weights, f32
    bias/gamma/beta as (1, Cout) rows, and the tap-selection matrices that
    replace im2col gather / dilation scatter for this (batch, length)."""
    cfgs = _layer_cfgs(in_channels, out_channels, num_filters)
    assert in_channels == num_filters // 2, (
        "final_conv consumes up0 (num_filters//2 channels); the PyTorch module "
        "requires in_channels == num_filters // 2")
    packed = {}

    def pack_layer(name, l_in):
        c = cfgs[name]
        l_out = (_deconv_out_len(l_in, c["k"], c["s"], c["p"]) if c["tr"]
                 else _conv_out_len(l_in, c["k"], c["s"], c["p"]))
        a = _selection_matrix(l_in, l_out, c["k"], c["s"], c["p"], batch, c["tr"])
        w = np.asarray(params[name]["w"], np.float32)
        if c["tr"]:   # (Cin, Cout, K) -> (K, Cin, Cout), kernel tap flipped
            w = np.flip(w, axis=2).transpose(2, 0, 1)
        else:         # (Cout, Cin, K) -> (K, Cin, Cout)
            w = w.transpose(2, 1, 0)
        lp = {"A": a,
              "W": jnp.asarray(w, jnp.bfloat16),
              "b": jnp.asarray(params[name]["b"], jnp.float32).reshape(1, -1)}
        if c["bn"]:
            lp["gamma"] = jnp.asarray(params[name]["gamma"], jnp.float32).reshape(1, -1)
            lp["beta"] = jnp.asarray(params[name]["beta"], jnp.float32).reshape(1, -1)
        packed[name] = lp
        return l_out

    l1 = pack_layer("enc1", length)
    l2 = pack_layer("enc2", l1)
    l3 = pack_layer("enc3", l2)
    l4 = pack_layer("enc4", l3)
    l5 = pack_layer("bottleneck", l4)
    d4 = pack_layer("up4", l5)
    assert d4 == l4, (d4, l4)
    d3 = pack_layer("up3", d4)
    assert d3 == l3, (d3, l3)
    d2 = pack_layer("up2", d3)
    assert d2 == l2, (d2, l2)
    d1 = pack_layer("up1", d2)
    assert d1 == l1, (d1, l1)
    d0 = pack_layer("up0", d1)
    assert d0 == length, (d0, length)
    lf = pack_layer("final_conv", d0)
    assert lf == length, (lf, length)
    return packed


# --------------------------------------------------------------------------
if __name__ == "__main__":
    # L=42 keeps every skip-connection addition length-consistent
    # (42 -> 21 -> 11 -> 6 -> 3 -> 2 down; exact mirror up) and
    # in_channels == num_filters // 2 so final_conv's input channels match.
    N, C_IN, L = 2, 8, 42
    NUM_FILTERS = 16
    C_OUT = 8

    key = jax.random.PRNGKey(0)
    kx, kt, kp = jax.random.split(key, 3)
    x = jax.random.normal(kx, (N, C_IN, L), jnp.float32)
    time_emb = jax.random.normal(kt, (N, C_IN, L), jnp.float32)

    params = init_params(kp, C_IN, C_OUT, NUM_FILTERS)
    packed = pack_params(params, C_IN, C_OUT, NUM_FILTERS, N, L)

    fwd = jax.jit(unet1d_forward)
    out = jax.block_until_ready(fwd(packed, x, time_emb))
    assert out.shape == (N, C_OUT, L), out.shape
    assert bool(jnp.all(jnp.isfinite(out)))
    print("KERNEL_OK")
</pallas_src>

<mosaic_0001>
module attributes {stable_mosaic.version = 11 : i64} {
  func.func @_unet1d_kernel(%arg0: memref<84x8xf32, #tpu.memory_space<vmem>>, %arg1: memref<84x8xf32, #tpu.memory_space<vmem>>, %arg2: memref<3x42x84xbf16, #tpu.memory_space<vmem>>, %arg3: memref<3x8x16xbf16, #tpu.memory_space<vmem>>, %arg4: memref<1x16xf32, #tpu.memory_space<vmem>>, %arg5: memref<1x16xf32, #tpu.memory_space<vmem>>, %arg6: memref<1x16xf32, #tpu.memory_space<vmem>>, %arg7: memref<3x22x42xbf16, #tpu.memory_space<vmem>>, %arg8: memref<3x16x32xbf16, #tpu.memory_space<vmem>>, %arg9: memref<1x32xf32, #tpu.memory_space<vmem>>, %arg10: memref<1x32xf32, #tpu.memory_space<vmem>>, %arg11: memref<1x32xf32, #tpu.memory_space<vmem>>, %arg12: memref<3x12x22xbf16, #tpu.memory_space<vmem>>, %arg13: memref<3x32x64xbf16, #tpu.memory_space<vmem>>, %arg14: memref<1x64xf32, #tpu.memory_space<vmem>>, %arg15: memref<1x64xf32, #tpu.memory_space<vmem>>, %arg16: memref<1x64xf32, #tpu.memory_space<vmem>>, %arg17: memref<3x6x12xbf16, #tpu.memory_space<vmem>>, %arg18: memref<3x64x128xbf16, #tpu.memory_space<vmem>>, %arg19: memref<1x128xf32, #tpu.memory_space<vmem>>, %arg20: memref<1x128xf32, #tpu.memory_space<vmem>>, %arg21: memref<1x128xf32, #tpu.memory_space<vmem>>, %arg22: memref<3x4x6xbf16, #tpu.memory_space<vmem>>, %arg23: memref<3x128x256xbf16, #tpu.memory_space<vmem>>, %arg24: memref<1x256xf32, #tpu.memory_space<vmem>>, %arg25: memref<1x256xf32, #tpu.memory_space<vmem>>, %arg26: memref<1x256xf32, #tpu.memory_space<vmem>>, %arg27: memref<3x6x4xbf16, #tpu.memory_space<vmem>>, %arg28: memref<3x256x128xbf16, #tpu.memory_space<vmem>>, %arg29: memref<1x128xf32, #tpu.memory_space<vmem>>, %arg30: memref<1x128xf32, #tpu.memory_space<vmem>>, %arg31: memref<1x128xf32, #tpu.memory_space<vmem>>, %arg32: memref<4x12x6xbf16, #tpu.memory_space<vmem>>, %arg33: memref<4x128x64xbf16, #tpu.memory_space<vmem>>, %arg34: memref<1x64xf32, #tpu.memory_space<vmem>>, %arg35: memref<1x64xf32, #tpu.memory_space<vmem>>, %arg36: memref<1x64xf32, #tpu.memory_space<vmem>>, %arg37: memref<3x22x12xbf16, #tpu.memory_space<vmem>>, %arg38: memref<3x64x32xbf16, #tpu.memory_space<vmem>>, %arg39: memref<1x32xf32, #tpu.memory_space<vmem>>, %arg40: memref<1x32xf32, #tpu.memory_space<vmem>>, %arg41: memref<1x32xf32, #tpu.memory_space<vmem>>, %arg42: memref<3x42x22xbf16, #tpu.memory_space<vmem>>, %arg43: memref<3x32x16xbf16, #tpu.memory_space<vmem>>, %arg44: memref<1x16xf32, #tpu.memory_space<vmem>>, %arg45: memref<1x16xf32, #tpu.memory_space<vmem>>, %arg46: memref<1x16xf32, #tpu.memory_space<vmem>>, %arg47: memref<4x84x42xbf16, #tpu.memory_space<vmem>>, %arg48: memref<4x16x8xbf16, #tpu.memory_space<vmem>>, %arg49: memref<1x8xf32, #tpu.memory_space<vmem>>, %arg50: memref<1x8xf32, #tpu.memory_space<vmem>>, %arg51: memref<1x8xf32, #tpu.memory_space<vmem>>, %arg52: memref<3x84x84xbf16, #tpu.memory_space<vmem>>, %arg53: memref<3x8x8xbf16, #tpu.memory_space<vmem>>, %arg54: memref<1x8xf32, #tpu.memory_space<vmem>>, %arg55: memref<84x8xf32, #tpu.memory_space<vmem>>) attributes {dimension_semantics = [], scalar_prefetch = 0 : i64, scratch_operands = 0 : i64, tpu.core_type = #tpu.core_type<tc>} {
    %c0 = arith.constant 0 : index
    %c0_0 = arith.constant 0 : index
    %0 = vector.load %arg0[%c0, %c0_0] : memref<84x8xf32, #tpu.memory_space<vmem>>, vector<84x8xf32>
    %c0_1 = arith.constant 0 : index
    %c0_2 = arith.constant 0 : index
    %1 = vector.load %arg1[%c0_1, %c0_2] : memref<84x8xf32, #tpu.memory_space<vmem>>, vector<84x8xf32>
    %2 = arith.addf %0, %1 : vector<84x8xf32>
    %3 = arith.truncf %2 : vector<84x8xf32> to vector<84x8xbf16>
    %c0_3 = arith.constant 0 : index
    %c0_4 = arith.constant 0 : index
    %c0_5 = arith.constant 0 : index
    %4 = vector.load %arg2[%c0_3, %c0_4, %c0_5] : memref<3x42x84xbf16, #tpu.memory_space<vmem>>, vector<1x42x84xbf16>
    %5 = vector.shape_cast %4 : vector<1x42x84xbf16> to vector<42x84xbf16>
    %cst = arith.constant dense<0.000000e+00> : vector<42x8xf32>
    %6 = tpu.matmul %5, %3, %cst {dimension_numbers = #tpu.dot_dimension_numbers<[1], [0], [0], [1], [0, 0, 1, 1], [], []>} : vector<42x84xbf16>, vector<84x8xbf16>, vector<42x8xf32> -> vector<42x8xf32>
    %7 = arith.truncf %6 : vector<42x8xf32> to vector<42x8xbf16>
    %c0_6 = arith.constant 0 : index
    %c0_7 = arith.constant 0 : index
    %c0_8 = arith.constant 0 : index
    %8 = vector.load %arg3[%c0_6, %c0_7, %c0_8] : memref<3x8x16xbf16, #tpu.memory_space<vmem>>, vector<1x8x16xbf16>
    %9 = vector.shape_cast %8 : vector<1x8x16xbf16> to vector<8x16xbf16>
    %cst_9 = arith.constant dense<0.000000e+00> : vector<42x16xf32>
    %10 = tpu.matmul %7, %9, %cst_9 {dimension_numbers = #tpu.dot_dimension_numbers<[1], [0], [0], [1], [0, 0, 1, 1], [], []>} : vector<42x8xbf16>, vector<8x16xbf16>, vector<42x16xf32> -> vector<42x16xf32>
    %c1 = arith.constant 1 : index
    %c0_10 = arith.constant 0 : index
    %c0_11 = arith.constant 0 : index
    %11 = vector.load %arg2[%c1, %c0_10, %c0_11] : memref<3x42x84xbf16, #tpu.memory_space<vmem>>, vector<1x42x84xbf16>
    %12 = vector.shape_cast %11 : vector<1x42x84xbf16> to vector<42x84xbf16>
    %cst_12 = arith.constant dense<0.000000e+00> : vector<42x8xf32>
    %13 = tpu.matmul %12, %3, %cst_12 {dimension_numbers = #tpu.dot_dimension_numbers<[1], [0], [0], [1], [0, 0, 1, 1], [], []>} : vector<42x84xbf16>, vector<84x8xbf16>, vector<42x8xf32> -> vector<42x8xf32>
    %14 = arith.truncf %13 : vector<42x8xf32> to vector<42x8xbf16>
    %c1_13 = arith.constant 1 : index
    %c0_14 = arith.constant 0 : index
    %c0_15 = arith.constant 0 : index
    %15 = vector.load %arg3[%c1_13, %c0_14, %c0_15] : memref<3x8x16xbf16, #tpu.memory_space<vmem>>, vector<1x8x16xbf16>
    %16 = vector.shape_cast %15 : vector<1x8x16xbf16> to vector<8x16xbf16>
    %cst_16 = arith.constant dense<0.000000e+00> : vector<42x16xf32>
    %17 = tpu.matmul %14, %16, %cst_16 {dimension_numbers = #tpu.dot_dimension_numbers<[1], [0], [0], [1], [0, 0, 1, 1], [], []>} : vector<42x8xbf16>, vector<8x16xbf16>, vector<42x16xf32> -> vector<42x16xf32>
    %18 = arith.addf %10, %17 : vector<42x16xf32>
    %c2 = arith.constant 2 : index
    %c0_17 = arith.constant 0 : index
    %c0_18 = arith.constant 0 : index
    %19 = vector.load %arg2[%c2, %c0_17, %c0_18] : memref<3x42x84xbf16, #tpu.memory_space<vmem>>, vector<1x42x84xbf16>
    %20 = vector.shape_cast %19 : vector<1x42x84xbf16> to vector<42x84xbf16>
    %cst_19 = arith.constant dense<0.000000e+00> : vector<42x8xf32>
    %21 = tpu.matmul %20, %3, %cst_19 {dimension_numbers = #tpu.dot_dimension_numbers<[1], [0], [0], [1], [0, 0, 1, 1], [], []>} : vector<42x84xbf16>, vector<84x8xbf16>, vector<42x8xf32> -> vector<42x8xf32>
    %22 = arith.truncf %21 : vector<42x8xf32> to vector<42x8xbf16>
    %c2_20 = arith.constant 2 : index
    %c0_21 = arith.constant 0 : index
    %c0_22 = arith.constant 0 : index
    %23 = vector.load %arg3[%c2_20, %c0_21, %c0_22] : memref<3x8x16xbf16, #tpu.memory_space<vmem>>, vector<1x8x16xbf16>
    %24 = vector.shape_cast %23 : vector<1x8x16xbf16> to vector<8x16xbf16>
    %cst_23 = arith.constant dense<0.000000e+00> : vector<42x16xf32>
    %25 = tpu.matmul %22, %24, %cst_23 {dimension_numbers = #tpu.dot_dimension_numbers<[1], [0], [0], [1], [0, 0, 1, 1], [], []>} : vector<42x8xbf16>, vector<8x16xbf16>, vector<42x16xf32> -> vector<42x16xf32>
    %26 = arith.addf %18, %25 : vector<42x16xf32>
    %c0_24 = arith.constant 0 : index
    %c0_25 = arith.constant 0 : index
    %27 = vector.load %arg4[%c0_24, %c0_25] : memref<1x16xf32, #tpu.memory_space<vmem>>, vector<1x16xf32>
    %28 = vector.broadcast %27 : vector<1x16xf32> to vector<42x16xf32>
    %29 = arith.addf %26, %28 : vector<42x16xf32>
    %cst_26 = arith.constant 0.000000e+00 : f32
    %30 = vector.broadcast %cst_26 : f32 to vector<42x16xf32>
    %31 = arith.maximumf %29, %30 : vector<42x16xf32>
    %cst_27 = arith.constant dense<0.000000e+00> : vector<16xf32>
    %32 = vector.multi_reduction <add>, %31, %cst_27 [0] : vector<42x16xf32> to vector<16xf32>
    %33 = vector.shape_cast %32 : vector<16xf32> to vector<1x16xf32>
    %cst_28 = arith.constant 0.0238095243 : f32
    %34 = vector.broadcast %cst_28 : f32 to vector<1x16xf32>
    %35 = arith.mulf %33, %34 : vector<1x16xf32>
    %36 = arith.mulf %31, %31 : vector<42x16xf32>
    %cst_29 = arith.constant dense<0.000000e+00> : vector<16xf32>
    %37 = vector.multi_reduction <add>, %36, %cst_29 [0] : vector<42x16xf32> to vector<16xf32>
    %38 = vector.shape_cast %37 : vector<16xf32> to vector<1x16xf32>
    %cst_30 = arith.constant 0.0238095243 : f32
    %39 = vector.broadcast %cst_30 : f32 to vector<1x16xf32>
    %40 = arith.mulf %38, %39 : vector<1x16xf32>
    %41 = arith.mulf %35, %35 : vector<1x16xf32>
    %42 = arith.subf %40, %41 : vector<1x16xf32>
    %cst_31 = arith.constant 0.000000e+00 : f32
    %43 = vector.broadcast %cst_31 : f32 to vector<1x16xf32>
    %44 = arith.maximumf %42, %43 : vector<1x16xf32>
    %45 = vector.broadcast %35 : vector<1x16xf32> to vector<42x16xf32>
    %46 = arith.subf %31, %45 : vector<42x16xf32>
    %cst_32 = arith.constant 9.99999974E-6 : f32
    %47 = vector.broadcast %cst_32 : f32 to vector<1x16xf32>
    %48 = arith.addf %44, %47 : vector<1x16xf32>
    %49 = math.rsqrt %48 : vector<1x16xf32>
    %50 = vector.broadcast %49 : vector<1x16xf32> to vector<42x16xf32>
    %51 = arith.mulf %46, %50 : vector<42x16xf32>
    %c0_33 = arith.constant 0 : index
    %c0_34 = arith.constant 0 : index
    %52 = vector.load %arg5[%c0_33, %c0_34] : memref<1x16xf32, #tpu.memory_space<vmem>>, vector<1x16xf32>
    %53 = vector.broadcast %52 : vector<1x16xf32> to vector<42x16xf32>
    %54 = arith.mulf %51, %53 : vector<42x16xf32>
    %c0_35 = arith.constant 0 : index
    %c0_36 = arith.constant 0 : index
    %55 = vector.load %arg6[%c0_35, %c0_36] : memref<1x16xf32, #tpu.memory_space<vmem>>, vector<1x16xf32>
    %56 = vector.broadcast %55 : vector<1x16xf32> to vector<42x16xf32>
    %57 = arith.addf %54, %56 : vector<42x16xf32>
    %58 = arith.truncf %57 : vector<42x16xf32> to vector<42x16xbf16>
    %c0_37 = arith.constant 0 : index
    %c0_38 = arith.constant 0 : index
    %c0_39 = arith.constant 0 : index
    %59 = vector.load %arg7[%c0_37, %c0_38, %c0_39] : memref<3x22x42xbf16, #tpu.memory_space<vmem>>, vector<1x22x42xbf16>
    %60 = vector.shape_cast %59 : vector<1x22x42xbf16> to vector<22x42xbf16>
    %cst_40 = arith.constant dense<0.000000e+00> : vector<22x16xf32>
    %61 = tpu.matmul %60, %58, %cst_40 {dimension_numbers = #tpu.dot_dimension_numbers<[1], [0], [0], [1], [0, 0, 1, 1], [], []>} : vector<22x42xbf16>, vector<42x16xbf16>, vector<22x16xf32> -> vector<22x16xf32>
    %62 = arith.truncf %61 : vector<22x16xf32> to vector<22x16xbf16>
    %c0_41 = arith.constant 0 : index
    %c0_42 = arith.constant 0 : index
    %c0_43 = arith.constant 0 : index
    %63 = vector.load %arg8[%c0_41, %c0_42, %c0_43] : memref<3x16x32xbf16, #tpu.memory_space<vmem>>, vector<1x16x32xbf16>
    %64 = vector.shape_cast %63 : vector<1x16x32xbf16> to vector<16x32xbf16>
    %cst_44 = arith.constant dense<0.000000e+00> : vector<22x32xf32>
    %65 = tpu.matmul %62, %64, %cst_44 {dimension_numbers = #tpu.dot_dimension_numbers<[1], [0], [0], [1], [0, 0, 1, 1], [], []>} : vector<22x16xbf16>, vector<16x32xbf16>, vector<22x32xf32> -> vector<22x32xf32>
    %c1_45 = arith.constant 1 : index
    %c0_46 = arith.constant 0 : index
    %c0_47 = arith.constant 0 : index
    %66 = vector.load %arg7[%c1_45, %c0_46, %c0_47] : memref<3x22x42xbf16, #tpu.memory_space<vmem>>, vector<1x22x42xbf16>
    %67 = vector.shape_cast %66 : vector<1x22x42xbf16> to vector<22x42xbf16>
    %cst_48 = arith.constant dense<0.000000e+00> : vector<22x16xf32>
    %68 = tpu.matmul %67, %58, %cst_48 {dimension_numbers = #tpu.dot_dimension_numbers<[1], [0], [0], [1], [0, 0, 1, 1], [], []>} : vector<22x42xbf16>, vector<42x16xbf16>, vector<22x16xf32> -> vector<22x16xf32>
    %69 = arith.truncf %68 : vector<22x16xf32> to vector<22x16xbf16>
    %c1_49 = arith.constant 1 : index
    %c0_50 = arith.constant 0 : index
    %c0_51 = arith.constant 0 : index
    %70 = vector.load %arg8[%c1_49, %c0_50, %c0_51] : memref<3x16x32xbf16, #tpu.memory_space<vmem>>, vector<1x16x32xbf16>
    %71 = vector.shape_cast %70 : vector<1x16x32xbf16> to vector<16x32xbf16>
    %cst_52 = arith.constant dense<0.000000e+00> : vector<22x32xf32>
    %72 = tpu.matmul %69, %71, %cst_52 {dimension_numbers = #tpu.dot_dimension_numbers<[1], [0], [0], [1], [0, 0, 1, 1], [], []>} : vector<22x16xbf16>, vector<16x32xbf16>, vector<22x32xf32> -> vector<22x32xf32>
    %73 = arith.addf %65, %72 : vector<22x32xf32>
    %c2_53 = arith.constant 2 : index
    %c0_54 = arith.constant 0 : index
    %c0_55 = arith.constant 0 : index
    %74 = vector.load %arg7[%c2_53, %c0_54, %c0_55] : memref<3x22x42xbf16, #tpu.memory_space<vmem>>, vector<1x22x42xbf16>
    %75 = vector.shape_cast %74 : vector<1x22x42xbf16> to vector<22x42xbf16>
    %cst_56 = arith.constant dense<0.000000e+00> : vector<22x16xf32>
    %76 = tpu.matmul %75, %58, %cst_56 {dimension_numbers = #tpu.dot_dimension_numbers<[1], [0], [0], [1], [0, 0, 1, 1], [], []>} : vector<22x42xbf16>, vector<42x16xbf16>, vector<22x16xf32> -> vector<22x16xf32>
    %77 = arith.truncf %76 : vector<22x16xf32> to vector<22x16xbf16>
    %c2_57 = arith.constant 2 : index
    %c0_58 = arith.constant 0 : index
    %c0_59 = arith.constant 0 : index
    %78 = vector.load %arg8[%c2_57, %c0_58, %c0_59] : memref<3x16x32xbf16, #tpu.memory_space<vmem>>, vector<1x16x32xbf16>
    %79 = vector.shape_cast %78 : vector<1x16x32xbf16> to vector<16x32xbf16>
    %cst_60 = arith.constant dense<0.000000e+00> : vector<22x32xf32>
    %80 = tpu.matmul %77, %79, %cst_60 {dimension_numbers = #tpu.dot_dimension_numbers<[1], [0], [0], [1], [0, 0, 1, 1], [], []>} : vector<22x16xbf16>, vector<16x32xbf16>, vector<22x32xf32> -> vector<22x32xf32>
    %81 = arith.addf %73, %80 : vector<22x32xf32>
    %c0_61 = arith.constant 0 : index
    %c0_62 = arith.constant 0 : index
    %82 = vector.load %arg9[%c0_61, %c0_62] : memref<1x32xf32, #tpu.memory_space<vmem>>, vector<1x32xf32>
    %83 = vector.broadcast %82 : vector<1x32xf32> to vector<22x32xf32>
    %84 = arith.addf %81, %83 : vector<22x32xf32>
    %cst_63 = arith.constant 0.000000e+00 : f32
    %85 = vector.broadcast %cst_63 : f32 to vector<22x32xf32>
    %86 = arith.maximumf %84, %85 : vector<22x32xf32>
    %cst_64 = arith.constant dense<0.000000e+00> : vector<32xf32>
    %87 = vector.multi_reduction <add>, %86, %cst_64 [0] : vector<22x32xf32> to vector<32xf32>
    %88 = vector.shape_cast %87 : vector<32xf32> to vector<1x32xf32>
    %cst_65 = arith.constant 0.0454545468 : f32
    %89 = vector.broadcast %cst_65 : f32 to vector<1x32xf32>
    %90 = arith.mulf %88, %89 : vector<1x32xf32>
    %91 = arith.mulf %86, %86 : vector<22x32xf32>
    %cst_66 = arith.constant dense<0.000000e+00> : vector<32xf32>
    %92 = vector.multi_reduction <add>, %91, %cst_66 [0] : vector<22x32xf32> to vector<32xf32>
    %93 = vector.shape_cast %92 : vector<32xf32> to vector<1x32xf32>
    %cst_67 = arith.constant 0.0454545468 : f32
    %94 = vector.broadcast %cst_67 : f32 to vector<1x32xf32>
    %95 = arith.mulf %93, %94 : vector<1x32xf32>
    %96 = arith.mulf %90, %90 : vector<1x32xf32>
    %97 = arith.subf %95, %96 : vector<1x32xf32>
    %cst_68 = arith.constant 0.000000e+00 : f32
    %98 = vector.broadcast %cst_68 : f32 to vector<1x32xf32>
    %99 = arith.maximumf %97, %98 : vector<1x32xf32>
    %100 = vector.broadcast %90 : vector<1x32xf32> to vector<22x32xf32>
    %101 = arith.subf %86, %100 : vector<22x32xf32>
    %cst_69 = arith.constant 9.99999974E-6 : f32
    %102 = vector.broadcast %cst_69 : f32 to vector<1x32xf32>
    %103 = arith.addf %99, %102 : vector<1x32xf32>
    %104 = math.rsqrt %103 : vector<1x32xf32>
    %105 = vector.broadcast %104 : vector<1x32xf32> to vector<22x32xf32>
    %106 = arith.mulf %101, %105 : vector<22x32xf32>
    %c0_70 = arith.constant 0 : index
    %c0_71 = arith.constant 0 : index
    %107 = vector.load %arg10[%c0_70, %c0_71] : memref<1x32xf32, #tpu.memory_space<vmem>>, vector<1x32xf32>
    %108 = vector.broadcast %107 : vector<1x32xf32> to vector<22x32xf32>
    %109 = arith.mulf %106, %108 : vector<22x32xf32>
    %c0_72 = arith.constant 0 : index
    %c0_73 = arith.constant 0 : index
    %110 = vector.load %arg11[%c0_72, %c0_73] : memref<1x32xf32, #tpu.memory_space<vmem>>, vector<1x32xf32>
    %111 = vector.broadcast %110 : vector<1x32xf32> to vector<22x32xf32>
    %112 = arith.addf %109, %111 : vector<22x32xf32>
    %113 = arith.truncf %112 : vector<22x32xf32> to vector<22x32xbf16>
    %c0_74 = arith.constant 0 : index
    %c0_75 = arith.constant 0 : index
    %c0_76 = arith.constant 0 : index
    %114 = vector.load %arg12[%c0_74, %c0_75, %c0_76] : memref<3x12x22xbf16, #tpu.memory_space<vmem>>, vector<1x12x22xbf16>
    %115 = vector.shape_cast %114 : vector<1x12x22xbf16> to vector<12x22xbf16>
    %cst_77 = arith.constant dense<0.000000e+00> : vector<12x32xf32>
    %116 = tpu.matmul %115, %113, %cst_77 {dimension_numbers = #tpu.dot_dimension_numbers<[1], [0], [0], [1], [0, 0, 1, 1], [], []>} : vector<12x22xbf16>, vector<22x32xbf16>, vector<12x32xf32> -> vector<12x32xf32>
    %117 = arith.truncf %116 : vector<12x32xf32> to vector<12x32xbf16>
    %c0_78 = arith.constant 0 : index
    %c0_79 = arith.constant 0 : index
    %c0_80 = arith.constant 0 : index
    %118 = vector.load %arg13[%c0_78, %c0_79, %c0_80] : memref<3x32x64xbf16, #tpu.memory_space<vmem>>, vector<1x32x64xbf16>
    %119 = vector.shape_cast %118 : vector<1x32x64xbf16> to vector<32x64xbf16>
    %cst_81 = arith.constant dense<0.000000e+00> : vector<12x64xf32>
    %120 = tpu.matmul %117, %119, %cst_81 {dimension_numbers = #tpu.dot_dimension_numbers<[1], [0], [0], [1], [0, 0, 1, 1], [], []>} : vector<12x32xbf16>, vector<32x64xbf16>, vector<12x64xf32> -> vector<12x64xf32>
    %c1_82 = arith.constant 1 : index
    %c0_83 = arith.constant 0 : index
    %c0_84 = arith.constant 0 : index
    %121 = vector.load %arg12[%c1_82, %c0_83, %c0_84] : memref<3x12x22xbf16, #tpu.memory_space<vmem>>, vector<1x12x22xbf16>
    %122 = vector.shape_cast %121 : vector<1x12x22xbf16> to vector<12x22xbf16>
    %cst_85 = arith.constant dense<0.000000e+00> : vector<12x32xf32>
    %123 = tpu.matmul %122, %113, %cst_85 {dimension_numbers = #tpu.dot_dimension_numbers<[1], [0], [0], [1], [0, 0, 1, 1], [], []>} : vector<12x22xbf16>, vector<22x32xbf16>, vector<12x32xf32> -> vector<12x32xf32>
    %124 = arith.truncf %123 : vector<12x32xf32> to vector<12x32xbf16>
    %c1_86 = arith.constant 1 : index
    %c0_87 = arith.constant 0 : index
    %c0_88 = arith.constant 0 : index
    %125 = vector.load %arg13[%c1_86, %c0_87, %c0_88] : memref<3x32x64xbf16, #tpu.memory_space<vmem>>, vector<1x32x64xbf16>
    %126 = vector.shape_cast %125 : vector<1x32x64xbf16> to vector<32x64xbf16>
    %cst_89 = arith.constant dense<0.000000e+00> : vector<12x64xf32>
    %127 = tpu.matmul %124, %126, %cst_89 {dimension_numbers = #tpu.dot_dimension_numbers<[1], [0], [0], [1], [0, 0, 1, 1], [], []>} : vector<12x32xbf16>, vector<32x64xbf16>, vector<12x64xf32> -> vector<12x64xf32>
    %128 = arith.addf %120, %127 : vector<12x64xf32>
    %c2_90 = arith.constant 2 : index
    %c0_91 = arith.constant 0 : index
    %c0_92 = arith.constant 0 : index
    %129 = vector.load %arg12[%c2_90, %c0_91, %c0_92] : memref<3x12x22xbf16, #tpu.memory_space<vmem>>, vector<1x12x22xbf16>
    %130 = vector.shape_cast %129 : vector<1x12x22xbf16> to vector<12x22xbf16>
    %cst_93 = arith.constant dense<0.000000e+00> : vector<12x32xf32>
    %131 = tpu.matmul %130, %113, %cst_93 {dimension_numbers = #tpu.dot_dimension_numbers<[1], [0], [0], [1], [0, 0, 1, 1], [], []>} : vector<12x22xbf16>, vector<22x32xbf16>, vector<12x32xf32> -> vector<12x32xf32>
    %132 = arith.truncf %131 : vector<12x32xf32> to vector<12x32xbf16>
    %c2_94 = arith.constant 2 : index
    %c0_95 = arith.constant 0 : index
    %c0_96 = arith.constant 0 : index
    %133 = vector.load %arg13[%c2_94, %c0_95, %c0_96] : memref<3x32x64xbf16, #tpu.memory_space<vmem>>, vector<1x32x64xbf16>
    %134 = vector.shape_cast %133 : vector<1x32x64xbf16> to vector<32x64xbf16>
    %cst_97 = arith.constant dense<0.000000e+00> : vector<12x64xf32>
    %135 = tpu.matmul %132, %134, %cst_97 {dimension_numbers = #tpu.dot_dimension_numbers<[1], [0], [0], [1], [0, 0, 1, 1], [], []>} : vector<12x32xbf16>, vector<32x64xbf16>, vector<12x64xf32> -> vector<12x64xf32>
    %136 = arith.addf %128, %135 : vector<12x64xf32>
    %c0_98 = arith.constant 0 : index
    %c0_99 = arith.constant 0 : index
    %137 = vector.load %arg14[%c0_98, %c0_99] : memref<1x64xf32, #tpu.memory_space<vmem>>, vector<1x64xf32>
    %138 = vector.broadcast %137 : vector<1x64xf32> to vector<12x64xf32>
    %139 = arith.addf %136, %138 : vector<12x64xf32>
    %cst_100 = arith.constant 0.000000e+00 : f32
    %140 = vector.broadcast %cst_100 : f32 to vector<12x64xf32>
    %141 = arith.maximumf %139, %140 : vector<12x64xf32>
    %cst_101 = arith.constant dense<0.000000e+00> : vector<64xf32>
    %142 = vector.multi_reduction <add>, %141, %cst_101 [0] : vector<12x64xf32> to vector<64xf32>
    %143 = vector.shape_cast %142 : vector<64xf32> to vector<1x64xf32>
    %cst_102 = arith.constant 0.0833333358 : f32
    %144 = vector.broadcast %cst_102 : f32 to vector<1x64xf32>
    %145 = arith.mulf %143, %144 : vector<1x64xf32>
    %146 = arith.mulf %141, %141 : vector<12x64xf32>
    %cst_103 = arith.constant dense<0.000000e+00> : vector<64xf32>
    %147 = vector.multi_reduction <add>, %146, %cst_103 [0] : vector<12x64xf32> to vector<64xf32>
    %148 = vector.shape_cast %147 : vector<64xf32> to vector<1x64xf32>
    %cst_104 = arith.constant 0.0833333358 : f32
    %149 = vector.broadcast %cst_104 : f32 to vector<1x64xf32>
    %150 = arith.mulf %148, %149 : vector<1x64xf32>
    %151 = arith.mulf %145, %145 : vector<1x64xf32>
    %152 = arith.subf %150, %151 : vector<1x64xf32>
    %cst_105 = arith.constant 0.000000e+00 : f32
    %153 = vector.broadcast %cst_105 : f32 to vector<1x64xf32>
    %154 = arith.maximumf %152, %153 : vector<1x64xf32>
    %155 = vector.broadcast %145 : vector<1x64xf32> to vector<12x64xf32>
    %156 = arith.subf %141, %155 : vector<12x64xf32>
    %cst_106 = arith.constant 9.99999974E-6 : f32
    %157 = vector.broadcast %cst_106 : f32 to vector<1x64xf32>
    %158 = arith.addf %154, %157 : vector<1x64xf32>
    %159 = math.rsqrt %158 : vector<1x64xf32>
    %160 = vector.broadcast %159 : vector<1x64xf32> to vector<12x64xf32>
    %161 = arith.mulf %156, %160 : vector<12x64xf32>
    %c0_107 = arith.constant 0 : index
    %c0_108 = arith.constant 0 : index
    %162 = vector.load %arg15[%c0_107, %c0_108] : memref<1x64xf32, #tpu.memory_space<vmem>>, vector<1x64xf32>
    %163 = vector.broadcast %162 : vector<1x64xf32> to vector<12x64xf32>
    %164 = arith.mulf %161, %163 : vector<12x64xf32>
    %c0_109 = arith.constant 0 : index
    %c0_110 = arith.constant 0 : index
    %165 = vector.load %arg16[%c0_109, %c0_110] : memref<1x64xf32, #tpu.memory_space<vmem>>, vector<1x64xf32>
    %166 = vector.broadcast %165 : vector<1x64xf32> to vector<12x64xf32>
    %167 = arith.addf %164, %166 : vector<12x64xf32>
    %168 = arith.truncf %167 : vector<12x64xf32> to vector<12x64xbf16>
    %c0_111 = arith.constant 0 : index
    %c0_112 = arith.constant 0 : index
    %c0_113 = arith.constant 0 : index
    %169 = vector.load %arg17[%c0_111, %c0_112, %c0_113] : memref<3x6x12xbf16, #tpu.memory_space<vmem>>, vector<1x6x12xbf16>
    %170 = vector.shape_cast %169 : vector<1x6x12xbf16> to vector<6x12xbf16>
    %cst_114 = arith.constant dense<0.000000e+00> : vector<6x64xf32>
    %171 = tpu.matmul %170, %168, %cst_114 {dimension_numbers = #tpu.dot_dimension_numbers<[1], [0], [0], [1], [0, 0, 1, 1], [], []>} : vector<6x12xbf16>, vector<12x64xbf16>, vector<6x64xf32> -> vector<6x64xf32>
    %172 = arith.truncf %171 : vector<6x64xf32> to vector<6x64xbf16>
    %c0_115 = arith.constant 0 : index
    %c0_116 = arith.constant 0 : index
    %c0_117 = arith.constant 0 : index
    %173 = vector.load %arg18[%c0_115, %c0_116, %c0_117] : memref<3x64x128xbf16, #tpu.memory_space<vmem>>, vector<1x64x128xbf16>
    %174 = vector.shape_cast %173 : vector<1x64x128xbf16> to vector<64x128xbf16>
    %cst_118 = arith.constant dense<0.000000e+00> : vector<6x128xf32>
    %175 = tpu.matmul %172, %174, %cst_118 {dimension_numbers = #tpu.dot_dimension_numbers<[1], [0], [0], [1], [0, 0, 1, 1], [], []>} : vector<6x64xbf16>, vector<64x128xbf16>, vector<6x128xf32> -> vector<6x128xf32>
    %c1_119 = arith.constant 1 : index
    %c0_120 = arith.constant 0 : index
    %c0_121 = arith.constant 0 : index
    %176 = vector.load %arg17[%c1_119, %c0_120, %c0_121] : memref<3x6x12xbf16, #tpu.memory_space<vmem>>, vector<1x6x12xbf16>
    %177 = vector.shape_cast %176 : vector<1x6x12xbf16> to vector<6x12xbf16>
    %cst_122 = arith.constant dense<0.000000e+00> : vector<6x64xf32>
    %178 = tpu.matmul %177, %168, %cst_122 {dimension_numbers = #tpu.dot_dimension_numbers<[1], [0], [0], [1], [0, 0, 1, 1], [], []>} : vector<6x12xbf16>, vector<12x64xbf16>, vector<6x64xf32> -> vector<6x64xf32>
    %179 = arith.truncf %178 : vector<6x64xf32> to vector<6x64xbf16>
    %c1_123 = arith.constant 1 : index
    %c0_124 = arith.constant 0 : index
    %c0_125 = arith.constant 0 : index
    %180 = vector.load %arg18[%c1_123, %c0_124, %c0_125] : memref<3x64x128xbf16, #tpu.memory_space<vmem>>, vector<1x64x128xbf16>
    %181 = vector.shape_cast %180 : vector<1x64x128xbf16> to vector<64x128xbf16>
    %cst_126 = arith.constant dense<0.000000e+00> : vector<6x128xf32>
    %182 = tpu.matmul %179, %181, %cst_126 {dimension_numbers = #tpu.dot_dimension_numbers<[1], [0], [0], [1], [0, 0, 1, 1], [], []>} : vector<6x64xbf16>, vector<64x128xbf16>, vector<6x128xf32> -> vector<6x128xf32>
    %183 = arith.addf %175, %182 : vector<6x128xf32>
    %c2_127 = arith.constant 2 : index
    %c0_128 = arith.constant 0 : index
    %c0_129 = arith.constant 0 : index
    %184 = vector.load %arg17[%c2_127, %c0_128, %c0_129] : memref<3x6x12xbf16, #tpu.memory_space<vmem>>, vector<1x6x12xbf16>
    %185 = vector.shape_cast %184 : vector<1x6x12xbf16> to vector<6x12xbf16>
    %cst_130 = arith.constant dense<0.000000e+00> : vector<6x64xf32>
    %186 = tpu.matmul %185, %168, %cst_130 {dimension_numbers = #tpu.dot_dimension_numbers<[1], [0], [0], [1], [0, 0, 1, 1], [], []>} : vector<6x12xbf16>, vector<12x64xbf16>, vector<6x64xf32> -> vector<6x64xf32>
    %187 = arith.truncf %186 : vector<6x64xf32> to vector<6x64xbf16>
    %c2_131 = arith.constant 2 : index
    %c0_132 = arith.constant 0 : index
    %c0_133 = arith.constant 0 : index
    %188 = vector.load %arg18[%c2_131, %c0_132, %c0_133] : memref<3x64x128xbf16, #tpu.memory_space<vmem>>, vector<1x64x128xbf16>
    %189 = vector.shape_cast %188 : vector<1x64x128xbf16> to vector<64x128xbf16>
    %cst_134 = arith.constant dense<0.000000e+00> : vector<6x128xf32>
    %190 = tpu.matmul %187, %189, %cst_134 {dimension_numbers = #tpu.dot_dimension_numbers<[1], [0], [0], [1], [0, 0, 1, 1], [], []>} : vector<6x64xbf16>, vector<64x128xbf16>, vector<6x128xf32> -> vector<6x128xf32>
    %191 = arith.addf %183, %190 : vector<6x128xf32>
    %c0_135 = arith.constant 0 : index
    %c0_136 = arith.constant 0 : index
    %192 = vector.load %arg19[%c0_135, %c0_136] : memref<1x128xf32, #tpu.memory_space<vmem>>, vector<1x128xf32>
    %193 = vector.broadcast %192 : vector<1x128xf32> to vector<6x128xf32>
    %194 = arith.addf %191, %193 : vector<6x128xf32>
    %cst_137 = arith.constant 0.000000e+00 : f32
    %195 = vector.broadcast %cst_137 : f32 to vector<6x128xf32>
    %196 = arith.maximumf %194, %195 : vector<6x128xf32>
    %cst_138 = arith.constant dense<0.000000e+00> : vector<128xf32>
    %197 = vector.multi_reduction <add>, %196, %cst_138 [0] : vector<6x128xf32> to vector<128xf32>
    %198 = vector.shape_cast %197 : vector<128xf32> to vector<1x128xf32>
    %cst_139 = arith.constant 0.166666672 : f32
    %199 = vector.broadcast %cst_139 : f32 to vector<1x128xf32>
    %200 = arith.mulf %198, %199 : vector<1x128xf32>
    %201 = arith.mulf %196, %196 : vector<6x128xf32>
    %cst_140 = arith.constant dense<0.000000e+00> : vector<128xf32>
    %202 = vector.multi_reduction <add>, %201, %cst_140 [0] : vector<6x128xf32> to vector<128xf32>
    %203 = vector.shape_cast %202 : vector<128xf32> to vector<1x128xf32>
    %cst_141 = arith.constant 0.166666672 : f32
    %204 = vector.broadcast %cst_141 : f32 to vector<1x128xf32>
    %205 = arith.mulf %203, %204 : vector<1x128xf32>
    %206 = arith.mulf %200, %200 : vector<1x128xf32>
    %207 = arith.subf %205, %206 : vector<1x128xf32>
    %cst_142 = arith.constant 0.000000e+00 : f32
    %208 = vector.broadcast %cst_142 : f32 to vector<1x128xf32>
    %209 = arith.maximumf %207, %208 : vector<1x128xf32>
    %210 = vector.broadcast %200 : vector<1x128xf32> to vector<6x128xf32>
    %211 = arith.subf %196, %210 : vector<6x128xf32>
    %cst_143 = arith.constant 9.99999974E-6 : f32
    %212 = vector.broadcast %cst_143 : f32 to vector<1x128xf32>
    %213 = arith.addf %209, %212 : vector<1x128xf32>
    %214 = math.rsqrt %213 : vector<1x128xf32>
    %215 = vector.broadcast %214 : vector<1x128xf32> to vector<6x128xf32>
    %216 = arith.mulf %211, %215 : vector<6x128xf32>
    %c0_144 = arith.constant 0 : index
    %c0_145 = arith.constant 0 : index
    %217 = vector.load %arg20[%c0_144, %c0_145] : memref<1x128xf32, #tpu.memory_space<vmem>>, vector<1x128xf32>
    %218 = vector.broadcast %217 : vector<1x128xf32> to vector<6x128xf32>
    %219 = arith.mulf %216, %218 : vector<6x128xf32>
    %c0_146 = arith.constant 0 : index
    %c0_147 = arith.constant 0 : index
    %220 = vector.load %arg21[%c0_146, %c0_147] : memref<1x128xf32, #tpu.memory_space<vmem>>, vector<1x128xf32>
    %221 = vector.broadcast %220 : vector<1x128xf32> to vector<6x128xf32>
    %222 = arith.addf %219, %221 : vector<6x128xf32>
    %223 = arith.truncf %222 : vector<6x128xf32> to vector<6x128xbf16>
    %c0_148 = arith.constant 0 : index
    %c0_149 = arith.constant 0 : index
    %c0_150 = arith.constant 0 : index
    %224 = vector.load %arg22[%c0_148, %c0_149, %c0_150] : memref<3x4x6xbf16, #tpu.memory_space<vmem>>, vector<1x4x6xbf16>
    %225 = vector.shape_cast %224 : vector<1x4x6xbf16> to vector<4x6xbf16>
    %cst_151 = arith.constant dense<0.000000e+00> : vector<4x128xf32>
    %226 = tpu.matmul %225, %223, %cst_151 {dimension_numbers = #tpu.dot_dimension_numbers<[1], [0], [0], [1], [0, 0, 1, 1], [], []>} : vector<4x6xbf16>, vector<6x128xbf16>, vector<4x128xf32> -> vector<4x128xf32>
    %227 = arith.truncf %226 : vector<4x128xf32> to vector<4x128xbf16>
    %c0_152 = arith.constant 0 : index
    %c0_153 = arith.constant 0 : index
    %c0_154 = arith.constant 0 : index
    %228 = vector.load %arg23[%c0_152, %c0_153, %c0_154] : memref<3x128x256xbf16, #tpu.memory_space<vmem>>, vector<1x128x256xbf16>
    %229 = vector.shape_cast %228 : vector<1x128x256xbf16> to vector<128x256xbf16>
    %cst_155 = arith.constant dense<0.000000e+00> : vector<4x256xf32>
    %230 = tpu.matmul %227, %229, %cst_155 {dimension_numbers = #tpu.dot_dimension_numbers<[1], [0], [0], [1], [0, 0, 1, 1], [], []>} : vector<4x128xbf16>, vector<128x256xbf16>, vector<4x256xf32> -> vector<4x256xf32>
    %c1_156 = arith.constant 1 : index
    %c0_157 = arith.constant 0 : index
    %c0_158 = arith.constant 0 : index
    %231 = vector.load %arg22[%c1_156, %c0_157, %c0_158] : memref<3x4x6xbf16, #tpu.memory_space<vmem>>, vector<1x4x6xbf16>
    %232 = vector.shape_cast %231 : vector<1x4x6xbf16> to vector<4x6xbf16>
    %cst_159 = arith.constant dense<0.000000e+00> : vector<4x128xf32>
    %233 = tpu.matmul %232, %223, %cst_159 {dimension_numbers = #tpu.dot_dimension_numbers<[1], [0], [0], [1], [0, 0, 1, 1], [], []>} : vector<4x6xbf16>, vector<6x128xbf16>, vector<4x128xf32> -> vector<4x128xf32>
    %234 = arith.truncf %233 : vector<4x128xf32> to vector<4x128xbf16>
    %c1_160 = arith.constant 1 : index
    %c0_161 = arith.constant 0 : index
    %c0_162 = arith.constant 0 : index
    %235 = vector.load %arg23[%c1_160, %c0_161, %c0_162] : memref<3x128x256xbf16, #tpu.memory_space<vmem>>, vector<1x128x256xbf16>
    %236 = vector.shape_cast %235 : vector<1x128x256xbf16> to vector<128x256xbf16>
    %cst_163 = arith.constant dense<0.000000e+00> : vector<4x256xf32>
    %237 = tpu.matmul %234, %236, %cst_163 {dimension_numbers = #tpu.dot_dimension_numbers<[1], [0], [0], [1], [0, 0, 1, 1], [], []>} : vector<4x128xbf16>, vector<128x256xbf16>, vector<4x256xf32> -> vector<4x256xf32>
    %238 = arith.addf %230, %237 : vector<4x256xf32>
    %c2_164 = arith.constant 2 : index
    %c0_165 = arith.constant 0 : index
    %c0_166 = arith.constant 0 : index
    %239 = vector.load %arg22[%c2_164, %c0_165, %c0_166] : memref<3x4x6xbf16, #tpu.memory_space<vmem>>, vector<1x4x6xbf16>
    %240 = vector.shape_cast %239 : vector<1x4x6xbf16> to vector<4x6xbf16>
    %cst_167 = arith.constant dense<0.000000e+00> : vector<4x128xf32>
    %241 = tpu.matmul %240, %223, %cst_167 {dimension_numbers = #tpu.dot_dimension_numbers<[1], [0], [0], [1], [0, 0, 1, 1], [], []>} : vector<4x6xbf16>, vector<6x128xbf16>, vector<4x128xf32> -> vector<4x128xf32>
    %242 = arith.truncf %241 : vector<4x128xf32> to vector<4x128xbf16>
    %c2_168 = arith.constant 2 : index
    %c0_169 = arith.constant 0 : index
    %c0_170 = arith.constant 0 : index
    %243 = vector.load %arg23[%c2_168, %c0_169, %c0_170] : memref<3x128x256xbf16, #tpu.memory_space<vmem>>, vector<1x128x256xbf16>
    %244 = vector.shape_cast %243 : vector<1x128x256xbf16> to vector<128x256xbf16>
    %cst_171 = arith.constant dense<0.000000e+00> : vector<4x256xf32>
    %245 = tpu.matmul %242, %244, %cst_171 {dimension_numbers = #tpu.dot_dimension_numbers<[1], [0], [0], [1], [0, 0, 1, 1], [], []>} : vector<4x128xbf16>, vector<128x256xbf16>, vector<4x256xf32> -> vector<4x256xf32>
    %246 = arith.addf %238, %245 : vector<4x256xf32>
    %c0_172 = arith.constant 0 : index
    %c0_173 = arith.constant 0 : index
    %247 = vector.load %arg24[%c0_172, %c0_173] : memref<1x256xf32, #tpu.memory_space<vmem>>, vector<1x256xf32>
    %248 = vector.broadcast %247 : vector<1x256xf32> to vector<4x256xf32>
    %249 = arith.addf %246, %248 : vector<4x256xf32>
    %cst_174 = arith.constant 0.000000e+00 : f32
    %250 = vector.broadcast %cst_174 : f32 to vector<4x256xf32>
    %251 = arith.maximumf %249, %250 : vector<4x256xf32>
    %cst_175 = arith.constant dense<0.000000e+00> : vector<256xf32>
    %252 = vector.multi_reduction <add>, %251, %cst_175 [0] : vector<4x256xf32> to vector<256xf32>
    %253 = vector.shape_cast %252 : vector<256xf32> to vector<1x256xf32>
    %cst_176 = arith.constant 2.500000e-01 : f32
    %254 = vector.broadcast %cst_176 : f32 to vector<1x256xf32>
    %255 = arith.mulf %253, %254 : vector<1x256xf32>
    %256 = arith.mulf %251, %251 : vector<4x256xf32>
    %cst_177 = arith.constant dense<0.000000e+00> : vector<256xf32>
    %257 = vector.multi_reduction <add>, %256, %cst_177 [0] : vector<4x256xf32> to vector<256xf32>
    %258 = vector.shape_cast %257 : vector<256xf32> to vector<1x256xf32>
    %cst_178 = arith.constant 2.500000e-01 : f32
    %259 = vector.broadcast %cst_178 : f32 to vector<1x256xf32>
    %260 = arith.mulf %258, %259 : vector<1x256xf32>
    %261 = arith.mulf %255, %255 : vector<1x256xf32>
    %262 = arith.subf %260, %261 : vector<1x256xf32>
    %cst_179 = arith.constant 0.000000e+00 : f32
    %263 = vector.broadcast %cst_179 : f32 to vector<1x256xf32>
    %264 = arith.maximumf %262, %263 : vector<1x256xf32>
    %265 = vector.broadcast %255 : vector<1x256xf32> to vector<4x256xf32>
    %266 = arith.subf %251, %265 : vector<4x256xf32>
    %cst_180 = arith.constant 9.99999974E-6 : f32
    %267 = vector.broadcast %cst_180 : f32 to vector<1x256xf32>
    %268 = arith.addf %264, %267 : vector<1x256xf32>
    %269 = math.rsqrt %268 : vector<1x256xf32>
    %270 = vector.broadcast %269 : vector<1x256xf32> to vector<4x256xf32>
    %271 = arith.mulf %266, %270 : vector<4x256xf32>
    %c0_181 = arith.constant 0 : index
    %c0_182 = arith.constant 0 : index
    %272 = vector.load %arg25[%c0_181, %c0_182] : memref<1x256xf32, #tpu.memory_space<vmem>>, vector<1x256xf32>
    %273 = vector.broadcast %272 : vector<1x256xf32> to vector<4x256xf32>
    %274 = arith.mulf %271, %273 : vector<4x256xf32>
    %c0_183 = arith.constant 0 : index
    %c0_184 = arith.constant 0 : index
    %275 = vector.load %arg26[%c0_183, %c0_184] : memref<1x256xf32, #tpu.memory_space<vmem>>, vector<1x256xf32>
    %276 = vector.broadcast %275 : vector<1x256xf32> to vector<4x256xf32>
    %277 = arith.addf %274, %276 : vector<4x256xf32>
    %278 = arith.truncf %277 : vector<4x256xf32> to vector<4x256xbf16>
    %c0_185 = arith.constant 0 : index
    %c0_186 = arith.constant 0 : index
    %c0_187 = arith.constant 0 : index
    %279 = vector.load %arg27[%c0_185, %c0_186, %c0_187] : memref<3x6x4xbf16, #tpu.memory_space<vmem>>, vector<1x6x4xbf16>
    %280 = vector.shape_cast %279 : vector<1x6x4xbf16> to vector<6x4xbf16>
    %cst_188 = arith.constant dense<0.000000e+00> : vector<6x256xf32>
    %281 = tpu.matmul %280, %278, %cst_188 {dimension_numbers = #tpu.dot_dimension_numbers<[1], [0], [0], [1], [0, 0, 1, 1], [], []>} : vector<6x4xbf16>, vector<4x256xbf16>, vector<6x256xf32> -> vector<6x256xf32>
    %282 = arith.truncf %281 : vector<6x256xf32> to vector<6x256xbf16>
    %c0_189 = arith.constant 0 : index
    %c0_190 = arith.constant 0 : index
    %c0_191 = arith.constant 0 : index
    %283 = vector.load %arg28[%c0_189, %c0_190, %c0_191] : memref<3x256x128xbf16, #tpu.memory_space<vmem>>, vector<1x256x128xbf16>
    %284 = vector.shape_cast %283 : vector<1x256x128xbf16> to vector<256x128xbf16>
    %cst_192 = arith.constant dense<0.000000e+00> : vector<6x128xf32>
    %285 = tpu.matmul %282, %284, %cst_192 {dimension_numbers = #tpu.dot_dimension_numbers<[1], [0], [0], [1], [0, 0, 1, 1], [], []>} : vector<6x256xbf16>, vector<256x128xbf16>, vector<6x128xf32> -> vector<6x128xf32>
    %c1_193 = arith.constant 1 : index
    %c0_194 = arith.constant 0 : index
    %c0_195 = arith.constant 0 : index
    %286 = vector.load %arg27[%c1_193, %c0_194, %c0_195] : memref<3x6x4xbf16, #tpu.memory_space<vmem>>, vector<1x6x4xbf16>
    %287 = vector.shape_cast %286 : vector<1x6x4xbf16> to vector<6x4xbf16>
    %cst_196 = arith.constant dense<0.000000e+00> : vector<6x256xf32>
    %288 = tpu.matmul %287, %278, %cst_196 {dimension_numbers = #tpu.dot_dimension_numbers<[1], [0], [0], [1], [0, 0, 1, 1], [], []>} : vector<6x4xbf16>, vector<4x256xbf16>, vector<6x256xf32> -> vector<6x256xf32>
    %289 = arith.truncf %288 : vector<6x256xf32> to vector<6x256xbf16>
    %c1_197 = arith.constant 1 : index
    %c0_198 = arith.constant 0 : index
    %c0_199 = arith.constant 0 : index
    %290 = vector.load %arg28[%c1_197, %c0_198, %c0_199] : memref<3x256x128xbf16, #tpu.memory_space<vmem>>, vector<1x256x128xbf16>
    %291 = vector.shape_cast %290 : vector<1x256x128xbf16> to vector<256x128xbf16>
    %cst_200 = arith.constant dense<0.000000e+00> : vector<6x128xf32>
    %292 = tpu.matmul %289, %291, %cst_200 {dimension_numbers = #tpu.dot_dimension_numbers<[1], [0], [0], [1], [0, 0, 1, 1], [], []>} : vector<6x256xbf16>, vector<256x128xbf16>, vector<6x128xf32> -> vector<6x128xf32>
    %293 = arith.addf %285, %292 : vector<6x128xf32>
    %c2_201 = arith.constant 2 : index
    %c0_202 = arith.constant 0 : index
    %c0_203 = arith.constant 0 : index
    %294 = vector.load %arg27[%c2_201, %c0_202, %c0_203] : memref<3x6x4xbf16, #tpu.memory_space<vmem>>, vector<1x6x4xbf16>
    %295 = vector.shape_cast %294 : vector<1x6x4xbf16> to vector<6x4xbf16>
    %cst_204 = arith.constant dense<0.000000e+00> : vector<6x256xf32>
    %296 = tpu.matmul %295, %278, %cst_204 {dimension_numbers = #tpu.dot_dimension_numbers<[1], [0], [0], [1], [0, 0, 1, 1], [], []>} : vector<6x4xbf16>, vector<4x256xbf16>, vector<6x256xf32> -> vector<6x256xf32>
    %297 = arith.truncf %296 : vector<6x256xf32> to vector<6x256xbf16>
    %c2_205 = arith.constant 2 : index
    %c0_206 = arith.constant 0 : index
    %c0_207 = arith.constant 0 : index
    %298 = vector.load %arg28[%c2_205, %c0_206, %c0_207] : memref<3x256x128xbf16, #tpu.memory_space<vmem>>, vector<1x256x128xbf16>
    %299 = vector.shape_cast %298 : vector<1x256x128xbf16> to vector<256x128xbf16>
    %cst_208 = arith.constant dense<0.000000e+00> : vector<6x128xf32>
    %300 = tpu.matmul %297, %299, %cst_208 {dimension_numbers = #tpu.dot_dimension_numbers<[1], [0], [0], [1], [0, 0, 1, 1], [], []>} : vector<6x256xbf16>, vector<256x128xbf16>, vector<6x128xf32> -> vector<6x128xf32>
    %301 = arith.addf %293, %300 : vector<6x128xf32>
    %c0_209 = arith.constant 0 : index
    %c0_210 = arith.constant 0 : index
    %302 = vector.load %arg29[%c0_209, %c0_210] : memref<1x128xf32, #tpu.memory_space<vmem>>, vector<1x128xf32>
    %303 = vector.broadcast %302 : vector<1x128xf32> to vector<6x128xf32>
    %304 = arith.addf %301, %303 : vector<6x128xf32>
    %cst_211 = arith.constant 0.000000e+00 : f32
    %305 = vector.broadcast %cst_211 : f32 to vector<6x128xf32>
    %306 = arith.maximumf %304, %305 : vector<6x128xf32>
    %cst_212 = arith.constant dense<0.000000e+00> : vector<128xf32>
    %307 = vector.multi_reduction <add>, %306, %cst_212 [0] : vector<6x128xf32> to vector<128xf32>
    %308 = vector.shape_cast %307 : vector<128xf32> to vector<1x128xf32>
    %cst_213 = arith.constant 0.166666672 : f32
    %309 = vector.broadcast %cst_213 : f32 to vector<1x128xf32>
    %310 = arith.mulf %308, %309 : vector<1x128xf32>
    %311 = arith.mulf %306, %306 : vector<6x128xf32>
    %cst_214 = arith.constant dense<0.000000e+00> : vector<128xf32>
    %312 = vector.multi_reduction <add>, %311, %cst_214 [0] : vector<6x128xf32> to vector<128xf32>
    %313 = vector.shape_cast %312 : vector<128xf32> to vector<1x128xf32>
    %cst_215 = arith.constant 0.166666672 : f32
    %314 = vector.broadcast %cst_215 : f32 to vector<1x128xf32>
    %315 = arith.mulf %313, %314 : vector<1x128xf32>
    %316 = arith.mulf %310, %310 : vector<1x128xf32>
    %317 = arith.subf %315, %316 : vector<1x128xf32>
    %cst_216 = arith.constant 0.000000e+00 : f32
    %318 = vector.broadcast %cst_216 : f32 to vector<1x128xf32>
    %319 = arith.maximumf %317, %318 : vector<1x128xf32>
    %320 = vector.broadcast %310 : vector<1x128xf32> to vector<6x128xf32>
    %321 = arith.subf %306, %320 : vector<6x128xf32>
    %cst_217 = arith.constant 9.99999974E-6 : f32
    %322 = vector.broadcast %cst_217 : f32 to vector<1x128xf32>
    %323 = arith.addf %319, %322 : vector<1x128xf32>
    %324 = math.rsqrt %323 : vector<1x128xf32>
    %325 = vector.broadcast %324 : vector<1x128xf32> to vector<6x128xf32>
    %326 = arith.mulf %321, %325 : vector<6x128xf32>
    %c0_218 = arith.constant 0 : index
    %c0_219 = arith.constant 0 : index
    %327 = vector.load %arg30[%c0_218, %c0_219] : memref<1x128xf32, #tpu.memory_space<vmem>>, vector<1x128xf32>
    %328 = vector.broadcast %327 : vector<1x128xf32> to vector<6x128xf32>
    %329 = arith.mulf %326, %328 : vector<6x128xf32>
    %c0_220 = arith.constant 0 : index
    %c0_221 = arith.constant 0 : index
    %330 = vector.load %arg31[%c0_220, %c0_221] : memref<1x128xf32, #tpu.memory_space<vmem>>, vector<1x128xf32>
    %331 = vector.broadcast %330 : vector<1x128xf32> to vector<6x128xf32>
    %332 = arith.addf %329, %331 : vector<6x128xf32>
    %333 = arith.truncf %332 : vector<6x128xf32> to vector<6x128xbf16>
    %334 = arith.addf %333, %223 : vector<6x128xbf16>
    %c0_222 = arith.constant 0 : index
    %c0_223 = arith.constant 0 : index
    %c0_224 = arith.constant 0 : index
    %335 = vector.load %arg32[%c0_222, %c0_223, %c0_224] : memref<4x12x6xbf16, #tpu.memory_space<vmem>>, vector<1x12x6xbf16>
    %336 = vector.shape_cast %335 : vector<1x12x6xbf16> to vector<12x6xbf16>
    %cst_225 = arith.constant dense<0.000000e+00> : vector<12x128xf32>
    %337 = tpu.matmul %336, %334, %cst_225 {dimension_numbers = #tpu.dot_dimension_numbers<[1], [0], [0], [1], [0, 0, 1, 1], [], []>} : vector<12x6xbf16>, vector<6x128xbf16>, vector<12x128xf32> -> vector<12x128xf32>
    %338 = arith.truncf %337 : vector<12x128xf32> to vector<12x128xbf16>
    %c0_226 = arith.constant 0 : index
    %c0_227 = arith.constant 0 : index
    %c0_228 = arith.constant 0 : index
    %339 = vector.load %arg33[%c0_226, %c0_227, %c0_228] : memref<4x128x64xbf16, #tpu.memory_space<vmem>>, vector<1x128x64xbf16>
    %340 = vector.shape_cast %339 : vector<1x128x64xbf16> to vector<128x64xbf16>
    %cst_229 = arith.constant dense<0.000000e+00> : vector<12x64xf32>
    %341 = tpu.matmul %338, %340, %cst_229 {dimension_numbers = #tpu.dot_dimension_numbers<[1], [0], [0], [1], [0, 0, 1, 1], [], []>} : vector<12x128xbf16>, vector<128x64xbf16>, vector<12x64xf32> -> vector<12x64xf32>
    %c1_230 = arith.constant 1 : index
    %c0_231 = arith.constant 0 : index
    %c0_232 = arith.constant 0 : index
    %342 = vector.load %arg32[%c1_230, %c0_231, %c0_232] : memref<4x12x6xbf16, #tpu.memory_space<vmem>>, vector<1x12x6xbf16>
    %343 = vector.shape_cast %342 : vector<1x12x6xbf16> to vector<12x6xbf16>
    %cst_233 = arith.constant dense<0.000000e+00> : vector<12x128xf32>
    %344 = tpu.matmul %343, %334, %cst_233 {dimension_numbers = #tpu.dot_dimension_numbers<[1], [0], [0], [1], [0, 0, 1, 1], [], []>} : vector<12x6xbf16>, vector<6x128xbf16>, vector<12x128xf32> -> vector<12x128xf32>
    %345 = arith.truncf %344 : vector<12x128xf32> to vector<12x128xbf16>
    %c1_234 = arith.constant 1 : index
    %c0_235 = arith.constant 0 : index
    %c0_236 = arith.constant 0 : index
    %346 = vector.load %arg33[%c1_234, %c0_235, %c0_236] : memref<4x128x64xbf16, #tpu.memory_space<vmem>>, vector<1x128x64xbf16>
    %347 = vector.shape_cast %346 : vector<1x128x64xbf16> to vector<128x64xbf16>
    %cst_237 = arith.constant dense<0.000000e+00> : vector<12x64xf32>
    %348 = tpu.matmul %345, %347, %cst_237 {dimension_numbers = #tpu.dot_dimension_numbers<[1], [0], [0], [1], [0, 0, 1, 1], [], []>} : vector<12x128xbf16>, vector<128x64xbf16>, vector<12x64xf32> -> vector<12x64xf32>
    %349 = arith.addf %341, %348 : vector<12x64xf32>
    %c2_238 = arith.constant 2 : index
    %c0_239 = arith.constant 0 : index
    %c0_240 = arith.constant 0 : index
    %350 = vector.load %arg32[%c2_238, %c0_239, %c0_240] : memref<4x12x6xbf16, #tpu.memory_space<vmem>>, vector<1x12x6xbf16>
    %351 = vector.shape_cast %350 : vector<1x12x6xbf16> to vector<12x6xbf16>
    %cst_241 = arith.constant dense<0.000000e+00> : vector<12x128xf32>
    %352 = tpu.matmul %351, %334, %cst_241 {dimension_numbers = #tpu.dot_dimension_numbers<[1], [0], [0], [1], [0, 0, 1, 1], [], []>} : vector<12x6xbf16>, vector<6x128xbf16>, vector<12x128xf32> -> vector<12x128xf32>
    %353 = arith.truncf %352 : vector<12x128xf32> to vector<12x128xbf16>
    %c2_242 = arith.constant 2 : index
    %c0_243 = arith.constant 0 : index
    %c0_244 = arith.constant 0 : index
    %354 = vector.load %arg33[%c2_242, %c0_243, %c0_244] : memref<4x128x64xbf16, #tpu.memory_space<vmem>>, vector<1x128x64xbf16>
    %355 = vector.shape_cast %354 : vector<1x128x64xbf16> to vector<128x64xbf16>
    %cst_245 = arith.constant dense<0.000000e+00> : vector<12x64xf32>
    %356 = tpu.matmul %353, %355, %cst_245 {dimension_numbers = #tpu.dot_dimension_numbers<[1], [0], [0], [1], [0, 0, 1, 1], [], []>} : vector<12x128xbf16>, vector<128x64xbf16>, vector<12x64xf32> -> vector<12x64xf32>
    %357 = arith.addf %349, %356 : vector<12x64xf32>
    %c3 = arith.constant 3 : index
    %c0_246 = arith.constant 0 : index
    %c0_247 = arith.constant 0 : index
    %358 = vector.load %arg32[%c3, %c0_246, %c0_247] : memref<4x12x6xbf16, #tpu.memory_space<vmem>>, vector<1x12x6xbf16>
    %359 = vector.shape_cast %358 : vector<1x12x6xbf16> to vector<12x6xbf16>
    %cst_248 = arith.constant dense<0.000000e+00> : vector<12x128xf32>
    %360 = tpu.matmul %359, %334, %cst_248 {dimension_numbers = #tpu.dot_dimension_numbers<[1], [0], [0], [1], [0, 0, 1, 1], [], []>} : vector<12x6xbf16>, vector<6x128xbf16>, vector<12x128xf32> -> vector<12x128xf32>
    %361 = arith.truncf %360 : vector<12x128xf32> to vector<12x128xbf16>
    %c3_249 = arith.constant 3 : index
    %c0_250 = arith.constant 0 : index
    %c0_251 = arith.constant 0 : index
    %362 = vector.load %arg33[%c3_249, %c0_250, %c0_251] : memref<4x128x64xbf16, #tpu.memory_space<vmem>>, vector<1x128x64xbf16>
    %363 = vector.shape_cast %362 : vector<1x128x64xbf16> to vector<128x64xbf16>
    %cst_252 = arith.constant dense<0.000000e+00> : vector<12x64xf32>
    %364 = tpu.matmul %361, %363, %cst_252 {dimension_numbers = #tpu.dot_dimension_numbers<[1], [0], [0], [1], [0, 0, 1, 1], [], []>} : vector<12x128xbf16>, vector<128x64xbf16>, vector<12x64xf32> -> vector<12x64xf32>
    %365 = arith.addf %357, %364 : vector<12x64xf32>
    %c0_253 = arith.constant 0 : index
    %c0_254 = arith.constant 0 : index
    %366 = vector.load %arg34[%c0_253, %c0_254] : memref<1x64xf32, #tpu.memory_space<vmem>>, vector<1x64xf32>
    %367 = vector.broadcast %366 : vector<1x64xf32> to vector<12x64xf32>
    %368 = arith.addf %365, %367 : vector<12x64xf32>
    %cst_255 = arith.constant 0.000000e+00 : f32
    %369 = vector.broadcast %cst_255 : f32 to vector<12x64xf32>
    %370 = arith.maximumf %368, %369 : vector<12x64xf32>
    %cst_256 = arith.constant dense<0.000000e+00> : vector<64xf32>
    %371 = vector.multi_reduction <add>, %370, %cst_256 [0] : vector<12x64xf32> to vector<64xf32>
    %372 = vector.shape_cast %371 : vector<64xf32> to vector<1x64xf32>
    %cst_257 = arith.constant 0.0833333358 : f32
    %373 = vector.broadcast %cst_257 : f32 to vector<1x64xf32>
    %374 = arith.mulf %372, %373 : vector<1x64xf32>
    %375 = arith.mulf %370, %370 : vector<12x64xf32>
    %cst_258 = arith.constant dense<0.000000e+00> : vector<64xf32>
    %376 = vector.multi_reduction <add>, %375, %cst_258 [0] : vector<12x64xf32> to vector<64xf32>
    %377 = vector.shape_cast %376 : vector<64xf32> to vector<1x64xf32>
    %cst_259 = arith.constant 0.0833333358 : f32
    %378 = vector.broadcast %cst_259 : f32 to vector<1x64xf32>
    %379 = arith.mulf %377, %378 : vector<1x64xf32>
    %380 = arith.mulf %374, %374 : vector<1x64xf32>
    %381 = arith.subf %379, %380 : vector<1x64xf32>
    %cst_260 = arith.constant 0.000000e+00 : f32
    %382 = vector.broadcast %cst_260 : f32 to vector<1x64xf32>
    %383 = arith.maximumf %381, %382 : vector<1x64xf32>
    %384 = vector.broadcast %374 : vector<1x64xf32> to vector<12x64xf32>
    %385 = arith.subf %370, %384 : vector<12x64xf32>
    %cst_261 = arith.constant 9.99999974E-6 : f32
    %386 = vector.broadcast %cst_261 : f32 to vector<1x64xf32>
    %387 = arith.addf %383, %386 : vector<1x64xf32>
    %388 = math.rsqrt %387 : vector<1x64xf32>
    %389 = vector.broadcast %388 : vector<1x64xf32> to vector<12x64xf32>
    %390 = arith.mulf %385, %389 : vector<12x64xf32>
    %c0_262 = arith.constant 0 : index
    %c0_263 = arith.constant 0 : index
    %391 = vector.load %arg35[%c0_262, %c0_263] : memref<1x64xf32, #tpu.memory_space<vmem>>, vector<1x64xf32>
    %392 = vector.broadcast %391 : vector<1x64xf32> to vector<12x64xf32>
    %393 = arith.mulf %390, %392 : vector<12x64xf32>
    %c0_264 = arith.constant 0 : index
    %c0_265 = arith.constant 0 : index
    %394 = vector.load %arg36[%c0_264, %c0_265] : memref<1x64xf32, #tpu.memory_space<vmem>>, vector<1x64xf32>
    %395 = vector.broadcast %394 : vector<1x64xf32> to vector<12x64xf32>
    %396 = arith.addf %393, %395 : vector<12x64xf32>
    %397 = arith.truncf %396 : vector<12x64xf32> to vector<12x64xbf16>
    %398 = arith.addf %397, %168 : vector<12x64xbf16>
    %c0_266 = arith.constant 0 : index
    %c0_267 = arith.constant 0 : index
    %c0_268 = arith.constant 0 : index
    %399 = vector.load %arg37[%c0_266, %c0_267, %c0_268] : memref<3x22x12xbf16, #tpu.memory_space<vmem>>, vector<1x22x12xbf16>
    %400 = vector.shape_cast %399 : vector<1x22x12xbf16> to vector<22x12xbf16>
    %cst_269 = arith.constant dense<0.000000e+00> : vector<22x64xf32>
    %401 = tpu.matmul %400, %398, %cst_269 {dimension_numbers = #tpu.dot_dimension_numbers<[1], [0], [0], [1], [0, 0, 1, 1], [], []>} : vector<22x12xbf16>, vector<12x64xbf16>, vector<22x64xf32> -> vector<22x64xf32>
    %402 = arith.truncf %401 : vector<22x64xf32> to vector<22x64xbf16>
    %c0_270 = arith.constant 0 : index
    %c0_271 = arith.constant 0 : index
    %c0_272 = arith.constant 0 : index
    %403 = vector.load %arg38[%c0_270, %c0_271, %c0_272] : memref<3x64x32xbf16, #tpu.memory_space<vmem>>, vector<1x64x32xbf16>
    %404 = vector.shape_cast %403 : vector<1x64x32xbf16> to vector<64x32xbf16>
    %cst_273 = arith.constant dense<0.000000e+00> : vector<22x32xf32>
    %405 = tpu.matmul %402, %404, %cst_273 {dimension_numbers = #tpu.dot_dimension_numbers<[1], [0], [0], [1], [0, 0, 1, 1], [], []>} : vector<22x64xbf16>, vector<64x32xbf16>, vector<22x32xf32> -> vector<22x32xf32>
    %c1_274 = arith.constant 1 : index
    %c0_275 = arith.constant 0 : index
    %c0_276 = arith.constant 0 : index
    %406 = vector.load %arg37[%c1_274, %c0_275, %c0_276] : memref<3x22x12xbf16, #tpu.memory_space<vmem>>, vector<1x22x12xbf16>
    %407 = vector.shape_cast %406 : vector<1x22x12xbf16> to vector<22x12xbf16>
    %cst_277 = arith.constant dense<0.000000e+00> : vector<22x64xf32>
    %408 = tpu.matmul %407, %398, %cst_277 {dimension_numbers = #tpu.dot_dimension_numbers<[1], [0], [0], [1], [0, 0, 1, 1], [], []>} : vector<22x12xbf16>, vector<12x64xbf16>, vector<22x64xf32> -> vector<22x64xf32>
    %409 = arith.truncf %408 : vector<22x64xf32> to vector<22x64xbf16>
    %c1_278 = arith.constant 1 : index
    %c0_279 = arith.constant 0 : index
    %c0_280 = arith.constant 0 : index
    %410 = vector.load %arg38[%c1_278, %c0_279, %c0_280] : memref<3x64x32xbf16, #tpu.memory_space<vmem>>, vector<1x64x32xbf16>
    %411 = vector.shape_cast %410 : vector<1x64x32xbf16> to vector<64x32xbf16>
    %cst_281 = arith.constant dense<0.000000e+00> : vector<22x32xf32>
    %412 = tpu.matmul %409, %411, %cst_281 {dimension_numbers = #tpu.dot_dimension_numbers<[1], [0], [0], [1], [0, 0, 1, 1], [], []>} : vector<22x64xbf16>, vector<64x32xbf16>, vector<22x32xf32> -> vector<22x32xf32>
    %413 = arith.addf %405, %412 : vector<22x32xf32>
    %c2_282 = arith.constant 2 : index
    %c0_283 = arith.constant 0 : index
    %c0_284 = arith.constant 0 : index
    %414 = vector.load %arg37[%c2_282, %c0_283, %c0_284] : memref<3x22x12xbf16, #tpu.memory_space<vmem>>, vector<1x22x12xbf16>
    %415 = vector.shape_cast %414 : vector<1x22x12xbf16> to vector<22x12xbf16>
    %cst_285 = arith.constant dense<0.000000e+00> : vector<22x64xf32>
    %416 = tpu.matmul %415, %398, %cst_285 {dimension_numbers = #tpu.dot_dimension_numbers<[1], [0], [0], [1], [0, 0, 1, 1], [], []>} : vector<22x12xbf16>, vector<12x64xbf16>, vector<22x64xf32> -> vector<22x64xf32>
    %417 = arith.truncf %416 : vector<22x64xf32> to vector<22x64xbf16>
    %c2_286 = arith.constant 2 : index
    %c0_287 = arith.constant 0 : index
    %c0_288 = arith.constant 0 : index
    %418 = vector.load %arg38[%c2_286, %c0_287, %c0_288] : memref<3x64x32xbf16, #tpu.memory_space<vmem>>, vector<1x64x32xbf16>
    %419 = vector.shape_cast %418 : vector<1x64x32xbf16> to vector<64x32xbf16>
    %cst_289 = arith.constant dense<0.000000e+00> : vector<22x32xf32>
    %420 = tpu.matmul %417, %419, %cst_289 {dimension_numbers = #tpu.dot_dimension_numbers<[1], [0], [0], [1], [0, 0, 1, 1], [], []>} : vector<22x64xbf16>, vector<64x32xbf16>, vector<22x32xf32> -> vector<22x32xf32>
    %421 = arith.addf %413, %420 : vector<22x32xf32>
    %c0_290 = arith.constant 0 : index
    %c0_291 = arith.constant 0 : index
    %422 = vector.load %arg39[%c0_290, %c0_291] : memref<1x32xf32, #tpu.memory_space<vmem>>, vector<1x32xf32>
    %423 = vector.broadcast %422 : vector<1x32xf32> to vector<22x32xf32>
    %424 = arith.addf %421, %423 : vector<22x32xf32>
    %cst_292 = arith.constant 0.000000e+00 : f32
    %425 = vector.broadcast %cst_292 : f32 to vector<22x32xf32>
    %426 = arith.maximumf %424, %425 : vector<22x32xf32>
    %cst_293 = arith.constant dense<0.000000e+00> : vector<32xf32>
    %427 = vector.multi_reduction <add>, %426, %cst_293 [0] : vector<22x32xf32> to vector<32xf32>
    %428 = vector.shape_cast %427 : vector<32xf32> to vector<1x32xf32>
    %cst_294 = arith.constant 0.0454545468 : f32
    %429 = vector.broadcast %cst_294 : f32 to vector<1x32xf32>
    %430 = arith.mulf %428, %429 : vector<1x32xf32>
    %431 = arith.mulf %426, %426 : vector<22x32xf32>
    %cst_295 = arith.constant dense<0.000000e+00> : vector<32xf32>
    %432 = vector.multi_reduction <add>, %431, %cst_295 [0] : vector<22x32xf32> to vector<32xf32>
    %433 = vector.shape_cast %432 : vector<32xf32> to vector<1x32xf32>
    %cst_296 = arith.constant 0.0454545468 : f32
    %434 = vector.broadcast %cst_296 : f32 to vector<1x32xf32>
    %435 = arith.mulf %433, %434 : vector<1x32xf32>
    %436 = arith.mulf %430, %430 : vector<1x32xf32>
    %437 = arith.subf %435, %436 : vector<1x32xf32>
    %cst_297 = arith.constant 0.000000e+00 : f32
    %438 = vector.broadcast %cst_297 : f32 to vector<1x32xf32>
    %439 = arith.maximumf %437, %438 : vector<1x32xf32>
    %440 = vector.broadcast %430 : vector<1x32xf32> to vector<22x32xf32>
    %441 = arith.subf %426, %440 : vector<22x32xf32>
    %cst_298 = arith.constant 9.99999974E-6 : f32
    %442 = vector.broadcast %cst_298 : f32 to vector<1x32xf32>
    %443 = arith.addf %439, %442 : vector<1x32xf32>
    %444 = math.rsqrt %443 : vector<1x32xf32>
    %445 = vector.broadcast %444 : vector<1x32xf32> to vector<22x32xf32>
    %446 = arith.mulf %441, %445 : vector<22x32xf32>
    %c0_299 = arith.constant 0 : index
    %c0_300 = arith.constant 0 : index
    %447 = vector.load %arg40[%c0_299, %c0_300] : memref<1x32xf32, #tpu.memory_space<vmem>>, vector<1x32xf32>
    %448 = vector.broadcast %447 : vector<1x32xf32> to vector<22x32xf32>
    %449 = arith.mulf %446, %448 : vector<22x32xf32>
    %c0_301 = arith.constant 0 : index
    %c0_302 = arith.constant 0 : index
    %450 = vector.load %arg41[%c0_301, %c0_302] : memref<1x32xf32, #tpu.memory_space<vmem>>, vector<1x32xf32>
    %451 = vector.broadcast %450 : vector<1x32xf32> to vector<22x32xf32>
    %452 = arith.addf %449, %451 : vector<22x32xf32>
    %453 = arith.truncf %452 : vector<22x32xf32> to vector<22x32xbf16>
    %454 = arith.addf %453, %113 : vector<22x32xbf16>
    %c0_303 = arith.constant 0 : index
    %c0_304 = arith.constant 0 : index
    %c0_305 = arith.constant 0 : index
    %455 = vector.load %arg42[%c0_303, %c0_304, %c0_305] : memref<3x42x22xbf16, #tpu.memory_space<vmem>>, vector<1x42x22xbf16>
    %456 = vector.shape_cast %455 : vector<1x42x22xbf16> to vector<42x22xbf16>
    %cst_306 = arith.constant dense<0.000000e+00> : vector<42x32xf32>
    %457 = tpu.matmul %456, %454, %cst_306 {dimension_numbers = #tpu.dot_dimension_numbers<[1], [0], [0], [1], [0, 0, 1, 1], [], []>} : vector<42x22xbf16>, vector<22x32xbf16>, vector<42x32xf32> -> vector<42x32xf32>
    %458 = arith.truncf %457 : vector<42x32xf32> to vector<42x32xbf16>
    %c0_307 = arith.constant 0 : index
    %c0_308 = arith.constant 0 : index
    %c0_309 = arith.constant 0 : index
    %459 = vector.load %arg43[%c0_307, %c0_308, %c0_309] : memref<3x32x16xbf16, #tpu.memory_space<vmem>>, vector<1x32x16xbf16>
    %460 = vector.shape_cast %459 : vector<1x32x16xbf16> to vector<32x16xbf16>
    %cst_310 = arith.constant dense<0.000000e+00> : vector<42x16xf32>
    %461 = tpu.matmul %458, %460, %cst_310 {dimension_numbers = #tpu.dot_dimension_numbers<[1], [0], [0], [1], [0, 0, 1, 1], [], []>} : vector<42x32xbf16>, vector<32x16xbf16>, vector<42x16xf32> -> vector<42x16xf32>
    %c1_311 = arith.constant 1 : index
    %c0_312 = arith.constant 0 : index
    %c0_313 = arith.constant 0 : index
    %462 = vector.load %arg42[%c1_311, %c0_312, %c0_313] : memref<3x42x22xbf16, #tpu.memory_space<vmem>>, vector<1x42x22xbf16>
    %463 = vector.shape_cast %462 : vector<1x42x22xbf16> to vector<42x22xbf16>
    %cst_314 = arith.constant dense<0.000000e+00> : vector<42x32xf32>
    %464 = tpu.matmul %463, %454, %cst_314 {dimension_numbers = #tpu.dot_dimension_numbers<[1], [0], [0], [1], [0, 0, 1, 1], [], []>} : vector<42x22xbf16>, vector<22x32xbf16>, vector<42x32xf32> -> vector<42x32xf32>
    %465 = arith.truncf %464 : vector<42x32xf32> to vector<42x32xbf16>
    %c1_315 = arith.constant 1 : index
    %c0_316 = arith.constant 0 : index
    %c0_317 = arith.constant 0 : index
    %466 = vector.load %arg43[%c1_315, %c0_316, %c0_317] : memref<3x32x16xbf16, #tpu.memory_space<vmem>>, vector<1x32x16xbf16>
    %467 = vector.shape_cast %466 : vector<1x32x16xbf16> to vector<32x16xbf16>
    %cst_318 = arith.constant dense<0.000000e+00> : vector<42x16xf32>
    %468 = tpu.matmul %465, %467, %cst_318 {dimension_numbers = #tpu.dot_dimension_numbers<[1], [0], [0], [1], [0, 0, 1, 1], [], []>} : vector<42x32xbf16>, vector<32x16xbf16>, vector<42x16xf32> -> vector<42x16xf32>
    %469 = arith.addf %461, %468 : vector<42x16xf32>
    %c2_319 = arith.constant 2 : index
    %c0_320 = arith.constant 0 : index
    %c0_321 = arith.constant 0 : index
    %470 = vector.load %arg42[%c2_319, %c0_320, %c0_321] : memref<3x42x22xbf16, #tpu.memory_space<vmem>>, vector<1x42x22xbf16>
    %471 = vector.shape_cast %470 : vector<1x42x22xbf16> to vector<42x22xbf16>
    %cst_322 = arith.constant dense<0.000000e+00> : vector<42x32xf32>
    %472 = tpu.matmul %471, %454, %cst_322 {dimension_numbers = #tpu.dot_dimension_numbers<[1], [0], [0], [1], [0, 0, 1, 1], [], []>} : vector<42x22xbf16>, vector<22x32xbf16>, vector<42x32xf32> -> vector<42x32xf32>
    %473 = arith.truncf %472 : vector<42x32xf32> to vector<42x32xbf16>
    %c2_323 = arith.constant 2 : index
    %c0_324 = arith.constant 0 : index
    %c0_325 = arith.constant 0 : index
    %474 = vector.load %arg43[%c2_323, %c0_324, %c0_325] : memref<3x32x16xbf16, #tpu.memory_space<vmem>>, vector<1x32x16xbf16>
    %475 = vector.shape_cast %474 : vector<1x32x16xbf16> to vector<32x16xbf16>
    %cst_326 = arith.constant dense<0.000000e+00> : vector<42x16xf32>
    %476 = tpu.matmul %473, %475, %cst_326 {dimension_numbers = #tpu.dot_dimension_numbers<[1], [0], [0], [1], [0, 0, 1, 1], [], []>} : vector<42x32xbf16>, vector<32x16xbf16>, vector<42x16xf32> -> vector<42x16xf32>
    %477 = arith.addf %469, %476 : vector<42x16xf32>
    %c0_327 = arith.constant 0 : index
    %c0_328 = arith.constant 0 : index
    %478 = vector.load %arg44[%c0_327, %c0_328] : memref<1x16xf32, #tpu.memory_space<vmem>>, vector<1x16xf32>
    %479 = vector.broadcast %478 : vector<1x16xf32> to vector<42x16xf32>
    %480 = arith.addf %477, %479 : vector<42x16xf32>
    %cst_329 = arith.constant 0.000000e+00 : f32
    %481 = vector.broadcast %cst_329 : f32 to vector<42x16xf32>
    %482 = arith.maximumf %480, %481 : vector<42x16xf32>
    %cst_330 = arith.constant dense<0.000000e+00> : vector<16xf32>
    %483 = vector.multi_reduction <add>, %482, %cst_330 [0] : vector<42x16xf32> to vector<16xf32>
    %484 = vector.shape_cast %483 : vector<16xf32> to vector<1x16xf32>
    %cst_331 = arith.constant 0.0238095243 : f32
    %485 = vector.broadcast %cst_331 : f32 to vector<1x16xf32>
    %486 = arith.mulf %484, %485 : vector<1x16xf32>
    %487 = arith.mulf %482, %482 : vector<42x16xf32>
    %cst_332 = arith.constant dense<0.000000e+00> : vector<16xf32>
    %488 = vector.multi_reduction <add>, %487, %cst_332 [0] : vector<42x16xf32> to vector<16xf32>
    %489 = vector.shape_cast %488 : vector<16xf32> to vector<1x16xf32>
    %cst_333 = arith.constant 0.0238095243 : f32
    %490 = vector.broadcast %cst_333 : f32 to vector<1x16xf32>
    %491 = arith.mulf %489, %490 : vector<1x16xf32>
    %492 = arith.mulf %486, %486 : vector<1x16xf32>
    %493 = arith.subf %491, %492 : vector<1x16xf32>
    %cst_334 = arith.constant 0.000000e+00 : f32
    %494 = vector.broadcast %cst_334 : f32 to vector<1x16xf32>
    %495 = arith.maximumf %493, %494 : vector<1x16xf32>
    %496 = vector.broadcast %486 : vector<1x16xf32> to vector<42x16xf32>
    %497 = arith.subf %482, %496 : vector<42x16xf32>
    %cst_335 = arith.constant 9.99999974E-6 : f32
    %498 = vector.broadcast %cst_335 : f32 to vector<1x16xf32>
    %499 = arith.addf %495, %498 : vector<1x16xf32>
    %500 = math.rsqrt %499 : vector<1x16xf32>
    %501 = vector.broadcast %500 : vector<1x16xf32> to vector<42x16xf32>
    %502 = arith.mulf %497, %501 : vector<42x16xf32>
    %c0_336 = arith.constant 0 : index
    %c0_337 = arith.constant 0 : index
    %503 = vector.load %arg45[%c0_336, %c0_337] : memref<1x16xf32, #tpu.memory_space<vmem>>, vector<1x16xf32>
    %504 = vector.broadcast %503 : vector<1x16xf32> to vector<42x16xf32>
    %505 = arith.mulf %502, %504 : vector<42x16xf32>
    %c0_338 = arith.constant 0 : index
    %c0_339 = arith.constant 0 : index
    %506 = vector.load %arg46[%c0_338, %c0_339] : memref<1x16xf32, #tpu.memory_space<vmem>>, vector<1x16xf32>
    %507 = vector.broadcast %506 : vector<1x16xf32> to vector<42x16xf32>
    %508 = arith.addf %505, %507 : vector<42x16xf32>
    %509 = arith.truncf %508 : vector<42x16xf32> to vector<42x16xbf16>
    %510 = arith.addf %509, %58 : vector<42x16xbf16>
    %c0_340 = arith.constant 0 : index
    %c0_341 = arith.constant 0 : index
    %c0_342 = arith.constant 0 : index
    %511 = vector.load %arg47[%c0_340, %c0_341, %c0_342] : memref<4x84x42xbf16, #tpu.memory_space<vmem>>, vector<1x84x42xbf16>
    %512 = vector.shape_cast %511 : vector<1x84x42xbf16> to vector<84x42xbf16>
    %cst_343 = arith.constant dense<0.000000e+00> : vector<84x16xf32>
    %513 = tpu.matmul %512, %510, %cst_343 {dimension_numbers = #tpu.dot_dimension_numbers<[1], [0], [0], [1], [0, 0, 1, 1], [], []>} : vector<84x42xbf16>, vector<42x16xbf16>, vector<84x16xf32> -> vector<84x16xf32>
    %514 = arith.truncf %513 : vector<84x16xf32> to vector<84x16xbf16>
    %c0_344 = arith.constant 0 : index
    %c0_345 = arith.constant 0 : index
    %c0_346 = arith.constant 0 : index
    %515 = vector.load %arg48[%c0_344, %c0_345, %c0_346] : memref<4x16x8xbf16, #tpu.memory_space<vmem>>, vector<1x16x8xbf16>
    %516 = vector.shape_cast %515 : vector<1x16x8xbf16> to vector<16x8xbf16>
    %cst_347 = arith.constant dense<0.000000e+00> : vector<84x8xf32>
    %517 = tpu.matmul %514, %516, %cst_347 {dimension_numbers = #tpu.dot_dimension_numbers<[1], [0], [0], [1], [0, 0, 1, 1], [], []>} : vector<84x16xbf16>, vector<16x8xbf16>, vector<84x8xf32> -> vector<84x8xf32>
    %c1_348 = arith.constant 1 : index
    %c0_349 = arith.constant 0 : index
    %c0_350 = arith.constant 0 : index
    %518 = vector.load %arg47[%c1_348, %c0_349, %c0_350] : memref<4x84x42xbf16, #tpu.memory_space<vmem>>, vector<1x84x42xbf16>
    %519 = vector.shape_cast %518 : vector<1x84x42xbf16> to vector<84x42xbf16>
    %cst_351 = arith.constant dense<0.000000e+00> : vector<84x16xf32>
    %520 = tpu.matmul %519, %510, %cst_351 {dimension_numbers = #tpu.dot_dimension_numbers<[1], [0], [0], [1], [0, 0, 1, 1], [], []>} : vector<84x42xbf16>, vector<42x16xbf16>, vector<84x16xf32> -> vector<84x16xf32>
    %521 = arith.truncf %520 : vector<84x16xf32> to vector<84x16xbf16>
    %c1_352 = arith.constant 1 : index
    %c0_353 = arith.constant 0 : index
    %c0_354 = arith.constant 0 : index
    %522 = vector.load %arg48[%c1_352, %c0_353, %c0_354] : memref<4x16x8xbf16, #tpu.memory_space<vmem>>, vector<1x16x8xbf16>
    %523 = vector.shape_cast %522 : vector<1x16x8xbf16> to vector<16x8xbf16>
    %cst_355 = arith.constant dense<0.000000e+00> : vector<84x8xf32>
    %524 = tpu.matmul %521, %523, %cst_355 {dimension_numbers = #tpu.dot_dimension_numbers<[1], [0], [0], [1], [0, 0, 1, 1], [], []>} : vector<84x16xbf16>, vector<16x8xbf16>, vector<84x8xf32> -> vector<84x8xf32>
    %525 = arith.addf %517, %524 : vector<84x8xf32>
    %c2_356 = arith.constant 2 : index
    %c0_357 = arith.constant 0 : index
    %c0_358 = arith.constant 0 : index
    %526 = vector.load %arg47[%c2_356, %c0_357, %c0_358] : memref<4x84x42xbf16, #tpu.memory_space<vmem>>, vector<1x84x42xbf16>
    %527 = vector.shape_cast %526 : vector<1x84x42xbf16> to vector<84x42xbf16>
    %cst_359 = arith.constant dense<0.000000e+00> : vector<84x16xf32>
    %528 = tpu.matmul %527, %510, %cst_359 {dimension_numbers = #tpu.dot_dimension_numbers<[1], [0], [0], [1], [0, 0, 1, 1], [], []>} : vector<84x42xbf16>, vector<42x16xbf16>, vector<84x16xf32> -> vector<84x16xf32>
    %529 = arith.truncf %528 : vector<84x16xf32> to vector<84x16xbf16>
    %c2_360 = arith.constant 2 : index
    %c0_361 = arith.constant 0 : index
    %c0_362 = arith.constant 0 : index
    %530 = vector.load %arg48[%c2_360, %c0_361, %c0_362] : memref<4x16x8xbf16, #tpu.memory_space<vmem>>, vector<1x16x8xbf16>
    %531 = vector.shape_cast %530 : vector<1x16x8xbf16> to vector<16x8xbf16>
    %cst_363 = arith.constant dense<0.000000e+00> : vector<84x8xf32>
    %532 = tpu.matmul %529, %531, %cst_363 {dimension_numbers = #tpu.dot_dimension_numbers<[1], [0], [0], [1], [0, 0, 1, 1], [], []>} : vector<84x16xbf16>, vector<16x8xbf16>, vector<84x8xf32> -> vector<84x8xf32>
    %533 = arith.addf %525, %532 : vector<84x8xf32>
    %c3_364 = arith.constant 3 : index
    %c0_365 = arith.constant 0 : index
    %c0_366 = arith.constant 0 : index
    %534 = vector.load %arg47[%c3_364, %c0_365, %c0_366] : memref<4x84x42xbf16, #tpu.memory_space<vmem>>, vector<1x84x42xbf16>
    %535 = vector.shape_cast %534 : vector<1x84x42xbf16> to vector<84x42xbf16>
    %cst_367 = arith.constant dense<0.000000e+00> : vector<84x16xf32>
    %536 = tpu.matmul %535, %510, %cst_367 {dimension_numbers = #tpu.dot_dimension_numbers<[1], [0], [0], [1], [0, 0, 1, 1], [], []>} : vector<84x42xbf16>, vector<42x16xbf16>, vector<84x16xf32> -> vector<84x16xf32>
    %537 = arith.truncf %536 : vector<84x16xf32> to vector<84x16xbf16>
    %c3_368 = arith.constant 3 : index
    %c0_369 = arith.constant 0 : index
    %c0_370 = arith.constant 0 : index
    %538 = vector.load %arg48[%c3_368, %c0_369, %c0_370] : memref<4x16x8xbf16, #tpu.memory_space<vmem>>, vector<1x16x8xbf16>
    %539 = vector.shape_cast %538 : vector<1x16x8xbf16> to vector<16x8xbf16>
    %cst_371 = arith.constant dense<0.000000e+00> : vector<84x8xf32>
    %540 = tpu.matmul %537, %539, %cst_371 {dimension_numbers = #tpu.dot_dimension_numbers<[1], [0], [0], [1], [0, 0, 1, 1], [], []>} : vector<84x16xbf16>, vector<16x8xbf16>, vector<84x8xf32> -> vector<84x8xf32>
    %541 = arith.addf %533, %540 : vector<84x8xf32>
    %c0_372 = arith.constant 0 : index
    %c0_373 = arith.constant 0 : index
    %542 = vector.load %arg49[%c0_372, %c0_373] : memref<1x8xf32, #tpu.memory_space<vmem>>, vector<1x8xf32>
    %543 = vector.broadcast %542 : vector<1x8xf32> to vector<84x8xf32>
    %544 = arith.addf %541, %543 : vector<84x8xf32>
    %cst_374 = arith.constant 0.000000e+00 : f32
    %545 = vector.broadcast %cst_374 : f32 to vector<84x8xf32>
    %546 = arith.maximumf %544, %545 : vector<84x8xf32>
    %cst_375 = arith.constant dense<0.000000e+00> : vector<8xf32>
    %547 = vector.multi_reduction <add>, %546, %cst_375 [0] : vector<84x8xf32> to vector<8xf32>
    %548 = vector.shape_cast %547 : vector<8xf32> to vector<1x8xf32>
    %cst_376 = arith.constant 0.0119047621 : f32
    %549 = vector.broadcast %cst_376 : f32 to vector<1x8xf32>
    %550 = arith.mulf %548, %549 : vector<1x8xf32>
    %551 = arith.mulf %546, %546 : vector<84x8xf32>
    %cst_377 = arith.constant dense<0.000000e+00> : vector<8xf32>
    %552 = vector.multi_reduction <add>, %551, %cst_377 [0] : vector<84x8xf32> to vector<8xf32>
    %553 = vector.shape_cast %552 : vector<8xf32> to vector<1x8xf32>
    %cst_378 = arith.constant 0.0119047621 : f32
    %554 = vector.broadcast %cst_378 : f32 to vector<1x8xf32>
    %555 = arith.mulf %553, %554 : vector<1x8xf32>
    %556 = arith.mulf %550, %550 : vector<1x8xf32>
    %557 = arith.subf %555, %556 : vector<1x8xf32>
    %cst_379 = arith.constant 0.000000e+00 : f32
    %558 = vector.broadcast %cst_379 : f32 to vector<1x8xf32>
    %559 = arith.maximumf %557, %558 : vector<1x8xf32>
    %560 = vector.broadcast %550 : vector<1x8xf32> to vector<84x8xf32>
    %561 = arith.subf %546, %560 : vector<84x8xf32>
    %cst_380 = arith.constant 9.99999974E-6 : f32
    %562 = vector.broadcast %cst_380 : f32 to vector<1x8xf32>
    %563 = arith.addf %559, %562 : vector<1x8xf32>
    %564 = math.rsqrt %563 : vector<1x8xf32>
    %565 = vector.broadcast %564 : vector<1x8xf32> to vector<84x8xf32>
    %566 = arith.mulf %561, %565 : vector<84x8xf32>
    %c0_381 = arith.constant 0 : index
    %c0_382 = arith.constant 0 : index
    %567 = vector.load %arg50[%c0_381, %c0_382] : memref<1x8xf32, #tpu.memory_space<vmem>>, vector<1x8xf32>
    %568 = vector.broadcast %567 : vector<1x8xf32> to vector<84x8xf32>
    %569 = arith.mulf %566, %568 : vector<84x8xf32>
    %c0_383 = arith.constant 0 : index
    %c0_384 = arith.constant 0 : index
    %570 = vector.load %arg51[%c0_383, %c0_384] : memref<1x8xf32, #tpu.memory_space<vmem>>, vector<1x8xf32>
    %571 = vector.broadcast %570 : vector<1x8xf32> to vector<84x8xf32>
    %572 = arith.addf %569, %571 : vector<84x8xf32>
    %573 = arith.truncf %572 : vector<84x8xf32> to vector<84x8xbf16>
    %c0_385 = arith.constant 0 : index
    %c0_386 = arith.constant 0 : index
    %c0_387 = arith.constant 0 : index
    %574 = vector.load %arg52[%c0_385, %c0_386, %c0_387] : memref<3x84x84xbf16, #tpu.memory_space<vmem>>, vector<1x84x84xbf16>
    %575 = vector.shape_cast %574 : vector<1x84x84xbf16> to vector<84x84xbf16>
    %cst_388 = arith.constant dense<0.000000e+00> : vector<84x8xf32>
    %576 = tpu.matmul %575, %573, %cst_388 {dimension_numbers = #tpu.dot_dimension_numbers<[1], [0], [0], [1], [0, 0, 1, 1], [], []>} : vector<84x84xbf16>, vector<84x8xbf16>, vector<84x8xf32> -> vector<84x8xf32>
    %577 = arith.truncf %576 : vector<84x8xf32> to vector<84x8xbf16>
    %c0_389 = arith.constant 0 : index
    %c0_390 = arith.constant 0 : index
    %c0_391 = arith.constant 0 : index
    %578 = vector.load %arg53[%c0_389, %c0_390, %c0_391] : memref<3x8x8xbf16, #tpu.memory_space<vmem>>, vector<1x8x8xbf16>
    %579 = vector.shape_cast %578 : vector<1x8x8xbf16> to vector<8x8xbf16>
    %cst_392 = arith.constant dense<0.000000e+00> : vector<84x8xf32>
    %580 = tpu.matmul %577, %579, %cst_392 {dimension_numbers = #tpu.dot_dimension_numbers<[1], [0], [0], [1], [0, 0, 1, 1], [], []>} : vector<84x8xbf16>, vector<8x8xbf16>, vector<84x8xf32> -> vector<84x8xf32>
    %c1_393 = arith.constant 1 : index
    %c0_394 = arith.constant 0 : index
    %c0_395 = arith.constant 0 : index
    %581 = vector.load %arg52[%c1_393, %c0_394, %c0_395] : memref<3x84x84xbf16, #tpu.memory_space<vmem>>, vector<1x84x84xbf16>
    %582 = vector.shape_cast %581 : vector<1x84x84xbf16> to vector<84x84xbf16>
    %cst_396 = arith.constant dense<0.000000e+00> : vector<84x8xf32>
    %583 = tpu.matmul %582, %573, %cst_396 {dimension_numbers = #tpu.dot_dimension_numbers<[1], [0], [0], [1], [0, 0, 1, 1], [], []>} : vector<84x84xbf16>, vector<84x8xbf16>, vector<84x8xf32> -> vector<84x8xf32>
    %584 = arith.truncf %583 : vector<84x8xf32> to vector<84x8xbf16>
    %c1_397 = arith.constant 1 : index
    %c0_398 = arith.constant 0 : index
    %c0_399 = arith.constant 0 : index
    %585 = vector.load %arg53[%c1_397, %c0_398, %c0_399] : memref<3x8x8xbf16, #tpu.memory_space<vmem>>, vector<1x8x8xbf16>
    %586 = vector.shape_cast %585 : vector<1x8x8xbf16> to vector<8x8xbf16>
    %cst_400 = arith.constant dense<0.000000e+00> : vector<84x8xf32>
    %587 = tpu.matmul %584, %586, %cst_400 {dimension_numbers = #tpu.dot_dimension_numbers<[1], [0], [0], [1], [0, 0, 1, 1], [], []>} : vector<84x8xbf16>, vector<8x8xbf16>, vector<84x8xf32> -> vector<84x8xf32>
    %588 = arith.addf %580, %587 : vector<84x8xf32>
    %c2_401 = arith.constant 2 : index
    %c0_402 = arith.constant 0 : index
    %c0_403 = arith.constant 0 : index
    %589 = vector.load %arg52[%c2_401, %c0_402, %c0_403] : memref<3x84x84xbf16, #tpu.memory_space<vmem>>, vector<1x84x84xbf16>
    %590 = vector.shape_cast %589 : vector<1x84x84xbf16> to vector<84x84xbf16>
    %cst_404 = arith.constant dense<0.000000e+00> : vector<84x8xf32>
    %591 = tpu.matmul %590, %573, %cst_404 {dimension_numbers = #tpu.dot_dimension_numbers<[1], [0], [0], [1], [0, 0, 1, 1], [], []>} : vector<84x84xbf16>, vector<84x8xbf16>, vector<84x8xf32> -> vector<84x8xf32>
    %592 = arith.truncf %591 : vector<84x8xf32> to vector<84x8xbf16>
    %c2_405 = arith.constant 2 : index
    %c0_406 = arith.constant 0 : index
    %c0_407 = arith.constant 0 : index
    %593 = vector.load %arg53[%c2_405, %c0_406, %c0_407] : memref<3x8x8xbf16, #tpu.memory_space<vmem>>, vector<1x8x8xbf16>
    %594 = vector.shape_cast %593 : vector<1x8x8xbf16> to vector<8x8xbf16>
    %cst_408 = arith.constant dense<0.000000e+00> : vector<84x8xf32>
    %595 = tpu.matmul %592, %594, %cst_408 {dimension_numbers = #tpu.dot_dimension_numbers<[1], [0], [0], [1], [0, 0, 1, 1], [], []>} : vector<84x8xbf16>, vector<8x8xbf16>, vector<84x8xf32> -> vector<84x8xf32>
    %596 = arith.addf %588, %595 : vector<84x8xf32>
    %c0_409 = arith.constant 0 : index
    %c0_410 = arith.constant 0 : index
    %597 = vector.load %arg54[%c0_409, %c0_410] : memref<1x8xf32, #tpu.memory_space<vmem>>, vector<1x8xf32>
    %598 = vector.broadcast %597 : vector<1x8xf32> to vector<84x8xf32>
    %599 = arith.addf %596, %598 : vector<84x8xf32>
    %c0_411 = arith.constant 0 : index
    %c0_412 = arith.constant 0 : index
    %600 = vector.load %arg55[%c0_411, %c0_412] : memref<84x8xf32, #tpu.memory_space<vmem>>, vector<84x8xf32>
    tpu.vector_store %arg55[%c0_411, %c0_412], %599 {strides = array<i32>} : memref<84x8xf32, #tpu.memory_space<vmem>>, vector<84x8xf32>,
    return
  }
}

</mosaic_0001>

<llo_original>
// kernel: unet1d_forward.1
$region0: #{unet1d_forward.1}
  #allocation0 [shape = 'u32[]', space=smem, size = 0x4, offset = 0x4, fixed_abs, tag = 'smem constant byte address 0x4 - core index']
  #allocation1 [shape = 'u32[144,128]{1,0:T(1,128)}', space=vmem, size = 0x12000, scoped, tag = 'internal scratch']
  %s0 = inlined_call_operand.smem [shape: u32[56], index: -1, kind: input, shape index: {}]
  %s1 = sld [smem:[%s0]]
  %s2 = scalar_lea.smem %s0, 1
  %s3 = sld [smem:[%s2]]
  %s4 = scalar_lea.smem %s0, 2
  %s5 = sld [smem:[%s4]]
  %s6 = scalar_lea.smem %s0, 3
  %s7 = sld [smem:[%s6]]
  %s8 = scalar_lea.smem %s0, 4
  %s9 = sld [smem:[%s8]]
  %s10 = scalar_lea.smem %s0, 5
  %s11 = sld [smem:[%s10]]
  %s12 = scalar_lea.smem %s0, 6
  %s13 = sld [smem:[%s12]]
  %s14 = scalar_lea.smem %s0, 7
  %s15 = sld [smem:[%s14]]
  %s16 = scalar_lea.smem %s0, 8
  %s17 = sld [smem:[%s16]]
  %s18 = scalar_lea.smem %s0, 9
  %s19 = sld [smem:[%s18]]
  %s20 = scalar_lea.smem %s0, 10
  %s21 = sld [smem:[%s20]]
  %s22 = scalar_lea.smem %s0, 11
  %s23 = sld [smem:[%s22]]
  %s24 = scalar_lea.smem %s0, 12
  %s25 = sld [smem:[%s24]]
  %s26 = scalar_lea.smem %s0, 13
  %s27 = sld [smem:[%s26]]
  %s28 = scalar_lea.smem %s0, 14
  %s29 = sld [smem:[%s28]]
  %s30 = scalar_lea.smem %s0, 15
  %s31 = sld [smem:[%s30]]
  %s32 = scalar_lea.smem %s0, 16
  %s33 = sld [smem:[%s32]]
  %s34 = scalar_lea.smem %s0, 17
  %s35 = sld [smem:[%s34]]
  %s36 = scalar_lea.smem %s0, 18
  %s37 = sld [smem:[%s36]]
  %s38 = scalar_lea.smem %s0, 19
  %s39 = sld [smem:[%s38]]
  %s40 = scalar_lea.smem %s0, 20
  %s41 = sld [smem:[%s40]]
  %s42 = scalar_lea.smem %s0, 21
  %s43 = sld [smem:[%s42]]
  %s44 = scalar_lea.smem %s0, 22
  %s45 = sld [smem:[%s44]]
  %s46 = scalar_lea.smem %s0, 23
  %s47 = sld [smem:[%s46]]
  %s48 = scalar_lea.smem %s0, 24
  %s49 = sld [smem:[%s48]]
  %s50 = scalar_lea.smem %s0, 25
  %s51 = sld [smem:[%s50]]
  %s52 = scalar_lea.smem %s0, 26
  %s53 = sld [smem:[%s52]]
  %s54 = scalar_lea.smem %s0, 27
  %s55 = sld [smem:[%s54]]
  %s56 = scalar_lea.smem %s0, 28
  %s57 = sld [smem:[%s56]]
  %s58 = scalar_lea.smem %s0, 29
  %s59 = sld [smem:[%s58]]
  %s60 = scalar_lea.smem %s0, 30
  %s61 = sld [smem:[%s60]]
  %s62 = scalar_lea.smem %s0, 31
  %s63 = sld [smem:[%s62]]
  %s64 = scalar_lea.smem %s0, 32
  %s65 = sld [smem:[%s64]]
  %s66 = scalar_lea.smem %s0, 33
  %s67 = sld [smem:[%s66]]
  %s68 = scalar_lea.smem %s0, 34
  %s69 = sld [smem:[%s68]]
  %s70 = scalar_lea.smem %s0, 35
  %s71 = sld [smem:[%s70]]
  %s72 = scalar_lea.smem %s0, 36
  %s73 = sld [smem:[%s72]]
  %s74 = scalar_lea.smem %s0, 37
  %s75 = sld [smem:[%s74]]
  %s76 = scalar_lea.smem %s0, 38
  %s77 = sld [smem:[%s76]]
  %s78 = scalar_lea.smem %s0, 39
  %s79 = sld [smem:[%s78]]
  %s80 = scalar_lea.smem %s0, 40
  %s81 = sld [smem:[%s80]]
  %s82 = scalar_lea.smem %s0, 41
  %s83 = sld [smem:[%s82]]
  %s84 = scalar_lea.smem %s0, 42
  %s85 = sld [smem:[%s84]]
  %s86 = scalar_lea.smem %s0, 43
  %s87 = sld [smem:[%s86]]
  %s88 = scalar_lea.smem %s0, 44
  %s89 = sld [smem:[%s88]]
  %s90 = scalar_lea.smem %s0, 45
  %s91 = sld [smem:[%s90]]
  %s92 = scalar_lea.smem %s0, 46
  %s93 = sld [smem:[%s92]]
  %s94 = scalar_lea.smem %s0, 47
  %s95 = sld [smem:[%s94]]
  %s96 = scalar_lea.smem %s0, 48
  %s97 = sld [smem:[%s96]]
  %s98 = scalar_lea.smem %s0, 49
  %s99 = sld [smem:[%s98]]
  %s100 = scalar_lea.smem %s0, 50
  %s101 = sld [smem:[%s100]]
  %s102 = scalar_lea.smem %s0, 51
  %s103 = sld [smem:[%s102]]
  %s104 = scalar_lea.smem %s0, 52
  %s105 = sld [smem:[%s104]]
  %s106 = scalar_lea.smem %s0, 53
  %s107 = sld [smem:[%s106]]
  %s108 = scalar_lea.smem %s0, 54
  %s109 = sld [smem:[%s108]]
  %s110 = scalar_lea.smem %s0, 55
  %s111 = sld [smem:[%s110]]
  %s112 = sld [smem:[#allocation0]]
  $region342: #{unet1d_forward.1} parent=0
    _
  %s114 = ssub.s32 1, %s112
  %s115 = scalar_select 0, %s114, %s112
  $region1: #{unet1d_forward.1} parent=0
    #allocation2 [shape = 'u8[6144]{0}', space=vmem, size = 0x1800, scoped, tag = 'input window, operand 3, single buffered']
    #allocation3 [shape = 's32[1]{0}', space=sflag, size = 0x4, scoped, tag = 'scoped memory for unet1d_forward.1']
    #allocation4 [shape = 'u8[512]{0}', space=vmem, size = 0x400, scoped, tag = 'input window, operand 4, single buffered']
    #allocation5 [shape = 's32[1]{0}', space=sflag, size = 0x4, scoped, tag = 'scoped memory for unet1d_forward.1']
    #allocation6 [shape = 'u8[512]{0}', space=vmem, size = 0x400, scoped, tag = 'input window, operand 5, single buffered']
    #allocation7 [shape = 'u8[512]{0}', space=vmem, size = 0x400, scoped, tag = 'input window, operand 6, single buffered']
    #allocation8 [shape = 's32[1]{0}', space=sflag, size = 0x4, scoped, tag = 'scoped memory for unet1d_forward.1']
    #allocation9 [shape = 'u8[512]{0}', space=vmem, size = 0x400, scoped, tag = 'input window, operand 10, single buffered']
    #allocation10 [shape = 'u8[512]{0}', space=vmem, size = 0x400, scoped, tag = 'input window, operand 11, single buffered']
    #allocation11 [shape = 's32[1]{0}', space=sflag, size = 0x4, scoped, tag = 'scoped memory for unet1d_forward.1']
    #allocation12 [shape = 'u8[512]{0}', space=vmem, size = 0x400, scoped, tag = 'input window, operand 14, single buffered']
    #allocation13 [shape = 'u8[512]{0}', space=vmem, size = 0x400, scoped, tag = 'input window, operand 15, single buffered']
    #allocation14 [shape = 's32[1]{0}', space=sflag, size = 0x4, scoped, tag = 'scoped memory for unet1d_forward.1']
    #allocation15 [shape = 'u8[512]{0}', space=vmem, size = 0x400, scoped, tag = 'input window, operand 16, single buffered']
    #allocation16 [shape = 'u8[6144]{0}', space=vmem, size = 0x1800, scoped, tag = 'input window, operand 17, single buffered']
    #allocation17 [shape = 's32[1]{0}', space=sflag, size = 0x4, scoped, tag = 'scoped memory for unet1d_forward.1']
    #allocation18 [shape = 'u8[512]{0}', space=vmem, size = 0x400, scoped, tag = 'input window, operand 19, single buffered']
    #allocation19 [shape = 'u8[512]{0}', space=vmem, size = 0x400, scoped, tag = 'input window, operand 20, single buffered']
    #allocation20 [shape = 's32[1]{0}', space=sflag, size = 0x4, scoped, tag = 'scoped memory for unet1d_forward.1']
    #allocation21 [shape = 'u8[512]{0}', space=vmem, size = 0x400, scoped, tag = 'input window, operand 21, single buffered']
    #allocation22 [shape = 'u8[3072]{0}', space=vmem, size = 0xc00, scoped, tag = 'input window, operand 22, single buffered']
    #allocation23 [shape = 's32[1]{0}', space=sflag, size = 0x4, scoped, tag = 'scoped memory for unet1d_forward.1']
    #allocation24 [shape = 'u8[1024]{0}', space=vmem, size = 0x400, scoped, tag = 'input window, operand 24, single buffered']
    #allocation25 [shape = 'u8[1024]{0}', space=vmem, size = 0x400, scoped, tag = 'input window, operand 25, single buffered']
    #allocation26 [shape = 's32[1]{0}', space=sflag, size = 0x4, scoped, tag = 'scoped memory for unet1d_forward.1']
    #allocation27 [shape = 'u8[1024]{0}', space=vmem, size = 0x400, scoped, tag = 'input window, operand 26, single buffered']
    #allocation28 [shape = 'u8[512]{0}', space=vmem, size = 0x400, scoped, tag = 'input window, operand 39, single buffered']
    #allocation29 [shape = 's32[1]{0}', space=sflag, size = 0x4, scoped, tag = 'scoped memory for unet1d_forward.1']
    #allocation30 [shape = 'u8[512]{0}', space=vmem, size = 0x400, scoped, tag = 'input window, operand 40, single buffered']
    #allocation31 [shape = 'u8[512]{0}', space=vmem, size = 0x400, scoped, tag = 'input window, operand 41, single buffered']
    #allocation32 [shape = 's32[1]{0}', space=sflag, size = 0x4, scoped, tag = 'scoped memory for unet1d_forward.1']
    #allocation33 [shape = 'u8[512]{0}', space=vmem, size = 0x400, scoped, tag = 'input window, operand 44, single buffered']
    #allocation34 [shape = 'u8[512]{0}', space=vmem, size = 0x400, scoped, tag = 'input window, operand 45, single buffered']
    #allocation35 [shape = 's32[1]{0}', space=sflag, size = 0x4, scoped, tag = 'scoped memory for unet1d_forward.1']
    #allocation36 [shape = 'u8[512]{0}', space=vmem, size = 0x400, scoped, tag = 'input window, operand 46, single buffered']
    #allocation37 [shape = 'u8[512]{0}', space=vmem, size = 0x400, scoped, tag = 'input window, operand 49, single buffered']
    #allocation38 [shape = 's32[1]{0}', space=sflag, size = 0x4, scoped, tag = 'scoped memory for unet1d_forward.1']
    #allocation39 [shape = 'u8[512]{0}', space=vmem, size = 0x400, scoped, tag = 'input window, operand 50, single buffered']
    #allocation40 [shape = 'u8[512]{0}', space=vmem, size = 0x400, scoped, tag = 'input window, operand 51, single buffered']
    #allocation41 [shape = 's32[1]{0}', space=sflag, size = 0x4, scoped, tag = 'scoped memory for unet1d_forward.1']
    #allocation42 [shape = 'u8[6144]{0}', space=vmem, size = 0x1800, scoped, tag = 'input window, operand 53, single buffered']
    #allocation43 [shape = 'u8[512]{0}', space=vmem, size = 0x400, scoped, tag = 'input window, operand 54, single buffered']
    #allocation44 [shape = 's32[1]{0}', space=sflag, size = 0x4, scoped, tag = 'scoped memory for unet1d_forward.1']
    %116 = vsyncpa [#allocation3], 0
    %117 = vsyncpa [#allocation5], 0
    %118 = vsyncpa [#allocation8], 0
    %119 = vsyncpa [#allocation11], 0
    %120 = vsyncpa [#allocation14], 0
    %121 = vsyncpa [#allocation17], 0
    %122 = vsyncpa [#allocation20], 0
    %123 = vsyncpa [#allocation23], 0
    %124 = vsyncpa [#allocation26], 0
    %125 = vsyncpa [#allocation29], 0
    %126 = vsyncpa [#allocation32], 0
    %127 = vsyncpa [#allocation35], 0
    %128 = vsyncpa [#allocation38], 0
    %129 = vsyncpa [#allocation41], 0
    %130 = vsyncpa [#allocation44], 0
    // Predicated region
    $region2: #{unet1d_forward.1} parent=1 // pred_check
      _
    $region3: #{unet1d_forward.1} parent=1 // pred_check_branch
      %132 = sbr.rel (0) target = $region5
    $region4: #{unet1d_forward.1} parent=1 // pred_region
      _
    $region5: #{unet1d_forward.1} parent=1 // pred_fallthru
      _
    // Predicated region
    $region6: #{unet1d_forward.1} parent=1 // pred_check
      _
    $region7: #{unet1d_forward.1} parent=1 // pred_check_branch
      %134 = sbr.rel (0) target = $region9
    $region8: #{unet1d_forward.1} parent=1 // pred_region
      _
    $region9: #{unet1d_forward.1} parent=1 // pred_fallthru
      _
    // Predicated region
    $region10: #{unet1d_forward.1} parent=1 // pred_check
      _
    $region11: #{unet1d_forward.1} parent=1 // pred_check_branch
      %136 = sbr.rel (0) target = $region13
    $region12: #{unet1d_forward.1} parent=1 // pred_region
      _
    $region13: #{unet1d_forward.1} parent=1 // pred_fallthru
      _
    // Predicated region
    $region14: #{unet1d_forward.1} parent=1 // pred_check
      _
    $region15: #{unet1d_forward.1} parent=1 // pred_check_branch
      %138 = sbr.rel (0) target = $region17
    $region16: #{unet1d_forward.1} parent=1 // pred_region
      %s140 = ssub.s32 192, 192
      %141 = vsyncadd [#allocation3], %s140
      %s142 = sshll.u32 [#allocation2], 4
      %s143 = int_to_ptr.vmem [resolvable:$true] %s142
      %148 = dma.hbm_to_vmem [thread:$0]  %s7, 192, %s143, [#allocation3], 64, 64, 4
    $region17: #{unet1d_forward.1} parent=1 // pred_fallthru
      _
    // Predicated region
    $region18: #{unet1d_forward.1} parent=1 // pred_check
      _
    $region19: #{unet1d_forward.1} parent=1 // pred_check_branch
      %150 = sbr.rel (0) target = $region21
    $region20: #{unet1d_forward.1} parent=1 // pred_region
      %s152 = ssub.s32 16, 16
      %153 = vsyncadd [#allocation5], %s152
      %s155 = sshll.u32 [#allocation4], 4
      %s156 = int_to_ptr.vmem [resolvable:$true] %s155
      %158 = dma.hbm_to_vmem [thread:$0]  %s9, 16, %s156, [#allocation5]
    $region21: #{unet1d_forward.1} parent=1 // pred_fallthru
      _
    // Predicated region
    $region22: #{unet1d_forward.1} parent=1 // pred_check
      _
    $region23: #{unet1d_forward.1} parent=1 // pred_check_branch
      %160 = sbr.rel (0) target = $region25
    $region24: #{unet1d_forward.1} parent=1 // pred_region
      %s162 = ssub.s32 16, 16
      %163 = vsyncadd [#allocation5], %s162
      %s165 = sshll.u32 [#allocation6], 4
      %s166 = int_to_ptr.vmem [resolvable:$true] %s165
      %168 = dma.hbm_to_vmem [thread:$0]  %s11, 16, %s166, [#allocation5]
    $region25: #{unet1d_forward.1} parent=1 // pred_fallthru
      _
    // Predicated region
    $region26: #{unet1d_forward.1} parent=1 // pred_check
      _
    $region27: #{unet1d_forward.1} parent=1 // pred_check_branch
      %170 = sbr.rel (0) target = $region29
    $region28: #{unet1d_forward.1} parent=1 // pred_region
      %s172 = ssub.s32 16, 16
      %173 = vsyncadd [#allocation8], %s172
      %s175 = sshll.u32 [#allocation7], 4
      %s176 = int_to_ptr.vmem [resolvable:$true] %s175
      %178 = dma.hbm_to_vmem [thread:$0]  %s13, 16, %s176, [#allocation8]
    $region29: #{unet1d_forward.1} parent=1 // pred_fallthru
      _
    // Predicated region
    $region30: #{unet1d_forward.1} parent=1 // pred_check
      _
    $region31: #{unet1d_forward.1} parent=1 // pred_check_branch
      %180 = sbr.rel (0) target = $region33
    $region32: #{unet1d_forward.1} parent=1 // pred_region
      _
    $region33: #{unet1d_forward.1} parent=1 // pred_fallthru
      _
    // Predicated region
    $region34: #{unet1d_forward.1} parent=1 // pred_check
      _
    $region35: #{unet1d_forward.1} parent=1 // pred_check_branch
      %182 = sbr.rel (0) target = $region37
    $region36: #{unet1d_forward.1} parent=1 // pred_region
      _
    $region37: #{unet1d_forward.1} parent=1 // pred_fallthru
      _
    // Predicated region
    $region38: #{unet1d_forward.1} parent=1 // pred_check
      _
    $region39: #{unet1d_forward.1} parent=1 // pred_check_branch
      %184 = sbr.rel (0) target = $region41
    $region40: #{unet1d_forward.1} parent=1 // pred_region
      _
    $region41: #{unet1d_forward.1} parent=1 // pred_fallthru
      _
    // Predicated region
    $region42: #{unet1d_forward.1} parent=1 // pred_check
      _
    $region43: #{unet1d_forward.1} parent=1 // pred_check_branch
      %186 = sbr.rel (0) target = $region45
    $region44: #{unet1d_forward.1} parent=1 // pred_region
      %s188 = ssub.s32 16, 16
      %189 = vsyncadd [#allocation8], %s188
      %s191 = sshll.u32 [#allocation9], 4
      %s192 = int_to_ptr.vmem [resolvable:$true] %s191
      %194 = dma.hbm_to_vmem [thread:$0]  %s21, 16, %s192, [#allocation8]
    $region45: #{unet1d_forward.1} parent=1 // pred_fallthru
      _
    // Predicated region
    $region46: #{unet1d_forward.1} parent=1 // pred_check
      _
    $region47: #{unet1d_forward.1} parent=1 // pred_check_branch
      %196 = sbr.rel (0) target = $region49
    $region48: #{unet1d_forward.1} parent=1 // pred_region
      %s198 = ssub.s32 16, 16
      %199 = vsyncadd [#allocation11], %s198
      %s201 = sshll.u32 [#allocation10], 4
      %s202 = int_to_ptr.vmem [resolvable:$true] %s201
      %204 = dma.hbm_to_vmem [thread:$0]  %s23, 16, %s202, [#allocation11]
    $region49: #{unet1d_forward.1} parent=1 // pred_fallthru
      _
    // Predicated region
    $region50: #{unet1d_forward.1} parent=1 // pred_check
      _
    $region51: #{unet1d_forward.1} parent=1 // pred_check_branch
      %206 = sbr.rel (0) target = $region53
    $region52: #{unet1d_forward.1} parent=1 // pred_region
      _
    $region53: #{unet1d_forward.1} parent=1 // pred_fallthru
      _
    // Predicated region
    $region54: #{unet1d_forward.1} parent=1 // pred_check
      _
    $region55: #{unet1d_forward.1} parent=1 // pred_check_branch
      %208 = sbr.rel (0) target = $region57
    $region56: #{unet1d_forward.1} parent=1 // pred_region
      _
    $region57: #{unet1d_forward.1} parent=1 // pred_fallthru
      _
    // Predicated region
    $region58: #{unet1d_forward.1} parent=1 // pred_check
      _
    $region59: #{unet1d_forward.1} parent=1 // pred_check_branch
      %210 = sbr.rel (0) target = $region61
    $region60: #{unet1d_forward.1} parent=1 // pred_region
      %s212 = ssub.s32 16, 16
      %213 = vsyncadd [#allocation11], %s212
      %s215 = sshll.u32 [#allocation12], 4
      %s216 = int_to_ptr.vmem [resolvable:$true] %s215
      %218 = dma.hbm_to_vmem [thread:$0]  %s29, 16, %s216, [#allocation11]
    $region61: #{unet1d_forward.1} parent=1 // pred_fallthru
      _
    // Predicated region
    $region62: #{unet1d_forward.1} parent=1 // pred_check
      _
    $region63: #{unet1d_forward.1} parent=1 // pred_check_branch
      %220 = sbr.rel (0) target = $region65
    $region64: #{unet1d_forward.1} parent=1 // pred_region
      %s222 = ssub.s32 16, 16
      %223 = vsyncadd [#allocation14], %s222
      %s225 = sshll.u32 [#allocation13], 4
      %s226 = int_to_ptr.vmem [resolvable:$true] %s225
      %228 = dma.hbm_to_vmem [thread:$0]  %s31, 16, %s226, [#allocation14]
    $region65: #{unet1d_forward.1} parent=1 // pred_fallthru
      _
    // Predicated region
    $region66: #{unet1d_forward.1} parent=1 // pred_check
      _
    $region67: #{unet1d_forward.1} parent=1 // pred_check_branch
      %230 = sbr.rel (0) target = $region69
    $region68: #{unet1d_forward.1} parent=1 // pred_region
      %s232 = ssub.s32 16, 16
      %233 = vsyncadd [#allocation14], %s232
      %s235 = sshll.u32 [#allocation15], 4
      %s236 = int_to_ptr.vmem [resolvable:$true] %s235
      %238 = dma.hbm_to_vmem [thread:$0]  %s33, 16, %s236, [#allocation14]
    $region69: #{unet1d_forward.1} parent=1 // pred_fallthru
      _
    // Predicated region
    $region70: #{unet1d_forward.1} parent=1 // pred_check
      _
    $region71: #{unet1d_forward.1} parent=1 // pred_check_branch
      %240 = sbr.rel (0) target = $region73
    $region72: #{unet1d_forward.1} parent=1 // pred_region
      %s242 = ssub.s32 192, 192
      %243 = vsyncadd [#allocation17], %s242
      %s244 = sshll.u32 [#allocation16], 4
      %s245 = int_to_ptr.vmem [resolvable:$true] %s244
      %250 = dma.hbm_to_vmem [thread:$0]  %s35, 192, %s245, [#allocation17], 64, 64, 4
    $region73: #{unet1d_forward.1} parent=1 // pred_fallthru
      _
    // Predicated region
    $region74: #{unet1d_forward.1} parent=1 // pred_check
      _
    $region75: #{unet1d_forward.1} parent=1 // pred_check_branch
      %252 = sbr.rel (0) target = $region77
    $region76: #{unet1d_forward.1} parent=1 // pred_region
      _
    $region77: #{unet1d_forward.1} parent=1 // pred_fallthru
      _
    // Predicated region
    $region78: #{unet1d_forward.1} parent=1 // pred_check
      _
    $region79: #{unet1d_forward.1} parent=1 // pred_check_branch
      %254 = sbr.rel (0) target = $region81
    $region80: #{unet1d_forward.1} parent=1 // pred_region
      %s256 = ssub.s32 16, 16
      %257 = vsyncadd [#allocation17], %s256
      %s259 = sshll.u32 [#allocation18], 4
      %s260 = int_to_ptr.vmem [resolvable:$true] %s259
      %262 = dma.hbm_to_vmem [thread:$0]  %s39, 16, %s260, [#allocation17]
    $region81: #{unet1d_forward.1} parent=1 // pred_fallthru
      _
    // Predicated region
    $region82: #{unet1d_forward.1} parent=1 // pred_check
      _
    $region83: #{unet1d_forward.1} parent=1 // pred_check_branch
      %264 = sbr.rel (0) target = $region85
    $region84: #{unet1d_forward.1} parent=1 // pred_region
      %s266 = ssub.s32 16, 16
      %267 = vsyncadd [#allocation20], %s266
      %s269 = sshll.u32 [#allocation19], 4
      %s270 = int_to_ptr.vmem [resolvable:$true] %s269
      %272 = dma.hbm_to_vmem [thread:$0]  %s41, 16, %s270, [#allocation20]
    $region85: #{unet1d_forward.1} parent=1 // pred_fallthru
      _
    // Predicated region
    $region86: #{unet1d_forward.1} parent=1 // pred_check
      _
    $region87: #{unet1d_forward.1} parent=1 // pred_check_branch
      %274 = sbr.rel (0) target = $region89
    $region88: #{unet1d_forward.1} parent=1 // pred_region
      %s276 = ssub.s32 16, 16
      %277 = vsyncadd [#allocation20], %s276
      %s279 = sshll.u32 [#allocation21], 4
      %s280 = int_to_ptr.vmem [resolvable:$true] %s279
      %282 = dma.hbm_to_vmem [thread:$0]  %s43, 16, %s280, [#allocation20]
    $region89: #{unet1d_forward.1} parent=1 // pred_fallthru
      _
    // Predicated region
    $region90: #{unet1d_forward.1} parent=1 // pred_check
      _
    $region91: #{unet1d_forward.1} parent=1 // pred_check_branch
      %284 = sbr.rel (0) target = $region93
    $region92: #{unet1d_forward.1} parent=1 // pred_region
      %s286 = ssub.s32 96, 96
      %287 = vsyncadd [#allocation23], %s286
      %s288 = sshll.u32 [#allocation22], 4
      %s289 = int_to_ptr.vmem [resolvable:$true] %s288
      %294 = dma.hbm_to_vmem [thread:$0]  %s45, 96, %s289, [#allocation23], 32, 32, 2
    $region93: #{unet1d_forward.1} parent=1 // pred_fallthru
      _
    // Predicated region
    $region94: #{unet1d_forward.1} parent=1 // pred_check
      _
    $region95: #{unet1d_forward.1} parent=1 // pred_check_branch
      %296 = sbr.rel (0) target = $region97
    $region96: #{unet1d_forward.1} parent=1 // pred_region
      _
    $region97: #{unet1d_forward.1} parent=1 // pred_fallthru
      _
    // Predicated region
    $region98: #{unet1d_forward.1} parent=1 // pred_check
      _
    $region99: #{unet1d_forward.1} parent=1 // pred_check_branch
      %298 = sbr.rel (0) target = $region101
    $region100: #{unet1d_forward.1} parent=1 // pred_region
      %s300 = ssub.s32 32, 32
      %301 = vsyncadd [#allocation23], %s300
      %s303 = sshll.u32 [#allocation24], 4
      %s304 = int_to_ptr.vmem [resolvable:$true] %s303
      %306 = dma.hbm_to_vmem [thread:$0]  %s49, 32, %s304, [#allocation23]
    $region101: #{unet1d_forward.1} parent=1 // pred_fallthru
      _
    // Predicated region
    $region102: #{unet1d_forward.1} parent=1 // pred_check
      _
    $region103: #{unet1d_forward.1} parent=1 // pred_check_branch
      %308 = sbr.rel (0) target = $region105
    $region104: #{unet1d_forward.1} parent=1 // pred_region
      %s310 = ssub.s32 32, 32
      %311 = vsyncadd [#allocation26], %s310
      %s313 = sshll.u32 [#allocation25], 4
      %s314 = int_to_ptr.vmem [resolvable:$true] %s313
      %316 = dma.hbm_to_vmem [thread:$0]  %s51, 32, %s314, [#allocation26]
    $region105: #{unet1d_forward.1} parent=1 // pred_fallthru
      _
    // Predicated region
    $region106: #{unet1d_forward.1} parent=1 // pred_check
      _
    $region107: #{unet1d_forward.1} parent=1 // pred_check_branch
      %318 = sbr.rel (0) target = $region109
    $region108: #{unet1d_forward.1} parent=1 // pred_region
      %s320 = ssub.s32 32, 32
      %321 = vsyncadd [#allocation26], %s320
      %s323 = sshll.u32 [#allocation27], 4
      %s324 = int_to_ptr.vmem [resolvable:$true] %s323
      %326 = dma.hbm_to_vmem [thread:$0]  %s53, 32, %s324, [#allocation26]
    $region109: #{unet1d_forward.1} parent=1 // pred_fallthru
      _
    // Predicated region
    $region110: #{unet1d_forward.1} parent=1 // pred_check
      _
    $region111: #{unet1d_forward.1} parent=1 // pred_check_branch
      %328 = sbr.rel (0) target = $region113
    $region112: #{unet1d_forward.1} parent=1 // pred_region
      _
    $region113: #{unet1d_forward.1} parent=1 // pred_fallthru
      _
    // Predicated region
    $region114: #{unet1d_forward.1} parent=1 // pred_check
      _
    $region115: #{unet1d_forward.1} parent=1 // pred_check_branch
      %330 = sbr.rel (0) target = $region117
    $region116: #{unet1d_forward.1} parent=1 // pred_region
      _
    $region117: #{unet1d_forward.1} parent=1 // pred_fallthru
      _
    // Predicated region
    $region118: #{unet1d_forward.1} parent=1 // pred_check
      _
    $region119: #{unet1d_forward.1} parent=1 // pred_check_branch
      %332 = sbr.rel (0) target = $region121
    $region120: #{unet1d_forward.1} parent=1 // pred_region
      _
    $region121: #{unet1d_forward.1} parent=1 // pred_fallthru
      _
    // Predicated region
    $region122: #{unet1d_forward.1} parent=1 // pred_check
      _
    $region123: #{unet1d_forward.1} parent=1 // pred_check_branch
      %334 = sbr.rel (0) target = $region125
    $region124: #{unet1d_forward.1} parent=1 // pred_region
      _
    $region125: #{unet1d_forward.1} parent=1 // pred_fallthru
      _
    // Predicated region
    $region126: #{unet1d_forward.1} parent=1 // pred_check
      _
    $region127: #{unet1d_forward.1} parent=1 // pred_check_branch
      %336 = sbr.rel (0) target = $region129
    $region128: #{unet1d_forward.1} parent=1 // pred_region
      _
    $region129: #{unet1d_forward.1} parent=1 // pred_fallthru
      _
    // Predicated region
    $region130: #{unet1d_forward.1} parent=1 // pred_check
      _
    $region131: #{unet1d_forward.1} parent=1 // pred_check_branch
      %338 = sbr.rel (0) target = $region133
    $region132: #{unet1d_forward.1} parent=1 // pred_region
      _
    $region133: #{unet1d_forward.1} parent=1 // pred_fallthru
      _
    // Predicated region
    $region134: #{unet1d_forward.1} parent=1 // pred_check
      _
    $region135: #{unet1d_forward.1} parent=1 // pred_check_branch
      %340 = sbr.rel (0) target = $region137
    $region136: #{unet1d_forward.1} parent=1 // pred_region
      _
    $region137: #{unet1d_forward.1} parent=1 // pred_fallthru
      _
    // Predicated region
    $region138: #{unet1d_forward.1} parent=1 // pred_check
      _
    $region139: #{unet1d_forward.1} parent=1 // pred_check_branch
      %342 = sbr.rel (0) target = $region141
    $region140: #{unet1d_forward.1} parent=1 // pred_region
      _
    $region141: #{unet1d_forward.1} parent=1 // pred_fallthru
      _
    // Predicated region
    $region142: #{unet1d_forward.1} parent=1 // pred_check
      _
    $region143: #{unet1d_forward.1} parent=1 // pred_check_branch
      %344 = sbr.rel (0) target = $region145
    $region144: #{unet1d_forward.1} parent=1 // pred_region
      _
    $region145: #{unet1d_forward.1} parent=1 // pred_fallthru
      _
    // Predicated region
    $region146: #{unet1d_forward.1} parent=1 // pred_check
      _
    $region147: #{unet1d_forward.1} parent=1 // pred_check_branch
      %346 = sbr.rel (0) target = $region149
    $region148: #{unet1d_forward.1} parent=1 // pred_region
      _
    $region149: #{unet1d_forward.1} parent=1 // pred_fallthru
      _
    // Predicated region
    $region150: #{unet1d_forward.1} parent=1 // pred_check
      _
    $region151: #{unet1d_forward.1} parent=1 // pred_check_branch
      %348 = sbr.rel (0) target = $region153
    $region152: #{unet1d_forward.1} parent=1 // pred_region
      _
    $region153: #{unet1d_forward.1} parent=1 // pred_fallthru
      _
    // Predicated region
    $region154: #{unet1d_forward.1} parent=1 // pred_check
      _
    $region155: #{unet1d_forward.1} parent=1 // pred_check_branch
      %350 = sbr.rel (0) target = $region157
    $region156: #{unet1d_forward.1} parent=1 // pred_region
      _
    $region157: #{unet1d_forward.1} parent=1 // pred_fallthru
      _
    // Predicated region
    $region158: #{unet1d_forward.1} parent=1 // pred_check
      _
    $region159: #{unet1d_forward.1} parent=1 // pred_check_branch
      %352 = sbr.rel (0) target = $region161
    $region160: #{unet1d_forward.1} parent=1 // pred_region
      %s354 = ssub.s32 16, 16
      %355 = vsyncadd [#allocation29], %s354
      %s357 = sshll.u32 [#allocation28], 4
      %s358 = int_to_ptr.vmem [resolvable:$true] %s357
      %360 = dma.hbm_to_vmem [thread:$0]  %s79, 16, %s358, [#allocation29]
    $region161: #{unet1d_forward.1} parent=1 // pred_fallthru
      _
    // Predicated region
    $region162: #{unet1d_forward.1} parent=1 // pred_check
      _
    $region163: #{unet1d_forward.1} parent=1 // pred_check_branch
      %362 = sbr.rel (0) target = $region165
    $region164: #{unet1d_forward.1} parent=1 // pred_region
      %s364 = ssub.s32 16, 16
      %365 = vsyncadd [#allocation29], %s364
      %s367 = sshll.u32 [#allocation30], 4
      %s368 = int_to_ptr.vmem [resolvable:$true] %s367
      %370 = dma.hbm_to_vmem [thread:$0]  %s81, 16, %s368, [#allocation29]
    $region165: #{unet1d_forward.1} parent=1 // pred_fallthru
      _
    // Predicated region
    $region166: #{unet1d_forward.1} parent=1 // pred_check
      _
    $region167: #{unet1d_forward.1} parent=1 // pred_check_branch
      %372 = sbr.rel (0) target = $region169
    $region168: #{unet1d_forward.1} parent=1 // pred_region
      %s374 = ssub.s32 16, 16
      %375 = vsyncadd [#allocation32], %s374
      %s377 = sshll.u32 [#allocation31], 4
      %s378 = int_to_ptr.vmem [resolvable:$true] %s377
      %380 = dma.hbm_to_vmem [thread:$0]  %s83, 16, %s378, [#allocation32]
    $region169: #{unet1d_forward.1} parent=1 // pred_fallthru
      _
    // Predicated region
    $region170: #{unet1d_forward.1} parent=1 // pred_check
      _
    $region171: #{unet1d_forward.1} parent=1 // pred_check_branch
      %382 = sbr.rel (0) target = $region173
    $region172: #{unet1d_forward.1} parent=1 // pred_region
      _
    $region173: #{unet1d_forward.1} parent=1 // pred_fallthru
      _
    // Predicated region
    $region174: #{unet1d_forward.1} parent=1 // pred_check
      _
    $region175: #{unet1d_forward.1} parent=1 // pred_check_branch
      %384 = sbr.rel (0) target = $region177
    $region176: #{unet1d_forward.1} parent=1 // pred_region
      _
    $region177: #{unet1d_forward.1} parent=1 // pred_fallthru
      _
    // Predicated region
    $region178: #{unet1d_forward.1} parent=1 // pred_check
      _
    $region179: #{unet1d_forward.1} parent=1 // pred_check_branch
      %386 = sbr.rel (0) target = $region181
    $region180: #{unet1d_forward.1} parent=1 // pred_region
      %s388 = ssub.s32 16, 16
      %389 = vsyncadd [#allocation32], %s388
      %s391 = sshll.u32 [#allocation33], 4
      %s392 = int_to_ptr.vmem [resolvable:$true] %s391
      %394 = dma.hbm_to_vmem [thread:$0]  %s89, 16, %s392, [#allocation32]
    $region181: #{unet1d_forward.1} parent=1 // pred_fallthru
      _
    // Predicated region
    $region182: #{unet1d_forward.1} parent=1 // pred_check
      _
    $region183: #{unet1d_forward.1} parent=1 // pred_check_branch
      %396 = sbr.rel (0) target = $region185
    $region184: #{unet1d_forward.1} parent=1 // pred_region
      %s398 = ssub.s32 16, 16
      %399 = vsyncadd [#allocation35], %s398
      %s401 = sshll.u32 [#allocation34], 4
      %s402 = int_to_ptr.vmem [resolvable:$true] %s401
      %404 = dma.hbm_to_vmem [thread:$0]  %s91, 16, %s402, [#allocation35]
    $region185: #{unet1d_forward.1} parent=1 // pred_fallthru
      _
    // Predicated region
    $region186: #{unet1d_forward.1} parent=1 // pred_check
      _
    $region187: #{unet1d_forward.1} parent=1 // pred_check_branch
      %406 = sbr.rel (0) target = $region189
    $region188: #{unet1d_forward.1} parent=1 // pred_region
      %s408 = ssub.s32 16, 16
      %409 = vsyncadd [#allocation35], %s408
      %s411 = sshll.u32 [#allocation36], 4
      %s412 = int_to_ptr.vmem [resolvable:$true] %s411
      %414 = dma.hbm_to_vmem [thread:$0]  %s93, 16, %s412, [#allocation35]
    $region189: #{unet1d_forward.1} parent=1 // pred_fallthru
      _
    // Predicated region
    $region190: #{unet1d_forward.1} parent=1 // pred_check
      _
    $region191: #{unet1d_forward.1} parent=1 // pred_check_branch
      %416 = sbr.rel (0) target = $region193
    $region192: #{unet1d_forward.1} parent=1 // pred_region
      _
    $region193: #{unet1d_forward.1} parent=1 // pred_fallthru
      _
    // Predicated region
    $region194: #{unet1d_forward.1} parent=1 // pred_check
      _
    $region195: #{unet1d_forward.1} parent=1 // pred_check_branch
      %418 = sbr.rel (0) target = $region197
    $region196: #{unet1d_forward.1} parent=1 // pred_region
      _
    $region197: #{unet1d_forward.1} parent=1 // pred_fallthru
      _
    // Predicated region
    $region198: #{unet1d_forward.1} parent=1 // pred_check
      _
    $region199: #{unet1d_forward.1} parent=1 // pred_check_branch
      %420 = sbr.rel (0) target = $region201
    $region200: #{unet1d_forward.1} parent=1 // pred_region
      %s422 = ssub.s32 16, 16
      %423 = vsyncadd [#allocation38], %s422
      %s425 = sshll.u32 [#allocation37], 4
      %s426 = int_to_ptr.vmem [resolvable:$true] %s425
      %428 = dma.hbm_to_vmem [thread:$0]  %s99, 16, %s426, [#allocation38]
    $region201: #{unet1d_forward.1} parent=1 // pred_fallthru
      _
    // Predicated region
    $region202: #{unet1d_forward.1} parent=1 // pred_check
      _
    $region203: #{unet1d_forward.1} parent=1 // pred_check_branch
      %430 = sbr.rel (0) target = $region205
    $region204: #{unet1d_forward.1} parent=1 // pred_region
      %s432 = ssub.s32 16, 16
      %433 = vsyncadd [#allocation38], %s432
      %s435 = sshll.u32 [#allocation39], 4
      %s436 = int_to_ptr.vmem [resolvable:$true] %s435
      %438 = dma.hbm_to_vmem [thread:$0]  %s101, 16, %s436, [#allocation38]
    $region205: #{unet1d_forward.1} parent=1 // pred_fallthru
      _
    // Predicated region
    $region206: #{unet1d_forward.1} parent=1 // pred_check
      _
    $region207: #{unet1d_forward.1} parent=1 // pred_check_branch
      %440 = sbr.rel (0) target = $region209
    $region208: #{unet1d_forward.1} parent=1 // pred_region
      %s442 = ssub.s32 16, 16
      %443 = vsyncadd [#allocation41], %s442
      %s445 = sshll.u32 [#allocation40], 4
      %s446 = int_to_ptr.vmem [resolvable:$true] %s445
      %448 = dma.hbm_to_vmem [thread:$0]  %s103, 16, %s446, [#allocation41]
    $region209: #{unet1d_forward.1} parent=1 // pred_fallthru
      _
    // Predicated region
    $region210: #{unet1d_forward.1} parent=1 // pred_check
      _
    $region211: #{unet1d_forward.1} parent=1 // pred_check_branch
      %450 = sbr.rel (0) target = $region213
    $region212: #{unet1d_forward.1} parent=1 // pred_region
      _
    $region213: #{unet1d_forward.1} parent=1 // pred_fallthru
      _
    // Predicated region
    $region214: #{unet1d_forward.1} parent=1 // pred_check
      _
    $region215: #{unet1d_forward.1} parent=1 // pred_check_branch
      %452 = sbr.rel (0) target = $region217
    $region216: #{unet1d_forward.1} parent=1 // pred_region
      %s454 = ssub.s32 192, 192
      %455 = vsyncadd [#allocation41], %s454
      %s456 = sshll.u32 [#allocation42], 4
      %s457 = int_to_ptr.vmem [resolvable:$true] %s456
      %462 = dma.hbm_to_vmem [thread:$0]  %s107, 192, %s457, [#allocation41], 64, 64, 4
    $region217: #{unet1d_forward.1} parent=1 // pred_fallthru
      _
    // Predicated region
    $region218: #{unet1d_forward.1} parent=1 // pred_check
      _
    $region219: #{unet1d_forward.1} parent=1 // pred_check_branch
      %464 = sbr.rel (0) target = $region221
    $region220: #{unet1d_forward.1} parent=1 // pred_region
      %s466 = ssub.s32 16, 16
      %467 = vsyncadd [#allocation44], %s466
      %s469 = sshll.u32 [#allocation43], 4
      %s470 = int_to_ptr.vmem [resolvable:$true] %s469
      %472 = dma.hbm_to_vmem [thread:$0]  %s109, 16, %s470, [#allocation44]
    $region221: #{unet1d_forward.1} parent=1 // pred_fallthru
      _
    // Predicated region
    $region222: #{unet1d_forward.1} parent=1 // pred_check
      _
    $region223: #{unet1d_forward.1} parent=1 // pred_check_branch
      %474 = sbr.rel (0) target = $region225
    $region224: #{unet1d_forward.1} parent=1 // pred_region
      %475 = dma.done [#allocation3], 192
    $region225: #{unet1d_forward.1} parent=1 // pred_fallthru
      _
    // Predicated region
    $region226: #{unet1d_forward.1} parent=1 // pred_check
      _
    $region227: #{unet1d_forward.1} parent=1 // pred_check_branch
      %477 = sbr.rel (0) target = $region229
    $region228: #{unet1d_forward.1} parent=1 // pred_region
      %478 = dma.done [#allocation5], 16
    $region229: #{unet1d_forward.1} parent=1 // pred_fallthru
      _
    // Predicated region
    $region230: #{unet1d_forward.1} parent=1 // pred_check
      _
    $region231: #{unet1d_forward.1} parent=1 // pred_check_branch
      %480 = sbr.rel (0) target = $region233
    $region232: #{unet1d_forward.1} parent=1 // pred_region
      %481 = dma.done [#allocation5], 16
    $region233: #{unet1d_forward.1} parent=1 // pred_fallthru
      _
    // Predicated region
    $region234: #{unet1d_forward.1} parent=1 // pred_check
      _
    $region235: #{unet1d_forward.1} parent=1 // pred_check_branch
      %483 = sbr.rel (0) target = $region237
    $region236: #{unet1d_forward.1} parent=1 // pred_region
      %484 = dma.done [#allocation8], 16
    $region237: #{unet1d_forward.1} parent=1 // pred_fallthru
      _
    // Predicated region
    $region238: #{unet1d_forward.1} parent=1 // pred_check
      _
    $region239: #{unet1d_forward.1} parent=1 // pred_check_branch
      %486 = sbr.rel (0) target = $region241
    $region240: #{unet1d_forward.1} parent=1 // pred_region
      %487 = dma.done [#allocation8], 16
    $region241: #{unet1d_forward.1} parent=1 // pred_fallthru
      _
    // Predicated region
    $region242: #{unet1d_forward.1} parent=1 // pred_check
      _
    $region243: #{unet1d_forward.1} parent=1 // pred_check_branch
      %489 = sbr.rel (0) target = $region245
    $region244: #{unet1d_forward.1} parent=1 // pred_region
      %490 = dma.done [#allocation11], 16
    $region245: #{unet1d_forward.1} parent=1 // pred_fallthru
      _
    // Predicated region
    $region246: #{unet1d_forward.1} parent=1 // pred_check
      _
    $region247: #{unet1d_forward.1} parent=1 // pred_check_branch
      %492 = sbr.rel (0) target = $region249
    $region248: #{unet1d_forward.1} parent=1 // pred_region
      %493 = dma.done [#allocation11], 16
    $region249: #{unet1d_forward.1} parent=1 // pred_fallthru
      _
    // Predicated region
    $region250: #{unet1d_forward.1} parent=1 // pred_check
      _
    $region251: #{unet1d_forward.1} parent=1 // pred_check_branch
      %495 = sbr.rel (0) target = $region253
    $region252: #{unet1d_forward.1} parent=1 // pred_region
      %496 = dma.done [#allocation14], 16
    $region253: #{unet1d_forward.1} parent=1 // pred_fallthru
      _
    // Predicated region
    $region254: #{unet1d_forward.1} parent=1 // pred_check
      _
    $region255: #{unet1d_forward.1} parent=1 // pred_check_branch
      %498 = sbr.rel (0) target = $region257
    $region256: #{unet1d_forward.1} parent=1 // pred_region
      %499 = dma.done [#allocation14], 16
    $region257: #{unet1d_forward.1} parent=1 // pred_fallthru
      _
    // Predicated region
    $region258: #{unet1d_forward.1} parent=1 // pred_check
      _
    $region259: #{unet1d_forward.1} parent=1 // pred_check_branch
      %501 = sbr.rel (0) target = $region261
    $region260: #{unet1d_forward.1} parent=1 // pred_region
      %502 = dma.done [#allocation17], 192
    $region261: #{unet1d_forward.1} parent=1 // pred_fallthru
      _
    // Predicated region
    $region262: #{unet1d_forward.1} parent=1 // pred_check
      _
    $region263: #{unet1d_forward.1} parent=1 // pred_check_branch
      %504 = sbr.rel (0) target = $region265
    $region264: #{unet1d_forward.1} parent=1 // pred_region
      %505 = dma.done [#allocation17], 16
    $region265: #{unet1d_forward.1} parent=1 // pred_fallthru
      _
    // Predicated region
    $region266: #{unet1d_forward.1} parent=1 // pred_check
      _
    $region267: #{unet1d_forward.1} parent=1 // pred_check_branch
      %507 = sbr.rel (0) target = $region269
    $region268: #{unet1d_forward.1} parent=1 // pred_region
      %508 = dma.done [#allocation20], 16
    $region269: #{unet1d_forward.1} parent=1 // pred_fallthru
      _
    // Predicated region
    $region270: #{unet1d_forward.1} parent=1 // pred_check
      _
    $region271: #{unet1d_forward.1} parent=1 // pred_check_branch
      %510 = sbr.rel (0) target = $region273
    $region272: #{unet1d_forward.1} parent=1 // pred_region
      %511 = dma.done [#allocation20], 16
    $region273: #{unet1d_forward.1} parent=1 // pred_fallthru
      _
    // Predicated region
    $region274: #{unet1d_forward.1} parent=1 // pred_check
      _
    $region275: #{unet1d_forward.1} parent=1 // pred_check_branch
      %513 = sbr.rel (0) target = $region277
    $region276: #{unet1d_forward.1} parent=1 // pred_region
      %514 = dma.done [#allocation23], 96
    $region277: #{unet1d_forward.1} parent=1 // pred_fallthru
      _
    // Predicated region
    $region278: #{unet1d_forward.1} parent=1 // pred_check
      _
    $region279: #{unet1d_forward.1} parent=1 // pred_check_branch
      %516 = sbr.rel (0) target = $region281
    $region280: #{unet1d_forward.1} parent=1 // pred_region
      %517 = dma.done [#allocation23], 32
    $region281: #{unet1d_forward.1} parent=1 // pred_fallthru
      _
    // Predicated region
    $region282: #{unet1d_forward.1} parent=1 // pred_check
      _
    $region283: #{unet1d_forward.1} parent=1 // pred_check_branch
      %519 = sbr.rel (0) target = $region285
    $region284: #{unet1d_forward.1} parent=1 // pred_region
      %520 = dma.done [#allocation26], 32
    $region285: #{unet1d_forward.1} parent=1 // pred_fallthru
      _
    // Predicated region
    $region286: #{unet1d_forward.1} parent=1 // pred_check
      _
    $region287: #{unet1d_forward.1} parent=1 // pred_check_branch
      %522 = sbr.rel (0) target = $region289
    $region288: #{unet1d_forward.1} parent=1 // pred_region
      %523 = dma.done [#allocation26], 32
    $region289: #{unet1d_forward.1} parent=1 // pred_fallthru
      _
    // Predicated region
    $region290: #{unet1d_forward.1} parent=1 // pred_check
      _
    $region291: #{unet1d_forward.1} parent=1 // pred_check_branch
      %525 = sbr.rel (0) target = $region293
    $region292: #{unet1d_forward.1} parent=1 // pred_region
      %526 = dma.done [#allocation29], 16
    $region293: #{unet1d_forward.1} parent=1 // pred_fallthru
      _
    // Predicated region
    $region294: #{unet1d_forward.1} parent=1 // pred_check
      _
    $region295: #{unet1d_forward.1} parent=1 // pred_check_branch
      %528 = sbr.rel (0) target = $region297
    $region296: #{unet1d_forward.1} parent=1 // pred_region
      %529 = dma.done [#allocation29], 16
    $region297: #{unet1d_forward.1} parent=1 // pred_fallthru
      _
    // Predicated region
    $region298: #{unet1d_forward.1} parent=1 // pred_check
      _
    $region299: #{unet1d_forward.1} parent=1 // pred_check_branch
      %531 = sbr.rel (0) target = $region301
    $region300: #{unet1d_forward.1} parent=1 // pred_region
      %532 = dma.done [#allocation32], 16
    $region301: #{unet1d_forward.1} parent=1 // pred_fallthru
      _
    // Predicated region
    $region302: #{unet1d_forward.1} parent=1 // pred_check
      _
    $region303: #{unet1d_forward.1} parent=1 // pred_check_branch
      %534 = sbr.rel (0) target = $region305
    $region304: #{unet1d_forward.1} parent=1 // pred_region
      %535 = dma.done [#allocation32], 16
    $region305: #{unet1d_forward.1} parent=1 // pred_fallthru
      _
    // Predicated region
    $region306: #{unet1d_forward.1} parent=1 // pred_check
      _
    $region307: #{unet1d_forward.1} parent=1 // pred_check_branch
      %537 = sbr.rel (0) target = $region309
    $region308: #{unet1d_forward.1} parent=1 // pred_region
      %538 = dma.done [#allocation35], 16
    $region309: #{unet1d_forward.1} parent=1 // pred_fallthru
      _
    // Predicated region
    $region310: #{unet1d_forward.1} parent=1 // pred_check
      _
    $region311: #{unet1d_forward.1} parent=1 // pred_check_branch
      %540 = sbr.rel (0) target = $region313
    $region312: #{unet1d_forward.1} parent=1 // pred_region
      %541 = dma.done [#allocation35], 16
    $region313: #{unet1d_forward.1} parent=1 // pred_fallthru
      _
    // Predicated region
    $region314: #{unet1d_forward.1} parent=1 // pred_check
      _
    $region315: #{unet1d_forward.1} parent=1 // pred_check_branch
      %543 = sbr.rel (0) target = $region317
    $region316: #{unet1d_forward.1} parent=1 // pred_region
      %544 = dma.done [#allocation38], 16
    $region317: #{unet1d_forward.1} parent=1 // pred_fallthru
      _
    // Predicated region
    $region318: #{unet1d_forward.1} parent=1 // pred_check
      _
    $region319: #{unet1d_forward.1} parent=1 // pred_check_branch
      %546 = sbr.rel (0) target = $region321
    $region320: #{unet1d_forward.1} parent=1 // pred_region
      %547 = dma.done [#allocation38], 16
    $region321: #{unet1d_forward.1} parent=1 // pred_fallthru
      _
    // Predicated region
    $region322: #{unet1d_forward.1} parent=1 // pred_check
      _
    $region323: #{unet1d_forward.1} parent=1 // pred_check_branch
      %549 = sbr.rel (0) target = $region325
    $region324: #{unet1d_forward.1} parent=1 // pred_region
      %550 = dma.done [#allocation41], 16
    $region325: #{unet1d_forward.1} parent=1 // pred_fallthru
      _
    // Predicated region
    $region326: #{unet1d_forward.1} parent=1 // pred_check
      _
    $region327: #{unet1d_forward.1} parent=1 // pred_check_branch
      %552 = sbr.rel (0) target = $region329
    $region328: #{unet1d_forward.1} parent=1 // pred_region
      %553 = dma.done [#allocation41], 192
    $region329: #{unet1d_forward.1} parent=1 // pred_fallthru
      _
    // Predicated region
    $region330: #{unet1d_forward.1} parent=1 // pred_check
      _
    $region331: #{unet1d_forward.1} parent=1 // pred_check_branch
      %555 = sbr.rel (0) target = $region333
    $region332: #{unet1d_forward.1} parent=1 // pred_region
      %556 = dma.done [#allocation44], 16
    $region333: #{unet1d_forward.1} parent=1 // pred_fallthru
      _
    %v558 = vld [vmem:[%s1] sm:$0xff]
    %v559 = vld [vmem:[%s1 + $0x8] sm:$0xff]
    %v560 = vld [vmem:[%s1 + $0x10] sm:$0xff]
    %v561 = vld [vmem:[%s1 + $0x18] sm:$0xff]
    %v562 = vld [vmem:[%s1 + $0x20] sm:$0xff]
    %v563 = vld [vmem:[%s1 + $0x28] sm:$0xff]
    %v564 = vld [vmem:[%s1 + $0x30] sm:$0xff]
    %v565 = vld [vmem:[%s1 + $0x38] sm:$0xff]
    %v566 = vld [vmem:[%s1 + $0x40] sm:$0xff]
    %v567 = vld [vmem:[%s1 + $0x48] sm:$0xff]
    %v568 = vld [vmem:[%s1 + $0x50] sm:$0xf]
    %v569 = vld [vmem:[%s3] sm:$0xff]
    %v570 = vld [vmem:[%s3 + $0x8] sm:$0xff]
    %v571 = vld [vmem:[%s3 + $0x10] sm:$0xff]
    %v572 = vld [vmem:[%s3 + $0x18] sm:$0xff]
    %v573 = vld [vmem:[%s3 + $0x20] sm:$0xff]
    %v574 = vld [vmem:[%s3 + $0x28] sm:$0xff]
    %v575 = vld [vmem:[%s3 + $0x30] sm:$0xff]
    %v576 = vld [vmem:[%s3 + $0x38] sm:$0xff]
    %v577 = vld [vmem:[%s3 + $0x40] sm:$0xff]
    %v578 = vld [vmem:[%s3 + $0x48] sm:$0xff]
    %v579 = vld [vmem:[%s3 + $0x50] sm:$0xf]
    %v580 = vadd.f32 %v558, %v569
    %v581 = vadd.f32 %v559, %v570
    %v582 = vadd.f32 %v560, %v571
    %v583 = vadd.f32 %v561, %v572
    %v584 = vadd.f32 %v562, %v573
    %v585 = vadd.f32 %v563, %v574
    %v586 = vadd.f32 %v564, %v575
    %v587 = vadd.f32 %v565, %v576
    %v588 = vadd.f32 %v566, %v577
    %v589 = vadd.f32 %v567, %v578
    %v590 = vadd.f32 %v568, %v579
    %v591 = vpack.c.bf16 %v581, %v580
    %v592 = vpack.c.bf16 %v583, %v582
    %v593 = vpack.c.bf16 %v585, %v584
    %v594 = vpack.c.bf16 %v587, %v586
    %v595 = vpack.c.bf16 %v589, %v588
    %v596 = vpack.c.bf16 %v590, %v590
    %v597 = vld [vmem:[%s5] sm:$0xf]
    %v598 = vld [vmem:[%s5 + $0x4] sm:$0xf]
    %v599 = vld [vmem:[%s5 + $0x8] sm:$0xf]
    %v600 = vld [vmem:[%s5 + $0xc] sm:$0xf]
    %v601 = vld [vmem:[%s5 + $0x10] sm:$0xf]
    %v602 = vld [vmem:[%s5 + $0x14] sm:$0x1]
    %v609 = vunpack.c.l.b16 %v597
    %v610 = vunpack.c.l.b16 %v598
    %v611 = vunpack.c.l.b16 %v599
    %v612 = vunpack.c.l.b16 %v600
    %v613 = vunpack.c.l.b16 %v601
    %v614 = vunpack.c.l.b16 %v602
    %v615 = vpack.c.b16 %v610, %v609
    %v616 = vpack.c.b16 %v612, %v611
    %v617 = vpack.c.b16 %v614, %v613
    %vm618 = vcmask 687104
    %v620 = vsel %vm618, %v615, 0
    %v623 = vsel %vm618, %v616, 0
    %v626 = vsel %vm618, %v617, 0
    %vm628 = vcmask 1041408
    %v630 = vsel %vm628, %v596, 0
    %632 = vmatprep.subr.bf16.mxu0 0
    %633 = vmatpush1.bf16.msra.mxu0 %v591
    %634 = vmatprep.subr.bf16.mxu0 0
    %635 = vmatpush1.bf16.msra.mxu0 %v592
    %636 = vmatprep.subr.bf16.mxu0 0
    %637 = vmatpush1.bf16.msra.mxu0 %v593
    %638 = vmatprep.subr.bf16.mxu0 0
    %639 = vmatpush1.bf16.msra.mxu0 %v594
    %640 = vmatprep.subr.bf16.mxu0 0
    %641 = vmatpush1.bf16.msra.mxu0 %v595
    %642 = vmatprep.subr.bf16.mxu0 0
    %643 = vmatpush1.bf16.msra.mxu0 %v630
    %644 = vmatprep.subr.bf16.mxu0 0
    %645 = vmatpush1.bf16.msra.mxu0 0
    %646 = vmatprep.subr.bf16.mxu0 0
    %647 = vmatpush1.bf16.msra.mxu0 0
    %648 = vmatprep.subr.bf16.mxu0 0
    %649 = vmatpush1.bf16.msra.mxu0 0
    %650 = vmatprep.subr.bf16.mxu0 0
    %651 = vmatpush1.bf16.msra.mxu0 0
    %652 = vmatprep.subr.bf16.mxu0 0
    %653 = vmatpush1.bf16.msra.mxu0 0
    %654 = vmatprep.subr.bf16.mxu0 0
    %655 = vmatpush1.bf16.msra.mxu0 0
    %656 = vmatprep.subr.bf16.mxu0 0
    %657 = vmatpush1.bf16.msra.mxu0 0
    %658 = vmatprep.subr.bf16.mxu0 0
    %659 = vmatpush1.bf16.msra.mxu0 0
    %660 = vmatprep.subr.bf16.mxu0 0
    %661 = vmatpush1.bf16.msra.mxu0 0
    %662 = vmatprep.subr.bf16.mxu0 0
    %663 = vmatpush1.bf16.msra.mxu0 0
    %664 = vmatprep.mubr.bf16.mxu0 0
    %665 = vmatmul.mubr.bf16.gmra.mrb[0].mxu0 %v620
    %v666 = vpop.f32.mrb[0].mxu0
    %v667 = vadd.f32 0.0, %v666
    %v668 = vpop.f32.mrb[0].mxu0
    %v669 = vpop.f32.mrb[0].mxu0
    %v670 = vadd.f32 0.0, %v669
    %v671 = vpop.f32.mrb[0].mxu0
    %672 = vmatprep.mubr.bf16.mxu0 0
    %673 = vmatmul.mubr.bf16.gmra.mrb[0].mxu0 %v623
    %v674 = vpop.f32.mrb[0].mxu0
    %v675 = vadd.f32 0.0, %v674
    %v676 = vpop.f32.mrb[0].mxu0
    %v677 = vpop.f32.mrb[0].mxu0
    %v678 = vadd.f32 0.0, %v677
    %v679 = vpop.f32.mrb[0].mxu0
    %680 = vmatprep.mubr.bf16.mxu0 0
    %681 = vmatmul.mubr.bf16.gmra.mrb[0].mxu0 %v626
    %v682 = vpop.f32.mrb[0].mxu0
    %v683 = vadd.f32 0.0, %v682
    %v684 = vpop.f32.mrb[0].mxu0
    %v685 = vpop.f32.mrb[0].mxu0
    %v686 = vadd.f32 0.0, %v685
    %v687 = vpop.f32.mrb[0].mxu0
    %688 = vdwg.mxu0
    %v689 = vpack.c.bf16 %v670, %v667
    %v690 = vpack.c.bf16 %v678, %v675
    %v691 = vpack.c.bf16 %v686, %v683
    %v692 = vld [vmem:[#allocation2] sm:$0xf]
    %s693 = scalar_lea.vmem %s5, 24
    %v694 = vld [vmem:[%s693] sm:$0xf]
    %v695 = vld [vmem:[%s693 + $0x4] sm:$0xf]
    %v696 = vld [vmem:[%s693 + $0x8] sm:$0xf]
    %v697 = vld [vmem:[%s693 + $0xc] sm:$0xf]
    %v698 = vld [vmem:[%s693 + $0x10] sm:$0xf]
    %v699 = vld [vmem:[%s693 + $0x14] sm:$0x1]
    %v706 = vunpack.c.l.b16 %v694
    %v707 = vunpack.c.l.b16 %v695
    %v708 = vunpack.c.l.b16 %v696
    %v709 = vunpack.c.l.b16 %v697
    %v710 = vunpack.c.l.b16 %v698
    %v711 = vunpack.c.l.b16 %v699
    %v712 = vpack.c.b16 %v707, %v706
    %v713 = vpack.c.b16 %v709, %v708
    %v714 = vpack.c.b16 %v711, %v710
    %v716 = vsel %vm618, %v712, 0
    %v719 = vsel %vm618, %v713, 0
    %v722 = vsel %vm618, %v714, 0
    %724 = vmatprep.subr.bf16.mxu0 0
    %725 = vmatpush1.bf16.msra.mxu0 %v591
    %726 = vmatprep.subr.bf16.mxu0 0
    %727 = vmatpush1.bf16.msra.mxu0 %v592
    %728 = vmatprep.subr.bf16.mxu0 0
    %729 = vmatpush1.bf16.msra.mxu0 %v593
    %730 = vmatprep.subr.bf16.mxu0 0
    %731 = vmatpush1.bf16.msra.mxu0 %v594
    %732 = vmatprep.subr.bf16.mxu0 0
    %733 = vmatpush1.bf16.msra.mxu0 %v595
    %734 = vmatprep.subr.bf16.mxu0 0
    %735 = vmatpush1.bf16.msra.mxu0 %v630
    %736 = vmatprep.subr.bf16.mxu0 0
    %737 = vmatpush1.bf16.msra.mxu0 0
    %738 = vmatprep.subr.bf16.mxu0 0
    %739 = vmatpush1.bf16.msra.mxu0 0
    %740 = vmatprep.subr.bf16.mxu0 0
    %741 = vmatpush1.bf16.msra.mxu0 0
    %742 = vmatprep.subr.bf16.mxu0 0
    %743 = vmatpush1.bf16.msra.mxu0 0
    %744 = vmatprep.subr.bf16.mxu0 0
    %745 = vmatpush1.bf16.msra.mxu0 0
    %746 = vmatprep.subr.bf16.mxu0 0
    %747 = vmatpush1.bf16.msra.mxu0 0
    %748 = vmatprep.subr.bf16.mxu0 0
    %749 = vmatpush1.bf16.msra.mxu0 0
    %750 = vmatprep.subr.bf16.mxu0 0
    %751 = vmatpush1.bf16.msra.mxu0 0
    %752 = vmatprep.subr.bf16.mxu0 0
    %753 = vmatpush1.bf16.msra.mxu0 0
    %754 = vmatprep.subr.bf16.mxu0 0
    %755 = vmatpush1.bf16.msra.mxu0 0
    %756 = vmatprep.mubr.bf16.mxu0 0
    %757 = vmatmul.mubr.bf16.gmra.mrb[0].mxu0 %v716
    %v758 = vpop.f32.mrb[0].mxu0
    %v759 = vadd.f32 0.0, %v758
    %v760 = vpop.f32.mrb[0].mxu0
    %v761 = vpop.f32.mrb[0].mxu0
    %v762 = vadd.f32 0.0, %v761
    %v763 = vpop.f32.mrb[0].mxu0
    %764 = vmatprep.mubr.bf16.mxu0 0
    %765 = vmatmul.mubr.bf16.gmra.mrb[0].mxu0 %v719
    %v766 = vpop.f32.mrb[0].mxu0
    %v767 = vadd.f32 0.0, %v766
    %v768 = vpop.f32.mrb[0].mxu0
    %v769 = vpop.f32.mrb[0].mxu0
    %v770 = vadd.f32 0.0, %v769
    %v771 = vpop.f32.mrb[0].mxu0
    %772 = vmatprep.mubr.bf16.mxu0 0
    %773 = vmatmul.mubr.bf16.gmra.mrb[0].mxu0 %v722
    %v774 = vpop.f32.mrb[0].mxu0
    %v775 = vadd.f32 0.0, %v774
    %v776 = vpop.f32.mrb[0].mxu0
    %v777 = vpop.f32.mrb[0].mxu0
    %v778 = vadd.f32 0.0, %v777
    %v779 = vpop.f32.mrb[0].mxu0
    %780 = vdwg.mxu0
    %v781 = vpack.c.bf16 %v762, %v759
    %v782 = vpack.c.bf16 %v770, %v767
    %v783 = vpack.c.bf16 %v778, %v775
    %s784 = scalar_lea.vmem [#allocation2], 4
    %v785 = vld [vmem:[%s784] sm:$0xf]
    %vm786 = vcmask 64512
    %v788 = vsel %vm786, %v781, 0
    %v791 = vsel %vm786, %v782, 0
    %v794 = vsel %vm786, %v783, 0
    %vm796 = vcmask 1043456
    %v798 = vsel %vm796, %v785, 0
    %800 = vmatprep.subr.bf16.mxu0 0
    %801 = vmatpush1.bf16.msra.mxu0 %v798
    %802 = vmatprep.subr.bf16.mxu0 0
    %803 = vmatpush1.bf16.msra.mxu0 0
    %804 = vmatprep.subr.bf16.mxu0 0
    %805 = vmatpush1.bf16.msra.mxu0 0
    %806 = vmatprep.subr.bf16.mxu0 0
    %807 = vmatpush1.bf16.msra.mxu0 0
    %808 = vmatprep.subr.bf16.mxu0 0
    %809 = vmatpush1.bf16.msra.mxu0 0
    %810 = vmatprep.subr.bf16.mxu0 0
    %811 = vmatpush1.bf16.msra.mxu0 0
    %812 = vmatprep.subr.bf16.mxu0 0
    %813 = vmatpush1.bf16.msra.mxu0 0
    %814 = vmatprep.subr.bf16.mxu0 0
    %815 = vmatpush1.bf16.msra.mxu0 0
    %816 = vmatprep.subr.bf16.mxu0 0
    %817 = vmatpush1.bf16.msra.mxu0 0
    %818 = vmatprep.subr.bf16.mxu0 0
    %819 = vmatpush1.bf16.msra.mxu0 0
    %820 = vmatprep.subr.bf16.mxu0 0
    %821 = vmatpush1.bf16.msra.mxu0 0
    %822 = vmatprep.subr.bf16.mxu0 0
    %823 = vmatpush1.bf16.msra.mxu0 0
    %824 = vmatprep.subr.bf16.mxu0 0
    %825 = vmatpush1.bf16.msra.mxu0 0
    %826 = vmatprep.subr.bf16.mxu0 0
    %827 = vmatpush1.bf16.msra.mxu0 0
    %828 = vmatprep.subr.bf16.mxu0 0
    %829 = vmatpush1.bf16.msra.mxu0 0
    %830 = vmatprep.subr.bf16.mxu0 0
    %831 = vmatpush1.bf16.msra.mxu0 0
    %832 = vmatprep.mubr.bf16.mxu0 0
    %833 = vmatmul.mubr.bf16.gmra.mrb[0].mxu0 %v788
    %v834 = vpop.f32.mrb[0].mxu0
    %v835 = vadd.f32 0.0, %v834
    %v836 = vpop.f32.mrb[0].mxu0
    %v837 = vpop.f32.mrb[0].mxu0
    %v838 = vadd.f32 0.0, %v837
    %v839 = vpop.f32.mrb[0].mxu0
    %840 = vmatprep.mubr.bf16.mxu0 0
    %841 = vmatmul.mubr.bf16.gmra.mrb[0].mxu0 %v791
    %v842 = vpop.f32.mrb[0].mxu0
    %v843 = vadd.f32 0.0, %v842
    %v844 = vpop.f32.mrb[0].mxu0
    %v845 = vpop.f32.mrb[0].mxu0
    %v846 = vadd.f32 0.0, %v845
    %v847 = vpop.f32.mrb[0].mxu0
    %848 = vmatprep.mubr.bf16.mxu0 0
    %849 = vmatmul.mubr.bf16.gmra.mrb[0].mxu0 %v794
    %v850 = vpop.f32.mrb[0].mxu0
    %v851 = vadd.f32 0.0, %v850
    %v852 = vpop.f32.mrb[0].mxu0
    %v853 = vpop.f32.mrb[0].mxu0
    %v854 = vadd.f32 0.0, %v853
    %v855 = vpop.f32.mrb[0].mxu0
    %856 = vdwg.mxu0
    %v858 = vsel %vm786, %v689, 0
    %v861 = vsel %vm786, %v690, 0
    %v864 = vsel %vm786, %v691, 0
    %v867 = vsel %vm796, %v692, 0
    %869 = vmatprep.subr.bf16.mxu0 0
    %870 = vmatpush1.bf16.msra.mxu0 %v867
    %871 = vmatprep.subr.bf16.mxu0 0
    %872 = vmatpush1.bf16.msra.mxu0 0
    %873 = vmatprep.subr.bf16.mxu0 0
    %874 = vmatpush1.bf16.msra.mxu0 0
    %875 = vmatprep.subr.bf16.mxu0 0
    %876 = vmatpush1.bf16.msra.mxu0 0
    %877 = vmatprep.subr.bf16.mxu0 0
    %878 = vmatpush1.bf16.msra.mxu0 0
    %879 = vmatprep.subr.bf16.mxu0 0
    %880 = vmatpush1.bf16.msra.mxu0 0
    %881 = vmatprep.subr.bf16.mxu0 0
    %882 = vmatpush1.bf16.msra.mxu0 0
    %883 = vmatprep.subr.bf16.mxu0 0
    %884 = vmatpush1.bf16.msra.mxu0 0
    %885 = vmatprep.subr.bf16.mxu0 0
    %886 = vmatpush1.bf16.msra.mxu0 0
    %887 = vmatprep.subr.bf16.mxu0 0
    %888 = vmatpush1.bf16.msra.mxu0 0
    %889 = vmatprep.subr.bf16.mxu0 0
    %890 = vmatpush1.bf16.msra.mxu0 0
    %891 = vmatprep.subr.bf16.mxu0 0
    %892 = vmatpush1.bf16.msra.mxu0 0
    %893 = vmatprep.subr.bf16.mxu0 0
    %894 = vmatpush1.bf16.msra.mxu0 0
    %895 = vmatprep.subr.bf16.mxu0 0
    %896 = vmatpush1.bf16.msra.mxu0 0
    %897 = vmatprep.subr.bf16.mxu0 0
    %898 = vmatpush1.bf16.msra.mxu0 0
    %899 = vmatprep.subr.bf16.mxu0 0
    %900 = vmatpush1.bf16.msra.mxu0 0
    %901 = vmatprep.mubr.bf16.mxu0 0
    %902 = vmatmul.mubr.bf16.gmra.mrb[0].mxu0 %v858
    %v903 = vpop.f32.mrb[0].mxu0
    %v904 = vadd.f32 %v835, %v903
    %v905 = vpop.f32.mrb[0].mxu0
    %v906 = vpop.f32.mrb[0].mxu0
    %v907 = vadd.f32 %v838, %v906
    %v908 = vpop.f32.mrb[0].mxu0
    %909 = vmatprep.mubr.bf16.mxu0 0
    %910 = vmatmul.mubr.bf16.gmra.mrb[0].mxu0 %v861
    %v911 = vpop.f32.mrb[0].mxu0
    %v912 = vadd.f32 %v843, %v911
    %v913 = vpop.f32.mrb[0].mxu0
    %v914 = vpop.f32.mrb[0].mxu0
    %v915 = vadd.f32 %v846, %v914
    %v916 = vpop.f32.mrb[0].mxu0
    %917 = vmatprep.mubr.bf16.mxu0 0
    %918 = vmatmul.mubr.bf16.gmra.mrb[0].mxu0 %v864
    %v919 = vpop.f32.mrb[0].mxu0
    %v920 = vadd.f32 %v851, %v919
    %v921 = vpop.f32.mrb[0].mxu0
    %v922 = vpop.f32.mrb[0].mxu0
    %v923 = vadd.f32 %v854, %v922
    %v924 = vpop.f32.mrb[0].mxu0
    %925 = vdwg.mxu0
    %s926 = scalar_lea.vmem %s5, 48
    %v927 = vld [vmem:[%s926] sm:$0xf]
    %v928 = vld [vmem:[%s926 + $0x4] sm:$0xf]
    %v929 = vld [vmem:[%s926 + $0x8] sm:$0xf]
    %v930 = vld [vmem:[%s926 + $0xc] sm:$0xf]
    %v931 = vld [vmem:[%s926 + $0x10] sm:$0xf]
    %v932 = vld [vmem:[%s926 + $0x14] sm:$0x1]
    %v939 = vunpack.c.l.b16 %v927
    %v940 = vunpack.c.l.b16 %v928
    %v941 = vunpack.c.l.b16 %v929
    %v942 = vunpack.c.l.b16 %v930
    %v943 = vunpack.c.l.b16 %v931
    %v944 = vunpack.c.l.b16 %v932
    %v945 = vpack.c.b16 %v940, %v939
    %v946 = vpack.c.b16 %v942, %v941
    %v947 = vpack.c.b16 %v944, %v943
    %v949 = vsel %vm618, %v945, 0
    %v952 = vsel %vm618, %v946, 0
    %v955 = vsel %vm618, %v947, 0
    %957 = vmatprep.subr.bf16.mxu0 0
    %958 = vmatpush1.bf16.msra.mxu0 %v591
    %959 = vmatprep.subr.bf16.mxu0 0
    %960 = vmatpush1.bf16.msra.mxu0 %v592
    %961 = vmatprep.subr.bf16.mxu0 0
    %962 = vmatpush1.bf16.msra.mxu0 %v593
    %963 = vmatprep.subr.bf16.mxu0 0
    %964 = vmatpush1.bf16.msra.mxu0 %v594
    %965 = vmatprep.subr.bf16.mxu0 0
    %966 = vmatpush1.bf16.msra.mxu0 %v595
    %967 = vmatprep.subr.bf16.mxu0 0
    %968 = vmatpush1.bf16.msra.mxu0 %v630
    %969 = vmatprep.subr.bf16.mxu0 0
    %970 = vmatpush1.bf16.msra.mxu0 0
    %971 = vmatprep.subr.bf16.mxu0 0
    %972 = vmatpush1.bf16.msra.mxu0 0
    %973 = vmatprep.subr.bf16.mxu0 0
    %974 = vmatpush1.bf16.msra.mxu0 0
    %975 = vmatprep.subr.bf16.mxu0 0
    %976 = vmatpush1.bf16.msra.mxu0 0
    %977 = vmatprep.subr.bf16.mxu0 0
    %978 = vmatpush1.bf16.msra.mxu0 0
    %979 = vmatprep.subr.bf16.mxu0 0
    %980 = vmatpush1.bf16.msra.mxu0 0
    %981 = vmatprep.subr.bf16.mxu0 0
    %982 = vmatpush1.bf16.msra.mxu0 0
    %983 = vmatprep.subr.bf16.mxu0 0
    %984 = vmatpush1.bf16.msra.mxu0 0
    %985 = vmatprep.subr.bf16.mxu0 0
    %986 = vmatpush1.bf16.msra.mxu0 0
    %987 = vmatprep.subr.bf16.mxu0 0
    %988 = vmatpush1.bf16.msra.mxu0 0
    %989 = vmatprep.mubr.bf16.mxu0 0
    %990 = vmatmul.mubr.bf16.gmra.mrb[0].mxu0 %v949
    %v991 = vpop.f32.mrb[0].mxu0
    %v992 = vadd.f32 0.0, %v991
    %v993 = vpop.f32.mrb[0].mxu0
    %v994 = vpop.f32.mrb[0].mxu0
    %v995 = vadd.f32 0.0, %v994
    %v996 = vpop.f32.mrb[0].mxu0
    %997 = vmatprep.mubr.bf16.mxu0 0
    %998 = vmatmul.mubr.bf16.gmra.mrb[0].mxu0 %v952
    %v999 = vpop.f32.mrb[0].mxu0
    %v1000 = vadd.f32 0.0, %v999
    %v1001 = vpop.f32.mrb[0].mxu0
    %v1002 = vpop.f32.mrb[0].mxu0
    %v1003 = vadd.f32 0.0, %v1002
    %v1004 = vpop.f32.mrb[0].mxu0
    %1005 = vmatprep.mubr.bf16.mxu0 0
    %1006 = vmatmul.mubr.bf16.gmra.mrb[0].mxu0 %v955
    %v1007 = vpop.f32.mrb[0].mxu0
    %v1008 = vadd.f32 0.0, %v1007
    %v1009 = vpop.f32.mrb[0].mxu0
    %v1010 = vpop.f32.mrb[0].mxu0
    %v1011 = vadd.f32 0.0, %v1010
    %v1012 = vpop.f32.mrb[0].mxu0
    %1013 = vdwg.mxu0
    %v1014 = vpack.c.bf16 %v995, %v992
    %v1015 = vpack.c.bf16 %v1003, %v1000
    %v1016 = vpack.c.bf16 %v1011, %v1008
    %s1017 = scalar_lea.vmem [#allocation2], 8
    %v1018 = vld [vmem:[%s1017] sm:$0xf]
    %v1020 = vsel %vm786, %v1014, 0
    %v1023 = vsel %vm786, %v1015, 0
    %v1026 = vsel %vm786, %v1016, 0
    %v1029 = vsel %vm796, %v1018, 0
    %1031 = vmatprep.subr.bf16.mxu0 0
    %1032 = vmatpush1.bf16.msra.mxu0 %v1029
    %1033 = vmatprep.subr.bf16.mxu0 0
    %1034 = vmatpush1.bf16.msra.mxu0 0
    %1035 = vmatprep.subr.bf16.mxu0 0
    %1036 = vmatpush1.bf16.msra.mxu0 0
    %1037 = vmatprep.subr.bf16.mxu0 0
    %1038 = vmatpush1.bf16.msra.mxu0 0
    %1039 = vmatprep.subr.bf16.mxu0 0
    %1040 = vmatpush1.bf16.msra.mxu0 0
    %1041 = vmatprep.subr.bf16.mxu0 0
    %1042 = vmatpush1.bf16.msra.mxu0 0
    %1043 = vmatprep.subr.bf16.mxu0 0
    %1044 = vmatpush1.bf16.msra.mxu0 0
    %1045 = vmatprep.subr.bf16.mxu0 0
    %1046 = vmatpush1.bf16.msra.mxu0 0
    %1047 = vmatprep.subr.bf16.mxu0 0
    %1048 = vmatpush1.bf16.msra.mxu0 0
    %1049 = vmatprep.subr.bf16.mxu0 0
    %1050 = vmatpush1.bf16.msra.mxu0 0
    %1051 = vmatprep.subr.bf16.mxu0 0
    %1052 = vmatpush1.bf16.msra.mxu0 0
    %1053 = vmatprep.subr.bf16.mxu0 0
    %1054 = vmatpush1.bf16.msra.mxu0 0
    %1055 = vmatprep.subr.bf16.mxu0 0
    %1056 = vmatpush1.bf16.msra.mxu0 0
    %1057 = vmatprep.subr.bf16.mxu0 0
    %1058 = vmatpush1.bf16.msra.mxu0 0
    %1059 = vmatprep.subr.bf16.mxu0 0
    %1060 = vmatpush1.bf16.msra.mxu0 0
    %1061 = vmatprep.subr.bf16.mxu0 0
    %1062 = vmatpush1.bf16.msra.mxu0 0
    %1063 = vmatprep.mubr.bf16.mxu0 0
    %1064 = vmatmul.mubr.bf16.gmra.mrb[0].mxu0 %v1020
    %v1065 = vpop.f32.mrb[0].mxu0
    %v1066 = vadd.f32 0.0, %v1065
    %v1067 = vpop.f32.mrb[0].mxu0
    %v1068 = vpop.f32.mrb[0].mxu0
    %v1069 = vadd.f32 0.0, %v1068
    %v1070 = vpop.f32.mrb[0].mxu0
    %1071 = vmatprep.mubr.bf16.mxu0 0
    %1072 = vmatmul.mubr.bf16.gmra.mrb[0].mxu0 %v1023
    %v1073 = vpop.f32.mrb[0].mxu0
    %v1074 = vadd.f32 0.0, %v1073
    %v1075 = vpop.f32.mrb[0].mxu0
    %v1076 = vpop.f32.mrb[0].mxu0
    %v1077 = vadd.f32 0.0, %v1076
    %v1078 = vpop.f32.mrb[0].mxu0
    %1079 = vmatprep.mubr.bf16.mxu0 0
    %1080 = vmatmul.mubr.bf16.gmra.mrb[0].mxu0 %v1026
    %v1081 = vpop.f32.mrb[0].mxu0
    %v1082 = vadd.f32 0.0, %v1081
    %v1083 = vpop.f32.mrb[0].mxu0
    %v1084 = vpop.f32.mrb[0].mxu0
    %v1085 = vadd.f32 0.0, %v1084
    %v1086 = vpop.f32.mrb[0].mxu0
    %1087 = vdwg.mxu0
    %v1088 = vadd.f32 %v904, %v1066
    %v1089 = vadd.f32 %v907, %v1069
    %v1090 = vadd.f32 %v912, %v1074
    %v1091 = vadd.f32 %v915, %v1077
    %v1092 = vadd.f32 %v920, %v1082
    %v1093 = vadd.f32 %v923, %v1085
    %v1094 = vld [vmem:[#allocation4] sm:$0x1]
    %v1096 = vlaneseq
    %v1097 = vshrl.u32 %v1096, 7
    %v1098 = vsub.s32 0, %v1097
    %v1099 = vrot.slane %v1094, %v1098
    %v1101 = vadd.f32 %v1088, %v1099
    %v1102 = vadd.f32 %v1089, %v1099
    %v1103 = vadd.f32 %v1090, %v1099
    %v1104 = vadd.f32 %v1091, %v1099
    %v1105 = vadd.f32 %v1092, %v1099
    %v1106 = vadd.f32 %v1093, %v1099
    %v1107 = vmax.f32 %v1101, 0.0
    %v1108 = vmax.f32 %v1102, 0.0
    %v1109 = vmax.f32 %v1103, 0.0
    %v1110 = vmax.f32 %v1104, 0.0
    %v1111 = vmax.f32 %v1105, 0.0
    %v1112 = vmax.f32 %v1106, 0.0
    %vm1113 = vcmask 130048
    %v1114 = vsel %vm1113, %v1107, 0.0
    %v1115 = vsel %vm1113, %v1108, 0.0
    %v1116 = vadd.f32 %v1114, %v1115
    %v1117 = vsel %vm1113, %v1109, 0.0
    %v1118 = vadd.f32 %v1116, %v1117
    %v1119 = vsel %vm1113, %v1110, 0.0
    %v1120 = vadd.f32 %v1118, %v1119
    %v1121 = vsel %vm1113, %v1111, 0.0
    %v1122 = vadd.f32 %v1120, %v1121
    %vm1123 = vcmask 123904
    %v1124 = vsel %vm1123, %v1112, 0.0
    %v1125 = vadd.f32 %v1122, %v1124
    %v1126 = vrot.slane %v1125, 4
    %v1127 = vadd.f32 %v1125, %v1126
    %v1128 = vrot.slane %v1127, 2
    %v1129 = vadd.f32 %v1127, %v1128
    %v1130 = vrot.slane %v1129, 1
    %v1131 = vadd.f32 %v1129, %v1130
    %v1132 = vmul.f32 %v1131, 0.023809524
    %v1133 = vmul.f32 %v1107, %v1107
    %v1134 = vmul.f32 %v1108, %v1108
    %v1135 = vmul.f32 %v1109, %v1109
    %v1136 = vmul.f32 %v1110, %v1110
    %v1137 = vmul.f32 %v1111, %v1111
    %v1138 = vmul.f32 %v1112, %v1112
    %v1139 = vsel %vm1113, %v1133, 0.0
    %v1140 = vsel %vm1113, %v1134, 0.0
    %v1141 = vadd.f32 %v1139, %v1140
    %v1142 = vsel %vm1113, %v1135, 0.0
    %v1143 = vadd.f32 %v1141, %v1142
    %v1144 = vsel %vm1113, %v1136, 0.0
    %v1145 = vadd.f32 %v1143, %v1144
    %v1146 = vsel %vm1113, %v1137, 0.0
    %v1147 = vadd.f32 %v1145, %v1146
    %v1148 = vsel %vm1123, %v1138, 0.0
    %v1149 = vadd.f32 %v1147, %v1148
    %v1150 = vrot.slane %v1149, 4
    %v1151 = vadd.f32 %v1149, %v1150
    %v1152 = vrot.slane %v1151, 2
    %v1153 = vadd.f32 %v1151, %v1152
    %v1154 = vrot.slane %v1153, 1
    %v1155 = vadd.f32 %v1153, %v1154
    %v1156 = vmul.f32 %v1155, 0.023809524
    %v1157 = vmul.f32 %v1132, %v1132
    %v1158 = vsub.f32 %v1156, %v1157
    %v1159 = vmax.f32 %v1158, 0.0
    %v1160 = vsub.f32 %v1107, %v1132
    %v1161 = vsub.f32 %v1108, %v1132
    %v1162 = vsub.f32 %v1109, %v1132
    %v1163 = vsub.f32 %v1110, %v1132
    %v1164 = vsub.f32 %v1111, %v1132
    %v1165 = vsub.f32 %v1112, %v1132
    %v1166 = vadd.f32 %v1159, 1e-05
    %v1167 = vrsqrt.pop %v1166
    %v1168 = vmul.f32 %v1160, %v1167
    %v1169 = vmul.f32 %v1161, %v1167
    %v1170 = vmul.f32 %v1162, %v1167
    %v1171 = vmul.f32 %v1163, %v1167
    %v1172 = vmul.f32 %v1164, %v1167
    %v1173 = vmul.f32 %v1165, %v1167
    %v1174 = vld [vmem:[#allocation6] sm:$0x1]
    %v1176 = vlaneseq
    %v1177 = vshrl.u32 %v1176, 7
    %v1178 = vsub.s32 0, %v1177
    %v1179 = vrot.slane %v1174, %v1178
    %v1181 = vmul.f32 %v1168, %v1179
    %v1182 = vmul.f32 %v1169, %v1179
    %v1183 = vmul.f32 %v1170, %v1179
    %v1184 = vmul.f32 %v1171, %v1179
    %v1185 = vmul.f32 %v1172, %v1179
    %v1186 = vmul.f32 %v1173, %v1179
    %v1187 = vld [vmem:[#allocation7] sm:$0x1]
    %v1189 = vlaneseq
    %v1190 = vshrl.u32 %v1189, 7
    %v1191 = vsub.s32 0, %v1190
    %v1192 = vrot.slane %v1187, %v1191
    %v1194 = vadd.f32 %v1181, %v1192
    %v1195 = vadd.f32 %v1182, %v1192
    %v1196 = vadd.f32 %v1183, %v1192
    %v1197 = vadd.f32 %v1184, %v1192
    %v1198 = vadd.f32 %v1185, %v1192
    %v1199 = vadd.f32 %v1186, %v1192
    %v1200 = vpack.c.bf16 %v1195, %v1194
    %v1201 = vpack.c.bf16 %v1197, %v1196
    %v1202 = vpack.c.bf16 %v1199, %v1198
    %v1203 = vld [vmem:[%s15] sm:$0xf]
    %v1204 = vld [vmem:[%s15 + $0x4] sm:$0xf]
    %v1205 = vld [vmem:[%s15 + $0x8] sm:$0x7]
    %v1209 = vunpack.c.l.b16 %v1203
    %v1210 = vunpack.c.l.b16 %v1204
    %v1211 = vunpack.c.l.b16 %v1205
    %v1212 = vpack.c.b16 %v1210, %v1209
    %v1213 = vpack.c.b16 %v1211, %v1211
    %vm1214 = vcmask 343040
    %v1216 = vsel %vm1214, %v1212, 0
    %v1219 = vsel %vm1214, %v1213, 0
    %vm1221 = vcmask 1044480
    %v1223 = vsel %vm1221, %v1202, 0
    %1225 = vmatprep.subr.bf16.mxu0 0
    %1226 = vmatpush1.bf16.msra.mxu0 %v1200
    %1227 = vmatprep.subr.bf16.mxu0 0
    %1228 = vmatpush1.bf16.msra.mxu0 %v1201
    %1229 = vmatprep.subr.bf16.mxu0 0
    %1230 = vmatpush1.bf16.msra.mxu0 %v1223
    %1231 = vmatprep.subr.bf16.mxu0 0
    %1232 = vmatpush1.bf16.msra.mxu0 0
    %1233 = vmatprep.subr.bf16.mxu0 0
    %1234 = vmatpush1.bf16.msra.mxu0 0
    %1235 = vmatprep.subr.bf16.mxu0 0
    %1236 = vmatpush1.bf16.msra.mxu0 0
    %1237 = vmatprep.subr.bf16.mxu0 0
    %1238 = vmatpush1.bf16.msra.mxu0 0
    %1239 = vmatprep.subr.bf16.mxu0 0
    %1240 = vmatpush1.bf16.msra.mxu0 0
    %1241 = vmatprep.subr.bf16.mxu0 0
    %1242 = vmatpush1.bf16.msra.mxu0 0
    %1243 = vmatprep.subr.bf16.mxu0 0
    %1244 = vmatpush1.bf16.msra.mxu0 0
    %1245 = vmatprep.subr.bf16.mxu0 0
    %1246 = vmatpush1.bf16.msra.mxu0 0
    %1247 = vmatprep.subr.bf16.mxu0 0
    %1248 = vmatpush1.bf16.msra.mxu0 0
    %1249 = vmatprep.subr.bf16.mxu0 0
    %1250 = vmatpush1.bf16.msra.mxu0 0
    %1251 = vmatprep.subr.bf16.mxu0 0
    %1252 = vmatpush1.bf16.msra.mxu0 0
    %1253 = vmatprep.subr.bf16.mxu0 0
    %1254 = vmatpush1.bf16.msra.mxu0 0
    %1255 = vmatprep.subr.bf16.mxu0 0
    %1256 = vmatpush1.bf16.msra.mxu0 0
    %1257 = vmatprep.mubr.bf16.mxu0 0
    %1258 = vmatmul.mubr.bf16.gmra.mrb[0].mxu0 %v1216
    %v1259 = vpop.f32.mrb[0].mxu0
    %v1260 = vadd.f32 0.0, %v1259
    %v1261 = vpop.f32.mrb[0].mxu0
    %v1262 = vpop.f32.mrb[0].mxu0
    %v1263 = vadd.f32 0.0, %v1262
    %v1264 = vpop.f32.mrb[0].mxu0
    %1265 = vmatprep.mubr.bf16.mxu0 0
    %1266 = vmatmul.mubr.bf16.gmra.mrb[0].mxu0 %v1219
    %v1267 = vpop.f32.mrb[0].mxu0
    %v1268 = vadd.f32 0.0, %v1267
    %v1269 = vpop.f32.mrb[0].mxu0
    %v1270 = vpop.f32.mrb[0].mxu0
    %v1271 = vpop.f32.mrb[0].mxu0
    %1272 = vdwg.mxu0
    %v1273 = vpack.c.bf16 %v1263, %v1260
    %v1274 = vpack.c.bf16 %v1268, %v1268
    %v1275 = vld [vmem:[%s17] sm:$0xf]
    %v1276 = vld [vmem:[%s17 + $0x4] sm:$0xf]
    %s1277 = scalar_lea.vmem %s15, 12
    %v1278 = vld [vmem:[%s1277] sm:$0xf]
    %v1279 = vld [vmem:[%s1277 + $0x4] sm:$0xf]
    %v1280 = vld [vmem:[%s1277 + $0x8] sm:$0x7]
    %v1284 = vunpack.c.l.b16 %v1278
    %v1285 = vunpack.c.l.b16 %v1279
    %v1286 = vunpack.c.l.b16 %v1280
    %v1287 = vpack.c.b16 %v1285, %v1284
    %v1288 = vpack.c.b16 %v1286, %v1286
    %v1290 = vsel %vm1214, %v1287, 0
    %v1293 = vsel %vm1214, %v1288, 0
    %1295 = vmatprep.subr.bf16.mxu0 0
    %1296 = vmatpush1.bf16.msra.mxu0 %v1200
    %1297 = vmatprep.subr.bf16.mxu0 0
    %1298 = vmatpush1.bf16.msra.mxu0 %v1201
    %1299 = vmatprep.subr.bf16.mxu0 0
    %1300 = vmatpush1.bf16.msra.mxu0 %v1223
    %1301 = vmatprep.subr.bf16.mxu0 0
    %1302 = vmatpush1.bf16.msra.mxu0 0
    %1303 = vmatprep.subr.bf16.mxu0 0
    %1304 = vmatpush1.bf16.msra.mxu0 0
    %1305 = vmatprep.subr.bf16.mxu0 0
    %1306 = vmatpush1.bf16.msra.mxu0 0
    %1307 = vmatprep.subr.bf16.mxu0 0
    %1308 = vmatpush1.bf16.msra.mxu0 0
    %1309 = vmatprep.subr.bf16.mxu0 0
    %1310 = vmatpush1.bf16.msra.mxu0 0
    %1311 = vmatprep.subr.bf16.mxu0 0
    %1312 = vmatpush1.bf16.msra.mxu0 0
    %1313 = vmatprep.subr.bf16.mxu0 0
    %1314 = vmatpush1.bf16.msra.mxu0 0
    %1315 = vmatprep.subr.bf16.mxu0 0
    %1316 = vmatpush1.bf16.msra.mxu0 0
    %1317 = vmatprep.subr.bf16.mxu0 0
    %1318 = vmatpush1.bf16.msra.mxu0 0
    %1319 = vmatprep.subr.bf16.mxu0 0
    %1320 = vmatpush1.bf16.msra.mxu0 0
    %1321 = vmatprep.subr.bf16.mxu0 0
    %1322 = vmatpush1.bf16.msra.mxu0 0
    %1323 = vmatprep.subr.bf16.mxu0 0
    %1324 = vmatpush1.bf16.msra.mxu0 0
    %1325 = vmatprep.subr.bf16.mxu0 0
    %1326 = vmatpush1.bf16.msra.mxu0 0
    %1327 = vmatprep.mubr.bf16.mxu0 0
    %1328 = vmatmul.mubr.bf16.gmra.mrb[0].mxu0 %v1290
    %v1329 = vpop.f32.mrb[0].mxu0
    %v1330 = vadd.f32 0.0, %v1329
    %v1331 = vpop.f32.mrb[0].mxu0
    %v1332 = vpop.f32.mrb[0].mxu0
    %v1333 = vadd.f32 0.0, %v1332
    %v1334 = vpop.f32.mrb[0].mxu0
    %1335 = vmatprep.mubr.bf16.mxu0 0
    %1336 = vmatmul.mubr.bf16.gmra.mrb[0].mxu0 %v1293
    %v1337 = vpop.f32.mrb[0].mxu0
    %v1338 = vadd.f32 0.0, %v1337
    %v1339 = vpop.f32.mrb[0].mxu0
    %v1340 = vpop.f32.mrb[0].mxu0
    %v1341 = vpop.f32.mrb[0].mxu0
    %1342 = vdwg.mxu0
    %v1343 = vpack.c.bf16 %v1333, %v1330
    %v1344 = vpack.c.bf16 %v1338, %v1338
    %s1345 = scalar_lea.vmem %s17, 8
    %v1346 = vld [vmem:[%s1345] sm:$0xf]
    %v1347 = vld [vmem:[%s1345 + $0x4] sm:$0xf]
    %v1350 = vunpack.c.l.b16 %v1346
    %v1351 = vunpack.c.l.b16 %v1347
    %v1352 = vpack.c.b16 %v1351, %v1350
    %v1355 = vsel %vm1113, %v1343, 0
    %v1358 = vsel %vm1113, %v1344, 0
    %1360 = vmatprep.subr.bf16.mxu0 0
    %1361 = vmatpush1.bf16.msra.mxu0 %v1352
    %1362 = vmatprep.subr.bf16.mxu0 0
    %1363 = vmatpush1.bf16.msra.mxu0 0
    %1364 = vmatprep.subr.bf16.mxu0 0
    %1365 = vmatpush1.bf16.msra.mxu0 0
    %1366 = vmatprep.subr.bf16.mxu0 0
    %1367 = vmatpush1.bf16.msra.mxu0 0
    %1368 = vmatprep.subr.bf16.mxu0 0
    %1369 = vmatpush1.bf16.msra.mxu0 0
    %1370 = vmatprep.subr.bf16.mxu0 0
    %1371 = vmatpush1.bf16.msra.mxu0 0
    %1372 = vmatprep.subr.bf16.mxu0 0
    %1373 = vmatpush1.bf16.msra.mxu0 0
    %1374 = vmatprep.subr.bf16.mxu0 0
    %1375 = vmatpush1.bf16.msra.mxu0 0
    %1376 = vmatprep.subr.bf16.mxu0 0
    %1377 = vmatpush1.bf16.msra.mxu0 0
    %1378 = vmatprep.subr.bf16.mxu0 0
    %1379 = vmatpush1.bf16.msra.mxu0 0
    %1380 = vmatprep.subr.bf16.mxu0 0
    %1381 = vmatpush1.bf16.msra.mxu0 0
    %1382 = vmatprep.subr.bf16.mxu0 0
    %1383 = vmatpush1.bf16.msra.mxu0 0
    %1384 = vmatprep.subr.bf16.mxu0 0
    %1385 = vmatpush1.bf16.msra.mxu0 0
    %1386 = vmatprep.subr.bf16.mxu0 0
    %1387 = vmatpush1.bf16.msra.mxu0 0
    %1388 = vmatprep.subr.bf16.mxu0 0
    %1389 = vmatpush1.bf16.msra.mxu0 0
    %1390 = vmatprep.subr.bf16.mxu0 0
    %1391 = vmatpush1.bf16.msra.mxu0 0
    %1392 = vmatprep.mubr.bf16.mxu0 0
    %1393 = vmatmul.mubr.bf16.gmra.mrb[0].mxu0 %v1355
    %v1394 = vpop.f32.mrb[0].mxu0
    %v1395 = vadd.f32 0.0, %v1394
    %v1396 = vpop.f32.mrb[0].mxu0
    %v1397 = vpop.f32.mrb[0].mxu0
    %v1398 = vadd.f32 0.0, %v1397
    %v1399 = vpop.f32.mrb[0].mxu0
    %1400 = vmatprep.mubr.bf16.mxu0 0
    %1401 = vmatmul.mubr.bf16.gmra.mrb[0].mxu0 %v1358
    %v1402 = vpop.f32.mrb[0].mxu0
    %v1403 = vadd.f32 0.0, %v1402
    %v1404 = vpop.f32.mrb[0].mxu0
    %v1405 = vpop.f32.mrb[0].mxu0
    %v1406 = vpop.f32.mrb[0].mxu0
    %1407 = vdwg.mxu0
    %v1410 = vunpack.c.l.b16 %v1275
    %v1411 = vunpack.c.l.b16 %v1276
    %v1412 = vpack.c.b16 %v1411, %v1410
    %v1415 = vsel %vm1113, %v1273, 0
    %v1418 = vsel %vm1113, %v1274, 0
    %1420 = vmatprep.subr.bf16.mxu0 0
    %1421 = vmatpush1.bf16.msra.mxu0 %v1412
    %1422 = vmatprep.subr.bf16.mxu0 0
    %1423 = vmatpush1.bf16.msra.mxu0 0
    %1424 = vmatprep.subr.bf16.mxu0 0
    %1425 = vmatpush1.bf16.msra.mxu0 0
    %1426 = vmatprep.subr.bf16.mxu0 0
    %1427 = vmatpush1.bf16.msra.mxu0 0
    %1428 = vmatprep.subr.bf16.mxu0 0
    %1429 = vmatpush1.bf16.msra.mxu0 0
    %1430 = vmatprep.subr.bf16.mxu0 0
    %1431 = vmatpush1.bf16.msra.mxu0 0
    %1432 = vmatprep.subr.bf16.mxu0 0
    %1433 = vmatpush1.bf16.msra.mxu0 0
    %1434 = vmatprep.subr.bf16.mxu0 0
    %1435 = vmatpush1.bf16.msra.mxu0 0
    %1436 = vmatprep.subr.bf16.mxu0 0
    %1437 = vmatpush1.bf16.msra.mxu0 0
    %1438 = vmatprep.subr.bf16.mxu0 0
    %1439 = vmatpush1.bf16.msra.mxu0 0
    %1440 = vmatprep.subr.bf16.mxu0 0
    %1441 = vmatpush1.bf16.msra.mxu0 0
    %1442 = vmatprep.subr.bf16.mxu0 0
    %1443 = vmatpush1.bf16.msra.mxu0 0
    %1444 = vmatprep.subr.bf16.mxu0 0
    %1445 = vmatpush1.bf16.msra.mxu0 0
    %1446 = vmatprep.subr.bf16.mxu0 0
    %1447 = vmatpush1.bf16.msra.mxu0 0
    %1448 = vmatprep.subr.bf16.mxu0 0
    %1449 = vmatpush1.bf16.msra.mxu0 0
    %1450 = vmatprep.subr.bf16.mxu0 0
    %1451 = vmatpush1.bf16.msra.mxu0 0
    %1452 = vmatprep.mubr.bf16.mxu0 0
    %1453 = vmatmul.mubr.bf16.gmra.mrb[0].mxu0 %v1415
    %v1454 = vpop.f32.mrb[0].mxu0
    %v1455 = vadd.f32 %v1395, %v1454
    %v1456 = vpop.f32.mrb[0].mxu0
    %v1457 = vpop.f32.mrb[0].mxu0
    %v1458 = vadd.f32 %v1398, %v1457
    %v1459 = vpop.f32.mrb[0].mxu0
    %1460 = vmatprep.mubr.bf16.mxu0 0
    %1461 = vmatmul.mubr.bf16.gmra.mrb[0].mxu0 %v1418
    %v1462 = vpop.f32.mrb[0].mxu0
    %v1463 = vadd.f32 %v1403, %v1462
    %v1464 = vpop.f32.mrb[0].mxu0
    %v1465 = vpop.f32.mrb[0].mxu0
    %v1466 = vpop.f32.mrb[0].mxu0
    %1467 = vdwg.mxu0
    %s1468 = scalar_lea.vmem %s15, 24
    %v1469 = vld [vmem:[%s1468] sm:$0xf]
    %v1470 = vld [vmem:[%s1468 + $0x4] sm:$0xf]
    %v1471 = vld [vmem:[%s1468 + $0x8] sm:$0x7]
    %v1475 = vunpack.c.l.b16 %v1469
    %v1476 = vunpack.c.l.b16 %v1470
    %v1477 = vunpack.c.l.b16 %v1471
    %v1478 = vpack.c.b16 %v1476, %v1475
    %v1479 = vpack.c.b16 %v1477, %v1477
    %v1481 = vsel %vm1214, %v1478, 0
    %v1484 = vsel %vm1214, %v1479, 0
    %1486 = vmatprep.subr.bf16.mxu0 0
    %1487 = vmatpush1.bf16.msra.mxu0 %v1200
    %1488 = vmatprep.subr.bf16.mxu0 0
    %1489 = vmatpush1.bf16.msra.mxu0 %v1201
    %1490 = vmatprep.subr.bf16.mxu0 0
    %1491 = vmatpush1.bf16.msra.mxu0 %v1223
    %1492 = vmatprep.subr.bf16.mxu0 0
    %1493 = vmatpush1.bf16.msra.mxu0 0
    %1494 = vmatprep.subr.bf16.mxu0 0
    %1495 = vmatpush1.bf16.msra.mxu0 0
    %1496 = vmatprep.subr.bf16.mxu0 0
    %1497 = vmatpush1.bf16.msra.mxu0 0
    %1498 = vmatprep.subr.bf16.mxu0 0
    %1499 = vmatpush1.bf16.msra.mxu0 0
    %1500 = vmatprep.subr.bf16.mxu0 0
    %1501 = vmatpush1.bf16.msra.mxu0 0
    %1502 = vmatprep.subr.bf16.mxu0 0
    %1503 = vmatpush1.bf16.msra.mxu0 0
    %1504 = vmatprep.subr.bf16.mxu0 0
    %1505 = vmatpush1.bf16.msra.mxu0 0
    %1506 = vmatprep.subr.bf16.mxu0 0
    %1507 = vmatpush1.bf16.msra.mxu0 0
    %1508 = vmatprep.subr.bf16.mxu0 0
    %1509 = vmatpush1.bf16.msra.mxu0 0
    %1510 = vmatprep.subr.bf16.mxu0 0
    %1511 = vmatpush1.bf16.msra.mxu0 0
    %1512 = vmatprep.subr.bf16.mxu0 0
    %1513 = vmatpush1.bf16.msra.mxu0 0
    %1514 = vmatprep.subr.bf16.mxu0 0
    %1515 = vmatpush1.bf16.msra.mxu0 0
    %1516 = vmatprep.subr.bf16.mxu0 0
    %1517 = vmatpush1.bf16.msra.mxu0 0
    %1518 = vmatprep.mubr.bf16.mxu0 0
    %1519 = vmatmul.mubr.bf16.gmra.mrb[0].mxu0 %v1481
    %v1520 = vpop.f32.mrb[0].mxu0
    %v1521 = vadd.f32 0.0, %v1520
    %v1522 = vpop.f32.mrb[0].mxu0
    %v1523 = vpop.f32.mrb[0].mxu0
    %v1524 = vadd.f32 0.0, %v1523
    %v1525 = vpop.f32.mrb[0].mxu0
    %1526 = vmatprep.mubr.bf16.mxu0 0
    %1527 = vmatmul.mubr.bf16.gmra.mrb[0].mxu0 %v1484
    %v1528 = vpop.f32.mrb[0].mxu0
    %v1529 = vadd.f32 0.0, %v1528
    %v1530 = vpop.f32.mrb[0].mxu0
    %v1531 = vpop.f32.mrb[0].mxu0
    %v1532 = vpop.f32.mrb[0].mxu0
    %1533 = vdwg.mxu0
    %v1534 = vpack.c.bf16 %v1524, %v1521
    %v1535 = vpack.c.bf16 %v1529, %v1529
    %s1536 = scalar_lea.vmem %s17, 16
    %v1537 = vld [vmem:[%s1536] sm:$0xf]
    %v1538 = vld [vmem:[%s1536 + $0x4] sm:$0xf]
    %v1541 = vunpack.c.l.b16 %v1537
    %v1542 = vunpack.c.l.b16 %v1538
    %v1543 = vpack.c.b16 %v1542, %v1541
    %v1546 = vsel %vm1113, %v1534, 0
    %v1549 = vsel %vm1113, %v1535, 0
    %1551 = vmatprep.subr.bf16.mxu0 0
    %1552 = vmatpush1.bf16.msra.mxu0 %v1543
    %1553 = vmatprep.subr.bf16.mxu0 0
    %1554 = vmatpush1.bf16.msra.mxu0 0
    %1555 = vmatprep.subr.bf16.mxu0 0
    %1556 = vmatpush1.bf16.msra.mxu0 0
    %1557 = vmatprep.subr.bf16.mxu0 0
    %1558 = vmatpush1.bf16.msra.mxu0 0
    %1559 = vmatprep.subr.bf16.mxu0 0
    %1560 = vmatpush1.bf16.msra.mxu0 0
    %1561 = vmatprep.subr.bf16.mxu0 0
    %1562 = vmatpush1.bf16.msra.mxu0 0
    %1563 = vmatprep.subr.bf16.mxu0 0
    %1564 = vmatpush1.bf16.msra.mxu0 0
    %1565 = vmatprep.subr.bf16.mxu0 0
    %1566 = vmatpush1.bf16.msra.mxu0 0
    %1567 = vmatprep.subr.bf16.mxu0 0
    %1568 = vmatpush1.bf16.msra.mxu0 0
    %1569 = vmatprep.subr.bf16.mxu0 0
    %1570 = vmatpush1.bf16.msra.mxu0 0
    %1571 = vmatprep.subr.bf16.mxu0 0
    %1572 = vmatpush1.bf16.msra.mxu0 0
    %1573 = vmatprep.subr.bf16.mxu0 0
    %1574 = vmatpush1.bf16.msra.mxu0 0
    %1575 = vmatprep.subr.bf16.mxu0 0
    %1576 = vmatpush1.bf16.msra.mxu0 0
    %1577 = vmatprep.subr.bf16.mxu0 0
    %1578 = vmatpush1.bf16.msra.mxu0 0
    %1579 = vmatprep.subr.bf16.mxu0 0
    %1580 = vmatpush1.bf16.msra.mxu0 0
    %1581 = vmatprep.subr.bf16.mxu0 0
    %1582 = vmatpush1.bf16.msra.mxu0 0
    %1583 = vmatprep.mubr.bf16.mxu0 0
    %1584 = vmatmul.mubr.bf16.gmra.mrb[0].mxu0 %v1546
    %v1585 = vpop.f32.mrb[0].mxu0
    %v1586 = vadd.f32 0.0, %v1585
    %v1587 = vpop.f32.mrb[0].mxu0
    %v1588 = vpop.f32.mrb[0].mxu0
    %v1589 = vadd.f32 0.0, %v1588
    %v1590 = vpop.f32.mrb[0].mxu0
    %1591 = vmatprep.mubr.bf16.mxu0 0
    %1592 = vmatmul.mubr.bf16.gmra.mrb[0].mxu0 %v1549
    %v1593 = vpop.f32.mrb[0].mxu0
    %v1594 = vadd.f32 0.0, %v1593
    %v1595 = vpop.f32.mrb[0].mxu0
    %v1596 = vpop.f32.mrb[0].mxu0
    %v1597 = vpop.f32.mrb[0].mxu0
    %1598 = vdwg.mxu0
    %v1599 = vadd.f32 %v1455, %v1586
    %v1600 = vadd.f32 %v1458, %v1589
    %v1601 = vadd.f32 %v1463, %v1594
    %v1602 = vld [vmem:[%s19] sm:$0x1]
    %v1604 = vlaneseq
    %v1605 = vshrl.u32 %v1604, 7
    %v1606 = vsub.s32 0, %v1605
    %v1607 = vrot.slane %v1602, %v1606
    %v1609 = vadd.f32 %v1599, %v1607
    %v1610 = vadd.f32 %v1600, %v1607
    %v1611 = vadd.f32 %v1601, %v1607
    %v1612 = vmax.f32 %v1609, 0.0
    %v1613 = vmax.f32 %v1610, 0.0
    %v1614 = vmax.f32 %v1611, 0.0
    %vm1615 = vcmask 261120
    %v1616 = vsel %vm1615, %v1612, 0.0
    %v1617 = vsel %vm1615, %v1613, 0.0
    %v1618 = vadd.f32 %v1616, %v1617
    %vm1619 = vcmask 259072
    %v1620 = vsel %vm1619, %v1614, 0.0
    %v1621 = vadd.f32 %v1618, %v1620
    %v1622 = vrot.slane %v1621, 4
    %v1623 = vadd.f32 %v1621, %v1622
    %v1624 = vrot.slane %v1623, 2
    %v1625 = vadd.f32 %v1623, %v1624
    %v1626 = vrot.slane %v1625, 1
    %v1627 = vadd.f32 %v1625, %v1626
    %v1628 = vmul.f32 %v1627, 0.045454547
    %v1629 = vmul.f32 %v1612, %v1612
    %v1630 = vmul.f32 %v1613, %v1613
    %v1631 = vmul.f32 %v1614, %v1614
    %v1632 = vsel %vm1615, %v1629, 0.0
    %v1633 = vsel %vm1615, %v1630, 0.0
    %v1634 = vadd.f32 %v1632, %v1633
    %v1635 = vsel %vm1619, %v1631, 0.0
    %v1636 = vadd.f32 %v1634, %v1635
    %v1637 = vrot.slane %v1636, 4
    %v1638 = vadd.f32 %v1636, %v1637
    %v1639 = vrot.slane %v1638, 2
    %v1640 = vadd.f32 %v1638, %v1639
    %v1641 = vrot.slane %v1640, 1
    %v1642 = vadd.f32 %v1640, %v1641
    %v1643 = vmul.f32 %v1642, 0.045454547
    %v1644 = vmul.f32 %v1628, %v1628
    %v1645 = vsub.f32 %v1643, %v1644
    %v1646 = vmax.f32 %v1645, 0.0
    %v1647 = vsub.f32 %v1612, %v1628
    %v1648 = vsub.f32 %v1613, %v1628
    %v1649 = vsub.f32 %v1614, %v1628
    %v1650 = vadd.f32 %v1646, 1e-05
    %v1651 = vrsqrt.pop %v1650
    %v1652 = vmul.f32 %v1647, %v1651
    %v1653 = vmul.f32 %v1648, %v1651
    %v1654 = vmul.f32 %v1649, %v1651
    %v1655 = vld [vmem:[#allocation9] sm:$0x1]
    %v1657 = vlaneseq
    %v1658 = vshrl.u32 %v1657, 7
    %v1659 = vsub.s32 0, %v1658
    %v1660 = vrot.slane %v1655, %v1659
    %v1662 = vmul.f32 %v1652, %v1660
    %v1663 = vmul.f32 %v1653, %v1660
    %v1664 = vmul.f32 %v1654, %v1660
    %v1665 = vld [vmem:[#allocation10] sm:$0x1]
    %v1667 = vlaneseq
    %v1668 = vshrl.u32 %v1667, 7
    %v1669 = vsub.s32 0, %v1668
    %v1670 = vrot.slane %v1665, %v1669
    %v1672 = vadd.f32 %v1662, %v1670
    %v1673 = vadd.f32 %v1663, %v1670
    %v1674 = vadd.f32 %v1664, %v1670
    %v1675 = vpack.c.bf16 %v1673, %v1672
    %v1676 = vpack.c.bf16 %v1674, %v1674
    %v1677 = vld [vmem:[%s25] sm:$0xf]
    %v1678 = vld [vmem:[%s25 + $0x4] sm:$0x3]
    %v1681 = vunpack.c.l.b16 %v1677
    %v1682 = vunpack.c.l.b16 %v1678
    %v1683 = vpack.c.b16 %v1682, %v1681
    %vm1684 = vcmask 179200
    %v1686 = vsel %vm1684, %v1683, 0
    %vm1688 = vcmask 1042432
    %v1690 = vsel %vm1688, %v1676, 0
    %1692 = vmatprep.subr.bf16.mxu0 0
    %1693 = vmatpush1.bf16.msra.mxu0 %v1675
    %1694 = vmatprep.subr.bf16.mxu0 0
    %1695 = vmatpush1.bf16.msra.mxu0 %v1690
    %1696 = vmatprep.subr.bf16.mxu0 0
    %1697 = vmatpush1.bf16.msra.mxu0 0
    %1698 = vmatprep.subr.bf16.mxu0 0
    %1699 = vmatpush1.bf16.msra.mxu0 0
    %1700 = vmatprep.subr.bf16.mxu0 0
    %1701 = vmatpush1.bf16.msra.mxu0 0
    %1702 = vmatprep.subr.bf16.mxu0 0
    %1703 = vmatpush1.bf16.msra.mxu0 0
    %1704 = vmatprep.subr.bf16.mxu0 0
    %1705 = vmatpush1.bf16.msra.mxu0 0
    %1706 = vmatprep.subr.bf16.mxu0 0
    %1707 = vmatpush1.bf16.msra.mxu0 0
    %1708 = vmatprep.subr.bf16.mxu0 0
    %1709 = vmatpush1.bf16.msra.mxu0 0
    %1710 = vmatprep.subr.bf16.mxu0 0
    %1711 = vmatpush1.bf16.msra.mxu0 0
    %1712 = vmatprep.subr.bf16.mxu0 0
    %1713 = vmatpush1.bf16.msra.mxu0 0
    %1714 = vmatprep.subr.bf16.mxu0 0
    %1715 = vmatpush1.bf16.msra.mxu0 0
    %1716 = vmatprep.subr.bf16.mxu0 0
    %1717 = vmatpush1.bf16.msra.mxu0 0
    %1718 = vmatprep.subr.bf16.mxu0 0
    %1719 = vmatpush1.bf16.msra.mxu0 0
    %1720 = vmatprep.subr.bf16.mxu0 0
    %1721 = vmatpush1.bf16.msra.mxu0 0
    %1722 = vmatprep.subr.bf16.mxu0 0
    %1723 = vmatpush1.bf16.msra.mxu0 0
    %1724 = vmatprep.mubr.bf16.mxu0 0
    %1725 = vmatmul.mubr.bf16.gmra.mrb[0].mxu0 %v1686
    %v1726 = vpop.f32.mrb[0].mxu0
    %v1727 = vadd.f32 0.0, %v1726
    %v1728 = vpop.f32.mrb[0].mxu0
    %v1729 = vpop.f32.mrb[0].mxu0
    %v1730 = vadd.f32 0.0, %v1729
    %v1731 = vpop.f32.mrb[0].mxu0
    %1732 = vdwg.mxu0
    %v1733 = vpack.c.bf16 %v1730, %v1727
    %v1734 = vld [vmem:[%s27] sm:$0xf]
    %v1735 = vld [vmem:[%s27 + $0x4] sm:$0xf]
    %v1736 = vld [vmem:[%s27 + $0x8] sm:$0xf]
    %v1737 = vld [vmem:[%s27 + $0xc] sm:$0xf]
    %s1738 = scalar_lea.vmem %s25, 8
    %v1739 = vld [vmem:[%s1738] sm:$0xf]
    %v1740 = vld [vmem:[%s1738 + $0x4] sm:$0x3]
    %v1743 = vunpack.c.l.b16 %v1739
    %v1744 = vunpack.c.l.b16 %v1740
    %v1745 = vpack.c.b16 %v1744, %v1743
    %v1747 = vsel %vm1684, %v1745, 0
    %1749 = vmatprep.subr.bf16.mxu0 0
    %1750 = vmatpush1.bf16.msra.mxu0 %v1675
    %1751 = vmatprep.subr.bf16.mxu0 0
    %1752 = vmatpush1.bf16.msra.mxu0 %v1690
    %1753 = vmatprep.subr.bf16.mxu0 0
    %1754 = vmatpush1.bf16.msra.mxu0 0
    %1755 = vmatprep.subr.bf16.mxu0 0
    %1756 = vmatpush1.bf16.msra.mxu0 0
    %1757 = vmatprep.subr.bf16.mxu0 0
    %1758 = vmatpush1.bf16.msra.mxu0 0
    %1759 = vmatprep.subr.bf16.mxu0 0
    %1760 = vmatpush1.bf16.msra.mxu0 0
    %1761 = vmatprep.subr.bf16.mxu0 0
    %1762 = vmatpush1.bf16.msra.mxu0 0
    %1763 = vmatprep.subr.bf16.mxu0 0
    %1764 = vmatpush1.bf16.msra.mxu0 0
    %1765 = vmatprep.subr.bf16.mxu0 0
    %1766 = vmatpush1.bf16.msra.mxu0 0
    %1767 = vmatprep.subr.bf16.mxu0 0
    %1768 = vmatpush1.bf16.msra.mxu0 0
    %1769 = vmatprep.subr.bf16.mxu0 0
    %1770 = vmatpush1.bf16.msra.mxu0 0
    %1771 = vmatprep.subr.bf16.mxu0 0
    %1772 = vmatpush1.bf16.msra.mxu0 0
    %1773 = vmatprep.subr.bf16.mxu0 0
    %1774 = vmatpush1.bf16.msra.mxu0 0
    %1775 = vmatprep.subr.bf16.mxu0 0
    %1776 = vmatpush1.bf16.msra.mxu0 0
    %1777 = vmatprep.subr.bf16.mxu0 0
    %1778 = vmatpush1.bf16.msra.mxu0 0
    %1779 = vmatprep.subr.bf16.mxu0 0
    %1780 = vmatpush1.bf16.msra.mxu0 0
    %1781 = vmatprep.mubr.bf16.mxu0 0
    %1782 = vmatmul.mubr.bf16.gmra.mrb[0].mxu0 %v1747
    %v1783 = vpop.f32.mrb[0].mxu0
    %v1784 = vadd.f32 0.0, %v1783
    %v1785 = vpop.f32.mrb[0].mxu0
    %v1786 = vpop.f32.mrb[0].mxu0
    %v1787 = vadd.f32 0.0, %v1786
    %v1788 = vpop.f32.mrb[0].mxu0
    %1789 = vdwg.mxu0
    %v1790 = vpack.c.bf16 %v1787, %v1784
    %s1791 = scalar_lea.vmem %s27, 16
    %v1792 = vld [vmem:[%s1791] sm:$0xf]
    %v1793 = vld [vmem:[%s1791 + $0x4] sm:$0xf]
    %v1794 = vld [vmem:[%s1791 + $0x8] sm:$0xf]
    %v1795 = vld [vmem:[%s1791 + $0xc] sm:$0xf]
    %v1800 = vunpack.c.l.b16 %v1792
    %v1801 = vunpack.c.l.b16 %v1793
    %v1802 = vunpack.c.l.b16 %v1794
    %v1803 = vunpack.c.l.b16 %v1795
    %v1804 = vpack.c.b16 %v1801, %v1800
    %v1805 = vpack.c.b16 %v1803, %v1802
    %v1809 = vsel %vm1615, %v1790, 0
    %1811 = vmatprep.subr.bf16.mxu0 0
    %1812 = vmatpush1.bf16.msra.mxu0 %v1804
    %1813 = vmatprep.subr.bf16.mxu0 0
    %1814 = vmatpush1.bf16.msra.mxu0 %v1805
    %1815 = vmatprep.subr.bf16.mxu0 0
    %1816 = vmatpush1.bf16.msra.mxu0 0
    %1817 = vmatprep.subr.bf16.mxu0 0
    %1818 = vmatpush1.bf16.msra.mxu0 0
    %1819 = vmatprep.subr.bf16.mxu0 0
    %1820 = vmatpush1.bf16.msra.mxu0 0
    %1821 = vmatprep.subr.bf16.mxu0 0
    %1822 = vmatpush1.bf16.msra.mxu0 0
    %1823 = vmatprep.subr.bf16.mxu0 0
    %1824 = vmatpush1.bf16.msra.mxu0 0
    %1825 = vmatprep.subr.bf16.mxu0 0
    %1826 = vmatpush1.bf16.msra.mxu0 0
    %1827 = vmatprep.subr.bf16.mxu0 0
    %1828 = vmatpush1.bf16.msra.mxu0 0
    %1829 = vmatprep.subr.bf16.mxu0 0
    %1830 = vmatpush1.bf16.msra.mxu0 0
    %1831 = vmatprep.subr.bf16.mxu0 0
    %1832 = vmatpush1.bf16.msra.mxu0 0
    %1833 = vmatprep.subr.bf16.mxu0 0
    %1834 = vmatpush1.bf16.msra.mxu0 0
    %1835 = vmatprep.subr.bf16.mxu0 0
    %1836 = vmatpush1.bf16.msra.mxu0 0
    %1837 = vmatprep.subr.bf16.mxu0 0
    %1838 = vmatpush1.bf16.msra.mxu0 0
    %1839 = vmatprep.subr.bf16.mxu0 0
    %1840 = vmatpush1.bf16.msra.mxu0 0
    %1841 = vmatprep.subr.bf16.mxu0 0
    %1842 = vmatpush1.bf16.msra.mxu0 0
    %1843 = vmatprep.mubr.bf16.mxu0 0
    %1844 = vmatmul.mubr.bf16.gmra.mrb[0].mxu0 %v1809
    %v1845 = vpop.f32.mrb[0].mxu0
    %v1846 = vadd.f32 0.0, %v1845
    %v1847 = vpop.f32.mrb[0].mxu0
    %v1848 = vpop.f32.mrb[0].mxu0
    %v1849 = vadd.f32 0.0, %v1848
    %v1850 = vpop.f32.mrb[0].mxu0
    %1851 = vdwg.mxu0
    %v1856 = vunpack.c.l.b16 %v1734
    %v1857 = vunpack.c.l.b16 %v1735
    %v1858 = vunpack.c.l.b16 %v1736
    %v1859 = vunpack.c.l.b16 %v1737
    %v1860 = vpack.c.b16 %v1857, %v1856
    %v1861 = vpack.c.b16 %v1859, %v1858
    %v1865 = vsel %vm1615, %v1733, 0
    %1867 = vmatprep.subr.bf16.mxu0 0
    %1868 = vmatpush1.bf16.msra.mxu0 %v1860
    %1869 = vmatprep.subr.bf16.mxu0 0
    %1870 = vmatpush1.bf16.msra.mxu0 %v1861
    %1871 = vmatprep.subr.bf16.mxu0 0
    %1872 = vmatpush1.bf16.msra.mxu0 0
    %1873 = vmatprep.subr.bf16.mxu0 0
    %1874 = vmatpush1.bf16.msra.mxu0 0
    %1875 = vmatprep.subr.bf16.mxu0 0
    %1876 = vmatpush1.bf16.msra.mxu0 0
    %1877 = vmatprep.subr.bf16.mxu0 0
    %1878 = vmatpush1.bf16.msra.mxu0 0
    %1879 = vmatprep.subr.bf16.mxu0 0
    %1880 = vmatpush1.bf16.msra.mxu0 0
    %1881 = vmatprep.subr.bf16.mxu0 0
    %1882 = vmatpush1.bf16.msra.mxu0 0
    %1883 = vmatprep.subr.bf16.mxu0 0
    %1884 = vmatpush1.bf16.msra.mxu0 0
    %1885 = vmatprep.subr.bf16.mxu0 0
    %1886 = vmatpush1.bf16.msra.mxu0 0
    %1887 = vmatprep.subr.bf16.mxu0 0
    %1888 = vmatpush1.bf16.msra.mxu0 0
    %1889 = vmatprep.subr.bf16.mxu0 0
    %1890 = vmatpush1.bf16.msra.mxu0 0
    %1891 = vmatprep.subr.bf16.mxu0 0
    %1892 = vmatpush1.bf16.msra.mxu0 0
    %1893 = vmatprep.subr.bf16.mxu0 0
    %1894 = vmatpush1.bf16.msra.mxu0 0
    %1895 = vmatprep.subr.bf16.mxu0 0
    %1896 = vmatpush1.bf16.msra.mxu0 0
    %1897 = vmatprep.subr.bf16.mxu0 0
    %1898 = vmatpush1.bf16.msra.mxu0 0
    %1899 = vmatprep.mubr.bf16.mxu0 0
    %1900 = vmatmul.mubr.bf16.gmra.mrb[0].mxu0 %v1865
    %v1901 = vpop.f32.mrb[0].mxu0
    %v1902 = vadd.f32 %v1846, %v1901
    %v1903 = vpop.f32.mrb[0].mxu0
    %v1904 = vpop.f32.mrb[0].mxu0
    %v1905 = vadd.f32 %v1849, %v1904
    %v1906 = vpop.f32.mrb[0].mxu0
    %1907 = vdwg.mxu0
    %s1908 = scalar_lea.vmem %s25, 16
    %v1909 = vld [vmem:[%s1908] sm:$0xf]
    %v1910 = vld [vmem:[%s1908 + $0x4] sm:$0x3]
    %v1913 = vunpack.c.l.b16 %v1909
    %v1914 = vunpack.c.l.b16 %v1910
    %v1915 = vpack.c.b16 %v1914, %v1913
    %v1917 = vsel %vm1684, %v1915, 0
    %1919 = vmatprep.subr.bf16.mxu0 0
    %1920 = vmatpush1.bf16.msra.mxu0 %v1675
    %1921 = vmatprep.subr.bf16.mxu0 0
    %1922 = vmatpush1.bf16.msra.mxu0 %v1690
    %1923 = vmatprep.subr.bf16.mxu0 0
    %1924 = vmatpush1.bf16.msra.mxu0 0
    %1925 = vmatprep.subr.bf16.mxu0 0
    %1926 = vmatpush1.bf16.msra.mxu0 0
    %1927 = vmatprep.subr.bf16.mxu0 0
    %1928 = vmatpush1.bf16.msra.mxu0 0
    %1929 = vmatprep.subr.bf16.mxu0 0
    %1930 = vmatpush1.bf16.msra.mxu0 0
    %1931 = vmatprep.subr.bf16.mxu0 0
    %1932 = vmatpush1.bf16.msra.mxu0 0
    %1933 = vmatprep.subr.bf16.mxu0 0
    %1934 = vmatpush1.bf16.msra.mxu0 0
    %1935 = vmatprep.subr.bf16.mxu0 0
    %1936 = vmatpush1.bf16.msra.mxu0 0
    %1937 = vmatprep.subr.bf16.mxu0 0
    %1938 = vmatpush1.bf16.msra.mxu0 0
    %1939 = vmatprep.subr.bf16.mxu0 0
    %1940 = vmatpush1.bf16.msra.mxu0 0
    %1941 = vmatprep.subr.bf16.mxu0 0
    %1942 = vmatpush1.bf16.msra.mxu0 0
    %1943 = vmatprep.subr.bf16.mxu0 0
    %1944 = vmatpush1.bf16.msra.mxu0 0
    %1945 = vmatprep.subr.bf16.mxu0 0
    %1946 = vmatpush1.bf16.msra.mxu0 0
    %1947 = vmatprep.subr.bf16.mxu0 0
    %1948 = vmatpush1.bf16.msra.mxu0 0
    %1949 = vmatprep.subr.bf16.mxu0 0
    %1950 = vmatpush1.bf16.msra.mxu0 0
    %1951 = vmatprep.mubr.bf16.mxu0 0
    %1952 = vmatmul.mubr.bf16.gmra.mrb[0].mxu0 %v1917
    %v1953 = vpop.f32.mrb[0].mxu0
    %v1954 = vadd.f32 0.0, %v1953
    %v1955 = vpop.f32.mrb[0].mxu0
    %v1956 = vpop.f32.mrb[0].mxu0
    %v1957 = vadd.f32 0.0, %v1956
    %v1958 = vpop.f32.mrb[0].mxu0
    %1959 = vdwg.mxu0
    %v1960 = vpack.c.bf16 %v1957, %v1954
    %s1961 = scalar_lea.vmem %s27, 32
    %v1962 = vld [vmem:[%s1961] sm:$0xf]
    %v1963 = vld [vmem:[%s1961 + $0x4] sm:$0xf]
    %v1964 = vld [vmem:[%s1961 + $0x8] sm:$0xf]
    %v1965 = vld [vmem:[%s1961 + $0xc] sm:$0xf]
    %v1970 = vunpack.c.l.b16 %v1962
    %v1971 = vunpack.c.l.b16 %v1963
    %v1972 = vunpack.c.l.b16 %v1964
    %v1973 = vunpack.c.l.b16 %v1965
    %v1974 = vpack.c.b16 %v1971, %v1970
    %v1975 = vpack.c.b16 %v1973, %v1972
    %v1979 = vsel %vm1615, %v1960, 0
    %1981 = vmatprep.subr.bf16.mxu0 0
    %1982 = vmatpush1.bf16.msra.mxu0 %v1974
    %1983 = vmatprep.subr.bf16.mxu0 0
    %1984 = vmatpush1.bf16.msra.mxu0 %v1975
    %1985 = vmatprep.subr.bf16.mxu0 0
    %1986 = vmatpush1.bf16.msra.mxu0 0
    %1987 = vmatprep.subr.bf16.mxu0 0
    %1988 = vmatpush1.bf16.msra.mxu0 0
    %1989 = vmatprep.subr.bf16.mxu0 0
    %1990 = vmatpush1.bf16.msra.mxu0 0
    %1991 = vmatprep.subr.bf16.mxu0 0
    %1992 = vmatpush1.bf16.msra.mxu0 0
    %1993 = vmatprep.subr.bf16.mxu0 0
    %1994 = vmatpush1.bf16.msra.mxu0 0
    %1995 = vmatprep.subr.bf16.mxu0 0
    %1996 = vmatpush1.bf16.msra.mxu0 0
    %1997 = vmatprep.subr.bf16.mxu0 0
    %1998 = vmatpush1.bf16.msra.mxu0 0
    %1999 = vmatprep.subr.bf16.mxu0 0
    %2000 = vmatpush1.bf16.msra.mxu0 0
    %2001 = vmatprep.subr.bf16.mxu0 0
    %2002 = vmatpush1.bf16.msra.mxu0 0
    %2003 = vmatprep.subr.bf16.mxu0 0
    %2004 = vmatpush1.bf16.msra.mxu0 0
    %2005 = vmatprep.subr.bf16.mxu0 0
    %2006 = vmatpush1.bf16.msra.mxu0 0
    %2007 = vmatprep.subr.bf16.mxu0 0
    %2008 = vmatpush1.bf16.msra.mxu0 0
    %2009 = vmatprep.subr.bf16.mxu0 0
    %2010 = vmatpush1.bf16.msra.mxu0 0
    %2011 = vmatprep.subr.bf16.mxu0 0
    %2012 = vmatpush1.bf16.msra.mxu0 0
    %2013 = vmatprep.mubr.bf16.mxu0 0
    %2014 = vmatmul.mubr.bf16.gmra.mrb[0].mxu0 %v1979
    %v2015 = vpop.f32.mrb[0].mxu0
    %v2016 = vadd.f32 0.0, %v2015
    %v2017 = vpop.f32.mrb[0].mxu0
    %v2018 = vpop.f32.mrb[0].mxu0
    %v2019 = vadd.f32 0.0, %v2018
    %v2020 = vpop.f32.mrb[0].mxu0
    %2021 = vdwg.mxu0
    %v2022 = vadd.f32 %v1902, %v2016
    %v2023 = vadd.f32 %v1905, %v2019
    %v2024 = vld [vmem:[#allocation12] sm:$0x1]
    %v2026 = vlaneseq
    %v2027 = vshrl.u32 %v2026, 7
    %v2028 = vsub.s32 0, %v2027
    %v2029 = vrot.slane %v2024, %v2028
    %v2031 = vadd.f32 %v2022, %v2029
    %v2032 = vadd.f32 %v2023, %v2029
    %v2033 = vmax.f32 %v2031, 0.0
    %v2034 = vmax.f32 %v2032, 0.0
    %vm2035 = vcmask 523264
    %v2036 = vsel %vm2035, %v2033, 0.0
    %vm2037 = vcmask 519168
    %v2038 = vsel %vm2037, %v2034, 0.0
    %v2039 = vadd.f32 %v2036, %v2038
    %v2040 = vrot.slane %v2039, 4
    %v2041 = vadd.f32 %v2039, %v2040
    %v2042 = vrot.slane %v2041, 2
    %v2043 = vadd.f32 %v2041, %v2042
    %v2044 = vrot.slane %v2043, 1
    %v2045 = vadd.f32 %v2043, %v2044
    %v2046 = vmul.f32 %v2045, 0.083333336
    %v2047 = vmul.f32 %v2033, %v2033
    %v2048 = vmul.f32 %v2034, %v2034
    %v2049 = vsel %vm2035, %v2047, 0.0
    %v2050 = vsel %vm2037, %v2048, 0.0
    %v2051 = vadd.f32 %v2049, %v2050
    %v2052 = vrot.slane %v2051, 4
    %v2053 = vadd.f32 %v2051, %v2052
    %v2054 = vrot.slane %v2053, 2
    %v2055 = vadd.f32 %v2053, %v2054
    %v2056 = vrot.slane %v2055, 1
    %v2057 = vadd.f32 %v2055, %v2056
    %v2058 = vmul.f32 %v2057, 0.083333336
    %v2059 = vmul.f32 %v2046, %v2046
    %v2060 = vsub.f32 %v2058, %v2059
    %v2061 = vmax.f32 %v2060, 0.0
    %v2062 = vsub.f32 %v2033, %v2046
    %v2063 = vsub.f32 %v2034, %v2046
    %v2064 = vadd.f32 %v2061, 1e-05
    %v2065 = vrsqrt.pop %v2064
    %v2066 = vmul.f32 %v2062, %v2065
    %v2067 = vmul.f32 %v2063, %v2065
    %v2068 = vld [vmem:[#allocation13] sm:$0x1]
    %v2070 = vlaneseq
    %v2071 = vshrl.u32 %v2070, 7
    %v2072 = vsub.s32 0, %v2071
    %v2073 = vrot.slane %v2068, %v2072
    %v2075 = vmul.f32 %v2066, %v2073
    %v2076 = vmul.f32 %v2067, %v2073
    %v2077 = vld [vmem:[#allocation15] sm:$0x1]
    %v2079 = vlaneseq
    %v2080 = vshrl.u32 %v2079, 7
    %v2081 = vsub.s32 0, %v2080
    %v2082 = vrot.slane %v2077, %v2081
    %v2084 = vadd.f32 %v2075, %v2082
    %v2085 = vadd.f32 %v2076, %v2082
    %v2086 = vpack.c.bf16 %v2085, %v2084
    %v2087 = vld [vmem:[#allocation16] sm:$0x7]
    %vm2088 = vcmask 97280
    %v2090 = vsel %vm2088, %v2087, 0
    %vm2092 = vcmask 1045504
    %v2094 = vsel %vm2092, %v2086, 0
    %2096 = vmatprep.subr.bf16.mxu0 0
    %2097 = vmatpush1.bf16.msra.mxu0 %v2094
    %2098 = vmatprep.subr.bf16.mxu0 0
    %2099 = vmatpush1.bf16.msra.mxu0 0
    %2100 = vmatprep.subr.bf16.mxu0 0
    %2101 = vmatpush1.bf16.msra.mxu0 0
    %2102 = vmatprep.subr.bf16.mxu0 0
    %2103 = vmatpush1.bf16.msra.mxu0 0
    %2104 = vmatprep.subr.bf16.mxu0 0
    %2105 = vmatpush1.bf16.msra.mxu0 0
    %2106 = vmatprep.subr.bf16.mxu0 0
    %2107 = vmatpush1.bf16.msra.mxu0 0
    %2108 = vmatprep.subr.bf16.mxu0 0
    %2109 = vmatpush1.bf16.msra.mxu0 0
    %2110 = vmatprep.subr.bf16.mxu0 0
    %2111 = vmatpush1.bf16.msra.mxu0 0
    %2112 = vmatprep.subr.bf16.mxu0 0
    %2113 = vmatpush1.bf16.msra.mxu0 0
    %2114 = vmatprep.subr.bf16.mxu0 0
    %2115 = vmatpush1.bf16.msra.mxu0 0
    %2116 = vmatprep.subr.bf16.mxu0 0
    %2117 = vmatpush1.bf16.msra.mxu0 0
    %2118 = vmatprep.subr.bf16.mxu0 0
    %2119 = vmatpush1.bf16.msra.mxu0 0
    %2120 = vmatprep.subr.bf16.mxu0 0
    %2121 = vmatpush1.bf16.msra.mxu0 0
    %2122 = vmatprep.subr.bf16.mxu0 0
    %2123 = vmatpush1.bf16.msra.mxu0 0
    %2124 = vmatprep.subr.bf16.mxu0 0
    %2125 = vmatpush1.bf16.msra.mxu0 0
    %2126 = vmatprep.subr.bf16.mxu0 0
    %2127 = vmatpush1.bf16.msra.mxu0 0
    %2128 = vmatprep.mubr.bf16.mxu0 0
    %2129 = vmatmul.mubr.bf16.gmra.mrb[0].mxu0 %v2090
    %v2130 = vpop.f32.mrb[0].mxu0
    %v2131 = vadd.f32 0.0, %v2130
    %v2132 = vpop.f32.mrb[0].mxu0
    %v2133 = vpop.f32.mrb[0].mxu0
    %v2134 = vpop.f32.mrb[0].mxu0
    %2135 = vdwg.mxu0
    %v2136 = vpack.c.bf16 %v2131, %v2131
    %v2137 = vld [vmem:[%s37] sm:$0xf]
    %v2138 = vld [vmem:[%s37 + $0x4] sm:$0xf]
    %v2139 = vld [vmem:[%s37 + $0x8] sm:$0xf]
    %v2140 = vld [vmem:[%s37 + $0xc] sm:$0xf]
    %v2141 = vld [vmem:[%s37 + $0x10] sm:$0xf]
    %v2142 = vld [vmem:[%s37 + $0x14] sm:$0xf]
    %v2143 = vld [vmem:[%s37 + $0x18] sm:$0xf]
    %v2144 = vld [vmem:[%s37 + $0x1c] sm:$0xf]
    %s2145 = scalar_lea.vmem [#allocation16], 4
    %v2146 = vld [vmem:[%s2145] sm:$0x7]
    %v2148 = vsel %vm2088, %v2146, 0
    %2150 = vmatprep.subr.bf16.mxu0 0
    %2151 = vmatpush1.bf16.msra.mxu0 %v2094
    %2152 = vmatprep.subr.bf16.mxu0 0
    %2153 = vmatpush1.bf16.msra.mxu0 0
    %2154 = vmatprep.subr.bf16.mxu0 0
    %2155 = vmatpush1.bf16.msra.mxu0 0
    %2156 = vmatprep.subr.bf16.mxu0 0
    %2157 = vmatpush1.bf16.msra.mxu0 0
    %2158 = vmatprep.subr.bf16.mxu0 0
    %2159 = vmatpush1.bf16.msra.mxu0 0
    %2160 = vmatprep.subr.bf16.mxu0 0
    %2161 = vmatpush1.bf16.msra.mxu0 0
    %2162 = vmatprep.subr.bf16.mxu0 0
    %2163 = vmatpush1.bf16.msra.mxu0 0
    %2164 = vmatprep.subr.bf16.mxu0 0
    %2165 = vmatpush1.bf16.msra.mxu0 0
    %2166 = vmatprep.subr.bf16.mxu0 0
    %2167 = vmatpush1.bf16.msra.mxu0 0
    %2168 = vmatprep.subr.bf16.mxu0 0
    %2169 = vmatpush1.bf16.msra.mxu0 0
    %2170 = vmatprep.subr.bf16.mxu0 0
    %2171 = vmatpush1.bf16.msra.mxu0 0
    %2172 = vmatprep.subr.bf16.mxu0 0
    %2173 = vmatpush1.bf16.msra.mxu0 0
    %2174 = vmatprep.subr.bf16.mxu0 0
    %2175 = vmatpush1.bf16.msra.mxu0 0
    %2176 = vmatprep.subr.bf16.mxu0 0
    %2177 = vmatpush1.bf16.msra.mxu0 0
    %2178 = vmatprep.subr.bf16.mxu0 0
    %2179 = vmatpush1.bf16.msra.mxu0 0
    %2180 = vmatprep.subr.bf16.mxu0 0
    %2181 = vmatpush1.bf16.msra.mxu0 0
    %2182 = vmatprep.mubr.bf16.mxu0 0
    %2183 = vmatmul.mubr.bf16.gmra.mrb[0].mxu0 %v2148
    %v2184 = vpop.f32.mrb[0].mxu0
    %v2185 = vadd.f32 0.0, %v2184
    %v2186 = vpop.f32.mrb[0].mxu0
    %v2187 = vpop.f32.mrb[0].mxu0
    %v2188 = vpop.f32.mrb[0].mxu0
    %2189 = vdwg.mxu0
    %v2190 = vpack.c.bf16 %v2185, %v2185
    %s2191 = scalar_lea.vmem %s37, 32
    %v2192 = vld [vmem:[%s2191] sm:$0xf]
    %v2193 = vld [vmem:[%s2191 + $0x4] sm:$0xf]
    %v2194 = vld [vmem:[%s2191 + $0x8] sm:$0xf]
    %v2195 = vld [vmem:[%s2191 + $0xc] sm:$0xf]
    %v2196 = vld [vmem:[%s2191 + $0x10] sm:$0xf]
    %v2197 = vld [vmem:[%s2191 + $0x14] sm:$0xf]
    %v2198 = vld [vmem:[%s2191 + $0x18] sm:$0xf]
    %v2199 = vld [vmem:[%s2191 + $0x1c] sm:$0xf]
    %v2208 = vunpack.c.l.b16 %v2192
    %v2209 = vunpack.c.l.b16 %v2193
    %v2210 = vunpack.c.l.b16 %v2194
    %v2211 = vunpack.c.l.b16 %v2195
    %v2212 = vunpack.c.l.b16 %v2196
    %v2213 = vunpack.c.l.b16 %v2197
    %v2214 = vunpack.c.l.b16 %v2198
    %v2215 = vunpack.c.l.b16 %v2199
    %v2216 = vpack.c.b16 %v2209, %v2208
    %v2217 = vpack.c.b16 %v2211, %v2210
    %v2218 = vpack.c.b16 %v2213, %v2212
    %v2219 = vpack.c.b16 %v2215, %v2214
    %v2225 = vsel %vm2035, %v2190, 0
    %2227 = vmatprep.subr.bf16.mxu0 0
    %2228 = vmatpush1.bf16.msra.mxu0 %v2216
    %2229 = vmatprep.subr.bf16.mxu0 0
    %2230 = vmatpush1.bf16.msra.mxu0 %v2217
    %2231 = vmatprep.subr.bf16.mxu0 0
    %2232 = vmatpush1.bf16.msra.mxu0 %v2218
    %2233 = vmatprep.subr.bf16.mxu0 0
    %2234 = vmatpush1.bf16.msra.mxu0 %v2219
    %2235 = vmatprep.subr.bf16.mxu0 0
    %2236 = vmatpush1.bf16.msra.mxu0 0
    %2237 = vmatprep.subr.bf16.mxu0 0
    %2238 = vmatpush1.bf16.msra.mxu0 0
    %2239 = vmatprep.subr.bf16.mxu0 0
    %2240 = vmatpush1.bf16.msra.mxu0 0
    %2241 = vmatprep.subr.bf16.mxu0 0
    %2242 = vmatpush1.bf16.msra.mxu0 0
    %2243 = vmatprep.subr.bf16.mxu0 0
    %2244 = vmatpush1.bf16.msra.mxu0 0
    %2245 = vmatprep.subr.bf16.mxu0 0
    %2246 = vmatpush1.bf16.msra.mxu0 0
    %2247 = vmatprep.subr.bf16.mxu0 0
    %2248 = vmatpush1.bf16.msra.mxu0 0
    %2249 = vmatprep.subr.bf16.mxu0 0
    %2250 = vmatpush1.bf16.msra.mxu0 0
    %2251 = vmatprep.subr.bf16.mxu0 0
    %2252 = vmatpush1.bf16.msra.mxu0 0
    %2253 = vmatprep.subr.bf16.mxu0 0
    %2254 = vmatpush1.bf16.msra.mxu0 0
    %2255 = vmatprep.subr.bf16.mxu0 0
    %2256 = vmatpush1.bf16.msra.mxu0 0
    %2257 = vmatprep.subr.bf16.mxu0 0
    %2258 = vmatpush1.bf16.msra.mxu0 0
    %2259 = vmatprep.mubr.bf16.mxu0 0
    %2260 = vmatmul.mubr.bf16.gmra.mrb[0].mxu0 %v2225
    %v2261 = vpop.f32.mrb[0].mxu0
    %v2262 = vadd.f32 0.0, %v2261
    %v2263 = vpop.f32.mrb[0].mxu0
    %v2264 = vpop.f32.mrb[0].mxu0
    %v2265 = vpop.f32.mrb[0].mxu0
    %2266 = vdwg.mxu0
    %v2275 = vunpack.c.l.b16 %v2137
    %v2276 = vunpack.c.l.b16 %v2138
    %v2277 = vunpack.c.l.b16 %v2139
    %v2278 = vunpack.c.l.b16 %v2140
    %v2279 = vunpack.c.l.b16 %v2141
    %v2280 = vunpack.c.l.b16 %v2142
    %v2281 = vunpack.c.l.b16 %v2143
    %v2282 = vunpack.c.l.b16 %v2144
    %v2283 = vpack.c.b16 %v2276, %v2275
    %v2284 = vpack.c.b16 %v2278, %v2277
    %v2285 = vpack.c.b16 %v2280, %v2279
    %v2286 = vpack.c.b16 %v2282, %v2281
    %v2292 = vsel %vm2035, %v2136, 0
    %2294 = vmatprep.subr.bf16.mxu0 0
    %2295 = vmatpush1.bf16.msra.mxu0 %v2283
    %2296 = vmatprep.subr.bf16.mxu0 0
    %2297 = vmatpush1.bf16.msra.mxu0 %v2284
    %2298 = vmatprep.subr.bf16.mxu0 0
    %2299 = vmatpush1.bf16.msra.mxu0 %v2285
    %2300 = vmatprep.subr.bf16.mxu0 0
    %2301 = vmatpush1.bf16.msra.mxu0 %v2286
    %2302 = vmatprep.subr.bf16.mxu0 0
    %2303 = vmatpush1.bf16.msra.mxu0 0
    %2304 = vmatprep.subr.bf16.mxu0 0
    %2305 = vmatpush1.bf16.msra.mxu0 0
    %2306 = vmatprep.subr.bf16.mxu0 0
    %2307 = vmatpush1.bf16.msra.mxu0 0
    %2308 = vmatprep.subr.bf16.mxu0 0
    %2309 = vmatpush1.bf16.msra.mxu0 0
    %2310 = vmatprep.subr.bf16.mxu0 0
    %2311 = vmatpush1.bf16.msra.mxu0 0
    %2312 = vmatprep.subr.bf16.mxu0 0
    %2313 = vmatpush1.bf16.msra.mxu0 0
    %2314 = vmatprep.subr.bf16.mxu0 0
    %2315 = vmatpush1.bf16.msra.mxu0 0
    %2316 = vmatprep.subr.bf16.mxu0 0
    %2317 = vmatpush1.bf16.msra.mxu0 0
    %2318 = vmatprep.subr.bf16.mxu0 0
    %2319 = vmatpush1.bf16.msra.mxu0 0
    %2320 = vmatprep.subr.bf16.mxu0 0
    %2321 = vmatpush1.bf16.msra.mxu0 0
    %2322 = vmatprep.subr.bf16.mxu0 0
    %2323 = vmatpush1.bf16.msra.mxu0 0
    %2324 = vmatprep.subr.bf16.mxu0 0
    %2325 = vmatpush1.bf16.msra.mxu0 0
    %2326 = vmatprep.mubr.bf16.mxu0 0
    %2327 = vmatmul.mubr.bf16.gmra.mrb[0].mxu0 %v2292
    %v2328 = vpop.f32.mrb[0].mxu0
    %v2329 = vadd.f32 %v2262, %v2328
    %v2330 = vpop.f32.mrb[0].mxu0
    %v2331 = vpop.f32.mrb[0].mxu0
    %v2332 = vpop.f32.mrb[0].mxu0
    %2333 = vdwg.mxu0
    %s2334 = scalar_lea.vmem [#allocation16], 8
    %v2335 = vld [vmem:[%s2334] sm:$0x7]
    %v2337 = vsel %vm2088, %v2335, 0
    %2339 = vmatprep.subr.bf16.mxu0 0
    %2340 = vmatpush1.bf16.msra.mxu0 %v2094
    %2341 = vmatprep.subr.bf16.mxu0 0
    %2342 = vmatpush1.bf16.msra.mxu0 0
    %2343 = vmatprep.subr.bf16.mxu0 0
    %2344 = vmatpush1.bf16.msra.mxu0 0
    %2345 = vmatprep.subr.bf16.mxu0 0
    %2346 = vmatpush1.bf16.msra.mxu0 0
    %2347 = vmatprep.subr.bf16.mxu0 0
    %2348 = vmatpush1.bf16.msra.mxu0 0
    %2349 = vmatprep.subr.bf16.mxu0 0
    %2350 = vmatpush1.bf16.msra.mxu0 0
    %2351 = vmatprep.subr.bf16.mxu0 0
    %2352 = vmatpush1.bf16.msra.mxu0 0
    %2353 = vmatprep.subr.bf16.mxu0 0
    %2354 = vmatpush1.bf16.msra.mxu0 0
    %2355 = vmatprep.subr.bf16.mxu0 0
    %2356 = vmatpush1.bf16.msra.mxu0 0
    %2357 = vmatprep.subr.bf16.mxu0 0
    %2358 = vmatpush1.bf16.msra.mxu0 0
    %2359 = vmatprep.subr.bf16.mxu0 0
    %2360 = vmatpush1.bf16.msra.mxu0 0
    %2361 = vmatprep.subr.bf16.mxu0 0
    %2362 = vmatpush1.bf16.msra.mxu0 0
    %2363 = vmatprep.subr.bf16.mxu0 0
    %2364 = vmatpush1.bf16.msra.mxu0 0
    %2365 = vmatprep.subr.bf16.mxu0 0
    %2366 = vmatpush1.bf16.msra.mxu0 0
    %2367 = vmatprep.subr.bf16.mxu0 0
    %2368 = vmatpush1.bf16.msra.mxu0 0
    %2369 = vmatprep.subr.bf16.mxu0 0
    %2370 = vmatpush1.bf16.msra.mxu0 0
    %2371 = vmatprep.mubr.bf16.mxu0 0
    %2372 = vmatmul.mubr.bf16.gmra.mrb[0].mxu0 %v2337
    %v2373 = vpop.f32.mrb[0].mxu0
    %v2374 = vadd.f32 0.0, %v2373
    %v2375 = vpop.f32.mrb[0].mxu0
    %v2376 = vpop.f32.mrb[0].mxu0
    %v2377 = vpop.f32.mrb[0].mxu0
    %2378 = vdwg.mxu0
    %v2379 = vpack.c.bf16 %v2374, %v2374
    %s2380 = scalar_lea.vmem %s37, 64
    %v2381 = vld [vmem:[%s2380] sm:$0xf]
    %v2382 = vld [vmem:[%s2380 + $0x4] sm:$0xf]
    %v2383 = vld [vmem:[%s2380 + $0x8] sm:$0xf]
    %v2384 = vld [vmem:[%s2380 + $0xc] sm:$0xf]
    %v2385 = vld [vmem:[%s2380 + $0x10] sm:$0xf]
    %v2386 = vld [vmem:[%s2380 + $0x14] sm:$0xf]
    %v2387 = vld [vmem:[%s2380 + $0x18] sm:$0xf]
    %v2388 = vld [vmem:[%s2380 + $0x1c] sm:$0xf]
    %v2397 = vunpack.c.l.b16 %v2381
    %v2398 = vunpack.c.l.b16 %v2382
    %v2399 = vunpack.c.l.b16 %v2383
    %v2400 = vunpack.c.l.b16 %v2384
    %v2401 = vunpack.c.l.b16 %v2385
    %v2402 = vunpack.c.l.b16 %v2386
    %v2403 = vunpack.c.l.b16 %v2387
    %v2404 = vunpack.c.l.b16 %v2388
    %v2405 = vpack.c.b16 %v2398, %v2397
    %v2406 = vpack.c.b16 %v2400, %v2399
    %v2407 = vpack.c.b16 %v2402, %v2401
    %v2408 = vpack.c.b16 %v2404, %v2403
    %v2414 = vsel %vm2035, %v2379, 0
    %2416 = vmatprep.subr.bf16.mxu0 0
    %2417 = vmatpush1.bf16.msra.mxu0 %v2405
    %2418 = vmatprep.subr.bf16.mxu0 0
    %2419 = vmatpush1.bf16.msra.mxu0 %v2406
    %2420 = vmatprep.subr.bf16.mxu0 0
    %2421 = vmatpush1.bf16.msra.mxu0 %v2407
    %2422 = vmatprep.subr.bf16.mxu0 0
    %2423 = vmatpush1.bf16.msra.mxu0 %v2408
    %2424 = vmatprep.subr.bf16.mxu0 0
    %2425 = vmatpush1.bf16.msra.mxu0 0
    %2426 = vmatprep.subr.bf16.mxu0 0
    %2427 = vmatpush1.bf16.msra.mxu0 0
    %2428 = vmatprep.subr.bf16.mxu0 0
    %2429 = vmatpush1.bf16.msra.mxu0 0
    %2430 = vmatprep.subr.bf16.mxu0 0
    %2431 = vmatpush1.bf16.msra.mxu0 0
    %2432 = vmatprep.subr.bf16.mxu0 0
    %2433 = vmatpush1.bf16.msra.mxu0 0
    %2434 = vmatprep.subr.bf16.mxu0 0
    %2435 = vmatpush1.bf16.msra.mxu0 0
    %2436 = vmatprep.subr.bf16.mxu0 0
    %2437 = vmatpush1.bf16.msra.mxu0 0
    %2438 = vmatprep.subr.bf16.mxu0 0
    %2439 = vmatpush1.bf16.msra.mxu0 0
    %2440 = vmatprep.subr.bf16.mxu0 0
    %2441 = vmatpush1.bf16.msra.mxu0 0
    %2442 = vmatprep.subr.bf16.mxu0 0
    %2443 = vmatpush1.bf16.msra.mxu0 0
    %2444 = vmatprep.subr.bf16.mxu0 0
    %2445 = vmatpush1.bf16.msra.mxu0 0
    %2446 = vmatprep.subr.bf16.mxu0 0
    %2447 = vmatpush1.bf16.msra.mxu0 0
    %2448 = vmatprep.mubr.bf16.mxu0 0
    %2449 = vmatmul.mubr.bf16.gmra.mrb[0].mxu0 %v2414
    %v2450 = vpop.f32.mrb[0].mxu0
    %v2451 = vadd.f32 0.0, %v2450
    %v2452 = vpop.f32.mrb[0].mxu0
    %v2453 = vpop.f32.mrb[0].mxu0
    %v2454 = vpop.f32.mrb[0].mxu0
    %2455 = vdwg.mxu0
    %v2456 = vadd.f32 %v2329, %v2451
    %v2457 = vld [vmem:[#allocation18] sm:$0x1]
    %v2459 = vlaneseq
    %v2460 = vshrl.u32 %v2459, 7
    %v2461 = vsub.s32 0, %v2460
    %v2462 = vrot.slane %v2457, %v2461
    %v2464 = vadd.f32 %v2456, %v2462
    %v2465 = vmax.f32 %v2464, 0.0
    %v2466 = vsel %vm2092, %v2465, 0.0
    %v2467 = vrot.slane %v2466, 4
    %v2468 = vadd.f32 %v2466, %v2467
    %v2469 = vrot.slane %v2468, 2
    %v2470 = vadd.f32 %v2468, %v2469
    %v2471 = vrot.slane %v2470, 1
    %v2472 = vadd.f32 %v2470, %v2471
    %v2473 = vmul.f32 %v2472, 0.16666667
    %v2474 = vmul.f32 %v2465, %v2465
    %v2475 = vsel %vm2092, %v2474, 0.0
    %v2476 = vrot.slane %v2475, 4
    %v2477 = vadd.f32 %v2475, %v2476
    %v2478 = vrot.slane %v2477, 2
    %v2479 = vadd.f32 %v2477, %v2478
    %v2480 = vrot.slane %v2479, 1
    %v2481 = vadd.f32 %v2479, %v2480
    %v2482 = vmul.f32 %v2481, 0.16666667
    %v2483 = vmul.f32 %v2473, %v2473
    %v2484 = vsub.f32 %v2482, %v2483
    %v2485 = vmax.f32 %v2484, 0.0
    %v2486 = vsub.f32 %v2465, %v2473
    %v2487 = vadd.f32 %v2485, 1e-05
    %v2488 = vrsqrt.pop %v2487
    %v2489 = vmul.f32 %v2486, %v2488
    %v2490 = vld [vmem:[#allocation19] sm:$0x1]
    %v2492 = vlaneseq
    %v2493 = vshrl.u32 %v2492, 7
    %v2494 = vsub.s32 0, %v2493
    %v2495 = vrot.slane %v2490, %v2494
    %v2497 = vmul.f32 %v2489, %v2495
    %v2498 = vld [vmem:[#allocation21] sm:$0x1]
    %v2500 = vlaneseq
    %v2501 = vshrl.u32 %v2500, 7
    %v2502 = vsub.s32 0, %v2501
    %v2503 = vrot.slane %v2498, %v2502
    %v2505 = vadd.f32 %v2497, %v2503
    %v2506 = vpack.c.bf16 %v2505, %v2505
    %v2507 = vld [vmem:[#allocation22] sm:$0x3]
    %vm2508 = vcmask 48128
    %v2510 = vsel %vm2508, %v2507, 0
    %v2513 = vsel %vm1688, %v2506, 0
    %2515 = vmatprep.subr.bf16.mxu0 0
    %2516 = vmatpush1.bf16.msra.mxu0 %v2513
    %2517 = vmatprep.subr.bf16.mxu0 0
    %2518 = vmatpush1.bf16.msra.mxu0 0
    %2519 = vmatprep.subr.bf16.mxu0 0
    %2520 = vmatpush1.bf16.msra.mxu0 0
    %2521 = vmatprep.subr.bf16.mxu0 0
    %2522 = vmatpush1.bf16.msra.mxu0 0
    %2523 = vmatprep.subr.bf16.mxu0 0
    %2524 = vmatpush1.bf16.msra.mxu0 0
    %2525 = vmatprep.subr.bf16.mxu0 0
    %2526 = vmatpush1.bf16.msra.mxu0 0
    %2527 = vmatprep.subr.bf16.mxu0 0
    %2528 = vmatpush1.bf16.msra.mxu0 0
    %2529 = vmatprep.subr.bf16.mxu0 0
    %2530 = vmatpush1.bf16.msra.mxu0 0
    %2531 = vmatprep.subr.bf16.mxu0 0
    %2532 = vmatpush1.bf16.msra.mxu0 0
    %2533 = vmatprep.subr.bf16.mxu0 0
    %2534 = vmatpush1.bf16.msra.mxu0 0
    %2535 = vmatprep.subr.bf16.mxu0 0
    %2536 = vmatpush1.bf16.msra.mxu0 0
    %2537 = vmatprep.subr.bf16.mxu0 0
    %2538 = vmatpush1.bf16.msra.mxu0 0
    %2539 = vmatprep.subr.bf16.mxu0 0
    %2540 = vmatpush1.bf16.msra.mxu0 0
    %2541 = vmatprep.subr.bf16.mxu0 0
    %2542 = vmatpush1.bf16.msra.mxu0 0
    %2543 = vmatprep.subr.bf16.mxu0 0
    %2544 = vmatpush1.bf16.msra.mxu0 0
    %2545 = vmatprep.subr.bf16.mxu0 0
    %2546 = vmatpush1.bf16.msra.mxu0 0
    %2547 = vmatprep.mubr.bf16.mxu0 0
    %2548 = vmatmul.mubr.bf16.gmra.mrb[0].mxu0 %v2510
    %v2549 = vpop.f32.mrb[0].mxu0
    %v2550 = vadd.f32 0.0, %v2549
    %v2551 = vpop.f32.mrb[0].mxu0
    %v2552 = vpop.f32.mrb[0].mxu0
    %v2553 = vpop.f32.mrb[0].mxu0
    %2554 = vdwg.mxu0
    %v2555 = vpack.c.bf16 %v2550, %v2550
    %v2556 = vld [vmem:[%s47] sm:$0xff]
    %v2557 = vld [vmem:[%s47 + $0x8] sm:$0xff]
    %v2558 = vld [vmem:[%s47 + $0x10] sm:$0xff]
    %v2559 = vld [vmem:[%s47 + $0x18] sm:$0xff]
    %v2560 = vld [vmem:[%s47 + $0x20] sm:$0xff]
    %v2561 = vld [vmem:[%s47 + $0x28] sm:$0xff]
    %v2562 = vld [vmem:[%s47 + $0x30] sm:$0xff]
    %v2563 = vld [vmem:[%s47 + $0x38] sm:$0xff]
    %v2564 = vld [vmem:[%s47 + $0x40] sm:$0xff]
    %v2565 = vld [vmem:[%s47 + $0x48] sm:$0xff]
    %v2566 = vld [vmem:[%s47 + $0x50] sm:$0xff]
    %v2567 = vld [vmem:[%s47 + $0x58] sm:$0xff]
    %v2568 = vld [vmem:[%s47 + $0x60] sm:$0xff]
    %v2569 = vld [vmem:[%s47 + $0x68] sm:$0xff]
    %v2570 = vld [vmem:[%s47 + $0x70] sm:$0xff]
    %v2571 = vld [vmem:[%s47 + $0x78] sm:$0xff]
    %s2572 = scalar_lea.vmem [#allocation22], 2
    %v2573 = vld [vmem:[%s2572] sm:$0x3]
    %v2575 = vsel %vm2508, %v2573, 0
    %2577 = vmatprep.subr.bf16.mxu0 0
    %2578 = vmatpush1.bf16.msra.mxu0 %v2513
    %2579 = vmatprep.subr.bf16.mxu0 0
    %2580 = vmatpush1.bf16.msra.mxu0 0
    %2581 = vmatprep.subr.bf16.mxu0 0
    %2582 = vmatpush1.bf16.msra.mxu0 0
    %2583 = vmatprep.subr.bf16.mxu0 0
    %2584 = vmatpush1.bf16.msra.mxu0 0
    %2585 = vmatprep.subr.bf16.mxu0 0
    %2586 = vmatpush1.bf16.msra.mxu0 0
    %2587 = vmatprep.subr.bf16.mxu0 0
    %2588 = vmatpush1.bf16.msra.mxu0 0
    %2589 = vmatprep.subr.bf16.mxu0 0
    %2590 = vmatpush1.bf16.msra.mxu0 0
    %2591 = vmatprep.subr.bf16.mxu0 0
    %2592 = vmatpush1.bf16.msra.mxu0 0
    %2593 = vmatprep.subr.bf16.mxu0 0
    %2594 = vmatpush1.bf16.msra.mxu0 0
    %2595 = vmatprep.subr.bf16.mxu0 0
    %2596 = vmatpush1.bf16.msra.mxu0 0
    %2597 = vmatprep.subr.bf16.mxu0 0
    %2598 = vmatpush1.bf16.msra.mxu0 0
    %2599 = vmatprep.subr.bf16.mxu0 0
    %2600 = vmatpush1.bf16.msra.mxu0 0
    %2601 = vmatprep.subr.bf16.mxu0 0
    %2602 = vmatpush1.bf16.msra.mxu0 0
    %2603 = vmatprep.subr.bf16.mxu0 0
    %2604 = vmatpush1.bf16.msra.mxu0 0
    %2605 = vmatprep.subr.bf16.mxu0 0
    %2606 = vmatpush1.bf16.msra.mxu0 0
    %2607 = vmatprep.subr.bf16.mxu0 0
    %2608 = vmatpush1.bf16.msra.mxu0 0
    %2609 = vmatprep.mubr.bf16.mxu0 0
    %2610 = vmatmul.mubr.bf16.gmra.mrb[0].mxu0 %v2575
    %v2611 = vpop.f32.mrb[0].mxu0
    %v2612 = vadd.f32 0.0, %v2611
    %v2613 = vpop.f32.mrb[0].mxu0
    %v2614 = vpop.f32.mrb[0].mxu0
    %v2615 = vpop.f32.mrb[0].mxu0
    %2616 = vdwg.mxu0
    %v2617 = vpack.c.bf16 %v2612, %v2612
    %s2618 = scalar_lea.vmem %s47, 128
    %v2619 = vld [vmem:[%s2618] sm:$0xff]
    %v2620 = vld [vmem:[%s2618 + $0x8] sm:$0xff]
    %v2621 = vld [vmem:[%s2618 + $0x10] sm:$0xff]
    %v2622 = vld [vmem:[%s2618 + $0x18] sm:$0xff]
    %v2623 = vld [vmem:[%s2618 + $0x20] sm:$0xff]
    %v2624 = vld [vmem:[%s2618 + $0x28] sm:$0xff]
    %v2625 = vld [vmem:[%s2618 + $0x30] sm:$0xff]
    %v2626 = vld [vmem:[%s2618 + $0x38] sm:$0xff]
    %v2627 = vld [vmem:[%s2618 + $0x40] sm:$0xff]
    %v2628 = vld [vmem:[%s2618 + $0x48] sm:$0xff]
    %v2629 = vld [vmem:[%s2618 + $0x50] sm:$0xff]
    %v2630 = vld [vmem:[%s2618 + $0x58] sm:$0xff]
    %v2631 = vld [vmem:[%s2618 + $0x60] sm:$0xff]
    %v2632 = vld [vmem:[%s2618 + $0x68] sm:$0xff]
    %v2633 = vld [vmem:[%s2618 + $0x70] sm:$0xff]
    %v2634 = vld [vmem:[%s2618 + $0x78] sm:$0xff]
    %v2651 = vunpack.c.l.b16 %v2619
    %v2652 = vunpack.c.h.b16 %v2619
    %v2653 = vunpack.c.l.b16 %v2620
    %v2654 = vunpack.c.h.b16 %v2620
    %v2655 = vunpack.c.l.b16 %v2621
    %v2656 = vunpack.c.h.b16 %v2621
    %v2657 = vunpack.c.l.b16 %v2622
    %v2658 = vunpack.c.h.b16 %v2622
    %v2659 = vunpack.c.l.b16 %v2623
    %v2660 = vunpack.c.h.b16 %v2623
    %v2661 = vunpack.c.l.b16 %v2624
    %v2662 = vunpack.c.h.b16 %v2624
    %v2663 = vunpack.c.l.b16 %v2625
    %v2664 = vunpack.c.h.b16 %v2625
    %v2665 = vunpack.c.l.b16 %v2626
    %v2666 = vunpack.c.h.b16 %v2626
    %v2667 = vunpack.c.l.b16 %v2627
    %v2668 = vunpack.c.h.b16 %v2627
    %v2669 = vunpack.c.l.b16 %v2628
    %v2670 = vunpack.c.h.b16 %v2628
    %v2671 = vunpack.c.l.b16 %v2629
    %v2672 = vunpack.c.h.b16 %v2629
    %v2673 = vunpack.c.l.b16 %v2630
    %v2674 = vunpack.c.h.b16 %v2630
    %v2675 = vunpack.c.l.b16 %v2631
    %v2676 = vunpack.c.h.b16 %v2631
    %v2677 = vunpack.c.l.b16 %v2632
    %v2678 = vunpack.c.h.b16 %v2632
    %v2679 = vunpack.c.l.b16 %v2633
    %v2680 = vunpack.c.h.b16 %v2633
    %v2681 = vunpack.c.l.b16 %v2634
    %v2682 = vunpack.c.h.b16 %v2634
    %v2683 = vpack.c.b16 %v2653, %v2651
    %v2684 = vpack.c.b16 %v2654, %v2652
    %v2685 = vpack.c.b16 %v2657, %v2655
    %v2686 = vpack.c.b16 %v2658, %v2656
    %v2687 = vpack.c.b16 %v2661, %v2659
    %v2688 = vpack.c.b16 %v2662, %v2660
    %v2689 = vpack.c.b16 %v2665, %v2663
    %v2690 = vpack.c.b16 %v2666, %v2664
    %v2691 = vpack.c.b16 %v2669, %v2667
    %v2692 = vpack.c.b16 %v2670, %v2668
    %v2693 = vpack.c.b16 %v2673, %v2671
    %v2694 = vpack.c.b16 %v2674, %v2672
    %v2695 = vpack.c.b16 %v2677, %v2675
    %v2696 = vpack.c.b16 %v2678, %v2676
    %v2697 = vpack.c.b16 %v2681, %v2679
    %v2698 = vpack.c.b16 %v2682, %v2680
    %2715 = vmatprep.subr.bf16.mxu0 %v2684
    %2716 = vmatpush1.bf16.msra.mxu0 %v2683
    %2717 = vmatprep.subr.bf16.mxu0 %v2686
    %2718 = vmatpush1.bf16.msra.mxu0 %v2685
    %2719 = vmatprep.subr.bf16.mxu0 %v2688
    %2720 = vmatpush1.bf16.msra.mxu0 %v2687
    %2721 = vmatprep.subr.bf16.mxu0 %v2690
    %2722 = vmatpush1.bf16.msra.mxu0 %v2689
    %2723 = vmatprep.subr.bf16.mxu0 %v2692
    %2724 = vmatpush1.bf16.msra.mxu0 %v2691
    %2725 = vmatprep.subr.bf16.mxu0 %v2694
    %2726 = vmatpush1.bf16.msra.mxu0 %v2693
    %2727 = vmatprep.subr.bf16.mxu0 %v2696
    %2728 = vmatpush1.bf16.msra.mxu0 %v2695
    %2729 = vmatprep.subr.bf16.mxu0 %v2698
    %2730 = vmatpush1.bf16.msra.mxu0 %v2697
    %2731 = vmatprep.subr.bf16.mxu0 0
    %2732 = vmatpush1.bf16.msra.mxu0 0
    %2733 = vmatprep.subr.bf16.mxu0 0
    %2734 = vmatpush1.bf16.msra.mxu0 0
    %2735 = vmatprep.subr.bf16.mxu0 0
    %2736 = vmatpush1.bf16.msra.mxu0 0
    %2737 = vmatprep.subr.bf16.mxu0 0
    %2738 = vmatpush1.bf16.msra.mxu0 0
    %2739 = vmatprep.subr.bf16.mxu0 0
    %2740 = vmatpush1.bf16.msra.mxu0 0
    %2741 = vmatprep.subr.bf16.mxu0 0
    %2742 = vmatpush1.bf16.msra.mxu0 0
    %2743 = vmatprep.subr.bf16.mxu0 0
    %2744 = vmatpush1.bf16.msra.mxu0 0
    %2745 = vmatprep.subr.bf16.mxu0 0
    %2746 = vmatpush1.bf16.msra.mxu0 0
    %2747 = vmatprep.mubr.bf16.mxu0 0
    %2748 = vmatmul.mubr.bf16.gmra.mrb[0].mxu0 %v2617
    %v2749 = vpop.f32.mrb[0].mxu0
    %v2750 = vadd.f32 0.0, %v2749
    %v2751 = vpop.f32.mrb[0].mxu0
    %v2752 = vadd.f32 0.0, %v2751
    %v2753 = vpop.f32.mrb[0].mxu0
    %v2754 = vpop.f32.mrb[0].mxu0
    %2755 = vdwg.mxu0
    %v2772 = vunpack.c.l.b16 %v2556
    %v2773 = vunpack.c.h.b16 %v2556
    %v2774 = vunpack.c.l.b16 %v2557
    %v2775 = vunpack.c.h.b16 %v2557
    %v2776 = vunpack.c.l.b16 %v2558
    %v2777 = vunpack.c.h.b16 %v2558
    %v2778 = vunpack.c.l.b16 %v2559
    %v2779 = vunpack.c.h.b16 %v2559
    %v2780 = vunpack.c.l.b16 %v2560
    %v2781 = vunpack.c.h.b16 %v2560
    %v2782 = vunpack.c.l.b16 %v2561
    %v2783 = vunpack.c.h.b16 %v2561
    %v2784 = vunpack.c.l.b16 %v2562
    %v2785 = vunpack.c.h.b16 %v2562
    %v2786 = vunpack.c.l.b16 %v2563
    %v2787 = vunpack.c.h.b16 %v2563
    %v2788 = vunpack.c.l.b16 %v2564
    %v2789 = vunpack.c.h.b16 %v2564
    %v2790 = vunpack.c.l.b16 %v2565
    %v2791 = vunpack.c.h.b16 %v2565
    %v2792 = vunpack.c.l.b16 %v2566
    %v2793 = vunpack.c.h.b16 %v2566
    %v2794 = vunpack.c.l.b16 %v2567
    %v2795 = vunpack.c.h.b16 %v2567
    %v2796 = vunpack.c.l.b16 %v2568
    %v2797 = vunpack.c.h.b16 %v2568
    %v2798 = vunpack.c.l.b16 %v2569
    %v2799 = vunpack.c.h.b16 %v2569
    %v2800 = vunpack.c.l.b16 %v2570
    %v2801 = vunpack.c.h.b16 %v2570
    %v2802 = vunpack.c.l.b16 %v2571
    %v2803 = vunpack.c.h.b16 %v2571
    %v2804 = vpack.c.b16 %v2774, %v2772
    %v2805 = vpack.c.b16 %v2775, %v2773
    %v2806 = vpack.c.b16 %v2778, %v2776
    %v2807 = vpack.c.b16 %v2779, %v2777
    %v2808 = vpack.c.b16 %v2782, %v2780
    %v2809 = vpack.c.b16 %v2783, %v2781
    %v2810 = vpack.c.b16 %v2786, %v2784
    %v2811 = vpack.c.b16 %v2787, %v2785
    %v2812 = vpack.c.b16 %v2790, %v2788
    %v2813 = vpack.c.b16 %v2791, %v2789
    %v2814 = vpack.c.b16 %v2794, %v2792
    %v2815 = vpack.c.b16 %v2795, %v2793
    %v2816 = vpack.c.b16 %v2798, %v2796
    %v2817 = vpack.c.b16 %v2799, %v2797
    %v2818 = vpack.c.b16 %v2802, %v2800
    %v2819 = vpack.c.b16 %v2803, %v2801
    %2836 = vmatprep.subr.bf16.mxu0 %v2805
    %2837 = vmatpush1.bf16.msra.mxu0 %v2804
    %2838 = vmatprep.subr.bf16.mxu0 %v2807
    %2839 = vmatpush1.bf16.msra.mxu0 %v2806
    %2840 = vmatprep.subr.bf16.mxu0 %v2809
    %2841 = vmatpush1.bf16.msra.mxu0 %v2808
    %2842 = vmatprep.subr.bf16.mxu0 %v2811
    %2843 = vmatpush1.bf16.msra.mxu0 %v2810
    %2844 = vmatprep.subr.bf16.mxu0 %v2813
    %2845 = vmatpush1.bf16.msra.mxu0 %v2812
    %2846 = vmatprep.subr.bf16.mxu0 %v2815
    %2847 = vmatpush1.bf16.msra.mxu0 %v2814
    %2848 = vmatprep.subr.bf16.mxu0 %v2817
    %2849 = vmatpush1.bf16.msra.mxu0 %v2816
    %2850 = vmatprep.subr.bf16.mxu0 %v2819
    %2851 = vmatpush1.bf16.msra.mxu0 %v2818
    %2852 = vmatprep.subr.bf16.mxu0 0
    %2853 = vmatpush1.bf16.msra.mxu0 0
    %2854 = vmatprep.subr.bf16.mxu0 0
    %2855 = vmatpush1.bf16.msra.mxu0 0
    %2856 = vmatprep.subr.bf16.mxu0 0
    %2857 = vmatpush1.bf16.msra.mxu0 0
    %2858 = vmatprep.subr.bf16.mxu0 0
    %2859 = vmatpush1.bf16.msra.mxu0 0
    %2860 = vmatprep.subr.bf16.mxu0 0
    %2861 = vmatpush1.bf16.msra.mxu0 0
    %2862 = vmatprep.subr.bf16.mxu0 0
    %2863 = vmatpush1.bf16.msra.mxu0 0
    %2864 = vmatprep.subr.bf16.mxu0 0
    %2865 = vmatpush1.bf16.msra.mxu0 0
    %2866 = vmatprep.subr.bf16.mxu0 0
    %2867 = vmatpush1.bf16.msra.mxu0 0
    %2868 = vmatprep.mubr.bf16.mxu0 0
    %2869 = vmatmul.mubr.bf16.gmra.mrb[0].mxu0 %v2555
    %v2870 = vpop.f32.mrb[0].mxu0
    %v2871 = vadd.f32 %v2750, %v2870
    %v2872 = vpop.f32.mrb[0].mxu0
    %v2873 = vadd.f32 %v2752, %v2872
    %v2874 = vpop.f32.mrb[0].mxu0
    %v2875 = vpop.f32.mrb[0].mxu0
    %2876 = vdwg.mxu0
    %s2877 = scalar_lea.vmem [#allocation22], 4
    %v2878 = vld [vmem:[%s2877] sm:$0x3]
    %v2880 = vsel %vm2508, %v2878, 0
    %2882 = vmatprep.subr.bf16.mxu0 0
    %2883 = vmatpush1.bf16.msra.mxu0 %v2513
    %2884 = vmatprep.subr.bf16.mxu0 0
    %2885 = vmatpush1.bf16.msra.mxu0 0
    %2886 = vmatprep.subr.bf16.mxu0 0
    %2887 = vmatpush1.bf16.msra.mxu0 0
    %2888 = vmatprep.subr.bf16.mxu0 0
    %2889 = vmatpush1.bf16.msra.mxu0 0
    %2890 = vmatprep.subr.bf16.mxu0 0
    %2891 = vmatpush1.bf16.msra.mxu0 0
    %2892 = vmatprep.subr.bf16.mxu0 0
    %2893 = vmatpush1.bf16.msra.mxu0 0
    %2894 = vmatprep.subr.bf16.mxu0 0
    %2895 = vmatpush1.bf16.msra.mxu0 0
    %2896 = vmatprep.subr.bf16.mxu0 0
    %2897 = vmatpush1.bf16.msra.mxu0 0
    %2898 = vmatprep.subr.bf16.mxu0 0
    %2899 = vmatpush1.bf16.msra.mxu0 0
    %2900 = vmatprep.subr.bf16.mxu0 0
    %2901 = vmatpush1.bf16.msra.mxu0 0
    %2902 = vmatprep.subr.bf16.mxu0 0
    %2903 = vmatpush1.bf16.msra.mxu0 0
    %2904 = vmatprep.subr.bf16.mxu0 0
    %2905 = vmatpush1.bf16.msra.mxu0 0
    %2906 = vmatprep.subr.bf16.mxu0 0
    %2907 = vmatpush1.bf16.msra.mxu0 0
    %2908 = vmatprep.subr.bf16.mxu0 0
    %2909 = vmatpush1.bf16.msra.mxu0 0
    %2910 = vmatprep.subr.bf16.mxu0 0
    %2911 = vmatpush1.bf16.msra.mxu0 0
    %2912 = vmatprep.subr.bf16.mxu0 0
    %2913 = vmatpush1.bf16.msra.mxu0 0
    %2914 = vmatprep.mubr.bf16.mxu0 0
    %2915 = vmatmul.mubr.bf16.gmra.mrb[0].mxu0 %v2880
    %v2916 = vpop.f32.mrb[0].mxu0
    %v2917 = vadd.f32 0.0, %v2916
    %v2918 = vpop.f32.mrb[0].mxu0
    %v2919 = vpop.f32.mrb[0].mxu0
    %v2920 = vpop.f32.mrb[0].mxu0
    %2921 = vdwg.mxu0
    %v2922 = vpack.c.bf16 %v2917, %v2917
    %s2923 = scalar_lea.vmem %s47, 256
    %v2924 = vld [vmem:[%s2923] sm:$0xff]
    %v2925 = vld [vmem:[%s2923 + $0x8] sm:$0xff]
    %v2926 = vld [vmem:[%s2923 + $0x10] sm:$0xff]
    %v2927 = vld [vmem:[%s2923 + $0x18] sm:$0xff]
    %v2928 = vld [vmem:[%s2923 + $0x20] sm:$0xff]
    %v2929 = vld [vmem:[%s2923 + $0x28] sm:$0xff]
    %v2930 = vld [vmem:[%s2923 + $0x30] sm:$0xff]
    %v2931 = vld [vmem:[%s2923 + $0x38] sm:$0xff]
    %v2932 = vld [vmem:[%s2923 + $0x40] sm:$0xff]
    %v2933 = vld [vmem:[%s2923 + $0x48] sm:$0xff]
    %v2934 = vld [vmem:[%s2923 + $0x50] sm:$0xff]
    %v2935 = vld [vmem:[%s2923 + $0x58] sm:$0xff]
    %v2936 = vld [vmem:[%s2923 + $0x60] sm:$0xff]
    %v2937 = vld [vmem:[%s2923 + $0x68] sm:$0xff]
    %v2938 = vld [vmem:[%s2923 + $0x70] sm:$0xff]
    %v2939 = vld [vmem:[%s2923 + $0x78] sm:$0xff]
    %v2956 = vunpack.c.l.b16 %v2924
    %v2957 = vunpack.c.h.b16 %v2924
    %v2958 = vunpack.c.l.b16 %v2925
    %v2959 = vunpack.c.h.b16 %v2925
    %v2960 = vunpack.c.l.b16 %v2926
    %v2961 = vunpack.c.h.b16 %v2926
    %v2962 = vunpack.c.l.b16 %v2927
    %v2963 = vunpack.c.h.b16 %v2927
    %v2964 = vunpack.c.l.b16 %v2928
    %v2965 = vunpack.c.h.b16 %v2928
    %v2966 = vunpack.c.l.b16 %v2929
    %v2967 = vunpack.c.h.b16 %v2929
    %v2968 = vunpack.c.l.b16 %v2930
    %v2969 = vunpack.c.h.b16 %v2930
    %v2970 = vunpack.c.l.b16 %v2931
    %v2971 = vunpack.c.h.b16 %v2931
    %v2972 = vunpack.c.l.b16 %v2932
    %v2973 = vunpack.c.h.b16 %v2932
    %v2974 = vunpack.c.l.b16 %v2933
    %v2975 = vunpack.c.h.b16 %v2933
    %v2976 = vunpack.c.l.b16 %v2934
    %v2977 = vunpack.c.h.b16 %v2934
    %v2978 = vunpack.c.l.b16 %v2935
    %v2979 = vunpack.c.h.b16 %v2935
    %v2980 = vunpack.c.l.b16 %v2936
    %v2981 = vunpack.c.h.b16 %v2936
    %v2982 = vunpack.c.l.b16 %v2937
    %v2983 = vunpack.c.h.b16 %v2937
    %v2984 = vunpack.c.l.b16 %v2938
    %v2985 = vunpack.c.h.b16 %v2938
    %v2986 = vunpack.c.l.b16 %v2939
    %v2987 = vunpack.c.h.b16 %v2939
    %v2988 = vpack.c.b16 %v2958, %v2956
    %v2989 = vpack.c.b16 %v2959, %v2957
    %v2990 = vpack.c.b16 %v2962, %v2960
    %v2991 = vpack.c.b16 %v2963, %v2961
    %v2992 = vpack.c.b16 %v2966, %v2964
    %v2993 = vpack.c.b16 %v2967, %v2965
    %v2994 = vpack.c.b16 %v2970, %v2968
    %v2995 = vpack.c.b16 %v2971, %v2969
    %v2996 = vpack.c.b16 %v2974, %v2972
    %v2997 = vpack.c.b16 %v2975, %v2973
    %v2998 = vpack.c.b16 %v2978, %v2976
    %v2999 = vpack.c.b16 %v2979, %v2977
    %v3000 = vpack.c.b16 %v2982, %v2980
    %v3001 = vpack.c.b16 %v2983, %v2981
    %v3002 = vpack.c.b16 %v2986, %v2984
    %v3003 = vpack.c.b16 %v2987, %v2985
    %3020 = vmatprep.subr.bf16.mxu0 %v2989
    %3021 = vmatpush1.bf16.msra.mxu0 %v2988
    %3022 = vmatprep.subr.bf16.mxu0 %v2991
    %3023 = vmatpush1.bf16.msra.mxu0 %v2990
    %3024 = vmatprep.subr.bf16.mxu0 %v2993
    %3025 = vmatpush1.bf16.msra.mxu0 %v2992
    %3026 = vmatprep.subr.bf16.mxu0 %v2995
    %3027 = vmatpush1.bf16.msra.mxu0 %v2994
    %3028 = vmatprep.subr.bf16.mxu0 %v2997
    %3029 = vmatpush1.bf16.msra.mxu0 %v2996
    %3030 = vmatprep.subr.bf16.mxu0 %v2999
    %3031 = vmatpush1.bf16.msra.mxu0 %v2998
    %3032 = vmatprep.subr.bf16.mxu0 %v3001
    %3033 = vmatpush1.bf16.msra.mxu0 %v3000
    %3034 = vmatprep.subr.bf16.mxu0 %v3003
    %3035 = vmatpush1.bf16.msra.mxu0 %v3002
    %3036 = vmatprep.subr.bf16.mxu0 0
    %3037 = vmatpush1.bf16.msra.mxu0 0
    %3038 = vmatprep.subr.bf16.mxu0 0
    %3039 = vmatpush1.bf16.msra.mxu0 0
    %3040 = vmatprep.subr.bf16.mxu0 0
    %3041 = vmatpush1.bf16.msra.mxu0 0
    %3042 = vmatprep.subr.bf16.mxu0 0
    %3043 = vmatpush1.bf16.msra.mxu0 0
    %3044 = vmatprep.subr.bf16.mxu0 0
    %3045 = vmatpush1.bf16.msra.mxu0 0
    %3046 = vmatprep.subr.bf16.mxu0 0
    %3047 = vmatpush1.bf16.msra.mxu0 0
    %3048 = vmatprep.subr.bf16.mxu0 0
    %3049 = vmatpush1.bf16.msra.mxu0 0
    %3050 = vmatprep.subr.bf16.mxu0 0
    %3051 = vmatpush1.bf16.msra.mxu0 0
    %3052 = vmatprep.mubr.bf16.mxu0 0
    %3053 = vmatmul.mubr.bf16.gmra.mrb[0].mxu0 %v2922
    %v3054 = vpop.f32.mrb[0].mxu0
    %v3055 = vadd.f32 0.0, %v3054
    %v3056 = vpop.f32.mrb[0].mxu0
    %v3057 = vadd.f32 0.0, %v3056
    %v3058 = vpop.f32.mrb[0].mxu0
    %v3059 = vpop.f32.mrb[0].mxu0
    %3060 = vdwg.mxu0
    %v3061 = vadd.f32 %v2871, %v3055
    %v3062 = vadd.f32 %v2873, %v3057
    %v3063 = vld [vmem:[#allocation24] sm:$0x3]
    %v3065 = vlaneseq
    %v3066 = vshrl.u32 %v3065, 7
    %v3067 = vsub.s32 0, %v3066
    %v3068 = vrot.slane %v3063, %v3067
    %v3069 = vlaneseq
    %v3070 = vshrl.u32 %v3069, 7
    %v3071 = vsub.s32 1, %v3070
    %v3072 = vrot.slane %v3063, %v3071
    %v3075 = vadd.f32 %v3061, %v3068
    %v3076 = vadd.f32 %v3062, %v3072
    %v3077 = vmax.f32 %v3075, 0.0
    %v3078 = vmax.f32 %v3076, 0.0
    %v3079 = vsel %vm796, %v3077, 0.0
    %v3080 = vrot.slane %v3079, 4
    %v3081 = vadd.f32 %v3079, %v3080
    %v3082 = vrot.slane %v3081, 2
    %v3083 = vadd.f32 %v3081, %v3082
    %v3084 = vrot.slane %v3083, 1
    %v3085 = vadd.f32 %v3083, %v3084
    %v3086 = vsel %vm796, %v3078, 0.0
    %v3087 = vrot.slane %v3086, 4
    %v3088 = vadd.f32 %v3086, %v3087
    %v3089 = vrot.slane %v3088, 2
    %v3090 = vadd.f32 %v3088, %v3089
    %v3091 = vrot.slane %v3090, 1
    %v3092 = vadd.f32 %v3090, %v3091
    %v3093 = vmul.f32 %v3085, 0.25
    %v3094 = vmul.f32 %v3092, 0.25
    %v3095 = vmul.f32 %v3077, %v3077
    %v3096 = vmul.f32 %v3078, %v3078
    %v3097 = vsel %vm796, %v3095, 0.0
    %v3098 = vrot.slane %v3097, 4
    %v3099 = vadd.f32 %v3097, %v3098
    %v3100 = vrot.slane %v3099, 2
    %v3101 = vadd.f32 %v3099, %v3100
    %v3102 = vrot.slane %v3101, 1
    %v3103 = vadd.f32 %v3101, %v3102
    %v3104 = vsel %vm796, %v3096, 0.0
    %v3105 = vrot.slane %v3104, 4
    %v3106 = vadd.f32 %v3104, %v3105
    %v3107 = vrot.slane %v3106, 2
    %v3108 = vadd.f32 %v3106, %v3107
    %v3109 = vrot.slane %v3108, 1
    %v3110 = vadd.f32 %v3108, %v3109
    %v3111 = vmul.f32 %v3103, 0.25
    %v3112 = vmul.f32 %v3110, 0.25
    %v3113 = vmul.f32 %v3093, %v3093
    %v3114 = vmul.f32 %v3094, %v3094
    %v3115 = vsub.f32 %v3111, %v3113
    %v3116 = vsub.f32 %v3112, %v3114
    %v3117 = vmax.f32 %v3115, 0.0
    %v3118 = vmax.f32 %v3116, 0.0
    %v3119 = vsub.f32 %v3077, %v3093
    %v3120 = vsub.f32 %v3078, %v3094
    %v3121 = vadd.f32 %v3117, 1e-05
    %v3122 = vadd.f32 %v3118, 1e-05
    %v3123 = vrsqrt.pop %v3121
    %v3124 = vrsqrt.pop %v3122
    %v3125 = vmul.f32 %v3119, %v3123
    %v3126 = vmul.f32 %v3120, %v3124
    %v3127 = vld [vmem:[#allocation25] sm:$0x3]
    %v3129 = vlaneseq
    %v3130 = vshrl.u32 %v3129, 7
    %v3131 = vsub.s32 0, %v3130
    %v3132 = vrot.slane %v3127, %v3131
    %v3133 = vlaneseq
    %v3134 = vshrl.u32 %v3133, 7
    %v3135 = vsub.s32 1, %v3134
    %v3136 = vrot.slane %v3127, %v3135
    %v3139 = vmul.f32 %v3125, %v3132
    %v3140 = vmul.f32 %v3126, %v3136
    %v3141 = vld [vmem:[#allocation27] sm:$0x3]
    %v3143 = vlaneseq
    %v3144 = vshrl.u32 %v3143, 7
    %v3145 = vsub.s32 0, %v3144
    %v3146 = vrot.slane %v3141, %v3145
    %v3147 = vlaneseq
    %v3148 = vshrl.u32 %v3147, 7
    %v3149 = vsub.s32 1, %v3148
    %v3150 = vrot.slane %v3141, %v3149
    %v3153 = vadd.f32 %v3139, %v3146
    %v3154 = vadd.f32 %v3140, %v3150
    %v3155 = vpack.c.bf16 %v3153, %v3153
    %v3156 = vpack.c.bf16 %v3154, %v3154
    %v3157 = vld [vmem:[%s55] sm:$0x7]
    %vm3158 = vcmask 31744
    %v3160 = vsel %vm3158, %v3157, 0
    %v3163 = vsel %vm628, %v3155, 0
    %v3166 = vsel %vm628, %v3156, 0
    %3168 = vmatprep.subr.bf16.mxu0 %v3166
    %3169 = vmatpush1.bf16.msra.mxu0 %v3163
    %3170 = vmatprep.subr.bf16.mxu0 0
    %3171 = vmatpush1.bf16.msra.mxu0 0
    %3172 = vmatprep.subr.bf16.mxu0 0
    %3173 = vmatpush1.bf16.msra.mxu0 0
    %3174 = vmatprep.subr.bf16.mxu0 0
    %3175 = vmatpush1.bf16.msra.mxu0 0
    %3176 = vmatprep.subr.bf16.mxu0 0
    %3177 = vmatpush1.bf16.msra.mxu0 0
    %3178 = vmatprep.subr.bf16.mxu0 0
    %3179 = vmatpush1.bf16.msra.mxu0 0
    %3180 = vmatprep.subr.bf16.mxu0 0
    %3181 = vmatpush1.bf16.msra.mxu0 0
    %3182 = vmatprep.subr.bf16.mxu0 0
    %3183 = vmatpush1.bf16.msra.mxu0 0
    %3184 = vmatprep.subr.bf16.mxu0 0
    %3185 = vmatpush1.bf16.msra.mxu0 0
    %3186 = vmatprep.subr.bf16.mxu0 0
    %3187 = vmatpush1.bf16.msra.mxu0 0
    %3188 = vmatprep.subr.bf16.mxu0 0
    %3189 = vmatpush1.bf16.msra.mxu0 0
    %3190 = vmatprep.subr.bf16.mxu0 0
    %3191 = vmatpush1.bf16.msra.mxu0 0
    %3192 = vmatprep.subr.bf16.mxu0 0
    %3193 = vmatpush1.bf16.msra.mxu0 0
    %3194 = vmatprep.subr.bf16.mxu0 0
    %3195 = vmatpush1.bf16.msra.mxu0 0
    %3196 = vmatprep.subr.bf16.mxu0 0
    %3197 = vmatpush1.bf16.msra.mxu0 0
    %3198 = vmatprep.subr.bf16.mxu0 0
    %3199 = vmatpush1.bf16.msra.mxu0 0
    %3200 = vmatprep.mubr.bf16.mxu0 0
    %3201 = vmatmul.mubr.bf16.gmra.mrb[0].mxu0 %v3160
    %v3202 = vpop.f32.mrb[0].mxu0
    %v3203 = vadd.f32 0.0, %v3202
    %v3204 = vpop.f32.mrb[0].mxu0
    %v3205 = vadd.f32 0.0, %v3204
    %v3206 = vpop.f32.mrb[0].mxu0
    %v3207 = vpop.f32.mrb[0].mxu0
    %3208 = vdwg.mxu0
    %v3209 = vpack.c.bf16 %v3203, %v3203
    %v3210 = vpack.c.bf16 %v3205, %v3205
    %v3211 = vld [vmem:[%s57] sm:$0xf]
    %v3212 = vld [vmem:[%s57 + $0x4] sm:$0xf]
    %v3213 = vld [vmem:[%s57 + $0x8] sm:$0xf]
    %v3214 = vld [vmem:[%s57 + $0xc] sm:$0xf]
    %v3215 = vld [vmem:[%s57 + $0x10] sm:$0xf]
    %v3216 = vld [vmem:[%s57 + $0x14] sm:$0xf]
    %v3217 = vld [vmem:[%s57 + $0x18] sm:$0xf]
    %v3218 = vld [vmem:[%s57 + $0x1c] sm:$0xf]
    %v3219 = vld [vmem:[%s57 + $0x20] sm:$0xf]
    %v3220 = vld [vmem:[%s57 + $0x24] sm:$0xf]
    %v3221 = vld [vmem:[%s57 + $0x28] sm:$0xf]
    %v3222 = vld [vmem:[%s57 + $0x2c] sm:$0xf]
    %v3223 = vld [vmem:[%s57 + $0x30] sm:$0xf]
    %v3224 = vld [vmem:[%s57 + $0x34] sm:$0xf]
    %v3225 = vld [vmem:[%s57 + $0x38] sm:$0xf]
    %v3226 = vld [vmem:[%s57 + $0x3c] sm:$0xf]
    %v3227 = vld [vmem:[%s57 + $0x40] sm:$0xf]
    %v3228 = vld [vmem:[%s57 + $0x44] sm:$0xf]
    %v3229 = vld [vmem:[%s57 + $0x48] sm:$0xf]
    %v3230 = vld [vmem:[%s57 + $0x4c] sm:$0xf]
    %v3231 = vld [vmem:[%s57 + $0x50] sm:$0xf]
    %v3232 = vld [vmem:[%s57 + $0x54] sm:$0xf]
    %v3233 = vld [vmem:[%s57 + $0x58] sm:$0xf]
    %v3234 = vld [vmem:[%s57 + $0x5c] sm:$0xf]
    %v3235 = vld [vmem:[%s57 + $0x60] sm:$0xf]
    %v3236 = vld [vmem:[%s57 + $0x64] sm:$0xf]
    %v3237 = vld [vmem:[%s57 + $0x68] sm:$0xf]
    %v3238 = vld [vmem:[%s57 + $0x6c] sm:$0xf]
    %v3239 = vld [vmem:[%s57 + $0x70] sm:$0xf]
    %v3240 = vld [vmem:[%s57 + $0x74] sm:$0xf]
    %v3241 = vld [vmem:[%s57 + $0x78] sm:$0xf]
    %v3242 = vld [vmem:[%s57 + $0x7c] sm:$0xf]
    %s3243 = scalar_lea.vmem %s55, 4
    %v3244 = vld [vmem:[%s3243] sm:$0x7]
    %v3246 = vsel %vm3158, %v3244, 0
    %3248 = vmatprep.subr.bf16.mxu0 %v3166
    %3249 = vmatpush1.bf16.msra.mxu0 %v3163
    %3250 = vmatprep.subr.bf16.mxu0 0
    %3251 = vmatpush1.bf16.msra.mxu0 0
    %3252 = vmatprep.subr.bf16.mxu0 0
    %3253 = vmatpush1.bf16.msra.mxu0 0
    %3254 = vmatprep.subr.bf16.mxu0 0
    %3255 = vmatpush1.bf16.msra.mxu0 0
    %3256 = vmatprep.subr.bf16.mxu0 0
    %3257 = vmatpush1.bf16.msra.mxu0 0
    %3258 = vmatprep.subr.bf16.mxu0 0
    %3259 = vmatpush1.bf16.msra.mxu0 0
    %3260 = vmatprep.subr.bf16.mxu0 0
    %3261 = vmatpush1.bf16.msra.mxu0 0
    %3262 = vmatprep.subr.bf16.mxu0 0
    %3263 = vmatpush1.bf16.msra.mxu0 0
    %3264 = vmatprep.subr.bf16.mxu0 0
    %3265 = vmatpush1.bf16.msra.mxu0 0
    %3266 = vmatprep.subr.bf16.mxu0 0
    %3267 = vmatpush1.bf16.msra.mxu0 0
    %3268 = vmatprep.subr.bf16.mxu0 0
    %3269 = vmatpush1.bf16.msra.mxu0 0
    %3270 = vmatprep.subr.bf16.mxu0 0
    %3271 = vmatpush1.bf16.msra.mxu0 0
    %3272 = vmatprep.subr.bf16.mxu0 0
    %3273 = vmatpush1.bf16.msra.mxu0 0
    %3274 = vmatprep.subr.bf16.mxu0 0
    %3275 = vmatpush1.bf16.msra.mxu0 0
    %3276 = vmatprep.subr.bf16.mxu0 0
    %3277 = vmatpush1.bf16.msra.mxu0 0
    %3278 = vmatprep.subr.bf16.mxu0 0
    %3279 = vmatpush1.bf16.msra.mxu0 0
    %3280 = vmatprep.mubr.bf16.mxu0 0
    %3281 = vmatmul.mubr.bf16.gmra.mrb[0].mxu0 %v3246
    %v3282 = vpop.f32.mrb[0].mxu0
    %v3283 = vadd.f32 0.0, %v3282
    %v3284 = vpop.f32.mrb[0].mxu0
    %v3285 = vadd.f32 0.0, %v3284
    %v3286 = vpop.f32.mrb[0].mxu0
    %v3287 = vpop.f32.mrb[0].mxu0
    %3288 = vdwg.mxu0
    %v3289 = vpack.c.bf16 %v3283, %v3283
    %v3290 = vpack.c.bf16 %v3285, %v3285
    %s3291 = scalar_lea.vmem %s57, 128
    %v3292 = vld [vmem:[%s3291] sm:$0xf]
    %v3293 = vld [vmem:[%s3291 + $0x4] sm:$0xf]
    %v3294 = vld [vmem:[%s3291 + $0x8] sm:$0xf]
    %v3295 = vld [vmem:[%s3291 + $0xc] sm:$0xf]
    %v3296 = vld [vmem:[%s3291 + $0x10] sm:$0xf]
    %v3297 = vld [vmem:[%s3291 + $0x14] sm:$0xf]
    %v3298 = vld [vmem:[%s3291 + $0x18] sm:$0xf]
    %v3299 = vld [vmem:[%s3291 + $0x1c] sm:$0xf]
    %v3300 = vld [vmem:[%s3291 + $0x20] sm:$0xf]
    %v3301 = vld [vmem:[%s3291 + $0x24] sm:$0xf]
    %v3302 = vld [vmem:[%s3291 + $0x28] sm:$0xf]
    %v3303 = vld [vmem:[%s3291 + $0x2c] sm:$0xf]
    %v3304 = vld [vmem:[%s3291 + $0x30] sm:$0xf]
    %v3305 = vld [vmem:[%s3291 + $0x34] sm:$0xf]
    %v3306 = vld [vmem:[%s3291 + $0x38] sm:$0xf]
    %v3307 = vld [vmem:[%s3291 + $0x3c] sm:$0xf]
    %v3308 = vld [vmem:[%s3291 + $0x40] sm:$0xf]
    %v3309 = vld [vmem:[%s3291 + $0x44] sm:$0xf]
    %v3310 = vld [vmem:[%s3291 + $0x48] sm:$0xf]
    %v3311 = vld [vmem:[%s3291 + $0x4c] sm:$0xf]
    %v3312 = vld [vmem:[%s3291 + $0x50] sm:$0xf]
    %v3313 = vld [vmem:[%s3291 + $0x54] sm:$0xf]
    %v3314 = vld [vmem:[%s3291 + $0x58] sm:$0xf]
    %v3315 = vld [vmem:[%s3291 + $0x5c] sm:$0xf]
    %v3316 = vld [vmem:[%s3291 + $0x60] sm:$0xf]
    %v3317 = vld [vmem:[%s3291 + $0x64] sm:$0xf]
    %v3318 = vld [vmem:[%s3291 + $0x68] sm:$0xf]
    %v3319 = vld [vmem:[%s3291 + $0x6c] sm:$0xf]
    %v3320 = vld [vmem:[%s3291 + $0x70] sm:$0xf]
    %v3321 = vld [vmem:[%s3291 + $0x74] sm:$0xf]
    %v3322 = vld [vmem:[%s3291 + $0x78] sm:$0xf]
    %v3323 = vld [vmem:[%s3291 + $0x7c] sm:$0xf]
    %v3356 = vunpack.c.l.b16 %v3292
    %v3357 = vunpack.c.l.b16 %v3293
    %v3358 = vunpack.c.l.b16 %v3294
    %v3359 = vunpack.c.l.b16 %v3295
    %v3360 = vunpack.c.l.b16 %v3296
    %v3361 = vunpack.c.l.b16 %v3297
    %v3362 = vunpack.c.l.b16 %v3298
    %v3363 = vunpack.c.l.b16 %v3299
    %v3364 = vunpack.c.l.b16 %v3300
    %v3365 = vunpack.c.l.b16 %v3301
    %v3366 = vunpack.c.l.b16 %v3302
    %v3367 = vunpack.c.l.b16 %v3303
    %v3368 = vunpack.c.l.b16 %v3304
    %v3369 = vunpack.c.l.b16 %v3305
    %v3370 = vunpack.c.l.b16 %v3306
    %v3371 = vunpack.c.l.b16 %v3307
    %v3372 = vunpack.c.l.b16 %v3308
    %v3373 = vunpack.c.l.b16 %v3309
    %v3374 = vunpack.c.l.b16 %v3310
    %v3375 = vunpack.c.l.b16 %v3311
    %v3376 = vunpack.c.l.b16 %v3312
    %v3377 = vunpack.c.l.b16 %v3313
    %v3378 = vunpack.c.l.b16 %v3314
    %v3379 = vunpack.c.l.b16 %v3315
    %v3380 = vunpack.c.l.b16 %v3316
    %v3381 = vunpack.c.l.b16 %v3317
    %v3382 = vunpack.c.l.b16 %v3318
    %v3383 = vunpack.c.l.b16 %v3319
    %v3384 = vunpack.c.l.b16 %v3320
    %v3385 = vunpack.c.l.b16 %v3321
    %v3386 = vunpack.c.l.b16 %v3322
    %v3387 = vunpack.c.l.b16 %v3323
    %v3388 = vpack.c.b16 %v3357, %v3356
    %v3389 = vpack.c.b16 %v3359, %v3358
    %v3390 = vpack.c.b16 %v3361, %v3360
    %v3391 = vpack.c.b16 %v3363, %v3362
    %v3392 = vpack.c.b16 %v3365, %v3364
    %v3393 = vpack.c.b16 %v3367, %v3366
    %v3394 = vpack.c.b16 %v3369, %v3368
    %v3395 = vpack.c.b16 %v3371, %v3370
    %v3396 = vpack.c.b16 %v3373, %v3372
    %v3397 = vpack.c.b16 %v3375, %v3374
    %v3398 = vpack.c.b16 %v3377, %v3376
    %v3399 = vpack.c.b16 %v3379, %v3378
    %v3400 = vpack.c.b16 %v3381, %v3380
    %v3401 = vpack.c.b16 %v3383, %v3382
    %v3402 = vpack.c.b16 %v3385, %v3384
    %v3403 = vpack.c.b16 %v3387, %v3386
    %3420 = vmatprep.subr.bf16.mxu0 0
    %3421 = vmatpush1.bf16.msra.mxu0 %v3388
    %3422 = vmatprep.subr.bf16.mxu0 0
    %3423 = vmatpush1.bf16.msra.mxu0 %v3389
    %3424 = vmatprep.subr.bf16.mxu0 0
    %3425 = vmatpush1.bf16.msra.mxu0 %v3390
    %3426 = vmatprep.subr.bf16.mxu0 0
    %3427 = vmatpush1.bf16.msra.mxu0 %v3391
    %3428 = vmatprep.subr.bf16.mxu0 0
    %3429 = vmatpush1.bf16.msra.mxu0 %v3392
    %3430 = vmatprep.subr.bf16.mxu0 0
    %3431 = vmatpush1.bf16.msra.mxu0 %v3393
    %3432 = vmatprep.subr.bf16.mxu0 0
    %3433 = vmatpush1.bf16.msra.mxu0 %v3394
    %3434 = vmatprep.subr.bf16.mxu0 0
    %3435 = vmatpush1.bf16.msra.mxu0 %v3395
    %3436 = vmatprep.subr.bf16.mxu0 0
    %3437 = vmatpush1.bf16.msra.mxu0 %v3396
    %3438 = vmatprep.subr.bf16.mxu0 0
    %3439 = vmatpush1.bf16.msra.mxu0 %v3397
    %3440 = vmatprep.subr.bf16.mxu0 0
    %3441 = vmatpush1.bf16.msra.mxu0 %v3398
    %3442 = vmatprep.subr.bf16.mxu0 0
    %3443 = vmatpush1.bf16.msra.mxu0 %v3399
    %3444 = vmatprep.subr.bf16.mxu0 0
    %3445 = vmatpush1.bf16.msra.mxu0 %v3400
    %3446 = vmatprep.subr.bf16.mxu0 0
    %3447 = vmatpush1.bf16.msra.mxu0 %v3401
    %3448 = vmatprep.subr.bf16.mxu0 0
    %3449 = vmatpush1.bf16.msra.mxu0 %v3402
    %3450 = vmatprep.subr.bf16.mxu0 0
    %3451 = vmatpush1.bf16.msra.mxu0 %v3403
    %3452 = vmatprep.mubr.bf16.mxu0 %v3290
    %3453 = vmatmul.mubr.bf16.gmra.mrb[0].mxu0 %v3289
    %v3454 = vpop.f32.mrb[0].mxu0
    %v3455 = vadd.f32 0.0, %v3454
    %v3456 = vpop.f32.mrb[0].mxu0
    %v3457 = vpop.f32.mrb[0].mxu0
    %v3458 = vpop.f32.mrb[0].mxu0
    %3459 = vdwg.mxu0
    %v3492 = vunpack.c.l.b16 %v3211
    %v3493 = vunpack.c.l.b16 %v3212
    %v3494 = vunpack.c.l.b16 %v3213
    %v3495 = vunpack.c.l.b16 %v3214
    %v3496 = vunpack.c.l.b16 %v3215
    %v3497 = vunpack.c.l.b16 %v3216
    %v3498 = vunpack.c.l.b16 %v3217
    %v3499 = vunpack.c.l.b16 %v3218
    %v3500 = vunpack.c.l.b16 %v3219
    %v3501 = vunpack.c.l.b16 %v3220
    %v3502 = vunpack.c.l.b16 %v3221
    %v3503 = vunpack.c.l.b16 %v3222
    %v3504 = vunpack.c.l.b16 %v3223
    %v3505 = vunpack.c.l.b16 %v3224
    %v3506 = vunpack.c.l.b16 %v3225
    %v3507 = vunpack.c.l.b16 %v3226
    %v3508 = vunpack.c.l.b16 %v3227
    %v3509 = vunpack.c.l.b16 %v3228
    %v3510 = vunpack.c.l.b16 %v3229
    %v3511 = vunpack.c.l.b16 %v3230
    %v3512 = vunpack.c.l.b16 %v3231
    %v3513 = vunpack.c.l.b16 %v3232
    %v3514 = vunpack.c.l.b16 %v3233
    %v3515 = vunpack.c.l.b16 %v3234
    %v3516 = vunpack.c.l.b16 %v3235
    %v3517 = vunpack.c.l.b16 %v3236
    %v3518 = vunpack.c.l.b16 %v3237
    %v3519 = vunpack.c.l.b16 %v3238
    %v3520 = vunpack.c.l.b16 %v3239
    %v3521 = vunpack.c.l.b16 %v3240
    %v3522 = vunpack.c.l.b16 %v3241
    %v3523 = vunpack.c.l.b16 %v3242
    %v3524 = vpack.c.b16 %v3493, %v3492
    %v3525 = vpack.c.b16 %v3495, %v3494
    %v3526 = vpack.c.b16 %v3497, %v3496
    %v3527 = vpack.c.b16 %v3499, %v3498
    %v3528 = vpack.c.b16 %v3501, %v3500
    %v3529 = vpack.c.b16 %v3503, %v3502
    %v3530 = vpack.c.b16 %v3505, %v3504
    %v3531 = vpack.c.b16 %v3507, %v3506
    %v3532 = vpack.c.b16 %v3509, %v3508
    %v3533 = vpack.c.b16 %v3511, %v3510
    %v3534 = vpack.c.b16 %v3513, %v3512
    %v3535 = vpack.c.b16 %v3515, %v3514
    %v3536 = vpack.c.b16 %v3517, %v3516
    %v3537 = vpack.c.b16 %v3519, %v3518
    %v3538 = vpack.c.b16 %v3521, %v3520
    %v3539 = vpack.c.b16 %v3523, %v3522
    %3556 = vmatprep.subr.bf16.mxu0 0
    %3557 = vmatpush1.bf16.msra.mxu0 %v3524
    %3558 = vmatprep.subr.bf16.mxu0 0
    %3559 = vmatpush1.bf16.msra.mxu0 %v3525
    %3560 = vmatprep.subr.bf16.mxu0 0
    %3561 = vmatpush1.bf16.msra.mxu0 %v3526
    %3562 = vmatprep.subr.bf16.mxu0 0
    %3563 = vmatpush1.bf16.msra.mxu0 %v3527
    %3564 = vmatprep.subr.bf16.mxu0 0
    %3565 = vmatpush1.bf16.msra.mxu0 %v3528
    %3566 = vmatprep.subr.bf16.mxu0 0
    %3567 = vmatpush1.bf16.msra.mxu0 %v3529
    %3568 = vmatprep.subr.bf16.mxu0 0
    %3569 = vmatpush1.bf16.msra.mxu0 %v3530
    %3570 = vmatprep.subr.bf16.mxu0 0
    %3571 = vmatpush1.bf16.msra.mxu0 %v3531
    %3572 = vmatprep.subr.bf16.mxu0 0
    %3573 = vmatpush1.bf16.msra.mxu0 %v3532
    %3574 = vmatprep.subr.bf16.mxu0 0
    %3575 = vmatpush1.bf16.msra.mxu0 %v3533
    %3576 = vmatprep.subr.bf16.mxu0 0
    %3577 = vmatpush1.bf16.msra.mxu0 %v3534
    %3578 = vmatprep.subr.bf16.mxu0 0
    %3579 = vmatpush1.bf16.msra.mxu0 %v3535
    %3580 = vmatprep.subr.bf16.mxu0 0
    %3581 = vmatpush1.bf16.msra.mxu0 %v3536
    %3582 = vmatprep.subr.bf16.mxu0 0
    %3583 = vmatpush1.bf16.msra.mxu0 %v3537
    %3584 = vmatprep.subr.bf16.mxu0 0
    %3585 = vmatpush1.bf16.msra.mxu0 %v3538
    %3586 = vmatprep.subr.bf16.mxu0 0
    %3587 = vmatpush1.bf16.msra.mxu0 %v3539
    %3588 = vmatprep.mubr.bf16.mxu0 %v3210
    %3589 = vmatmul.mubr.bf16.gmra.mrb[0].mxu0 %v3209
    %v3590 = vpop.f32.mrb[0].mxu0
    %v3591 = vadd.f32 %v3455, %v3590
    %v3592 = vpop.f32.mrb[0].mxu0
    %v3593 = vpop.f32.mrb[0].mxu0
    %v3594 = vpop.f32.mrb[0].mxu0
    %3595 = vdwg.mxu0
    %s3596 = scalar_lea.vmem %s55, 8
    %v3597 = vld [vmem:[%s3596] sm:$0x7]
    %v3599 = vsel %vm3158, %v3597, 0
    %3601 = vmatprep.subr.bf16.mxu0 %v3166
    %3602 = vmatpush1.bf16.msra.mxu0 %v3163
    %3603 = vmatprep.subr.bf16.mxu0 0
    %3604 = vmatpush1.bf16.msra.mxu0 0
    %3605 = vmatprep.subr.bf16.mxu0 0
    %3606 = vmatpush1.bf16.msra.mxu0 0
    %3607 = vmatprep.subr.bf16.mxu0 0
    %3608 = vmatpush1.bf16.msra.mxu0 0
    %3609 = vmatprep.subr.bf16.mxu0 0
    %3610 = vmatpush1.bf16.msra.mxu0 0
    %3611 = vmatprep.subr.bf16.mxu0 0
    %3612 = vmatpush1.bf16.msra.mxu0 0
    %3613 = vmatprep.subr.bf16.mxu0 0
    %3614 = vmatpush1.bf16.msra.mxu0 0
    %3615 = vmatprep.subr.bf16.mxu0 0
    %3616 = vmatpush1.bf16.msra.mxu0 0
    %3617 = vmatprep.subr.bf16.mxu0 0
    %3618 = vmatpush1.bf16.msra.mxu0 0
    %3619 = vmatprep.subr.bf16.mxu0 0
    %3620 = vmatpush1.bf16.msra.mxu0 0
    %3621 = vmatprep.subr.bf16.mxu0 0
    %3622 = vmatpush1.bf16.msra.mxu0 0
    %3623 = vmatprep.subr.bf16.mxu0 0
    %3624 = vmatpush1.bf16.msra.mxu0 0
    %3625 = vmatprep.subr.bf16.mxu0 0
    %3626 = vmatpush1.bf16.msra.mxu0 0
    %3627 = vmatprep.subr.bf16.mxu0 0
    %3628 = vmatpush1.bf16.msra.mxu0 0
    %3629 = vmatprep.subr.bf16.mxu0 0
    %3630 = vmatpush1.bf16.msra.mxu0 0
    %3631 = vmatprep.subr.bf16.mxu0 0
    %3632 = vmatpush1.bf16.msra.mxu0 0
    %3633 = vmatprep.mubr.bf16.mxu0 0
    %3634 = vmatmul.mubr.bf16.gmra.mrb[0].mxu0 %v3599
    %v3635 = vpop.f32.mrb[0].mxu0
    %v3636 = vadd.f32 0.0, %v3635
    %v3637 = vpop.f32.mrb[0].mxu0
    %v3638 = vadd.f32 0.0, %v3637
    %v3639 = vpop.f32.mrb[0].mxu0
    %v3640 = vpop.f32.mrb[0].mxu0
    %3641 = vdwg.mxu0
    %v3642 = vpack.c.bf16 %v3636, %v3636
    %v3643 = vpack.c.bf16 %v3638, %v3638
    %s3644 = scalar_lea.vmem %s57, 256
    %v3645 = vld [vmem:[%s3644] sm:$0xf]
    %v3646 = vld [vmem:[%s3644 + $0x4] sm:$0xf]
    %v3647 = vld [vmem:[%s3644 + $0x8] sm:$0xf]
    %v3648 = vld [vmem:[%s3644 + $0xc] sm:$0xf]
    %v3649 = vld [vmem:[%s3644 + $0x10] sm:$0xf]
    %v3650 = vld [vmem:[%s3644 + $0x14] sm:$0xf]
    %v3651 = vld [vmem:[%s3644 + $0x18] sm:$0xf]
    %v3652 = vld [vmem:[%s3644 + $0x1c] sm:$0xf]
    %v3653 = vld [vmem:[%s3644 + $0x20] sm:$0xf]
    %v3654 = vld [vmem:[%s3644 + $0x24] sm:$0xf]
    %v3655 = vld [vmem:[%s3644 + $0x28] sm:$0xf]
    %v3656 = vld [vmem:[%s3644 + $0x2c] sm:$0xf]
    %v3657 = vld [vmem:[%s3644 + $0x30] sm:$0xf]
    %v3658 = vld [vmem:[%s3644 + $0x34] sm:$0xf]
    %v3659 = vld [vmem:[%s3644 + $0x38] sm:$0xf]
    %v3660 = vld [vmem:[%s3644 + $0x3c] sm:$0xf]
    %v3661 = vld [vmem:[%s3644 + $0x40] sm:$0xf]
    %v3662 = vld [vmem:[%s3644 + $0x44] sm:$0xf]
    %v3663 = vld [vmem:[%s3644 + $0x48] sm:$0xf]
    %v3664 = vld [vmem:[%s3644 + $0x4c] sm:$0xf]
    %v3665 = vld [vmem:[%s3644 + $0x50] sm:$0xf]
    %v3666 = vld [vmem:[%s3644 + $0x54] sm:$0xf]
    %v3667 = vld [vmem:[%s3644 + $0x58] sm:$0xf]
    %v3668 = vld [vmem:[%s3644 + $0x5c] sm:$0xf]
    %v3669 = vld [vmem:[%s3644 + $0x60] sm:$0xf]
    %v3670 = vld [vmem:[%s3644 + $0x64] sm:$0xf]
    %v3671 = vld [vmem:[%s3644 + $0x68] sm:$0xf]
    %v3672 = vld [vmem:[%s3644 + $0x6c] sm:$0xf]
    %v3673 = vld [vmem:[%s3644 + $0x70] sm:$0xf]
    %v3674 = vld [vmem:[%s3644 + $0x74] sm:$0xf]
    %v3675 = vld [vmem:[%s3644 + $0x78] sm:$0xf]
    %v3676 = vld [vmem:[%s3644 + $0x7c] sm:$0xf]
    %v3709 = vunpack.c.l.b16 %v3645
    %v3710 = vunpack.c.l.b16 %v3646
    %v3711 = vunpack.c.l.b16 %v3647
    %v3712 = vunpack.c.l.b16 %v3648
    %v3713 = vunpack.c.l.b16 %v3649
    %v3714 = vunpack.c.l.b16 %v3650
    %v3715 = vunpack.c.l.b16 %v3651
    %v3716 = vunpack.c.l.b16 %v3652
    %v3717 = vunpack.c.l.b16 %v3653
    %v3718 = vunpack.c.l.b16 %v3654
    %v3719 = vunpack.c.l.b16 %v3655
    %v3720 = vunpack.c.l.b16 %v3656
    %v3721 = vunpack.c.l.b16 %v3657
    %v3722 = vunpack.c.l.b16 %v3658
    %v3723 = vunpack.c.l.b16 %v3659
    %v3724 = vunpack.c.l.b16 %v3660
    %v3725 = vunpack.c.l.b16 %v3661
    %v3726 = vunpack.c.l.b16 %v3662
    %v3727 = vunpack.c.l.b16 %v3663
    %v3728 = vunpack.c.l.b16 %v3664
    %v3729 = vunpack.c.l.b16 %v3665
    %v3730 = vunpack.c.l.b16 %v3666
    %v3731 = vunpack.c.l.b16 %v3667
    %v3732 = vunpack.c.l.b16 %v3668
    %v3733 = vunpack.c.l.b16 %v3669
    %v3734 = vunpack.c.l.b16 %v3670
    %v3735 = vunpack.c.l.b16 %v3671
    %v3736 = vunpack.c.l.b16 %v3672
    %v3737 = vunpack.c.l.b16 %v3673
    %v3738 = vunpack.c.l.b16 %v3674
    %v3739 = vunpack.c.l.b16 %v3675
    %v3740 = vunpack.c.l.b16 %v3676
    %v3741 = vpack.c.b16 %v3710, %v3709
    %v3742 = vpack.c.b16 %v3712, %v3711
    %v3743 = vpack.c.b16 %v3714, %v3713
    %v3744 = vpack.c.b16 %v3716, %v3715
    %v3745 = vpack.c.b16 %v3718, %v3717
    %v3746 = vpack.c.b16 %v3720, %v3719
    %v3747 = vpack.c.b16 %v3722, %v3721
    %v3748 = vpack.c.b16 %v3724, %v3723
    %v3749 = vpack.c.b16 %v3726, %v3725
    %v3750 = vpack.c.b16 %v3728, %v3727
    %v3751 = vpack.c.b16 %v3730, %v3729
    %v3752 = vpack.c.b16 %v3732, %v3731
    %v3753 = vpack.c.b16 %v3734, %v3733
    %v3754 = vpack.c.b16 %v3736, %v3735
    %v3755 = vpack.c.b16 %v3738, %v3737
    %v3756 = vpack.c.b16 %v3740, %v3739
    %3773 = vmatprep.subr.bf16.mxu0 0
    %3774 = vmatpush1.bf16.msra.mxu0 %v3741
    %3775 = vmatprep.subr.bf16.mxu0 0
    %3776 = vmatpush1.bf16.msra.mxu0 %v3742
    %3777 = vmatprep.subr.bf16.mxu0 0
    %3778 = vmatpush1.bf16.msra.mxu0 %v3743
    %3779 = vmatprep.subr.bf16.mxu0 0
    %3780 = vmatpush1.bf16.msra.mxu0 %v3744
    %3781 = vmatprep.subr.bf16.mxu0 0
    %3782 = vmatpush1.bf16.msra.mxu0 %v3745
    %3783 = vmatprep.subr.bf16.mxu0 0
    %3784 = vmatpush1.bf16.msra.mxu0 %v3746
    %3785 = vmatprep.subr.bf16.mxu0 0
    %3786 = vmatpush1.bf16.msra.mxu0 %v3747
    %3787 = vmatprep.subr.bf16.mxu0 0
    %3788 = vmatpush1.bf16.msra.mxu0 %v3748
    %3789 = vmatprep.subr.bf16.mxu0 0
    %3790 = vmatpush1.bf16.msra.mxu0 %v3749
    %3791 = vmatprep.subr.bf16.mxu0 0
    %3792 = vmatpush1.bf16.msra.mxu0 %v3750
    %3793 = vmatprep.subr.bf16.mxu0 0
    %3794 = vmatpush1.bf16.msra.mxu0 %v3751
    %3795 = vmatprep.subr.bf16.mxu0 0
    %3796 = vmatpush1.bf16.msra.mxu0 %v3752
    %3797 = vmatprep.subr.bf16.mxu0 0
    %3798 = vmatpush1.bf16.msra.mxu0 %v3753
    %3799 = vmatprep.subr.bf16.mxu0 0
    %3800 = vmatpush1.bf16.msra.mxu0 %v3754
    %3801 = vmatprep.subr.bf16.mxu0 0
    %3802 = vmatpush1.bf16.msra.mxu0 %v3755
    %3803 = vmatprep.subr.bf16.mxu0 0
    %3804 = vmatpush1.bf16.msra.mxu0 %v3756
    %3805 = vmatprep.mubr.bf16.mxu0 %v3643
    %3806 = vmatmul.mubr.bf16.gmra.mrb[0].mxu0 %v3642
    %v3807 = vpop.f32.mrb[0].mxu0
    %v3808 = vadd.f32 0.0, %v3807
    %v3809 = vpop.f32.mrb[0].mxu0
    %v3810 = vpop.f32.mrb[0].mxu0
    %v3811 = vpop.f32.mrb[0].mxu0
    %3812 = vdwg.mxu0
    %v3813 = vadd.f32 %v3591, %v3808
    %v3814 = vld [vmem:[%s59] sm:$0x1]
    %v3816 = vlaneseq
    %v3817 = vshrl.u32 %v3816, 7
    %v3818 = vsub.s32 0, %v3817
    %v3819 = vrot.slane %v3814, %v3818
    %v3821 = vadd.f32 %v3813, %v3819
    %v3822 = vmax.f32 %v3821, 0.0
    %v3823 = vsel %vm2092, %v3822, 0.0
    %v3824 = vrot.slane %v3823, 4
    %v3825 = vadd.f32 %v3823, %v3824
    %v3826 = vrot.slane %v3825, 2
    %v3827 = vadd.f32 %v3825, %v3826
    %v3828 = vrot.slane %v3827, 1
    %v3829 = vadd.f32 %v3827, %v3828
    %v3830 = vmul.f32 %v3829, 0.16666667
    %v3831 = vmul.f32 %v3822, %v3822
    %v3832 = vsel %vm2092, %v3831, 0.0
    %v3833 = vrot.slane %v3832, 4
    %v3834 = vadd.f32 %v3832, %v3833
    %v3835 = vrot.slane %v3834, 2
    %v3836 = vadd.f32 %v3834, %v3835
    %v3837 = vrot.slane %v3836, 1
    %v3838 = vadd.f32 %v3836, %v3837
    %v3839 = vmul.f32 %v3838, 0.16666667
    %v3840 = vmul.f32 %v3830, %v3830
    %v3841 = vsub.f32 %v3839, %v3840
    %v3842 = vmax.f32 %v3841, 0.0
    %v3843 = vsub.f32 %v3822, %v3830
    %v3844 = vadd.f32 %v3842, 1e-05
    %v3845 = vrsqrt.pop %v3844
    %v3846 = vmul.f32 %v3843, %v3845
    %v3847 = vld [vmem:[%s61] sm:$0x1]
    %v3849 = vlaneseq
    %v3850 = vshrl.u32 %v3849, 7
    %v3851 = vsub.s32 0, %v3850
    %v3852 = vrot.slane %v3847, %v3851
    %v3854 = vmul.f32 %v3846, %v3852
    %v3855 = vld [vmem:[%s63] sm:$0x1]
    %v3857 = vlaneseq
    %v3858 = vshrl.u32 %v3857, 7
    %v3859 = vsub.s32 0, %v3858
    %v3860 = vrot.slane %v3855, %v3859
    %v3862 = vadd.f32 %v3854, %v3860
    %v3863 = vpack.c.bf16 %v3862, %v3862
    %v3864 = vadd.bf16 %v3863, %v2506
    %v3865 = vld [vmem:[%s65] sm:$0xf]
    %v3866 = vld [vmem:[%s65 + $0x4] sm:$0x3]
    %v3869 = vunpack.c.l.b16 %v3865
    %v3870 = vunpack.c.l.b16 %v3866
    %v3871 = vpack.c.b16 %v3870, %v3869
    %v3873 = vsel %vm2508, %v3871, 0
    %v3876 = vsel %vm1688, %v3864, 0
    %3878 = vmatprep.subr.bf16.mxu0 0
    %3879 = vmatpush1.bf16.msra.mxu0 %v3876
    %3880 = vmatprep.subr.bf16.mxu0 0
    %3881 = vmatpush1.bf16.msra.mxu0 0
    %3882 = vmatprep.subr.bf16.mxu0 0
    %3883 = vmatpush1.bf16.msra.mxu0 0
    %3884 = vmatprep.subr.bf16.mxu0 0
    %3885 = vmatpush1.bf16.msra.mxu0 0
    %3886 = vmatprep.subr.bf16.mxu0 0
    %3887 = vmatpush1.bf16.msra.mxu0 0
    %3888 = vmatprep.subr.bf16.mxu0 0
    %3889 = vmatpush1.bf16.msra.mxu0 0
    %3890 = vmatprep.subr.bf16.mxu0 0
    %3891 = vmatpush1.bf16.msra.mxu0 0
    %3892 = vmatprep.subr.bf16.mxu0 0
    %3893 = vmatpush1.bf16.msra.mxu0 0
    %3894 = vmatprep.subr.bf16.mxu0 0
    %3895 = vmatpush1.bf16.msra.mxu0 0
    %3896 = vmatprep.subr.bf16.mxu0 0
    %3897 = vmatpush1.bf16.msra.mxu0 0
    %3898 = vmatprep.subr.bf16.mxu0 0
    %3899 = vmatpush1.bf16.msra.mxu0 0
    %3900 = vmatprep.subr.bf16.mxu0 0
    %3901 = vmatpush1.bf16.msra.mxu0 0
    %3902 = vmatprep.subr.bf16.mxu0 0
    %3903 = vmatpush1.bf16.msra.mxu0 0
    %3904 = vmatprep.subr.bf16.mxu0 0
    %3905 = vmatpush1.bf16.msra.mxu0 0
    %3906 = vmatprep.subr.bf16.mxu0 0
    %3907 = vmatpush1.bf16.msra.mxu0 0
    %3908 = vmatprep.subr.bf16.mxu0 0
    %3909 = vmatpush1.bf16.msra.mxu0 0
    %3910 = vmatprep.mubr.bf16.mxu0 0
    %3911 = vmatmul.mubr.bf16.gmra.mrb[0].mxu0 %v3873
    %v3912 = vpop.f32.mrb[0].mxu0
    %v3913 = vadd.f32 0.0, %v3912
    %v3914 = vpop.f32.mrb[0].mxu0
    %v3915 = vpop.f32.mrb[0].mxu0
    %v3916 = vadd.f32 0.0, %v3915
    %v3917 = vpop.f32.mrb[0].mxu0
    %3918 = vdwg.mxu0
    %v3919 = vpack.c.bf16 %v3916, %v3913
    %v3920 = vld [vmem:[%s67] sm:$0xf]
    %v3921 = vld [vmem:[%s67 + $0x4] sm:$0xf]
    %v3922 = vld [vmem:[%s67 + $0x8] sm:$0xf]
    %v3923 = vld [vmem:[%s67 + $0xc] sm:$0xf]
    %v3924 = vld [vmem:[%s67 + $0x10] sm:$0xf]
    %v3925 = vld [vmem:[%s67 + $0x14] sm:$0xf]
    %v3926 = vld [vmem:[%s67 + $0x18] sm:$0xf]
    %v3927 = vld [vmem:[%s67 + $0x1c] sm:$0xf]
    %v3928 = vld [vmem:[%s67 + $0x20] sm:$0xf]
    %v3929 = vld [vmem:[%s67 + $0x24] sm:$0xf]
    %v3930 = vld [vmem:[%s67 + $0x28] sm:$0xf]
    %v3931 = vld [vmem:[%s67 + $0x2c] sm:$0xf]
    %v3932 = vld [vmem:[%s67 + $0x30] sm:$0xf]
    %v3933 = vld [vmem:[%s67 + $0x34] sm:$0xf]
    %v3934 = vld [vmem:[%s67 + $0x38] sm:$0xf]
    %v3935 = vld [vmem:[%s67 + $0x3c] sm:$0xf]
    %s3936 = scalar_lea.vmem %s65, 8
    %v3937 = vld [vmem:[%s3936] sm:$0xf]
    %v3938 = vld [vmem:[%s3936 + $0x4] sm:$0x3]
    %v3941 = vunpack.c.l.b16 %v3937
    %v3942 = vunpack.c.l.b16 %v3938
    %v3943 = vpack.c.b16 %v3942, %v3941
    %v3945 = vsel %vm2508, %v3943, 0
    %3947 = vmatprep.subr.bf16.mxu0 0
    %3948 = vmatpush1.bf16.msra.mxu0 %v3876
    %3949 = vmatprep.subr.bf16.mxu0 0
    %3950 = vmatpush1.bf16.msra.mxu0 0
    %3951 = vmatprep.subr.bf16.mxu0 0
    %3952 = vmatpush1.bf16.msra.mxu0 0
    %3953 = vmatprep.subr.bf16.mxu0 0
    %3954 = vmatpush1.bf16.msra.mxu0 0
    %3955 = vmatprep.subr.bf16.mxu0 0
    %3956 = vmatpush1.bf16.msra.mxu0 0
    %3957 = vmatprep.subr.bf16.mxu0 0
    %3958 = vmatpush1.bf16.msra.mxu0 0
    %3959 = vmatprep.subr.bf16.mxu0 0
    %3960 = vmatpush1.bf16.msra.mxu0 0
    %3961 = vmatprep.subr.bf16.mxu0 0
    %3962 = vmatpush1.bf16.msra.mxu0 0
    %3963 = vmatprep.subr.bf16.mxu0 0
    %3964 = vmatpush1.bf16.msra.mxu0 0
    %3965 = vmatprep.subr.bf16.mxu0 0
    %3966 = vmatpush1.bf16.msra.mxu0 0
    %3967 = vmatprep.subr.bf16.mxu0 0
    %3968 = vmatpush1.bf16.msra.mxu0 0
    %3969 = vmatprep.subr.bf16.mxu0 0
    %3970 = vmatpush1.bf16.msra.mxu0 0
    %3971 = vmatprep.subr.bf16.mxu0 0
    %3972 = vmatpush1.bf16.msra.mxu0 0
    %3973 = vmatprep.subr.bf16.mxu0 0
    %3974 = vmatpush1.bf16.msra.mxu0 0
    %3975 = vmatprep.subr.bf16.mxu0 0
    %3976 = vmatpush1.bf16.msra.mxu0 0
    %3977 = vmatprep.subr.bf16.mxu0 0
    %3978 = vmatpush1.bf16.msra.mxu0 0
    %3979 = vmatprep.mubr.bf16.mxu0 0
    %3980 = vmatmul.mubr.bf16.gmra.mrb[0].mxu0 %v3945
    %v3981 = vpop.f32.mrb[0].mxu0
    %v3982 = vadd.f32 0.0, %v3981
    %v3983 = vpop.f32.mrb[0].mxu0
    %v3984 = vpop.f32.mrb[0].mxu0
    %v3985 = vadd.f32 0.0, %v3984
    %v3986 = vpop.f32.mrb[0].mxu0
    %3987 = vdwg.mxu0
    %v3988 = vpack.c.bf16 %v3985, %v3982
    %s3989 = scalar_lea.vmem %s67, 64
    %v3990 = vld [vmem:[%s3989] sm:$0xf]
    %v3991 = vld [vmem:[%s3989 + $0x4] sm:$0xf]
    %v3992 = vld [vmem:[%s3989 + $0x8] sm:$0xf]
    %v3993 = vld [vmem:[%s3989 + $0xc] sm:$0xf]
    %v3994 = vld [vmem:[%s3989 + $0x10] sm:$0xf]
    %v3995 = vld [vmem:[%s3989 + $0x14] sm:$0xf]
    %v3996 = vld [vmem:[%s3989 + $0x18] sm:$0xf]
    %v3997 = vld [vmem:[%s3989 + $0x1c] sm:$0xf]
    %v3998 = vld [vmem:[%s3989 + $0x20] sm:$0xf]
    %v3999 = vld [vmem:[%s3989 + $0x24] sm:$0xf]
    %v4000 = vld [vmem:[%s3989 + $0x28] sm:$0xf]
    %v4001 = vld [vmem:[%s3989 + $0x2c] sm:$0xf]
    %v4002 = vld [vmem:[%s3989 + $0x30] sm:$0xf]
    %v4003 = vld [vmem:[%s3989 + $0x34] sm:$0xf]
    %v4004 = vld [vmem:[%s3989 + $0x38] sm:$0xf]
    %v4005 = vld [vmem:[%s3989 + $0x3c] sm:$0xf]
    %v4022 = vunpack.c.l.b16 %v3990
    %v4023 = vunpack.c.l.b16 %v3991
    %v4024 = vunpack.c.l.b16 %v3992
    %v4025 = vunpack.c.l.b16 %v3993
    %v4026 = vunpack.c.l.b16 %v3994
    %v4027 = vunpack.c.l.b16 %v3995
    %v4028 = vunpack.c.l.b16 %v3996
    %v4029 = vunpack.c.l.b16 %v3997
    %v4030 = vunpack.c.l.b16 %v3998
    %v4031 = vunpack.c.l.b16 %v3999
    %v4032 = vunpack.c.l.b16 %v4000
    %v4033 = vunpack.c.l.b16 %v4001
    %v4034 = vunpack.c.l.b16 %v4002
    %v4035 = vunpack.c.l.b16 %v4003
    %v4036 = vunpack.c.l.b16 %v4004
    %v4037 = vunpack.c.l.b16 %v4005
    %v4038 = vpack.c.b16 %v4023, %v4022
    %v4039 = vpack.c.b16 %v4025, %v4024
    %v4040 = vpack.c.b16 %v4027, %v4026
    %v4041 = vpack.c.b16 %v4029, %v4028
    %v4042 = vpack.c.b16 %v4031, %v4030
    %v4043 = vpack.c.b16 %v4033, %v4032
    %v4044 = vpack.c.b16 %v4035, %v4034
    %v4045 = vpack.c.b16 %v4037, %v4036
    %4054 = vmatprep.subr.bf16.mxu0 0
    %4055 = vmatpush1.bf16.msra.mxu0 %v4038
    %4056 = vmatprep.subr.bf16.mxu0 0
    %4057 = vmatpush1.bf16.msra.mxu0 %v4039
    %4058 = vmatprep.subr.bf16.mxu0 0
    %4059 = vmatpush1.bf16.msra.mxu0 %v4040
    %4060 = vmatprep.subr.bf16.mxu0 0
    %4061 = vmatpush1.bf16.msra.mxu0 %v4041
    %4062 = vmatprep.subr.bf16.mxu0 0
    %4063 = vmatpush1.bf16.msra.mxu0 %v4042
    %4064 = vmatprep.subr.bf16.mxu0 0
    %4065 = vmatpush1.bf16.msra.mxu0 %v4043
    %4066 = vmatprep.subr.bf16.mxu0 0
    %4067 = vmatpush1.bf16.msra.mxu0 %v4044
    %4068 = vmatprep.subr.bf16.mxu0 0
    %4069 = vmatpush1.bf16.msra.mxu0 %v4045
    %4070 = vmatprep.subr.bf16.mxu0 0
    %4071 = vmatpush1.bf16.msra.mxu0 0
    %4072 = vmatprep.subr.bf16.mxu0 0
    %4073 = vmatpush1.bf16.msra.mxu0 0
    %4074 = vmatprep.subr.bf16.mxu0 0
    %4075 = vmatpush1.bf16.msra.mxu0 0
    %4076 = vmatprep.subr.bf16.mxu0 0
    %4077 = vmatpush1.bf16.msra.mxu0 0
    %4078 = vmatprep.subr.bf16.mxu0 0
    %4079 = vmatpush1.bf16.msra.mxu0 0
    %4080 = vmatprep.subr.bf16.mxu0 0
    %4081 = vmatpush1.bf16.msra.mxu0 0
    %4082 = vmatprep.subr.bf16.mxu0 0
    %4083 = vmatpush1.bf16.msra.mxu0 0
    %4084 = vmatprep.subr.bf16.mxu0 0
    %4085 = vmatpush1.bf16.msra.mxu0 0
    %4086 = vmatprep.mubr.bf16.mxu0 0
    %4087 = vmatmul.mubr.bf16.gmra.mrb[0].mxu0 %v3988
    %v4088 = vpop.f32.mrb[0].mxu0
    %v4089 = vadd.f32 0.0, %v4088
    %v4090 = vpop.f32.mrb[0].mxu0
    %v4091 = vpop.f32.mrb[0].mxu0
    %v4092 = vadd.f32 0.0, %v4091
    %v4093 = vpop.f32.mrb[0].mxu0
    %4094 = vdwg.mxu0
    %v4111 = vunpack.c.l.b16 %v3920
    %v4112 = vunpack.c.l.b16 %v3921
    %v4113 = vunpack.c.l.b16 %v3922
    %v4114 = vunpack.c.l.b16 %v3923
    %v4115 = vunpack.c.l.b16 %v3924
    %v4116 = vunpack.c.l.b16 %v3925
    %v4117 = vunpack.c.l.b16 %v3926
    %v4118 = vunpack.c.l.b16 %v3927
    %v4119 = vunpack.c.l.b16 %v3928
    %v4120 = vunpack.c.l.b16 %v3929
    %v4121 = vunpack.c.l.b16 %v3930
    %v4122 = vunpack.c.l.b16 %v3931
    %v4123 = vunpack.c.l.b16 %v3932
    %v4124 = vunpack.c.l.b16 %v3933
    %v4125 = vunpack.c.l.b16 %v3934
    %v4126 = vunpack.c.l.b16 %v3935
    %v4127 = vpack.c.b16 %v4112, %v4111
    %v4128 = vpack.c.b16 %v4114, %v4113
    %v4129 = vpack.c.b16 %v4116, %v4115
    %v4130 = vpack.c.b16 %v4118, %v4117
    %v4131 = vpack.c.b16 %v4120, %v4119
    %v4132 = vpack.c.b16 %v4122, %v4121
    %v4133 = vpack.c.b16 %v4124, %v4123
    %v4134 = vpack.c.b16 %v4126, %v4125
    %4143 = vmatprep.subr.bf16.mxu0 0
    %4144 = vmatpush1.bf16.msra.mxu0 %v4127
    %4145 = vmatprep.subr.bf16.mxu0 0
    %4146 = vmatpush1.bf16.msra.mxu0 %v4128
    %4147 = vmatprep.subr.bf16.mxu0 0
    %4148 = vmatpush1.bf16.msra.mxu0 %v4129
    %4149 = vmatprep.subr.bf16.mxu0 0
    %4150 = vmatpush1.bf16.msra.mxu0 %v4130
    %4151 = vmatprep.subr.bf16.mxu0 0
    %4152 = vmatpush1.bf16.msra.mxu0 %v4131
    %4153 = vmatprep.subr.bf16.mxu0 0
    %4154 = vmatpush1.bf16.msra.mxu0 %v4132
    %4155 = vmatprep.subr.bf16.mxu0 0
    %4156 = vmatpush1.bf16.msra.mxu0 %v4133
    %4157 = vmatprep.subr.bf16.mxu0 0
    %4158 = vmatpush1.bf16.msra.mxu0 %v4134
    %4159 = vmatprep.subr.bf16.mxu0 0
    %4160 = vmatpush1.bf16.msra.mxu0 0
    %4161 = vmatprep.subr.bf16.mxu0 0
    %4162 = vmatpush1.bf16.msra.mxu0 0
    %4163 = vmatprep.subr.bf16.mxu0 0
    %4164 = vmatpush1.bf16.msra.mxu0 0
    %4165 = vmatprep.subr.bf16.mxu0 0
    %4166 = vmatpush1.bf16.msra.mxu0 0
    %4167 = vmatprep.subr.bf16.mxu0 0
    %4168 = vmatpush1.bf16.msra.mxu0 0
    %4169 = vmatprep.subr.bf16.mxu0 0
    %4170 = vmatpush1.bf16.msra.mxu0 0
    %4171 = vmatprep.subr.bf16.mxu0 0
    %4172 = vmatpush1.bf16.msra.mxu0 0
    %4173 = vmatprep.subr.bf16.mxu0 0
    %4174 = vmatpush1.bf16.msra.mxu0 0
    %4175 = vmatprep.mubr.bf16.mxu0 0
    %4176 = vmatmul.mubr.bf16.gmra.mrb[0].mxu0 %v3919
    %v4177 = vpop.f32.mrb[0].mxu0
    %v4178 = vadd.f32 %v4089, %v4177
    %v4179 = vpop.f32.mrb[0].mxu0
    %v4180 = vpop.f32.mrb[0].mxu0
    %v4181 = vadd.f32 %v4092, %v4180
    %v4182 = vpop.f32.mrb[0].mxu0
    %4183 = vdwg.mxu0
    %s4184 = scalar_lea.vmem %s65, 16
    %v4185 = vld [vmem:[%s4184] sm:$0xf]
    %v4186 = vld [vmem:[%s4184 + $0x4] sm:$0x3]
    %v4189 = vunpack.c.l.b16 %v4185
    %v4190 = vunpack.c.l.b16 %v4186
    %v4191 = vpack.c.b16 %v4190, %v4189
    %v4193 = vsel %vm2508, %v4191, 0
    %4195 = vmatprep.subr.bf16.mxu0 0
    %4196 = vmatpush1.bf16.msra.mxu0 %v3876
    %4197 = vmatprep.subr.bf16.mxu0 0
    %4198 = vmatpush1.bf16.msra.mxu0 0
    %4199 = vmatprep.subr.bf16.mxu0 0
    %4200 = vmatpush1.bf16.msra.mxu0 0
    %4201 = vmatprep.subr.bf16.mxu0 0
    %4202 = vmatpush1.bf16.msra.mxu0 0
    %4203 = vmatprep.subr.bf16.mxu0 0
    %4204 = vmatpush1.bf16.msra.mxu0 0
    %4205 = vmatprep.subr.bf16.mxu0 0
    %4206 = vmatpush1.bf16.msra.mxu0 0
    %4207 = vmatprep.subr.bf16.mxu0 0
    %4208 = vmatpush1.bf16.msra.mxu0 0
    %4209 = vmatprep.subr.bf16.mxu0 0
    %4210 = vmatpush1.bf16.msra.mxu0 0
    %4211 = vmatprep.subr.bf16.mxu0 0
    %4212 = vmatpush1.bf16.msra.mxu0 0
    %4213 = vmatprep.subr.bf16.mxu0 0
    %4214 = vmatpush1.bf16.msra.mxu0 0
    %4215 = vmatprep.subr.bf16.mxu0 0
    %4216 = vmatpush1.bf16.msra.mxu0 0
    %4217 = vmatprep.subr.bf16.mxu0 0
    %4218 = vmatpush1.bf16.msra.mxu0 0
    %4219 = vmatprep.subr.bf16.mxu0 0
    %4220 = vmatpush1.bf16.msra.mxu0 0
    %4221 = vmatprep.subr.bf16.mxu0 0
    %4222 = vmatpush1.bf16.msra.mxu0 0
    %4223 = vmatprep.subr.bf16.mxu0 0
    %4224 = vmatpush1.bf16.msra.mxu0 0
    %4225 = vmatprep.subr.bf16.mxu0 0
    %4226 = vmatpush1.bf16.msra.mxu0 0
    %4227 = vmatprep.mubr.bf16.mxu0 0
    %4228 = vmatmul.mubr.bf16.gmra.mrb[0].mxu0 %v4193
    %v4229 = vpop.f32.mrb[0].mxu0
    %v4230 = vadd.f32 0.0, %v4229
    %v4231 = vpop.f32.mrb[0].mxu0
    %v4232 = vpop.f32.mrb[0].mxu0
    %v4233 = vadd.f32 0.0, %v4232
    %v4234 = vpop.f32.mrb[0].mxu0
    %4235 = vdwg.mxu0
    %v4236 = vpack.c.bf16 %v4233, %v4230
    %s4237 = scalar_lea.vmem %s67, 128
    %v4238 = vld [vmem:[%s4237] sm:$0xf]
    %v4239 = vld [vmem:[%s4237 + $0x4] sm:$0xf]
    %v4240 = vld [vmem:[%s4237 + $0x8] sm:$0xf]
    %v4241 = vld [vmem:[%s4237 + $0xc] sm:$0xf]
    %v4242 = vld [vmem:[%s4237 + $0x10] sm:$0xf]
    %v4243 = vld [vmem:[%s4237 + $0x14] sm:$0xf]
    %v4244 = vld [vmem:[%s4237 + $0x18] sm:$0xf]
    %v4245 = vld [vmem:[%s4237 + $0x1c] sm:$0xf]
    %v4246 = vld [vmem:[%s4237 + $0x20] sm:$0xf]
    %v4247 = vld [vmem:[%s4237 + $0x24] sm:$0xf]
    %v4248 = vld [vmem:[%s4237 + $0x28] sm:$0xf]
    %v4249 = vld [vmem:[%s4237 + $0x2c] sm:$0xf]
    %v4250 = vld [vmem:[%s4237 + $0x30] sm:$0xf]
    %v4251 = vld [vmem:[%s4237 + $0x34] sm:$0xf]
    %v4252 = vld [vmem:[%s4237 + $0x38] sm:$0xf]
    %v4253 = vld [vmem:[%s4237 + $0x3c] sm:$0xf]
    %v4270 = vunpack.c.l.b16 %v4238
    %v4271 = vunpack.c.l.b16 %v4239
    %v4272 = vunpack.c.l.b16 %v4240
    %v4273 = vunpack.c.l.b16 %v4241
    %v4274 = vunpack.c.l.b16 %v4242
    %v4275 = vunpack.c.l.b16 %v4243
    %v4276 = vunpack.c.l.b16 %v4244
    %v4277 = vunpack.c.l.b16 %v4245
    %v4278 = vunpack.c.l.b16 %v4246
    %v4279 = vunpack.c.l.b16 %v4247
    %v4280 = vunpack.c.l.b16 %v4248
    %v4281 = vunpack.c.l.b16 %v4249
    %v4282 = vunpack.c.l.b16 %v4250
    %v4283 = vunpack.c.l.b16 %v4251
    %v4284 = vunpack.c.l.b16 %v4252
    %v4285 = vunpack.c.l.b16 %v4253
    %v4286 = vpack.c.b16 %v4271, %v4270
    %v4287 = vpack.c.b16 %v4273, %v4272
    %v4288 = vpack.c.b16 %v4275, %v4274
    %v4289 = vpack.c.b16 %v4277, %v4276
    %v4290 = vpack.c.b16 %v4279, %v4278
    %v4291 = vpack.c.b16 %v4281, %v4280
    %v4292 = vpack.c.b16 %v4283, %v4282
    %v4293 = vpack.c.b16 %v4285, %v4284
    %4302 = vmatprep.subr.bf16.mxu0 0
    %4303 = vmatpush1.bf16.msra.mxu0 %v4286
    %4304 = vmatprep.subr.bf16.mxu0 0
    %4305 = vmatpush1.bf16.msra.mxu0 %v4287
    %4306 = vmatprep.subr.bf16.mxu0 0
    %4307 = vmatpush1.bf16.msra.mxu0 %v4288
    %4308 = vmatprep.subr.bf16.mxu0 0
    %4309 = vmatpush1.bf16.msra.mxu0 %v4289
    %4310 = vmatprep.subr.bf16.mxu0 0
    %4311 = vmatpush1.bf16.msra.mxu0 %v4290
    %4312 = vmatprep.subr.bf16.mxu0 0
    %4313 = vmatpush1.bf16.msra.mxu0 %v4291
    %4314 = vmatprep.subr.bf16.mxu0 0
    %4315 = vmatpush1.bf16.msra.mxu0 %v4292
    %4316 = vmatprep.subr.bf16.mxu0 0
    %4317 = vmatpush1.bf16.msra.mxu0 %v4293
    %4318 = vmatprep.subr.bf16.mxu0 0
    %4319 = vmatpush1.bf16.msra.mxu0 0
    %4320 = vmatprep.subr.bf16.mxu0 0
    %4321 = vmatpush1.bf16.msra.mxu0 0
    %4322 = vmatprep.subr.bf16.mxu0 0
    %4323 = vmatpush1.bf16.msra.mxu0 0
    %4324 = vmatprep.subr.bf16.mxu0 0
    %4325 = vmatpush1.bf16.msra.mxu0 0
    %4326 = vmatprep.subr.bf16.mxu0 0
    %4327 = vmatpush1.bf16.msra.mxu0 0
    %4328 = vmatprep.subr.bf16.mxu0 0
    %4329 = vmatpush1.bf16.msra.mxu0 0
    %4330 = vmatprep.subr.bf16.mxu0 0
    %4331 = vmatpush1.bf16.msra.mxu0 0
    %4332 = vmatprep.subr.bf16.mxu0 0
    %4333 = vmatpush1.bf16.msra.mxu0 0
    %4334 = vmatprep.mubr.bf16.mxu0 0
    %4335 = vmatmul.mubr.bf16.gmra.mrb[0].mxu0 %v4236
    %v4336 = vpop.f32.mrb[0].mxu0
    %v4337 = vadd.f32 0.0, %v4336
    %v4338 = vpop.f32.mrb[0].mxu0
    %v4339 = vpop.f32.mrb[0].mxu0
    %v4340 = vadd.f32 0.0, %v4339
    %v4341 = vpop.f32.mrb[0].mxu0
    %4342 = vdwg.mxu0
    %v4343 = vadd.f32 %v4178, %v4337
    %v4344 = vadd.f32 %v4181, %v4340
    %s4345 = scalar_lea.vmem %s65, 24
    %v4346 = vld [vmem:[%s4345] sm:$0xf]
    %v4347 = vld [vmem:[%s4345 + $0x4] sm:$0x3]
    %v4350 = vunpack.c.l.b16 %v4346
    %v4351 = vunpack.c.l.b16 %v4347
    %v4352 = vpack.c.b16 %v4351, %v4350
    %v4354 = vsel %vm2508, %v4352, 0
    %4356 = vmatprep.subr.bf16.mxu0 0
    %4357 = vmatpush1.bf16.msra.mxu0 %v3876
    %4358 = vmatprep.subr.bf16.mxu0 0
    %4359 = vmatpush1.bf16.msra.mxu0 0
    %4360 = vmatprep.subr.bf16.mxu0 0
    %4361 = vmatpush1.bf16.msra.mxu0 0
    %4362 = vmatprep.subr.bf16.mxu0 0
    %4363 = vmatpush1.bf16.msra.mxu0 0
    %4364 = vmatprep.subr.bf16.mxu0 0
    %4365 = vmatpush1.bf16.msra.mxu0 0
    %4366 = vmatprep.subr.bf16.mxu0 0
    %4367 = vmatpush1.bf16.msra.mxu0 0
    %4368 = vmatprep.subr.bf16.mxu0 0
    %4369 = vmatpush1.bf16.msra.mxu0 0
    %4370 = vmatprep.subr.bf16.mxu0 0
    %4371 = vmatpush1.bf16.msra.mxu0 0
    %4372 = vmatprep.subr.bf16.mxu0 0
    %4373 = vmatpush1.bf16.msra.mxu0 0
    %4374 = vmatprep.subr.bf16.mxu0 0
    %4375 = vmatpush1.bf16.msra.mxu0 0
    %4376 = vmatprep.subr.bf16.mxu0 0
    %4377 = vmatpush1.bf16.msra.mxu0 0
    %4378 = vmatprep.subr.bf16.mxu0 0
    %4379 = vmatpush1.bf16.msra.mxu0 0
    %4380 = vmatprep.subr.bf16.mxu0 0
    %4381 = vmatpush1.bf16.msra.mxu0 0
    %4382 = vmatprep.subr.bf16.mxu0 0
    %4383 = vmatpush1.bf16.msra.mxu0 0
    %4384 = vmatprep.subr.bf16.mxu0 0
    %4385 = vmatpush1.bf16.msra.mxu0 0
    %4386 = vmatprep.subr.bf16.mxu0 0
    %4387 = vmatpush1.bf16.msra.mxu0 0
    %4388 = vmatprep.mubr.bf16.mxu0 0
    %4389 = vmatmul.mubr.bf16.gmra.mrb[0].mxu0 %v4354
    %v4390 = vpop.f32.mrb[0].mxu0
    %v4391 = vadd.f32 0.0, %v4390
    %v4392 = vpop.f32.mrb[0].mxu0
    %v4393 = vpop.f32.mrb[0].mxu0
    %v4394 = vadd.f32 0.0, %v4393
    %v4395 = vpop.f32.mrb[0].mxu0
    %4396 = vdwg.mxu0
    %v4397 = vpack.c.bf16 %v4394, %v4391
    %s4398 = scalar_lea.vmem %s67, 192
    %v4399 = vld [vmem:[%s4398] sm:$0xf]
    %v4400 = vld [vmem:[%s4398 + $0x4] sm:$0xf]
    %v4401 = vld [vmem:[%s4398 + $0x8] sm:$0xf]
    %v4402 = vld [vmem:[%s4398 + $0xc] sm:$0xf]
    %v4403 = vld [vmem:[%s4398 + $0x10] sm:$0xf]
    %v4404 = vld [vmem:[%s4398 + $0x14] sm:$0xf]
    %v4405 = vld [vmem:[%s4398 + $0x18] sm:$0xf]
    %v4406 = vld [vmem:[%s4398 + $0x1c] sm:$0xf]
    %v4407 = vld [vmem:[%s4398 + $0x20] sm:$0xf]
    %v4408 = vld [vmem:[%s4398 + $0x24] sm:$0xf]
    %v4409 = vld [vmem:[%s4398 + $0x28] sm:$0xf]
    %v4410 = vld [vmem:[%s4398 + $0x2c] sm:$0xf]
    %v4411 = vld [vmem:[%s4398 + $0x30] sm:$0xf]
    %v4412 = vld [vmem:[%s4398 + $0x34] sm:$0xf]
    %v4413 = vld [vmem:[%s4398 + $0x38] sm:$0xf]
    %v4414 = vld [vmem:[%s4398 + $0x3c] sm:$0xf]
    %v4431 = vunpack.c.l.b16 %v4399
    %v4432 = vunpack.c.l.b16 %v4400
    %v4433 = vunpack.c.l.b16 %v4401
    %v4434 = vunpack.c.l.b16 %v4402
    %v4435 = vunpack.c.l.b16 %v4403
    %v4436 = vunpack.c.l.b16 %v4404
    %v4437 = vunpack.c.l.b16 %v4405
    %v4438 = vunpack.c.l.b16 %v4406
    %v4439 = vunpack.c.l.b16 %v4407
    %v4440 = vunpack.c.l.b16 %v4408
    %v4441 = vunpack.c.l.b16 %v4409
    %v4442 = vunpack.c.l.b16 %v4410
    %v4443 = vunpack.c.l.b16 %v4411
    %v4444 = vunpack.c.l.b16 %v4412
    %v4445 = vunpack.c.l.b16 %v4413
    %v4446 = vunpack.c.l.b16 %v4414
    %v4447 = vpack.c.b16 %v4432, %v4431
    %v4448 = vpack.c.b16 %v4434, %v4433
    %v4449 = vpack.c.b16 %v4436, %v4435
    %v4450 = vpack.c.b16 %v4438, %v4437
    %v4451 = vpack.c.b16 %v4440, %v4439
    %v4452 = vpack.c.b16 %v4442, %v4441
    %v4453 = vpack.c.b16 %v4444, %v4443
    %v4454 = vpack.c.b16 %v4446, %v4445
    %4463 = vmatprep.subr.bf16.mxu0 0
    %4464 = vmatpush1.bf16.msra.mxu0 %v4447
    %4465 = vmatprep.subr.bf16.mxu0 0
    %4466 = vmatpush1.bf16.msra.mxu0 %v4448
    %4467 = vmatprep.subr.bf16.mxu0 0
    %4468 = vmatpush1.bf16.msra.mxu0 %v4449
    %4469 = vmatprep.subr.bf16.mxu0 0
    %4470 = vmatpush1.bf16.msra.mxu0 %v4450
    %4471 = vmatprep.subr.bf16.mxu0 0
    %4472 = vmatpush1.bf16.msra.mxu0 %v4451
    %4473 = vmatprep.subr.bf16.mxu0 0
    %4474 = vmatpush1.bf16.msra.mxu0 %v4452
    %4475 = vmatprep.subr.bf16.mxu0 0
    %4476 = vmatpush1.bf16.msra.mxu0 %v4453
    %4477 = vmatprep.subr.bf16.mxu0 0
    %4478 = vmatpush1.bf16.msra.mxu0 %v4454
    %4479 = vmatprep.subr.bf16.mxu0 0
    %4480 = vmatpush1.bf16.msra.mxu0 0
    %4481 = vmatprep.subr.bf16.mxu0 0
    %4482 = vmatpush1.bf16.msra.mxu0 0
    %4483 = vmatprep.subr.bf16.mxu0 0
    %4484 = vmatpush1.bf16.msra.mxu0 0
    %4485 = vmatprep.subr.bf16.mxu0 0
    %4486 = vmatpush1.bf16.msra.mxu0 0
    %4487 = vmatprep.subr.bf16.mxu0 0
    %4488 = vmatpush1.bf16.msra.mxu0 0
    %4489 = vmatprep.subr.bf16.mxu0 0
    %4490 = vmatpush1.bf16.msra.mxu0 0
    %4491 = vmatprep.subr.bf16.mxu0 0
    %4492 = vmatpush1.bf16.msra.mxu0 0
    %4493 = vmatprep.subr.bf16.mxu0 0
    %4494 = vmatpush1.bf16.msra.mxu0 0
    %4495 = vmatprep.mubr.bf16.mxu0 0
    %4496 = vmatmul.mubr.bf16.gmra.mrb[0].mxu0 %v4397
    %v4497 = vpop.f32.mrb[0].mxu0
    %v4498 = vadd.f32 0.0, %v4497
    %v4499 = vpop.f32.mrb[0].mxu0
    %v4500 = vpop.f32.mrb[0].mxu0
    %v4501 = vadd.f32 0.0, %v4500
    %v4502 = vpop.f32.mrb[0].mxu0
    %4503 = vdwg.mxu0
    %v4504 = vadd.f32 %v4343, %v4498
    %v4505 = vadd.f32 %v4344, %v4501
    %v4506 = vld [vmem:[%s69] sm:$0x1]
    %v4508 = vlaneseq
    %v4509 = vshrl.u32 %v4508, 7
    %v4510 = vsub.s32 0, %v4509
    %v4511 = vrot.slane %v4506, %v4510
    %v4513 = vadd.f32 %v4504, %v4511
    %v4514 = vadd.f32 %v4505, %v4511
    %v4515 = vmax.f32 %v4513, 0.0
    %v4516 = vmax.f32 %v4514, 0.0
    %v4517 = vsel %vm2035, %v4515, 0.0
    %v4518 = vsel %vm2037, %v4516, 0.0
    %v4519 = vadd.f32 %v4517, %v4518
    %v4520 = vrot.slane %v4519, 4
    %v4521 = vadd.f32 %v4519, %v4520
    %v4522 = vrot.slane %v4521, 2
    %v4523 = vadd.f32 %v4521, %v4522
    %v4524 = vrot.slane %v4523, 1
    %v4525 = vadd.f32 %v4523, %v4524
    %v4526 = vmul.f32 %v4525, 0.083333336
    %v4527 = vmul.f32 %v4515, %v4515
    %v4528 = vmul.f32 %v4516, %v4516
    %v4529 = vsel %vm2035, %v4527, 0.0
    %v4530 = vsel %vm2037, %v4528, 0.0
    %v4531 = vadd.f32 %v4529, %v4530
    %v4532 = vrot.slane %v4531, 4
    %v4533 = vadd.f32 %v4531, %v4532
    %v4534 = vrot.slane %v4533, 2
    %v4535 = vadd.f32 %v4533, %v4534
    %v4536 = vrot.slane %v4535, 1
    %v4537 = vadd.f32 %v4535, %v4536
    %v4538 = vmul.f32 %v4537, 0.083333336
    %v4539 = vmul.f32 %v4526, %v4526
    %v4540 = vsub.f32 %v4538, %v4539
    %v4541 = vmax.f32 %v4540, 0.0
    %v4542 = vsub.f32 %v4515, %v4526
    %v4543 = vsub.f32 %v4516, %v4526
    %v4544 = vadd.f32 %v4541, 1e-05
    %v4545 = vrsqrt.pop %v4544
    %v4546 = vmul.f32 %v4542, %v4545
    %v4547 = vmul.f32 %v4543, %v4545
    %v4548 = vld [vmem:[%s71] sm:$0x1]
    %v4550 = vlaneseq
    %v4551 = vshrl.u32 %v4550, 7
    %v4552 = vsub.s32 0, %v4551
    %v4553 = vrot.slane %v4548, %v4552
    %v4555 = vmul.f32 %v4546, %v4553
    %v4556 = vmul.f32 %v4547, %v4553
    %v4557 = vld [vmem:[%s73] sm:$0x1]
    %v4559 = vlaneseq
    %v4560 = vshrl.u32 %v4559, 7
    %v4561 = vsub.s32 0, %v4560
    %v4562 = vrot.slane %v4557, %v4561
    %v4564 = vadd.f32 %v4555, %v4562
    %v4565 = vadd.f32 %v4556, %v4562
    %v4566 = vpack.c.bf16 %v4565, %v4564
    %v4567 = vadd.bf16 %v4566, %v2086
    %v4568 = vld [vmem:[%s75] sm:$0xf]
    %v4569 = vld [vmem:[%s75 + $0x4] sm:$0xf]
    %v4570 = vld [vmem:[%s75 + $0x8] sm:$0x7]
    %v4574 = vunpack.c.l.b16 %v4568
    %v4575 = vunpack.c.l.b16 %v4569
    %v4576 = vunpack.c.l.b16 %v4570
    %v4577 = vpack.c.b16 %v4575, %v4574
    %v4578 = vpack.c.b16 %v4576, %v4576
    %v4580 = vsel %vm2088, %v4577, 0
    %v4583 = vsel %vm2088, %v4578, 0
    %v4586 = vsel %vm2092, %v4567, 0
    %4588 = vmatprep.subr.bf16.mxu0 0
    %4589 = vmatpush1.bf16.msra.mxu0 %v4586
    %4590 = vmatprep.subr.bf16.mxu0 0
    %4591 = vmatpush1.bf16.msra.mxu0 0
    %4592 = vmatprep.subr.bf16.mxu0 0
    %4593 = vmatpush1.bf16.msra.mxu0 0
    %4594 = vmatprep.subr.bf16.mxu0 0
    %4595 = vmatpush1.bf16.msra.mxu0 0
    %4596 = vmatprep.subr.bf16.mxu0 0
    %4597 = vmatpush1.bf16.msra.mxu0 0
    %4598 = vmatprep.subr.bf16.mxu0 0
    %4599 = vmatpush1.bf16.msra.mxu0 0
    %4600 = vmatprep.subr.bf16.mxu0 0
    %4601 = vmatpush1.bf16.msra.mxu0 0
    %4602 = vmatprep.subr.bf16.mxu0 0
    %4603 = vmatpush1.bf16.msra.mxu0 0
    %4604 = vmatprep.subr.bf16.mxu0 0
    %4605 = vmatpush1.bf16.msra.mxu0 0
    %4606 = vmatprep.subr.bf16.mxu0 0
    %4607 = vmatpush1.bf16.msra.mxu0 0
    %4608 = vmatprep.subr.bf16.mxu0 0
    %4609 = vmatpush1.bf16.msra.mxu0 0
    %4610 = vmatprep.subr.bf16.mxu0 0
    %4611 = vmatpush1.bf16.msra.mxu0 0
    %4612 = vmatprep.subr.bf16.mxu0 0
    %4613 = vmatpush1.bf16.msra.mxu0 0
    %4614 = vmatprep.subr.bf16.mxu0 0
    %4615 = vmatpush1.bf16.msra.mxu0 0
    %4616 = vmatprep.subr.bf16.mxu0 0
    %4617 = vmatpush1.bf16.msra.mxu0 0
    %4618 = vmatprep.subr.bf16.mxu0 0
    %4619 = vmatpush1.bf16.msra.mxu0 0
    %4620 = vmatprep.mubr.bf16.mxu0 0
    %4621 = vmatmul.mubr.bf16.gmra.mrb[0].mxu0 %v4580
    %v4622 = vpop.f32.mrb[0].mxu0
    %v4623 = vadd.f32 0.0, %v4622
    %v4624 = vpop.f32.mrb[0].mxu0
    %v4625 = vpop.f32.mrb[0].mxu0
    %v4626 = vadd.f32 0.0, %v4625
    %v4627 = vpop.f32.mrb[0].mxu0
    %4628 = vmatprep.mubr.bf16.mxu0 0
    %4629 = vmatmul.mubr.bf16.gmra.mrb[0].mxu0 %v4583
    %v4630 = vpop.f32.mrb[0].mxu0
    %v4631 = vadd.f32 0.0, %v4630
    %v4632 = vpop.f32.mrb[0].mxu0
    %v4633 = vpop.f32.mrb[0].mxu0
    %v4634 = vpop.f32.mrb[0].mxu0
    %4635 = vdwg.mxu0
    %v4636 = vpack.c.bf16 %v4626, %v4623
    %v4637 = vpack.c.bf16 %v4631, %v4631
    %v4638 = vld [vmem:[%s77] sm:$0xf]
    %v4639 = vld [vmem:[%s77 + $0x4] sm:$0xf]
    %v4640 = vld [vmem:[%s77 + $0x8] sm:$0xf]
    %v4641 = vld [vmem:[%s77 + $0xc] sm:$0xf]
    %v4642 = vld [vmem:[%s77 + $0x10] sm:$0xf]
    %v4643 = vld [vmem:[%s77 + $0x14] sm:$0xf]
    %v4644 = vld [vmem:[%s77 + $0x18] sm:$0xf]
    %v4645 = vld [vmem:[%s77 + $0x1c] sm:$0xf]
    %s4646 = scalar_lea.vmem %s75, 12
    %v4647 = vld [vmem:[%s4646] sm:$0xf]
    %v4648 = vld [vmem:[%s4646 + $0x4] sm:$0xf]
    %v4649 = vld [vmem:[%s4646 + $0x8] sm:$0x7]
    %v4653 = vunpack.c.l.b16 %v4647
    %v4654 = vunpack.c.l.b16 %v4648
    %v4655 = vunpack.c.l.b16 %v4649
    %v4656 = vpack.c.b16 %v4654, %v4653
    %v4657 = vpack.c.b16 %v4655, %v4655
    %v4659 = vsel %vm2088, %v4656, 0
    %v4662 = vsel %vm2088, %v4657, 0
    %4664 = vmatprep.subr.bf16.mxu0 0
    %4665 = vmatpush1.bf16.msra.mxu0 %v4586
    %4666 = vmatprep.subr.bf16.mxu0 0
    %4667 = vmatpush1.bf16.msra.mxu0 0
    %4668 = vmatprep.subr.bf16.mxu0 0
    %4669 = vmatpush1.bf16.msra.mxu0 0
    %4670 = vmatprep.subr.bf16.mxu0 0
    %4671 = vmatpush1.bf16.msra.mxu0 0
    %4672 = vmatprep.subr.bf16.mxu0 0
    %4673 = vmatpush1.bf16.msra.mxu0 0
    %4674 = vmatprep.subr.bf16.mxu0 0
    %4675 = vmatpush1.bf16.msra.mxu0 0
    %4676 = vmatprep.subr.bf16.mxu0 0
    %4677 = vmatpush1.bf16.msra.mxu0 0
    %4678 = vmatprep.subr.bf16.mxu0 0
    %4679 = vmatpush1.bf16.msra.mxu0 0
    %4680 = vmatprep.subr.bf16.mxu0 0
    %4681 = vmatpush1.bf16.msra.mxu0 0
    %4682 = vmatprep.subr.bf16.mxu0 0
    %4683 = vmatpush1.bf16.msra.mxu0 0
    %4684 = vmatprep.subr.bf16.mxu0 0
    %4685 = vmatpush1.bf16.msra.mxu0 0
    %4686 = vmatprep.subr.bf16.mxu0 0
    %4687 = vmatpush1.bf16.msra.mxu0 0
    %4688 = vmatprep.subr.bf16.mxu0 0
    %4689 = vmatpush1.bf16.msra.mxu0 0
    %4690 = vmatprep.subr.bf16.mxu0 0
    %4691 = vmatpush1.bf16.msra.mxu0 0
    %4692 = vmatprep.subr.bf16.mxu0 0
    %4693 = vmatpush1.bf16.msra.mxu0 0
    %4694 = vmatprep.subr.bf16.mxu0 0
    %4695 = vmatpush1.bf16.msra.mxu0 0
    %4696 = vmatprep.mubr.bf16.mxu0 0
    %4697 = vmatmul.mubr.bf16.gmra.mrb[0].mxu0 %v4659
    %v4698 = vpop.f32.mrb[0].mxu0
    %v4699 = vadd.f32 0.0, %v4698
    %v4700 = vpop.f32.mrb[0].mxu0
    %v4701 = vpop.f32.mrb[0].mxu0
    %v4702 = vadd.f32 0.0, %v4701
    %v4703 = vpop.f32.mrb[0].mxu0
    %4704 = vmatprep.mubr.bf16.mxu0 0
    %4705 = vmatmul.mubr.bf16.gmra.mrb[0].mxu0 %v4662
    %v4706 = vpop.f32.mrb[0].mxu0
    %v4707 = vadd.f32 0.0, %v4706
    %v4708 = vpop.f32.mrb[0].mxu0
    %v4709 = vpop.f32.mrb[0].mxu0
    %v4710 = vpop.f32.mrb[0].mxu0
    %4711 = vdwg.mxu0
    %v4712 = vpack.c.bf16 %v4702, %v4699
    %v4713 = vpack.c.bf16 %v4707, %v4707
    %s4714 = scalar_lea.vmem %s77, 32
    %v4715 = vld [vmem:[%s4714] sm:$0xf]
    %v4716 = vld [vmem:[%s4714 + $0x4] sm:$0xf]
    %v4717 = vld [vmem:[%s4714 + $0x8] sm:$0xf]
    %v4718 = vld [vmem:[%s4714 + $0xc] sm:$0xf]
    %v4719 = vld [vmem:[%s4714 + $0x10] sm:$0xf]
    %v4720 = vld [vmem:[%s4714 + $0x14] sm:$0xf]
    %v4721 = vld [vmem:[%s4714 + $0x18] sm:$0xf]
    %v4722 = vld [vmem:[%s4714 + $0x1c] sm:$0xf]
    %v4731 = vunpack.c.l.b16 %v4715
    %v4732 = vunpack.c.l.b16 %v4716
    %v4733 = vunpack.c.l.b16 %v4717
    %v4734 = vunpack.c.l.b16 %v4718
    %v4735 = vunpack.c.l.b16 %v4719
    %v4736 = vunpack.c.l.b16 %v4720
    %v4737 = vunpack.c.l.b16 %v4721
    %v4738 = vunpack.c.l.b16 %v4722
    %v4739 = vpack.c.b16 %v4732, %v4731
    %v4740 = vpack.c.b16 %v4734, %v4733
    %v4741 = vpack.c.b16 %v4736, %v4735
    %v4742 = vpack.c.b16 %v4738, %v4737
    %v4748 = vsel %vm2035, %v4712, 0
    %v4751 = vsel %vm2035, %v4713, 0
    %4753 = vmatprep.subr.bf16.mxu0 0
    %4754 = vmatpush1.bf16.msra.mxu0 %v4739
    %4755 = vmatprep.subr.bf16.mxu0 0
    %4756 = vmatpush1.bf16.msra.mxu0 %v4740
    %4757 = vmatprep.subr.bf16.mxu0 0
    %4758 = vmatpush1.bf16.msra.mxu0 %v4741
    %4759 = vmatprep.subr.bf16.mxu0 0
    %4760 = vmatpush1.bf16.msra.mxu0 %v4742
    %4761 = vmatprep.subr.bf16.mxu0 0
    %4762 = vmatpush1.bf16.msra.mxu0 0
    %4763 = vmatprep.subr.bf16.mxu0 0
    %4764 = vmatpush1.bf16.msra.mxu0 0
    %4765 = vmatprep.subr.bf16.mxu0 0
    %4766 = vmatpush1.bf16.msra.mxu0 0
    %4767 = vmatprep.subr.bf16.mxu0 0
    %4768 = vmatpush1.bf16.msra.mxu0 0
    %4769 = vmatprep.subr.bf16.mxu0 0
    %4770 = vmatpush1.bf16.msra.mxu0 0
    %4771 = vmatprep.subr.bf16.mxu0 0
    %4772 = vmatpush1.bf16.msra.mxu0 0
    %4773 = vmatprep.subr.bf16.mxu0 0
    %4774 = vmatpush1.bf16.msra.mxu0 0
    %4775 = vmatprep.subr.bf16.mxu0 0
    %4776 = vmatpush1.bf16.msra.mxu0 0
    %4777 = vmatprep.subr.bf16.mxu0 0
    %4778 = vmatpush1.bf16.msra.mxu0 0
    %4779 = vmatprep.subr.bf16.mxu0 0
    %4780 = vmatpush1.bf16.msra.mxu0 0
    %4781 = vmatprep.subr.bf16.mxu0 0
    %4782 = vmatpush1.bf16.msra.mxu0 0
    %4783 = vmatprep.subr.bf16.mxu0 0
    %4784 = vmatpush1.bf16.msra.mxu0 0
    %4785 = vmatprep.mubr.bf16.mxu0 0
    %4786 = vmatmul.mubr.bf16.gmra.mrb[0].mxu0 %v4748
    %v4787 = vpop.f32.mrb[0].mxu0
    %v4788 = vadd.f32 0.0, %v4787
    %v4789 = vpop.f32.mrb[0].mxu0
    %v4790 = vpop.f32.mrb[0].mxu0
    %v4791 = vadd.f32 0.0, %v4790
    %v4792 = vpop.f32.mrb[0].mxu0
    %4793 = vmatprep.mubr.bf16.mxu0 0
    %4794 = vmatmul.mubr.bf16.gmra.mrb[0].mxu0 %v4751
    %v4795 = vpop.f32.mrb[0].mxu0
    %v4796 = vadd.f32 0.0, %v4795
    %v4797 = vpop.f32.mrb[0].mxu0
    %v4798 = vpop.f32.mrb[0].mxu0
    %v4799 = vpop.f32.mrb[0].mxu0
    %4800 = vdwg.mxu0
    %v4809 = vunpack.c.l.b16 %v4638
    %v4810 = vunpack.c.l.b16 %v4639
    %v4811 = vunpack.c.l.b16 %v4640
    %v4812 = vunpack.c.l.b16 %v4641
    %v4813 = vunpack.c.l.b16 %v4642
    %v4814 = vunpack.c.l.b16 %v4643
    %v4815 = vunpack.c.l.b16 %v4644
    %v4816 = vunpack.c.l.b16 %v4645
    %v4817 = vpack.c.b16 %v4810, %v4809
    %v4818 = vpack.c.b16 %v4812, %v4811
    %v4819 = vpack.c.b16 %v4814, %v4813
    %v4820 = vpack.c.b16 %v4816, %v4815
    %v4826 = vsel %vm2035, %v4636, 0
    %v4829 = vsel %vm2035, %v4637, 0
    %4831 = vmatprep.subr.bf16.mxu0 0
    %4832 = vmatpush1.bf16.msra.mxu0 %v4817
    %4833 = vmatprep.subr.bf16.mxu0 0
    %4834 = vmatpush1.bf16.msra.mxu0 %v4818
    %4835 = vmatprep.subr.bf16.mxu0 0
    %4836 = vmatpush1.bf16.msra.mxu0 %v4819
    %4837 = vmatprep.subr.bf16.mxu0 0
    %4838 = vmatpush1.bf16.msra.mxu0 %v4820
    %4839 = vmatprep.subr.bf16.mxu0 0
    %4840 = vmatpush1.bf16.msra.mxu0 0
    %4841 = vmatprep.subr.bf16.mxu0 0
    %4842 = vmatpush1.bf16.msra.mxu0 0
    %4843 = vmatprep.subr.bf16.mxu0 0
    %4844 = vmatpush1.bf16.msra.mxu0 0
    %4845 = vmatprep.subr.bf16.mxu0 0
    %4846 = vmatpush1.bf16.msra.mxu0 0
    %4847 = vmatprep.subr.bf16.mxu0 0
    %4848 = vmatpush1.bf16.msra.mxu0 0
    %4849 = vmatprep.subr.bf16.mxu0 0
    %4850 = vmatpush1.bf16.msra.mxu0 0
    %4851 = vmatprep.subr.bf16.mxu0 0
    %4852 = vmatpush1.bf16.msra.mxu0 0
    %4853 = vmatprep.subr.bf16.mxu0 0
    %4854 = vmatpush1.bf16.msra.mxu0 0
    %4855 = vmatprep.subr.bf16.mxu0 0
    %4856 = vmatpush1.bf16.msra.mxu0 0
    %4857 = vmatprep.subr.bf16.mxu0 0
    %4858 = vmatpush1.bf16.msra.mxu0 0
    %4859 = vmatprep.subr.bf16.mxu0 0
    %4860 = vmatpush1.bf16.msra.mxu0 0
    %4861 = vmatprep.subr.bf16.mxu0 0
    %4862 = vmatpush1.bf16.msra.mxu0 0
    %4863 = vmatprep.mubr.bf16.mxu0 0
    %4864 = vmatmul.mubr.bf16.gmra.mrb[0].mxu0 %v4826
    %v4865 = vpop.f32.mrb[0].mxu0
    %v4866 = vadd.f32 %v4788, %v4865
    %v4867 = vpop.f32.mrb[0].mxu0
    %v4868 = vpop.f32.mrb[0].mxu0
    %v4869 = vadd.f32 %v4791, %v4868
    %v4870 = vpop.f32.mrb[0].mxu0
    %4871 = vmatprep.mubr.bf16.mxu0 0
    %4872 = vmatmul.mubr.bf16.gmra.mrb[0].mxu0 %v4829
    %v4873 = vpop.f32.mrb[0].mxu0
    %v4874 = vadd.f32 %v4796, %v4873
    %v4875 = vpop.f32.mrb[0].mxu0
    %v4876 = vpop.f32.mrb[0].mxu0
    %v4877 = vpop.f32.mrb[0].mxu0
    %4878 = vdwg.mxu0
    %s4879 = scalar_lea.vmem %s75, 24
    %v4880 = vld [vmem:[%s4879] sm:$0xf]
    %v4881 = vld [vmem:[%s4879 + $0x4] sm:$0xf]
    %v4882 = vld [vmem:[%s4879 + $0x8] sm:$0x7]
    %v4886 = vunpack.c.l.b16 %v4880
    %v4887 = vunpack.c.l.b16 %v4881
    %v4888 = vunpack.c.l.b16 %v4882
    %v4889 = vpack.c.b16 %v4887, %v4886
    %v4890 = vpack.c.b16 %v4888, %v4888
    %v4892 = vsel %vm2088, %v4889, 0
    %v4895 = vsel %vm2088, %v4890, 0
    %4897 = vmatprep.subr.bf16.mxu0 0
    %4898 = vmatpush1.bf16.msra.mxu0 %v4586
    %4899 = vmatprep.subr.bf16.mxu0 0
    %4900 = vmatpush1.bf16.msra.mxu0 0
    %4901 = vmatprep.subr.bf16.mxu0 0
    %4902 = vmatpush1.bf16.msra.mxu0 0
    %4903 = vmatprep.subr.bf16.mxu0 0
    %4904 = vmatpush1.bf16.msra.mxu0 0
    %4905 = vmatprep.subr.bf16.mxu0 0
    %4906 = vmatpush1.bf16.msra.mxu0 0
    %4907 = vmatprep.subr.bf16.mxu0 0
    %4908 = vmatpush1.bf16.msra.mxu0 0
    %4909 = vmatprep.subr.bf16.mxu0 0
    %4910 = vmatpush1.bf16.msra.mxu0 0
    %4911 = vmatprep.subr.bf16.mxu0 0
    %4912 = vmatpush1.bf16.msra.mxu0 0
    %4913 = vmatprep.subr.bf16.mxu0 0
    %4914 = vmatpush1.bf16.msra.mxu0 0
    %4915 = vmatprep.subr.bf16.mxu0 0
    %4916 = vmatpush1.bf16.msra.mxu0 0
    %4917 = vmatprep.subr.bf16.mxu0 0
    %4918 = vmatpush1.bf16.msra.mxu0 0
    %4919 = vmatprep.subr.bf16.mxu0 0
    %4920 = vmatpush1.bf16.msra.mxu0 0
    %4921 = vmatprep.subr.bf16.mxu0 0
    %4922 = vmatpush1.bf16.msra.mxu0 0
    %4923 = vmatprep.subr.bf16.mxu0 0
    %4924 = vmatpush1.bf16.msra.mxu0 0
    %4925 = vmatprep.subr.bf16.mxu0 0
    %4926 = vmatpush1.bf16.msra.mxu0 0
    %4927 = vmatprep.subr.bf16.mxu0 0
    %4928 = vmatpush1.bf16.msra.mxu0 0
    %4929 = vmatprep.mubr.bf16.mxu0 0
    %4930 = vmatmul.mubr.bf16.gmra.mrb[0].mxu0 %v4892
    %v4931 = vpop.f32.mrb[0].mxu0
    %v4932 = vadd.f32 0.0, %v4931
    %v4933 = vpop.f32.mrb[0].mxu0
    %v4934 = vpop.f32.mrb[0].mxu0
    %v4935 = vadd.f32 0.0, %v4934
    %v4936 = vpop.f32.mrb[0].mxu0
    %4937 = vmatprep.mubr.bf16.mxu0 0
    %4938 = vmatmul.mubr.bf16.gmra.mrb[0].mxu0 %v4895
    %v4939 = vpop.f32.mrb[0].mxu0
    %v4940 = vadd.f32 0.0, %v4939
    %v4941 = vpop.f32.mrb[0].mxu0
    %v4942 = vpop.f32.mrb[0].mxu0
    %v4943 = vpop.f32.mrb[0].mxu0
    %4944 = vdwg.mxu0
    %v4945 = vpack.c.bf16 %v4935, %v4932
    %v4946 = vpack.c.bf16 %v4940, %v4940
    %s4947 = scalar_lea.vmem %s77, 64
    %v4948 = vld [vmem:[%s4947] sm:$0xf]
    %v4949 = vld [vmem:[%s4947 + $0x4] sm:$0xf]
    %v4950 = vld [vmem:[%s4947 + $0x8] sm:$0xf]
    %v4951 = vld [vmem:[%s4947 + $0xc] sm:$0xf]
    %v4952 = vld [vmem:[%s4947 + $0x10] sm:$0xf]
    %v4953 = vld [vmem:[%s4947 + $0x14] sm:$0xf]
    %v4954 = vld [vmem:[%s4947 + $0x18] sm:$0xf]
    %v4955 = vld [vmem:[%s4947 + $0x1c] sm:$0xf]
    %v4964 = vunpack.c.l.b16 %v4948
    %v4965 = vunpack.c.l.b16 %v4949
    %v4966 = vunpack.c.l.b16 %v4950
    %v4967 = vunpack.c.l.b16 %v4951
    %v4968 = vunpack.c.l.b16 %v4952
    %v4969 = vunpack.c.l.b16 %v4953
    %v4970 = vunpack.c.l.b16 %v4954
    %v4971 = vunpack.c.l.b16 %v4955
    %v4972 = vpack.c.b16 %v4965, %v4964
    %v4973 = vpack.c.b16 %v4967, %v4966
    %v4974 = vpack.c.b16 %v4969, %v4968
    %v4975 = vpack.c.b16 %v4971, %v4970
    %v4981 = vsel %vm2035, %v4945, 0
    %v4984 = vsel %vm2035, %v4946, 0
    %4986 = vmatprep.subr.bf16.mxu0 0
    %4987 = vmatpush1.bf16.msra.mxu0 %v4972
    %4988 = vmatprep.subr.bf16.mxu0 0
    %4989 = vmatpush1.bf16.msra.mxu0 %v4973
    %4990 = vmatprep.subr.bf16.mxu0 0
    %4991 = vmatpush1.bf16.msra.mxu0 %v4974
    %4992 = vmatprep.subr.bf16.mxu0 0
    %4993 = vmatpush1.bf16.msra.mxu0 %v4975
    %4994 = vmatprep.subr.bf16.mxu0 0
    %4995 = vmatpush1.bf16.msra.mxu0 0
    %4996 = vmatprep.subr.bf16.mxu0 0
    %4997 = vmatpush1.bf16.msra.mxu0 0
    %4998 = vmatprep.subr.bf16.mxu0 0
    %4999 = vmatpush1.bf16.msra.mxu0 0
    %5000 = vmatprep.subr.bf16.mxu0 0
    %5001 = vmatpush1.bf16.msra.mxu0 0
    %5002 = vmatprep.subr.bf16.mxu0 0
    %5003 = vmatpush1.bf16.msra.mxu0 0
    %5004 = vmatprep.subr.bf16.mxu0 0
    %5005 = vmatpush1.bf16.msra.mxu0 0
    %5006 = vmatprep.subr.bf16.mxu0 0
    %5007 = vmatpush1.bf16.msra.mxu0 0
    %5008 = vmatprep.subr.bf16.mxu0 0
    %5009 = vmatpush1.bf16.msra.mxu0 0
    %5010 = vmatprep.subr.bf16.mxu0 0
    %5011 = vmatpush1.bf16.msra.mxu0 0
    %5012 = vmatprep.subr.bf16.mxu0 0
    %5013 = vmatpush1.bf16.msra.mxu0 0
    %5014 = vmatprep.subr.bf16.mxu0 0
    %5015 = vmatpush1.bf16.msra.mxu0 0
    %5016 = vmatprep.subr.bf16.mxu0 0
    %5017 = vmatpush1.bf16.msra.mxu0 0
    %5018 = vmatprep.mubr.bf16.mxu0 0
    %5019 = vmatmul.mubr.bf16.gmra.mrb[0].mxu0 %v4981
    %v5020 = vpop.f32.mrb[0].mxu0
    %v5021 = vadd.f32 0.0, %v5020
    %v5022 = vpop.f32.mrb[0].mxu0
    %v5023 = vpop.f32.mrb[0].mxu0
    %v5024 = vadd.f32 0.0, %v5023
    %v5025 = vpop.f32.mrb[0].mxu0
    %5026 = vmatprep.mubr.bf16.mxu0 0
    %5027 = vmatmul.mubr.bf16.gmra.mrb[0].mxu0 %v4984
    %v5028 = vpop.f32.mrb[0].mxu0
    %v5029 = vadd.f32 0.0, %v5028
    %v5030 = vpop.f32.mrb[0].mxu0
    %v5031 = vpop.f32.mrb[0].mxu0
    %v5032 = vpop.f32.mrb[0].mxu0
    %5033 = vdwg.mxu0
    %v5034 = vadd.f32 %v4866, %v5021
    %v5035 = vadd.f32 %v4869, %v5024
    %v5036 = vadd.f32 %v4874, %v5029
    %v5037 = vld [vmem:[#allocation28] sm:$0x1]
    %v5039 = vlaneseq
    %v5040 = vshrl.u32 %v5039, 7
    %v5041 = vsub.s32 0, %v5040
    %v5042 = vrot.slane %v5037, %v5041
    %v5044 = vadd.f32 %v5034, %v5042
    %v5045 = vadd.f32 %v5035, %v5042
    %v5046 = vadd.f32 %v5036, %v5042
    %v5047 = vmax.f32 %v5044, 0.0
    %v5048 = vmax.f32 %v5045, 0.0
    %v5049 = vmax.f32 %v5046, 0.0
    %v5050 = vsel %vm1615, %v5047, 0.0
    %v5051 = vsel %vm1615, %v5048, 0.0
    %v5052 = vadd.f32 %v5050, %v5051
    %v5053 = vsel %vm1619, %v5049, 0.0
    %v5054 = vadd.f32 %v5052, %v5053
    %v5055 = vrot.slane %v5054, 4
    %v5056 = vadd.f32 %v5054, %v5055
    %v5057 = vrot.slane %v5056, 2
    %v5058 = vadd.f32 %v5056, %v5057
    %v5059 = vrot.slane %v5058, 1
    %v5060 = vadd.f32 %v5058, %v5059
    %v5061 = vmul.f32 %v5060, 0.045454547
    %v5062 = vmul.f32 %v5047, %v5047
    %v5063 = vmul.f32 %v5048, %v5048
    %v5064 = vmul.f32 %v5049, %v5049
    %v5065 = vsel %vm1615, %v5062, 0.0
    %v5066 = vsel %vm1615, %v5063, 0.0
    %v5067 = vadd.f32 %v5065, %v5066
    %v5068 = vsel %vm1619, %v5064, 0.0
    %v5069 = vadd.f32 %v5067, %v5068
    %v5070 = vrot.slane %v5069, 4
    %v5071 = vadd.f32 %v5069, %v5070
    %v5072 = vrot.slane %v5071, 2
    %v5073 = vadd.f32 %v5071, %v5072
    %v5074 = vrot.slane %v5073, 1
    %v5075 = vadd.f32 %v5073, %v5074
    %v5076 = vmul.f32 %v5075, 0.045454547
    %v5077 = vmul.f32 %v5061, %v5061
    %v5078 = vsub.f32 %v5076, %v5077
    %v5079 = vmax.f32 %v5078, 0.0
    %v5080 = vsub.f32 %v5047, %v5061
    %v5081 = vsub.f32 %v5048, %v5061
    %v5082 = vsub.f32 %v5049, %v5061
    %v5083 = vadd.f32 %v5079, 1e-05
    %v5084 = vrsqrt.pop %v5083
    %v5085 = vmul.f32 %v5080, %v5084
    %v5086 = vmul.f32 %v5081, %v5084
    %v5087 = vmul.f32 %v5082, %v5084
    %v5088 = vld [vmem:[#allocation30] sm:$0x1]
    %v5090 = vlaneseq
    %v5091 = vshrl.u32 %v5090, 7
    %v5092 = vsub.s32 0, %v5091
    %v5093 = vrot.slane %v5088, %v5092
    %v5095 = vmul.f32 %v5085, %v5093
    %v5096 = vmul.f32 %v5086, %v5093
    %v5097 = vmul.f32 %v5087, %v5093
    %v5098 = vld [vmem:[#allocation31] sm:$0x1]
    %v5100 = vlaneseq
    %v5101 = vshrl.u32 %v5100, 7
    %v5102 = vsub.s32 0, %v5101
    %v5103 = vrot.slane %v5098, %v5102
    %v5105 = vadd.f32 %v5095, %v5103
    %v5106 = vadd.f32 %v5096, %v5103
    %v5107 = vadd.f32 %v5097, %v5103
    %v5108 = vpack.c.bf16 %v5106, %v5105
    %v5109 = vpack.c.bf16 %v5107, %v5107
    %v5110 = vadd.bf16 %v5108, %v1675
    %v5111 = vadd.bf16 %v5109, %v1676
    %v5112 = vld [vmem:[%s85] sm:$0xf]
    %v5113 = vld [vmem:[%s85 + $0x4] sm:$0xf]
    %v5114 = vld [vmem:[%s85 + $0x8] sm:$0xf]
    %v5115 = vld [vmem:[%s85 + $0xc] sm:$0xf]
    %v5116 = vld [vmem:[%s85 + $0x10] sm:$0xf]
    %v5117 = vld [vmem:[%s85 + $0x14] sm:$0x1]
    %v5124 = vunpack.c.l.b16 %v5112
    %v5125 = vunpack.c.l.b16 %v5113
    %v5126 = vunpack.c.l.b16 %v5114
    %v5127 = vunpack.c.l.b16 %v5115
    %v5128 = vunpack.c.l.b16 %v5116
    %v5129 = vunpack.c.l.b16 %v5117
    %v5130 = vpack.c.b16 %v5125, %v5124
    %v5131 = vpack.c.b16 %v5127, %v5126
    %v5132 = vpack.c.b16 %v5129, %v5128
    %v5134 = vsel %vm1684, %v5130, 0
    %v5137 = vsel %vm1684, %v5131, 0
    %v5140 = vsel %vm1684, %v5132, 0
    %v5143 = vsel %vm1688, %v5111, 0
    %5145 = vmatprep.subr.bf16.mxu0 0
    %5146 = vmatpush1.bf16.msra.mxu0 %v5110
    %5147 = vmatprep.subr.bf16.mxu0 0
    %5148 = vmatpush1.bf16.msra.mxu0 %v5143
    %5149 = vmatprep.subr.bf16.mxu0 0
    %5150 = vmatpush1.bf16.msra.mxu0 0
    %5151 = vmatprep.subr.bf16.mxu0 0
    %5152 = vmatpush1.bf16.msra.mxu0 0
    %5153 = vmatprep.subr.bf16.mxu0 0
    %5154 = vmatpush1.bf16.msra.mxu0 0
    %5155 = vmatprep.subr.bf16.mxu0 0
    %5156 = vmatpush1.bf16.msra.mxu0 0
    %5157 = vmatprep.subr.bf16.mxu0 0
    %5158 = vmatpush1.bf16.msra.mxu0 0
    %5159 = vmatprep.subr.bf16.mxu0 0
    %5160 = vmatpush1.bf16.msra.mxu0 0
    %5161 = vmatprep.subr.bf16.mxu0 0
    %5162 = vmatpush1.bf16.msra.mxu0 0
    %5163 = vmatprep.subr.bf16.mxu0 0
    %5164 = vmatpush1.bf16.msra.mxu0 0
    %5165 = vmatprep.subr.bf16.mxu0 0
    %5166 = vmatpush1.bf16.msra.mxu0 0
    %5167 = vmatprep.subr.bf16.mxu0 0
    %5168 = vmatpush1.bf16.msra.mxu0 0
    %5169 = vmatprep.subr.bf16.mxu0 0
    %5170 = vmatpush1.bf16.msra.mxu0 0
    %5171 = vmatprep.subr.bf16.mxu0 0
    %5172 = vmatpush1.bf16.msra.mxu0 0
    %5173 = vmatprep.subr.bf16.mxu0 0
    %5174 = vmatpush1.bf16.msra.mxu0 0
    %5175 = vmatprep.subr.bf16.mxu0 0
    %5176 = vmatpush1.bf16.msra.mxu0 0
    %5177 = vmatprep.mubr.bf16.mxu0 0
    %5178 = vmatmul.mubr.bf16.gmra.mrb[0].mxu0 %v5134
    %v5179 = vpop.f32.mrb[0].mxu0
    %v5180 = vadd.f32 0.0, %v5179
    %v5181 = vpop.f32.mrb[0].mxu0
    %v5182 = vpop.f32.mrb[0].mxu0
    %v5183 = vadd.f32 0.0, %v5182
    %v5184 = vpop.f32.mrb[0].mxu0
    %5185 = vmatprep.mubr.bf16.mxu0 0
    %5186 = vmatmul.mubr.bf16.gmra.mrb[0].mxu0 %v5137
    %v5187 = vpop.f32.mrb[0].mxu0
    %v5188 = vadd.f32 0.0, %v5187
    %v5189 = vpop.f32.mrb[0].mxu0
    %v5190 = vpop.f32.mrb[0].mxu0
    %v5191 = vadd.f32 0.0, %v5190
    %v5192 = vpop.f32.mrb[0].mxu0
    %5193 = vmatprep.mubr.bf16.mxu0 0
    %5194 = vmatmul.mubr.bf16.gmra.mrb[0].mxu0 %v5140
    %v5195 = vpop.f32.mrb[0].mxu0
    %v5196 = vadd.f32 0.0, %v5195
    %v5197 = vpop.f32.mrb[0].mxu0
    %v5198 = vpop.f32.mrb[0].mxu0
    %v5199 = vadd.f32 0.0, %v5198
    %v5200 = vpop.f32.mrb[0].mxu0
    %5201 = vdwg.mxu0
    %v5202 = vpack.c.bf16 %v5183, %v5180
    %v5203 = vpack.c.bf16 %v5191, %v5188
    %v5204 = vpack.c.bf16 %v5199, %v5196
    %v5205 = vld [vmem:[%s87] sm:$0xf]
    %v5206 = vld [vmem:[%s87 + $0x4] sm:$0xf]
    %v5207 = vld [vmem:[%s87 + $0x8] sm:$0xf]
    %v5208 = vld [vmem:[%s87 + $0xc] sm:$0xf]
    %s5209 = scalar_lea.vmem %s85, 24
    %v5210 = vld [vmem:[%s5209] sm:$0xf]
    %v5211 = vld [vmem:[%s5209 + $0x4] sm:$0xf]
    %v5212 = vld [vmem:[%s5209 + $0x8] sm:$0xf]
    %v5213 = vld [vmem:[%s5209 + $0xc] sm:$0xf]
    %v5214 = vld [vmem:[%s5209 + $0x10] sm:$0xf]
    %v5215 = vld [vmem:[%s5209 + $0x14] sm:$0x1]
    %v5222 = vunpack.c.l.b16 %v5210
    %v5223 = vunpack.c.l.b16 %v5211
    %v5224 = vunpack.c.l.b16 %v5212
    %v5225 = vunpack.c.l.b16 %v5213
    %v5226 = vunpack.c.l.b16 %v5214
    %v5227 = vunpack.c.l.b16 %v5215
    %v5228 = vpack.c.b16 %v5223, %v5222
    %v5229 = vpack.c.b16 %v5225, %v5224
    %v5230 = vpack.c.b16 %v5227, %v5226
    %v5232 = vsel %vm1684, %v5228, 0
    %v5235 = vsel %vm1684, %v5229, 0
    %v5238 = vsel %vm1684, %v5230, 0
    %5240 = vmatprep.subr.bf16.mxu0 0
    %5241 = vmatpush1.bf16.msra.mxu0 %v5110
    %5242 = vmatprep.subr.bf16.mxu0 0
    %5243 = vmatpush1.bf16.msra.mxu0 %v5143
    %5244 = vmatprep.subr.bf16.mxu0 0
    %5245 = vmatpush1.bf16.msra.mxu0 0
    %5246 = vmatprep.subr.bf16.mxu0 0
    %5247 = vmatpush1.bf16.msra.mxu0 0
    %5248 = vmatprep.subr.bf16.mxu0 0
    %5249 = vmatpush1.bf16.msra.mxu0 0
    %5250 = vmatprep.subr.bf16.mxu0 0
    %5251 = vmatpush1.bf16.msra.mxu0 0
    %5252 = vmatprep.subr.bf16.mxu0 0
    %5253 = vmatpush1.bf16.msra.mxu0 0
    %5254 = vmatprep.subr.bf16.mxu0 0
    %5255 = vmatpush1.bf16.msra.mxu0 0
    %5256 = vmatprep.subr.bf16.mxu0 0
    %5257 = vmatpush1.bf16.msra.mxu0 0
    %5258 = vmatprep.subr.bf16.mxu0 0
    %5259 = vmatpush1.bf16.msra.mxu0 0
    %5260 = vmatprep.subr.bf16.mxu0 0
    %5261 = vmatpush1.bf16.msra.mxu0 0
    %5262 = vmatprep.subr.bf16.mxu0 0
    %5263 = vmatpush1.bf16.msra.mxu0 0
    %5264 = vmatprep.subr.bf16.mxu0 0
    %5265 = vmatpush1.bf16.msra.mxu0 0
    %5266 = vmatprep.subr.bf16.mxu0 0
    %5267 = vmatpush1.bf16.msra.mxu0 0
    %5268 = vmatprep.subr.bf16.mxu0 0
    %5269 = vmatpush1.bf16.msra.mxu0 0
    %5270 = vmatprep.subr.bf16.mxu0 0
    %5271 = vmatpush1.bf16.msra.mxu0 0
    %5272 = vmatprep.mubr.bf16.mxu0 0
    %5273 = vmatmul.mubr.bf16.gmra.mrb[0].mxu0 %v5232
    %v5274 = vpop.f32.mrb[0].mxu0
    %v5275 = vadd.f32 0.0, %v5274
    %v5276 = vpop.f32.mrb[0].mxu0
    %v5277 = vpop.f32.mrb[0].mxu0
    %v5278 = vadd.f32 0.0, %v5277
    %v5279 = vpop.f32.mrb[0].mxu0
    %5280 = vmatprep.mubr.bf16.mxu0 0
    %5281 = vmatmul.mubr.bf16.gmra.mrb[0].mxu0 %v5235
    %v5282 = vpop.f32.mrb[0].mxu0
    %v5283 = vadd.f32 0.0, %v5282
    %v5284 = vpop.f32.mrb[0].mxu0
    %v5285 = vpop.f32.mrb[0].mxu0
    %v5286 = vadd.f32 0.0, %v5285
    %v5287 = vpop.f32.mrb[0].mxu0
    %5288 = vmatprep.mubr.bf16.mxu0 0
    %5289 = vmatmul.mubr.bf16.gmra.mrb[0].mxu0 %v5238
    %v5290 = vpop.f32.mrb[0].mxu0
    %v5291 = vadd.f32 0.0, %v5290
    %v5292 = vpop.f32.mrb[0].mxu0
    %v5293 = vpop.f32.mrb[0].mxu0
    %v5294 = vadd.f32 0.0, %v5293
    %v5295 = vpop.f32.mrb[0].mxu0
    %5296 = vdwg.mxu0
    %v5297 = vpack.c.bf16 %v5278, %v5275
    %v5298 = vpack.c.bf16 %v5286, %v5283
    %v5299 = vpack.c.bf16 %v5294, %v5291
    %s5300 = scalar_lea.vmem %s87, 16
    %v5301 = vld [vmem:[%s5300] sm:$0xf]
    %v5302 = vld [vmem:[%s5300 + $0x4] sm:$0xf]
    %v5303 = vld [vmem:[%s5300 + $0x8] sm:$0xf]
    %v5304 = vld [vmem:[%s5300 + $0xc] sm:$0xf]
    %v5309 = vunpack.c.l.b16 %v5301
    %v5310 = vunpack.c.l.b16 %v5302
    %v5311 = vunpack.c.l.b16 %v5303
    %v5312 = vunpack.c.l.b16 %v5304
    %v5313 = vpack.c.b16 %v5310, %v5309
    %v5314 = vpack.c.b16 %v5312, %v5311
    %v5318 = vsel %vm1615, %v5297, 0
    %v5321 = vsel %vm1615, %v5298, 0
    %v5324 = vsel %vm1615, %v5299, 0
    %5326 = vmatprep.subr.bf16.mxu0 0
    %5327 = vmatpush1.bf16.msra.mxu0 %v5313
    %5328 = vmatprep.subr.bf16.mxu0 0
    %5329 = vmatpush1.bf16.msra.mxu0 %v5314
    %5330 = vmatprep.subr.bf16.mxu0 0
    %5331 = vmatpush1.bf16.msra.mxu0 0
    %5332 = vmatprep.subr.bf16.mxu0 0
    %5333 = vmatpush1.bf16.msra.mxu0 0
    %5334 = vmatprep.subr.bf16.mxu0 0
    %5335 = vmatpush1.bf16.msra.mxu0 0
    %5336 = vmatprep.subr.bf16.mxu0 0
    %5337 = vmatpush1.bf16.msra.mxu0 0
    %5338 = vmatprep.subr.bf16.mxu0 0
    %5339 = vmatpush1.bf16.msra.mxu0 0
    %5340 = vmatprep.subr.bf16.mxu0 0
    %5341 = vmatpush1.bf16.msra.mxu0 0
    %5342 = vmatprep.subr.bf16.mxu0 0
    %5343 = vmatpush1.bf16.msra.mxu0 0
    %5344 = vmatprep.subr.bf16.mxu0 0
    %5345 = vmatpush1.bf16.msra.mxu0 0
    %5346 = vmatprep.subr.bf16.mxu0 0
    %5347 = vmatpush1.bf16.msra.mxu0 0
    %5348 = vmatprep.subr.bf16.mxu0 0
    %5349 = vmatpush1.bf16.msra.mxu0 0
    %5350 = vmatprep.subr.bf16.mxu0 0
    %5351 = vmatpush1.bf16.msra.mxu0 0
    %5352 = vmatprep.subr.bf16.mxu0 0
    %5353 = vmatpush1.bf16.msra.mxu0 0
    %5354 = vmatprep.subr.bf16.mxu0 0
    %5355 = vmatpush1.bf16.msra.mxu0 0
    %5356 = vmatprep.subr.bf16.mxu0 0
    %5357 = vmatpush1.bf16.msra.mxu0 0
    %5358 = vmatprep.mubr.bf16.mxu0 0
    %5359 = vmatmul.mubr.bf16.gmra.mrb[0].mxu0 %v5318
    %v5360 = vpop.f32.mrb[0].mxu0
    %v5361 = vadd.f32 0.0, %v5360
    %v5362 = vpop.f32.mrb[0].mxu0
    %v5363 = vpop.f32.mrb[0].mxu0
    %v5364 = vadd.f32 0.0, %v5363
    %v5365 = vpop.f32.mrb[0].mxu0
    %5366 = vmatprep.mubr.bf16.mxu0 0
    %5367 = vmatmul.mubr.bf16.gmra.mrb[0].mxu0 %v5321
    %v5368 = vpop.f32.mrb[0].mxu0
    %v5369 = vadd.f32 0.0, %v5368
    %v5370 = vpop.f32.mrb[0].mxu0
    %v5371 = vpop.f32.mrb[0].mxu0
    %v5372 = vadd.f32 0.0, %v5371
    %v5373 = vpop.f32.mrb[0].mxu0
    %5374 = vmatprep.mubr.bf16.mxu0 0
    %5375 = vmatmul.mubr.bf16.gmra.mrb[0].mxu0 %v5324
    %v5376 = vpop.f32.mrb[0].mxu0
    %v5377 = vadd.f32 0.0, %v5376
    %v5378 = vpop.f32.mrb[0].mxu0
    %v5379 = vpop.f32.mrb[0].mxu0
    %v5380 = vadd.f32 0.0, %v5379
    %v5381 = vpop.f32.mrb[0].mxu0
    %5382 = vdwg.mxu0
    %v5387 = vunpack.c.l.b16 %v5205
    %v5388 = vunpack.c.l.b16 %v5206
    %v5389 = vunpack.c.l.b16 %v5207
    %v5390 = vunpack.c.l.b16 %v5208
    %v5391 = vpack.c.b16 %v5388, %v5387
    %v5392 = vpack.c.b16 %v5390, %v5389
    %v5396 = vsel %vm1615, %v5202, 0
    %v5399 = vsel %vm1615, %v5203, 0
    %v5402 = vsel %vm1615, %v5204, 0
    %5404 = vmatprep.subr.bf16.mxu0 0
    %5405 = vmatpush1.bf16.msra.mxu0 %v5391
    %5406 = vmatprep.subr.bf16.mxu0 0
    %5407 = vmatpush1.bf16.msra.mxu0 %v5392
    %5408 = vmatprep.subr.bf16.mxu0 0
    %5409 = vmatpush1.bf16.msra.mxu0 0
    %5410 = vmatprep.subr.bf16.mxu0 0
    %5411 = vmatpush1.bf16.msra.mxu0 0
    %5412 = vmatprep.subr.bf16.mxu0 0
    %5413 = vmatpush1.bf16.msra.mxu0 0
    %5414 = vmatprep.subr.bf16.mxu0 0
    %5415 = vmatpush1.bf16.msra.mxu0 0
    %5416 = vmatprep.subr.bf16.mxu0 0
    %5417 = vmatpush1.bf16.msra.mxu0 0
    %5418 = vmatprep.subr.bf16.mxu0 0
    %5419 = vmatpush1.bf16.msra.mxu0 0
    %5420 = vmatprep.subr.bf16.mxu0 0
    %5421 = vmatpush1.bf16.msra.mxu0 0
    %5422 = vmatprep.subr.bf16.mxu0 0
    %5423 = vmatpush1.bf16.msra.mxu0 0
    %5424 = vmatprep.subr.bf16.mxu0 0
    %5425 = vmatpush1.bf16.msra.mxu0 0
    %5426 = vmatprep.subr.bf16.mxu0 0
    %5427 = vmatpush1.bf16.msra.mxu0 0
    %5428 = vmatprep.subr.bf16.mxu0 0
    %5429 = vmatpush1.bf16.msra.mxu0 0
    %5430 = vmatprep.subr.bf16.mxu0 0
    %5431 = vmatpush1.bf16.msra.mxu0 0
    %5432 = vmatprep.subr.bf16.mxu0 0
    %5433 = vmatpush1.bf16.msra.mxu0 0
    %5434 = vmatprep.subr.bf16.mxu0 0
    %5435 = vmatpush1.bf16.msra.mxu0 0
    %5436 = vmatprep.mubr.bf16.mxu0 0
    %5437 = vmatmul.mubr.bf16.gmra.mrb[0].mxu0 %v5396
    %v5438 = vpop.f32.mrb[0].mxu0
    %v5439 = vadd.f32 %v5361, %v5438
    %v5440 = vpop.f32.mrb[0].mxu0
    %v5441 = vpop.f32.mrb[0].mxu0
    %v5442 = vadd.f32 %v5364, %v5441
    %v5443 = vpop.f32.mrb[0].mxu0
    %5444 = vmatprep.mubr.bf16.mxu0 0
    %5445 = vmatmul.mubr.bf16.gmra.mrb[0].mxu0 %v5399
    %v5446 = vpop.f32.mrb[0].mxu0
    %v5447 = vadd.f32 %v5369, %v5446
    %v5448 = vpop.f32.mrb[0].mxu0
    %v5449 = vpop.f32.mrb[0].mxu0
    %v5450 = vadd.f32 %v5372, %v5449
    %v5451 = vpop.f32.mrb[0].mxu0
    %5452 = vmatprep.mubr.bf16.mxu0 0
    %5453 = vmatmul.mubr.bf16.gmra.mrb[0].mxu0 %v5402
    %v5454 = vpop.f32.mrb[0].mxu0
    %v5455 = vadd.f32 %v5377, %v5454
    %v5456 = vpop.f32.mrb[0].mxu0
    %v5457 = vpop.f32.mrb[0].mxu0
    %v5458 = vadd.f32 %v5380, %v5457
    %v5459 = vpop.f32.mrb[0].mxu0
    %5460 = vdwg.mxu0
    %s5461 = scalar_lea.vmem %s85, 48
    %v5462 = vld [vmem:[%s5461] sm:$0xf]
    %v5463 = vld [vmem:[%s5461 + $0x4] sm:$0xf]
    %v5464 = vld [vmem:[%s5461 + $0x8] sm:$0xf]
    %v5465 = vld [vmem:[%s5461 + $0xc] sm:$0xf]
    %v5466 = vld [vmem:[%s5461 + $0x10] sm:$0xf]
    %v5467 = vld [vmem:[%s5461 + $0x14] sm:$0x1]
    %v5474 = vunpack.c.l.b16 %v5462
    %v5475 = vunpack.c.l.b16 %v5463
    %v5476 = vunpack.c.l.b16 %v5464
    %v5477 = vunpack.c.l.b16 %v5465
    %v5478 = vunpack.c.l.b16 %v5466
    %v5479 = vunpack.c.l.b16 %v5467
    %v5480 = vpack.c.b16 %v5475, %v5474
    %v5481 = vpack.c.b16 %v5477, %v5476
    %v5482 = vpack.c.b16 %v5479, %v5478
    %v5484 = vsel %vm1684, %v5480, 0
    %v5487 = vsel %vm1684, %v5481, 0
    %v5490 = vsel %vm1684, %v5482, 0
    %5492 = vmatprep.subr.bf16.mxu0 0
    %5493 = vmatpush1.bf16.msra.mxu0 %v5110
    %5494 = vmatprep.subr.bf16.mxu0 0
    %5495 = vmatpush1.bf16.msra.mxu0 %v5143
    %5496 = vmatprep.subr.bf16.mxu0 0
    %5497 = vmatpush1.bf16.msra.mxu0 0
    %5498 = vmatprep.subr.bf16.mxu0 0
    %5499 = vmatpush1.bf16.msra.mxu0 0
    %5500 = vmatprep.subr.bf16.mxu0 0
    %5501 = vmatpush1.bf16.msra.mxu0 0
    %5502 = vmatprep.subr.bf16.mxu0 0
    %5503 = vmatpush1.bf16.msra.mxu0 0
    %5504 = vmatprep.subr.bf16.mxu0 0
    %5505 = vmatpush1.bf16.msra.mxu0 0
    %5506 = vmatprep.subr.bf16.mxu0 0
    %5507 = vmatpush1.bf16.msra.mxu0 0
    %5508 = vmatprep.subr.bf16.mxu0 0
    %5509 = vmatpush1.bf16.msra.mxu0 0
    %5510 = vmatprep.subr.bf16.mxu0 0
    %5511 = vmatpush1.bf16.msra.mxu0 0
    %5512 = vmatprep.subr.bf16.mxu0 0
    %5513 = vmatpush1.bf16.msra.mxu0 0
    %5514 = vmatprep.subr.bf16.mxu0 0
    %5515 = vmatpush1.bf16.msra.mxu0 0
    %5516 = vmatprep.subr.bf16.mxu0 0
    %5517 = vmatpush1.bf16.msra.mxu0 0
    %5518 = vmatprep.subr.bf16.mxu0 0
    %5519 = vmatpush1.bf16.msra.mxu0 0
    %5520 = vmatprep.subr.bf16.mxu0 0
    %5521 = vmatpush1.bf16.msra.mxu0 0
    %5522 = vmatprep.subr.bf16.mxu0 0
    %5523 = vmatpush1.bf16.msra.mxu0 0
    %5524 = vmatprep.mubr.bf16.mxu0 0
    %5525 = vmatmul.mubr.bf16.gmra.mrb[0].mxu0 %v5484
    %v5526 = vpop.f32.mrb[0].mxu0
    %v5527 = vadd.f32 0.0, %v5526
    %v5528 = vpop.f32.mrb[0].mxu0
    %v5529 = vpop.f32.mrb[0].mxu0
    %v5530 = vadd.f32 0.0, %v5529
    %v5531 = vpop.f32.mrb[0].mxu0
    %5532 = vmatprep.mubr.bf16.mxu0 0
    %5533 = vmatmul.mubr.bf16.gmra.mrb[0].mxu0 %v5487
    %v5534 = vpop.f32.mrb[0].mxu0
    %v5535 = vadd.f32 0.0, %v5534
    %v5536 = vpop.f32.mrb[0].mxu0
    %v5537 = vpop.f32.mrb[0].mxu0
    %v5538 = vadd.f32 0.0, %v5537
    %v5539 = vpop.f32.mrb[0].mxu0
    %5540 = vmatprep.mubr.bf16.mxu0 0
    %5541 = vmatmul.mubr.bf16.gmra.mrb[0].mxu0 %v5490
    %v5542 = vpop.f32.mrb[0].mxu0
    %v5543 = vadd.f32 0.0, %v5542
    %v5544 = vpop.f32.mrb[0].mxu0
    %v5545 = vpop.f32.mrb[0].mxu0
    %v5546 = vadd.f32 0.0, %v5545
    %v5547 = vpop.f32.mrb[0].mxu0
    %5548 = vdwg.mxu0
    %v5549 = vpack.c.bf16 %v5530, %v5527
    %v5550 = vpack.c.bf16 %v5538, %v5535
    %v5551 = vpack.c.bf16 %v5546, %v5543
    %s5552 = scalar_lea.vmem %s87, 32
    %v5553 = vld [vmem:[%s5552] sm:$0xf]
    %v5554 = vld [vmem:[%s5552 + $0x4] sm:$0xf]
    %v5555 = vld [vmem:[%s5552 + $0x8] sm:$0xf]
    %v5556 = vld [vmem:[%s5552 + $0xc] sm:$0xf]
    %v5561 = vunpack.c.l.b16 %v5553
    %v5562 = vunpack.c.l.b16 %v5554
    %v5563 = vunpack.c.l.b16 %v5555
    %v5564 = vunpack.c.l.b16 %v5556
    %v5565 = vpack.c.b16 %v5562, %v5561
    %v5566 = vpack.c.b16 %v5564, %v5563
    %v5570 = vsel %vm1615, %v5549, 0
    %v5573 = vsel %vm1615, %v5550, 0
    %v5576 = vsel %vm1615, %v5551, 0
    %5578 = vmatprep.subr.bf16.mxu0 0
    %5579 = vmatpush1.bf16.msra.mxu0 %v5565
    %5580 = vmatprep.subr.bf16.mxu0 0
    %5581 = vmatpush1.bf16.msra.mxu0 %v5566
    %5582 = vmatprep.subr.bf16.mxu0 0
    %5583 = vmatpush1.bf16.msra.mxu0 0
    %5584 = vmatprep.subr.bf16.mxu0 0
    %5585 = vmatpush1.bf16.msra.mxu0 0
    %5586 = vmatprep.subr.bf16.mxu0 0
    %5587 = vmatpush1.bf16.msra.mxu0 0
    %5588 = vmatprep.subr.bf16.mxu0 0
    %5589 = vmatpush1.bf16.msra.mxu0 0
    %5590 = vmatprep.subr.bf16.mxu0 0
    %5591 = vmatpush1.bf16.msra.mxu0 0
    %5592 = vmatprep.subr.bf16.mxu0 0
    %5593 = vmatpush1.bf16.msra.mxu0 0
    %5594 = vmatprep.subr.bf16.mxu0 0
    %5595 = vmatpush1.bf16.msra.mxu0 0
    %5596 = vmatprep.subr.bf16.mxu0 0
    %5597 = vmatpush1.bf16.msra.mxu0 0
    %5598 = vmatprep.subr.bf16.mxu0 0
    %5599 = vmatpush1.bf16.msra.mxu0 0
    %5600 = vmatprep.subr.bf16.mxu0 0
    %5601 = vmatpush1.bf16.msra.mxu0 0
    %5602 = vmatprep.subr.bf16.mxu0 0
    %5603 = vmatpush1.bf16.msra.mxu0 0
    %5604 = vmatprep.subr.bf16.mxu0 0
    %5605 = vmatpush1.bf16.msra.mxu0 0
    %5606 = vmatprep.subr.bf16.mxu0 0
    %5607 = vmatpush1.bf16.msra.mxu0 0
    %5608 = vmatprep.subr.bf16.mxu0 0
    %5609 = vmatpush1.bf16.msra.mxu0 0
    %5610 = vmatprep.mubr.bf16.mxu0 0
    %5611 = vmatmul.mubr.bf16.gmra.mrb[0].mxu0 %v5570
    %v5612 = vpop.f32.mrb[0].mxu0
    %v5613 = vadd.f32 0.0, %v5612
    %v5614 = vpop.f32.mrb[0].mxu0
    %v5615 = vpop.f32.mrb[0].mxu0
    %v5616 = vadd.f32 0.0, %v5615
    %v5617 = vpop.f32.mrb[0].mxu0
    %5618 = vmatprep.mubr.bf16.mxu0 0
    %5619 = vmatmul.mubr.bf16.gmra.mrb[0].mxu0 %v5573
    %v5620 = vpop.f32.mrb[0].mxu0
    %v5621 = vadd.f32 0.0, %v5620
    %v5622 = vpop.f32.mrb[0].mxu0
    %v5623 = vpop.f32.mrb[0].mxu0
    %v5624 = vadd.f32 0.0, %v5623
    %v5625 = vpop.f32.mrb[0].mxu0
    %5626 = vmatprep.mubr.bf16.mxu0 0
    %5627 = vmatmul.mubr.bf16.gmra.mrb[0].mxu0 %v5576
    %v5628 = vpop.f32.mrb[0].mxu0
    %v5629 = vadd.f32 0.0, %v5628
    %v5630 = vpop.f32.mrb[0].mxu0
    %v5631 = vpop.f32.mrb[0].mxu0
    %v5632 = vadd.f32 0.0, %v5631
    %v5633 = vpop.f32.mrb[0].mxu0
    %5634 = vdwg.mxu0
    %v5635 = vadd.f32 %v5439, %v5613
    %v5636 = vadd.f32 %v5442, %v5616
    %v5637 = vadd.f32 %v5447, %v5621
    %v5638 = vadd.f32 %v5450, %v5624
    %v5639 = vadd.f32 %v5455, %v5629
    %v5640 = vadd.f32 %v5458, %v5632
    %v5641 = vld [vmem:[#allocation33] sm:$0x1]
    %v5643 = vlaneseq
    %v5644 = vshrl.u32 %v5643, 7
    %v5645 = vsub.s32 0, %v5644
    %v5646 = vrot.slane %v5641, %v5645
    %v5648 = vadd.f32 %v5635, %v5646
    %v5649 = vadd.f32 %v5636, %v5646
    %v5650 = vadd.f32 %v5637, %v5646
    %v5651 = vadd.f32 %v5638, %v5646
    %v5652 = vadd.f32 %v5639, %v5646
    %v5653 = vadd.f32 %v5640, %v5646
    %v5654 = vmax.f32 %v5648, 0.0
    %v5655 = vmax.f32 %v5649, 0.0
    %v5656 = vmax.f32 %v5650, 0.0
    %v5657 = vmax.f32 %v5651, 0.0
    %v5658 = vmax.f32 %v5652, 0.0
    %v5659 = vmax.f32 %v5653, 0.0
    %v5660 = vsel %vm1113, %v5654, 0.0
    %v5661 = vsel %vm1113, %v5655, 0.0
    %v5662 = vadd.f32 %v5660, %v5661
    %v5663 = vsel %vm1113, %v5656, 0.0
    %v5664 = vadd.f32 %v5662, %v5663
    %v5665 = vsel %vm1113, %v5657, 0.0
    %v5666 = vadd.f32 %v5664, %v5665
    %v5667 = vsel %vm1113, %v5658, 0.0
    %v5668 = vadd.f32 %v5666, %v5667
    %v5669 = vsel %vm1123, %v5659, 0.0
    %v5670 = vadd.f32 %v5668, %v5669
    %v5671 = vrot.slane %v5670, 4
    %v5672 = vadd.f32 %v5670, %v5671
    %v5673 = vrot.slane %v5672, 2
    %v5674 = vadd.f32 %v5672, %v5673
    %v5675 = vrot.slane %v5674, 1
    %v5676 = vadd.f32 %v5674, %v5675
    %v5677 = vmul.f32 %v5676, 0.023809524
    %v5678 = vmul.f32 %v5654, %v5654
    %v5679 = vmul.f32 %v5655, %v5655
    %v5680 = vmul.f32 %v5656, %v5656
    %v5681 = vmul.f32 %v5657, %v5657
    %v5682 = vmul.f32 %v5658, %v5658
    %v5683 = vmul.f32 %v5659, %v5659
    %v5684 = vsel %vm1113, %v5678, 0.0
    %v5685 = vsel %vm1113, %v5679, 0.0
    %v5686 = vadd.f32 %v5684, %v5685
    %v5687 = vsel %vm1113, %v5680, 0.0
    %v5688 = vadd.f32 %v5686, %v5687
    %v5689 = vsel %vm1113, %v5681, 0.0
    %v5690 = vadd.f32 %v5688, %v5689
    %v5691 = vsel %vm1113, %v5682, 0.0
    %v5692 = vadd.f32 %v5690, %v5691
    %v5693 = vsel %vm1123, %v5683, 0.0
    %v5694 = vadd.f32 %v5692, %v5693
    %v5695 = vrot.slane %v5694, 4
    %v5696 = vadd.f32 %v5694, %v5695
    %v5697 = vrot.slane %v5696, 2
    %v5698 = vadd.f32 %v5696, %v5697
    %v5699 = vrot.slane %v5698, 1
    %v5700 = vadd.f32 %v5698, %v5699
    %v5701 = vmul.f32 %v5700, 0.023809524
    %v5702 = vmul.f32 %v5677, %v5677
    %v5703 = vsub.f32 %v5701, %v5702
    %v5704 = vmax.f32 %v5703, 0.0
    %v5705 = vsub.f32 %v5654, %v5677
    %v5706 = vsub.f32 %v5655, %v5677
    %v5707 = vsub.f32 %v5656, %v5677
    %v5708 = vsub.f32 %v5657, %v5677
    %v5709 = vsub.f32 %v5658, %v5677
    %v5710 = vsub.f32 %v5659, %v5677
    %v5711 = vadd.f32 %v5704, 1e-05
    %v5712 = vrsqrt.pop %v5711
    %v5713 = vmul.f32 %v5705, %v5712
    %v5714 = vmul.f32 %v5706, %v5712
    %v5715 = vmul.f32 %v5707, %v5712
    %v5716 = vmul.f32 %v5708, %v5712
    %v5717 = vmul.f32 %v5709, %v5712
    %v5718 = vmul.f32 %v5710, %v5712
    %v5719 = vld [vmem:[#allocation34] sm:$0x1]
    %v5721 = vlaneseq
    %v5722 = vshrl.u32 %v5721, 7
    %v5723 = vsub.s32 0, %v5722
    %v5724 = vrot.slane %v5719, %v5723
    %v5726 = vmul.f32 %v5713, %v5724
    %v5727 = vmul.f32 %v5714, %v5724
    %v5728 = vmul.f32 %v5715, %v5724
    %v5729 = vmul.f32 %v5716, %v5724
    %v5730 = vmul.f32 %v5717, %v5724
    %v5731 = vmul.f32 %v5718, %v5724
    %v5732 = vld [vmem:[#allocation36] sm:$0x1]
    %v5734 = vlaneseq
    %v5735 = vshrl.u32 %v5734, 7
    %v5736 = vsub.s32 0, %v5735
    %v5737 = vrot.slane %v5732, %v5736
    %v5739 = vadd.f32 %v5726, %v5737
    %v5740 = vadd.f32 %v5727, %v5737
    %v5741 = vadd.f32 %v5728, %v5737
    %v5742 = vadd.f32 %v5729, %v5737
    %v5743 = vadd.f32 %v5730, %v5737
    %v5744 = vadd.f32 %v5731, %v5737
    %v5745 = vpack.c.bf16 %v5740, %v5739
    %v5746 = vpack.c.bf16 %v5742, %v5741
    %v5747 = vpack.c.bf16 %v5744, %v5743
    %v5748 = vadd.bf16 %v5745, %v1200
    %v5749 = vadd.bf16 %v5746, %v1201
    %v5750 = vadd.bf16 %v5747, %v1202
    %v5751 = vld [vmem:[%s95] sm:$0xf]
    %v5752 = vld [vmem:[%s95 + $0x4] sm:$0xf]
    %v5753 = vld [vmem:[%s95 + $0x8] sm:$0xf]
    %v5754 = vld [vmem:[%s95 + $0xc] sm:$0xf]
    %v5755 = vld [vmem:[%s95 + $0x10] sm:$0xf]
    %v5756 = vld [vmem:[%s95 + $0x14] sm:$0xf]
    %v5757 = vld [vmem:[%s95 + $0x18] sm:$0xf]
    %v5758 = vld [vmem:[%s95 + $0x1c] sm:$0xf]
    %v5759 = vld [vmem:[%s95 + $0x20] sm:$0xf]
    %v5760 = vld [vmem:[%s95 + $0x24] sm:$0xf]
    %v5761 = vld [vmem:[%s95 + $0x28] sm:$0x3]
    %v5773 = vunpack.c.l.b16 %v5751
    %v5774 = vunpack.c.l.b16 %v5752
    %v5775 = vunpack.c.l.b16 %v5753
    %v5776 = vunpack.c.l.b16 %v5754
    %v5777 = vunpack.c.l.b16 %v5755
    %v5778 = vunpack.c.l.b16 %v5756
    %v5779 = vunpack.c.l.b16 %v5757
    %v5780 = vunpack.c.l.b16 %v5758
    %v5781 = vunpack.c.l.b16 %v5759
    %v5782 = vunpack.c.l.b16 %v5760
    %v5783 = vunpack.c.l.b16 %v5761
    %v5784 = vpack.c.b16 %v5774, %v5773
    %v5785 = vpack.c.b16 %v5776, %v5775
    %v5786 = vpack.c.b16 %v5778, %v5777
    %v5787 = vpack.c.b16 %v5780, %v5779
    %v5788 = vpack.c.b16 %v5782, %v5781
    %v5789 = vpack.c.b16 %v5783, %v5783
    %v5791 = vsel %vm1214, %v5784, 0
    %v5794 = vsel %vm1214, %v5785, 0
    %v5797 = vsel %vm1214, %v5786, 0
    %v5800 = vsel %vm1214, %v5787, 0
    %v5803 = vsel %vm1214, %v5788, 0
    %v5806 = vsel %vm1214, %v5789, 0
    %v5809 = vsel %vm1221, %v5750, 0
    %5811 = vmatprep.subr.bf16.mxu0 0
    %5812 = vmatpush1.bf16.msra.mxu0 %v5748
    %5813 = vmatprep.subr.bf16.mxu0 0
    %5814 = vmatpush1.bf16.msra.mxu0 %v5749
    %5815 = vmatprep.subr.bf16.mxu0 0
    %5816 = vmatpush1.bf16.msra.mxu0 %v5809
    %5817 = vmatprep.subr.bf16.mxu0 0
    %5818 = vmatpush1.bf16.msra.mxu0 0
    %5819 = vmatprep.subr.bf16.mxu0 0
    %5820 = vmatpush1.bf16.msra.mxu0 0
    %5821 = vmatprep.subr.bf16.mxu0 0
    %5822 = vmatpush1.bf16.msra.mxu0 0
    %5823 = vmatprep.subr.bf16.mxu0 0
    %5824 = vmatpush1.bf16.msra.mxu0 0
    %5825 = vmatprep.subr.bf16.mxu0 0
    %5826 = vmatpush1.bf16.msra.mxu0 0
    %5827 = vmatprep.subr.bf16.mxu0 0
    %5828 = vmatpush1.bf16.msra.mxu0 0
    %5829 = vmatprep.subr.bf16.mxu0 0
    %5830 = vmatpush1.bf16.msra.mxu0 0
    %5831 = vmatprep.subr.bf16.mxu0 0
    %5832 = vmatpush1.bf16.msra.mxu0 0
    %5833 = vmatprep.subr.bf16.mxu0 0
    %5834 = vmatpush1.bf16.msra.mxu0 0
    %5835 = vmatprep.subr.bf16.mxu0 0
    %5836 = vmatpush1.bf16.msra.mxu0 0
    %5837 = vmatprep.subr.bf16.mxu0 0
    %5838 = vmatpush1.bf16.msra.mxu0 0
    %5839 = vmatprep.subr.bf16.mxu0 0
    %5840 = vmatpush1.bf16.msra.mxu0 0
    %5841 = vmatprep.subr.bf16.mxu0 0
    %5842 = vmatpush1.bf16.msra.mxu0 0
    %5843 = vmatprep.mubr.bf16.mxu0 0
    %5844 = vmatmul.mubr.bf16.gmra.mrb[0].mxu0 %v5791
    %v5845 = vpop.f32.mrb[0].mxu0
    %v5846 = vadd.f32 0.0, %v5845
    %v5847 = vpop.f32.mrb[0].mxu0
    %v5848 = vpop.f32.mrb[0].mxu0
    %v5849 = vadd.f32 0.0, %v5848
    %v5850 = vpop.f32.mrb[0].mxu0
    %5851 = vmatprep.mubr.bf16.mxu0 0
    %5852 = vmatmul.mubr.bf16.gmra.mrb[0].mxu0 %v5794
    %v5853 = vpop.f32.mrb[0].mxu0
    %v5854 = vadd.f32 0.0, %v5853
    %v5855 = vpop.f32.mrb[0].mxu0
    %v5856 = vpop.f32.mrb[0].mxu0
    %v5857 = vadd.f32 0.0, %v5856
    %v5858 = vpop.f32.mrb[0].mxu0
    %5859 = vmatprep.mubr.bf16.mxu0 0
    %5860 = vmatmul.mubr.bf16.gmra.mrb[0].mxu0 %v5797
    %v5861 = vpop.f32.mrb[0].mxu0
    %v5862 = vadd.f32 0.0, %v5861
    %v5863 = vpop.f32.mrb[0].mxu0
    %v5864 = vpop.f32.mrb[0].mxu0
    %v5865 = vadd.f32 0.0, %v5864
    %v5866 = vpop.f32.mrb[0].mxu0
    %5867 = vmatprep.mubr.bf16.mxu0 0
    %5868 = vmatmul.mubr.bf16.gmra.mrb[0].mxu0 %v5800
    %v5869 = vpop.f32.mrb[0].mxu0
    %v5870 = vadd.f32 0.0, %v5869
    %v5871 = vpop.f32.mrb[0].mxu0
    %v5872 = vpop.f32.mrb[0].mxu0
    %v5873 = vadd.f32 0.0, %v5872
    %v5874 = vpop.f32.mrb[0].mxu0
    %5875 = vmatprep.mubr.bf16.mxu0 0
    %5876 = vmatmul.mubr.bf16.gmra.mrb[0].mxu0 %v5803
    %v5877 = vpop.f32.mrb[0].mxu0
    %v5878 = vadd.f32 0.0, %v5877
    %v5879 = vpop.f32.mrb[0].mxu0
    %v5880 = vpop.f32.mrb[0].mxu0
    %v5881 = vadd.f32 0.0, %v5880
    %v5882 = vpop.f32.mrb[0].mxu0
    %5883 = vmatprep.mubr.bf16.mxu0 0
    %5884 = vmatmul.mubr.bf16.gmra.mrb[0].mxu0 %v5806
    %v5885 = vpop.f32.mrb[0].mxu0
    %v5886 = vadd.f32 0.0, %v5885
    %v5887 = vpop.f32.mrb[0].mxu0
    %v5888 = vpop.f32.mrb[0].mxu0
    %v5889 = vpop.f32.mrb[0].mxu0
    %5890 = vdwg.mxu0
    %v5891 = vpack.c.bf16 %v5849, %v5846
    %v5892 = vpack.c.bf16 %v5857, %v5854
    %v5893 = vpack.c.bf16 %v5865, %v5862
    %v5894 = vpack.c.bf16 %v5873, %v5870
    %v5895 = vpack.c.bf16 %v5881, %v5878
    %v5896 = vpack.c.bf16 %v5886, %v5886
    %v5897 = vld [vmem:[%s97] sm:$0xf]
    %v5898 = vld [vmem:[%s97 + $0x4] sm:$0xf]
    %s5899 = scalar_lea.vmem %s95, 44
    %v5900 = vld [vmem:[%s5899] sm:$0xf]
    %v5901 = vld [vmem:[%s5899 + $0x4] sm:$0xf]
    %v5902 = vld [vmem:[%s5899 + $0x8] sm:$0xf]
    %v5903 = vld [vmem:[%s5899 + $0xc] sm:$0xf]
    %v5904 = vld [vmem:[%s5899 + $0x10] sm:$0xf]
    %v5905 = vld [vmem:[%s5899 + $0x14] sm:$0xf]
    %v5906 = vld [vmem:[%s5899 + $0x18] sm:$0xf]
    %v5907 = vld [vmem:[%s5899 + $0x1c] sm:$0xf]
    %v5908 = vld [vmem:[%s5899 + $0x20] sm:$0xf]
    %v5909 = vld [vmem:[%s5899 + $0x24] sm:$0xf]
    %v5910 = vld [vmem:[%s5899 + $0x28] sm:$0x3]
    %v5922 = vunpack.c.l.b16 %v5900
    %v5923 = vunpack.c.l.b16 %v5901
    %v5924 = vunpack.c.l.b16 %v5902
    %v5925 = vunpack.c.l.b16 %v5903
    %v5926 = vunpack.c.l.b16 %v5904
    %v5927 = vunpack.c.l.b16 %v5905
    %v5928 = vunpack.c.l.b16 %v5906
    %v5929 = vunpack.c.l.b16 %v5907
    %v5930 = vunpack.c.l.b16 %v5908
    %v5931 = vunpack.c.l.b16 %v5909
    %v5932 = vunpack.c.l.b16 %v5910
    %v5933 = vpack.c.b16 %v5923, %v5922
    %v5934 = vpack.c.b16 %v5925, %v5924
    %v5935 = vpack.c.b16 %v5927, %v5926
    %v5936 = vpack.c.b16 %v5929, %v5928
    %v5937 = vpack.c.b16 %v5931, %v5930
    %v5938 = vpack.c.b16 %v5932, %v5932
    %v5940 = vsel %vm1214, %v5933, 0
    %v5943 = vsel %vm1214, %v5934, 0
    %v5946 = vsel %vm1214, %v5935, 0
    %v5949 = vsel %vm1214, %v5936, 0
    %v5952 = vsel %vm1214, %v5937, 0
    %v5955 = vsel %vm1214, %v5938, 0
    %5957 = vmatprep.subr.bf16.mxu0 0
    %5958 = vmatpush1.bf16.msra.mxu0 %v5748
    %5959 = vmatprep.subr.bf16.mxu0 0
    %5960 = vmatpush1.bf16.msra.mxu0 %v5749
    %5961 = vmatprep.subr.bf16.mxu0 0
    %5962 = vmatpush1.bf16.msra.mxu0 %v5809
    %5963 = vmatprep.subr.bf16.mxu0 0
    %5964 = vmatpush1.bf16.msra.mxu0 0
    %5965 = vmatprep.subr.bf16.mxu0 0
    %5966 = vmatpush1.bf16.msra.mxu0 0
    %5967 = vmatprep.subr.bf16.mxu0 0
    %5968 = vmatpush1.bf16.msra.mxu0 0
    %5969 = vmatprep.subr.bf16.mxu0 0
    %5970 = vmatpush1.bf16.msra.mxu0 0
    %5971 = vmatprep.subr.bf16.mxu0 0
    %5972 = vmatpush1.bf16.msra.mxu0 0
    %5973 = vmatprep.subr.bf16.mxu0 0
    %5974 = vmatpush1.bf16.msra.mxu0 0
    %5975 = vmatprep.subr.bf16.mxu0 0
    %5976 = vmatpush1.bf16.msra.mxu0 0
    %5977 = vmatprep.subr.bf16.mxu0 0
    %5978 = vmatpush1.bf16.msra.mxu0 0
    %5979 = vmatprep.subr.bf16.mxu0 0
    %5980 = vmatpush1.bf16.msra.mxu0 0
    %5981 = vmatprep.subr.bf16.mxu0 0
    %5982 = vmatpush1.bf16.msra.mxu0 0
    %5983 = vmatprep.subr.bf16.mxu0 0
    %5984 = vmatpush1.bf16.msra.mxu0 0
    %5985 = vmatprep.subr.bf16.mxu0 0
    %5986 = vmatpush1.bf16.msra.mxu0 0
    %5987 = vmatprep.subr.bf16.mxu0 0
    %5988 = vmatpush1.bf16.msra.mxu0 0
    %5989 = vmatprep.mubr.bf16.mxu0 0
    %5990 = vmatmul.mubr.bf16.gmra.mrb[0].mxu0 %v5940
    %v5991 = vpop.f32.mrb[0].mxu0
    %v5992 = vadd.f32 0.0, %v5991
    %v5993 = vpop.f32.mrb[0].mxu0
    %v5994 = vpop.f32.mrb[0].mxu0
    %v5995 = vadd.f32 0.0, %v5994
    %v5996 = vpop.f32.mrb[0].mxu0
    %5997 = vmatprep.mubr.bf16.mxu0 0
    %5998 = vmatmul.mubr.bf16.gmra.mrb[0].mxu0 %v5943
    %v5999 = vpop.f32.mrb[0].mxu0
    %v6000 = vadd.f32 0.0, %v5999
    %v6001 = vpop.f32.mrb[0].mxu0
    %v6002 = vpop.f32.mrb[0].mxu0
    %v6003 = vadd.f32 0.0, %v6002
    %v6004 = vpop.f32.mrb[0].mxu0
    %6005 = vmatprep.mubr.bf16.mxu0 0
    %6006 = vmatmul.mubr.bf16.gmra.mrb[0].mxu0 %v5946
    %v6007 = vpop.f32.mrb[0].mxu0
    %v6008 = vadd.f32 0.0, %v6007
    %v6009 = vpop.f32.mrb[0].mxu0
    %v6010 = vpop.f32.mrb[0].mxu0
    %v6011 = vadd.f32 0.0, %v6010
    %v6012 = vpop.f32.mrb[0].mxu0
    %6013 = vmatprep.mubr.bf16.mxu0 0
    %6014 = vmatmul.mubr.bf16.gmra.mrb[0].mxu0 %v5949
    %v6015 = vpop.f32.mrb[0].mxu0
    %v6016 = vadd.f32 0.0, %v6015
    %v6017 = vpop.f32.mrb[0].mxu0
    %v6018 = vpop.f32.mrb[0].mxu0
    %v6019 = vadd.f32 0.0, %v6018
    %v6020 = vpop.f32.mrb[0].mxu0
    %6021 = vmatprep.mubr.bf16.mxu0 0
    %6022 = vmatmul.mubr.bf16.gmra.mrb[0].mxu0 %v5952
    %v6023 = vpop.f32.mrb[0].mxu0
    %v6024 = vadd.f32 0.0, %v6023
    %v6025 = vpop.f32.mrb[0].mxu0
    %v6026 = vpop.f32.mrb[0].mxu0
    %v6027 = vadd.f32 0.0, %v6026
    %v6028 = vpop.f32.mrb[0].mxu0
    %6029 = vmatprep.mubr.bf16.mxu0 0
    %6030 = vmatmul.mubr.bf16.gmra.mrb[0].mxu0 %v5955
    %v6031 = vpop.f32.mrb[0].mxu0
    %v6032 = vadd.f32 0.0, %v6031
    %v6033 = vpop.f32.mrb[0].mxu0
    %v6034 = vpop.f32.mrb[0].mxu0
    %v6035 = vpop.f32.mrb[0].mxu0
    %6036 = vdwg.mxu0
    %v6037 = vpack.c.bf16 %v5995, %v5992
    %v6038 = vpack.c.bf16 %v6003, %v6000
    %v6039 = vpack.c.bf16 %v6011, %v6008
    %v6040 = vpack.c.bf16 %v6019, %v6016
    %v6041 = vpack.c.bf16 %v6027, %v6024
    %v6042 = vpack.c.bf16 %v6032, %v6032
    %s6043 = scalar_lea.vmem %s97, 8
    %v6044 = vld [vmem:[%s6043] sm:$0xf]
    %v6045 = vld [vmem:[%s6043 + $0x4] sm:$0xf]
    %v6048 = vunpack.c.l.b16 %v6044
    %v6049 = vunpack.c.l.b16 %v6045
    %v6050 = vpack.c.b16 %v6049, %v6048
    %v6053 = vsel %vm1113, %v6037, 0
    %v6056 = vsel %vm1113, %v6038, 0
    %v6059 = vsel %vm1113, %v6039, 0
    %v6062 = vsel %vm1113, %v6040, 0
    %v6065 = vsel %vm1113, %v6041, 0
    %v6068 = vsel %vm1113, %v6042, 0
    %6070 = vmatprep.subr.bf16.mxu0 0
    %6071 = vmatpush1.bf16.msra.mxu0 %v6050
    %6072 = vmatprep.subr.bf16.mxu0 0
    %6073 = vmatpush1.bf16.msra.mxu0 0
    %6074 = vmatprep.subr.bf16.mxu0 0
    %6075 = vmatpush1.bf16.msra.mxu0 0
    %6076 = vmatprep.subr.bf16.mxu0 0
    %6077 = vmatpush1.bf16.msra.mxu0 0
    %6078 = vmatprep.subr.bf16.mxu0 0
    %6079 = vmatpush1.bf16.msra.mxu0 0
    %6080 = vmatprep.subr.bf16.mxu0 0
    %6081 = vmatpush1.bf16.msra.mxu0 0
    %6082 = vmatprep.subr.bf16.mxu0 0
    %6083 = vmatpush1.bf16.msra.mxu0 0
    %6084 = vmatprep.subr.bf16.mxu0 0
    %6085 = vmatpush1.bf16.msra.mxu0 0
    %6086 = vmatprep.subr.bf16.mxu0 0
    %6087 = vmatpush1.bf16.msra.mxu0 0
    %6088 = vmatprep.subr.bf16.mxu0 0
    %6089 = vmatpush1.bf16.msra.mxu0 0
    %6090 = vmatprep.subr.bf16.mxu0 0
    %6091 = vmatpush1.bf16.msra.mxu0 0
    %6092 = vmatprep.subr.bf16.mxu0 0
    %6093 = vmatpush1.bf16.msra.mxu0 0
    %6094 = vmatprep.subr.bf16.mxu0 0
    %6095 = vmatpush1.bf16.msra.mxu0 0
    %6096 = vmatprep.subr.bf16.mxu0 0
    %6097 = vmatpush1.bf16.msra.mxu0 0
    %6098 = vmatprep.subr.bf16.mxu0 0
    %6099 = vmatpush1.bf16.msra.mxu0 0
    %6100 = vmatprep.subr.bf16.mxu0 0
    %6101 = vmatpush1.bf16.msra.mxu0 0
    %6102 = vmatprep.mubr.bf16.mxu0 0
    %6103 = vmatmul.mubr.bf16.gmra.mrb[0].mxu0 %v6053
    %v6104 = vpop.f32.mrb[0].mxu0
    %v6105 = vadd.f32 0.0, %v6104
    %v6106 = vpop.f32.mrb[0].mxu0
    %v6107 = vpop.f32.mrb[0].mxu0
    %v6108 = vadd.f32 0.0, %v6107
    %v6109 = vpop.f32.mrb[0].mxu0
    %6110 = vmatprep.mubr.bf16.mxu0 0
    %6111 = vmatmul.mubr.bf16.gmra.mrb[0].mxu0 %v6056
    %v6112 = vpop.f32.mrb[0].mxu0
    %v6113 = vadd.f32 0.0, %v6112
    %v6114 = vpop.f32.mrb[0].mxu0
    %v6115 = vpop.f32.mrb[0].mxu0
    %v6116 = vadd.f32 0.0, %v6115
    %v6117 = vpop.f32.mrb[0].mxu0
    %6118 = vmatprep.mubr.bf16.mxu0 0
    %6119 = vmatmul.mubr.bf16.gmra.mrb[0].mxu0 %v6059
    %v6120 = vpop.f32.mrb[0].mxu0
    %v6121 = vadd.f32 0.0, %v6120
    %v6122 = vpop.f32.mrb[0].mxu0
    %v6123 = vpop.f32.mrb[0].mxu0
    %v6124 = vadd.f32 0.0, %v6123
    %v6125 = vpop.f32.mrb[0].mxu0
    %6126 = vmatprep.mubr.bf16.mxu0 0
    %6127 = vmatmul.mubr.bf16.gmra.mrb[0].mxu0 %v6062
    %v6128 = vpop.f32.mrb[0].mxu0
    %v6129 = vadd.f32 0.0, %v6128
    %v6130 = vpop.f32.mrb[0].mxu0
    %v6131 = vpop.f32.mrb[0].mxu0
    %v6132 = vadd.f32 0.0, %v6131
    %v6133 = vpop.f32.mrb[0].mxu0
    %6134 = vmatprep.mubr.bf16.mxu0 0
    %6135 = vmatmul.mubr.bf16.gmra.mrb[0].mxu0 %v6065
    %v6136 = vpop.f32.mrb[0].mxu0
    %v6137 = vadd.f32 0.0, %v6136
    %v6138 = vpop.f32.mrb[0].mxu0
    %v6139 = vpop.f32.mrb[0].mxu0
    %v6140 = vadd.f32 0.0, %v6139
    %v6141 = vpop.f32.mrb[0].mxu0
    %6142 = vmatprep.mubr.bf16.mxu0 0
    %6143 = vmatmul.mubr.bf16.gmra.mrb[0].mxu0 %v6068
    %v6144 = vpop.f32.mrb[0].mxu0
    %v6145 = vadd.f32 0.0, %v6144
    %v6146 = vpop.f32.mrb[0].mxu0
    %v6147 = vpop.f32.mrb[0].mxu0
    %v6148 = vpop.f32.mrb[0].mxu0
    %6149 = vdwg.mxu0
    %v6152 = vunpack.c.l.b16 %v5897
    %v6153 = vunpack.c.l.b16 %v5898
    %v6154 = vpack.c.b16 %v6153, %v6152
    %v6157 = vsel %vm1113, %v5891, 0
    %v6160 = vsel %vm1113, %v5892, 0
    %v6163 = vsel %vm1113, %v5893, 0
    %v6166 = vsel %vm1113, %v5894, 0
    %v6169 = vsel %vm1113, %v5895, 0
    %v6172 = vsel %vm1113, %v5896, 0
    %6174 = vmatprep.subr.bf16.mxu0 0
    %6175 = vmatpush1.bf16.msra.mxu0 %v6154
    %6176 = vmatprep.subr.bf16.mxu0 0
    %6177 = vmatpush1.bf16.msra.mxu0 0
    %6178 = vmatprep.subr.bf16.mxu0 0
    %6179 = vmatpush1.bf16.msra.mxu0 0
    %6180 = vmatprep.subr.bf16.mxu0 0
    %6181 = vmatpush1.bf16.msra.mxu0 0
    %6182 = vmatprep.subr.bf16.mxu0 0
    %6183 = vmatpush1.bf16.msra.mxu0 0
    %6184 = vmatprep.subr.bf16.mxu0 0
    %6185 = vmatpush1.bf16.msra.mxu0 0
    %6186 = vmatprep.subr.bf16.mxu0 0
    %6187 = vmatpush1.bf16.msra.mxu0 0
    %6188 = vmatprep.subr.bf16.mxu0 0
    %6189 = vmatpush1.bf16.msra.mxu0 0
    %6190 = vmatprep.subr.bf16.mxu0 0
    %6191 = vmatpush1.bf16.msra.mxu0 0
    %6192 = vmatprep.subr.bf16.mxu0 0
    %6193 = vmatpush1.bf16.msra.mxu0 0
    %6194 = vmatprep.subr.bf16.mxu0 0
    %6195 = vmatpush1.bf16.msra.mxu0 0
    %6196 = vmatprep.subr.bf16.mxu0 0
    %6197 = vmatpush1.bf16.msra.mxu0 0
    %6198 = vmatprep.subr.bf16.mxu0 0
    %6199 = vmatpush1.bf16.msra.mxu0 0
    %6200 = vmatprep.subr.bf16.mxu0 0
    %6201 = vmatpush1.bf16.msra.mxu0 0
    %6202 = vmatprep.subr.bf16.mxu0 0
    %6203 = vmatpush1.bf16.msra.mxu0 0
    %6204 = vmatprep.subr.bf16.mxu0 0
    %6205 = vmatpush1.bf16.msra.mxu0 0
    %6206 = vmatprep.mubr.bf16.mxu0 0
    %6207 = vmatmul.mubr.bf16.gmra.mrb[0].mxu0 %v6157
    %v6208 = vpop.f32.mrb[0].mxu0
    %v6209 = vadd.f32 %v6105, %v6208
    %v6210 = vpop.f32.mrb[0].mxu0
    %v6211 = vpop.f32.mrb[0].mxu0
    %v6212 = vadd.f32 %v6108, %v6211
    %v6213 = vpop.f32.mrb[0].mxu0
    %6214 = vmatprep.mubr.bf16.mxu0 0
    %6215 = vmatmul.mubr.bf16.gmra.mrb[0].mxu0 %v6160
    %v6216 = vpop.f32.mrb[0].mxu0
    %v6217 = vadd.f32 %v6113, %v6216
    %v6218 = vpop.f32.mrb[0].mxu0
    %v6219 = vpop.f32.mrb[0].mxu0
    %v6220 = vadd.f32 %v6116, %v6219
    %v6221 = vpop.f32.mrb[0].mxu0
    %6222 = vmatprep.mubr.bf16.mxu0 0
    %6223 = vmatmul.mubr.bf16.gmra.mrb[0].mxu0 %v6163
    %v6224 = vpop.f32.mrb[0].mxu0
    %v6225 = vadd.f32 %v6121, %v6224
    %v6226 = vpop.f32.mrb[0].mxu0
    %v6227 = vpop.f32.mrb[0].mxu0
    %v6228 = vadd.f32 %v6124, %v6227
    %v6229 = vpop.f32.mrb[0].mxu0
    %6230 = vmatprep.mubr.bf16.mxu0 0
    %6231 = vmatmul.mubr.bf16.gmra.mrb[0].mxu0 %v6166
    %v6232 = vpop.f32.mrb[0].mxu0
    %v6233 = vadd.f32 %v6129, %v6232
    %v6234 = vpop.f32.mrb[0].mxu0
    %v6235 = vpop.f32.mrb[0].mxu0
    %v6236 = vadd.f32 %v6132, %v6235
    %v6237 = vpop.f32.mrb[0].mxu0
    %6238 = vmatprep.mubr.bf16.mxu0 0
    %6239 = vmatmul.mubr.bf16.gmra.mrb[0].mxu0 %v6169
    %v6240 = vpop.f32.mrb[0].mxu0
    %v6241 = vadd.f32 %v6137, %v6240
    %v6242 = vpop.f32.mrb[0].mxu0
    %v6243 = vpop.f32.mrb[0].mxu0
    %v6244 = vadd.f32 %v6140, %v6243
    %v6245 = vpop.f32.mrb[0].mxu0
    %6246 = vmatprep.mubr.bf16.mxu0 0
    %6247 = vmatmul.mubr.bf16.gmra.mrb[0].mxu0 %v6172
    %v6248 = vpop.f32.mrb[0].mxu0
    %v6249 = vadd.f32 %v6145, %v6248
    %v6250 = vpop.f32.mrb[0].mxu0
    %v6251 = vpop.f32.mrb[0].mxu0
    %v6252 = vpop.f32.mrb[0].mxu0
    %6253 = vdwg.mxu0
    %s6254 = scalar_lea.vmem %s95, 88
    %v6255 = vld [vmem:[%s6254] sm:$0xf]
    %v6256 = vld [vmem:[%s6254 + $0x4] sm:$0xf]
    %v6257 = vld [vmem:[%s6254 + $0x8] sm:$0xf]
    %v6258 = vld [vmem:[%s6254 + $0xc] sm:$0xf]
    %v6259 = vld [vmem:[%s6254 + $0x10] sm:$0xf]
    %v6260 = vld [vmem:[%s6254 + $0x14] sm:$0xf]
    %v6261 = vld [vmem:[%s6254 + $0x18] sm:$0xf]
    %v6262 = vld [vmem:[%s6254 + $0x1c] sm:$0xf]
    %v6263 = vld [vmem:[%s6254 + $0x20] sm:$0xf]
    %v6264 = vld [vmem:[%s6254 + $0x24] sm:$0xf]
    %v6265 = vld [vmem:[%s6254 + $0x28] sm:$0x3]
    %v6277 = vunpack.c.l.b16 %v6255
    %v6278 = vunpack.c.l.b16 %v6256
    %v6279 = vunpack.c.l.b16 %v6257
    %v6280 = vunpack.c.l.b16 %v6258
    %v6281 = vunpack.c.l.b16 %v6259
    %v6282 = vunpack.c.l.b16 %v6260
    %v6283 = vunpack.c.l.b16 %v6261
    %v6284 = vunpack.c.l.b16 %v6262
    %v6285 = vunpack.c.l.b16 %v6263
    %v6286 = vunpack.c.l.b16 %v6264
    %v6287 = vunpack.c.l.b16 %v6265
    %v6288 = vpack.c.b16 %v6278, %v6277
    %v6289 = vpack.c.b16 %v6280, %v6279
    %v6290 = vpack.c.b16 %v6282, %v6281
    %v6291 = vpack.c.b16 %v6284, %v6283
    %v6292 = vpack.c.b16 %v6286, %v6285
    %v6293 = vpack.c.b16 %v6287, %v6287
    %v6295 = vsel %vm1214, %v6288, 0
    %v6298 = vsel %vm1214, %v6289, 0
    %v6301 = vsel %vm1214, %v6290, 0
    %v6304 = vsel %vm1214, %v6291, 0
    %v6307 = vsel %vm1214, %v6292, 0
    %v6310 = vsel %vm1214, %v6293, 0
    %6312 = vmatprep.subr.bf16.mxu0 0
    %6313 = vmatpush1.bf16.msra.mxu0 %v5748
    %6314 = vmatprep.subr.bf16.mxu0 0
    %6315 = vmatpush1.bf16.msra.mxu0 %v5749
    %6316 = vmatprep.subr.bf16.mxu0 0
    %6317 = vmatpush1.bf16.msra.mxu0 %v5809
    %6318 = vmatprep.subr.bf16.mxu0 0
    %6319 = vmatpush1.bf16.msra.mxu0 0
    %6320 = vmatprep.subr.bf16.mxu0 0
    %6321 = vmatpush1.bf16.msra.mxu0 0
    %6322 = vmatprep.subr.bf16.mxu0 0
    %6323 = vmatpush1.bf16.msra.mxu0 0
    %6324 = vmatprep.subr.bf16.mxu0 0
    %6325 = vmatpush1.bf16.msra.mxu0 0
    %6326 = vmatprep.subr.bf16.mxu0 0
    %6327 = vmatpush1.bf16.msra.mxu0 0
    %6328 = vmatprep.subr.bf16.mxu0 0
    %6329 = vmatpush1.bf16.msra.mxu0 0
    %6330 = vmatprep.subr.bf16.mxu0 0
    %6331 = vmatpush1.bf16.msra.mxu0 0
    %6332 = vmatprep.subr.bf16.mxu0 0
    %6333 = vmatpush1.bf16.msra.mxu0 0
    %6334 = vmatprep.subr.bf16.mxu0 0
    %6335 = vmatpush1.bf16.msra.mxu0 0
    %6336 = vmatprep.subr.bf16.mxu0 0
    %6337 = vmatpush1.bf16.msra.mxu0 0
    %6338 = vmatprep.subr.bf16.mxu0 0
    %6339 = vmatpush1.bf16.msra.mxu0 0
    %6340 = vmatprep.subr.bf16.mxu0 0
    %6341 = vmatpush1.bf16.msra.mxu0 0
    %6342 = vmatprep.subr.bf16.mxu0 0
    %6343 = vmatpush1.bf16.msra.mxu0 0
    %6344 = vmatprep.mubr.bf16.mxu0 0
    %6345 = vmatmul.mubr.bf16.gmra.mrb[0].mxu0 %v6295
    %v6346 = vpop.f32.mrb[0].mxu0
    %v6347 = vadd.f32 0.0, %v6346
    %v6348 = vpop.f32.mrb[0].mxu0
    %v6349 = vpop.f32.mrb[0].mxu0
    %v6350 = vadd.f32 0.0, %v6349
    %v6351 = vpop.f32.mrb[0].mxu0
    %6352 = vmatprep.mubr.bf16.mxu0 0
    %6353 = vmatmul.mubr.bf16.gmra.mrb[0].mxu0 %v6298
    %v6354 = vpop.f32.mrb[0].mxu0
    %v6355 = vadd.f32 0.0, %v6354
    %v6356 = vpop.f32.mrb[0].mxu0
    %v6357 = vpop.f32.mrb[0].mxu0
    %v6358 = vadd.f32 0.0, %v6357
    %v6359 = vpop.f32.mrb[0].mxu0
    %6360 = vmatprep.mubr.bf16.mxu0 0
    %6361 = vmatmul.mubr.bf16.gmra.mrb[0].mxu0 %v6301
    %v6362 = vpop.f32.mrb[0].mxu0
    %v6363 = vadd.f32 0.0, %v6362
    %v6364 = vpop.f32.mrb[0].mxu0
    %v6365 = vpop.f32.mrb[0].mxu0
    %v6366 = vadd.f32 0.0, %v6365
    %v6367 = vpop.f32.mrb[0].mxu0
    %6368 = vmatprep.mubr.bf16.mxu0 0
    %6369 = vmatmul.mubr.bf16.gmra.mrb[0].mxu0 %v6304
    %v6370 = vpop.f32.mrb[0].mxu0
    %v6371 = vadd.f32 0.0, %v6370
    %v6372 = vpop.f32.mrb[0].mxu0
    %v6373 = vpop.f32.mrb[0].mxu0
    %v6374 = vadd.f32 0.0, %v6373
    %v6375 = vpop.f32.mrb[0].mxu0
    %6376 = vmatprep.mubr.bf16.mxu0 0
    %6377 = vmatmul.mubr.bf16.gmra.mrb[0].mxu0 %v6307
    %v6378 = vpop.f32.mrb[0].mxu0
    %v6379 = vadd.f32 0.0, %v6378
    %v6380 = vpop.f32.mrb[0].mxu0
    %v6381 = vpop.f32.mrb[0].mxu0
    %v6382 = vadd.f32 0.0, %v6381
    %v6383 = vpop.f32.mrb[0].mxu0
    %6384 = vmatprep.mubr.bf16.mxu0 0
    %6385 = vmatmul.mubr.bf16.gmra.mrb[0].mxu0 %v6310
    %v6386 = vpop.f32.mrb[0].mxu0
    %v6387 = vadd.f32 0.0, %v6386
    %v6388 = vpop.f32.mrb[0].mxu0
    %v6389 = vpop.f32.mrb[0].mxu0
    %v6390 = vpop.f32.mrb[0].mxu0
    %6391 = vdwg.mxu0
    %v6392 = vpack.c.bf16 %v6350, %v6347
    %v6393 = vpack.c.bf16 %v6358, %v6355
    %v6394 = vpack.c.bf16 %v6366, %v6363
    %v6395 = vpack.c.bf16 %v6374, %v6371
    %v6396 = vpack.c.bf16 %v6382, %v6379
    %v6397 = vpack.c.bf16 %v6387, %v6387
    %s6398 = scalar_lea.vmem %s97, 16
    %v6399 = vld [vmem:[%s6398] sm:$0xf]
    %v6400 = vld [vmem:[%s6398 + $0x4] sm:$0xf]
    %v6403 = vunpack.c.l.b16 %v6399
    %v6404 = vunpack.c.l.b16 %v6400
    %v6405 = vpack.c.b16 %v6404, %v6403
    %v6408 = vsel %vm1113, %v6392, 0
    %v6411 = vsel %vm1113, %v6393, 0
    %v6414 = vsel %vm1113, %v6394, 0
    %v6417 = vsel %vm1113, %v6395, 0
    %v6420 = vsel %vm1113, %v6396, 0
    %v6423 = vsel %vm1113, %v6397, 0
    %6425 = vmatprep.subr.bf16.mxu0 0
    %6426 = vmatpush1.bf16.msra.mxu0 %v6405
    %6427 = vmatprep.subr.bf16.mxu0 0
    %6428 = vmatpush1.bf16.msra.mxu0 0
    %6429 = vmatprep.subr.bf16.mxu0 0
    %6430 = vmatpush1.bf16.msra.mxu0 0
    %6431 = vmatprep.subr.bf16.mxu0 0
    %6432 = vmatpush1.bf16.msra.mxu0 0
    %6433 = vmatprep.subr.bf16.mxu0 0
    %6434 = vmatpush1.bf16.msra.mxu0 0
    %6435 = vmatprep.subr.bf16.mxu0 0
    %6436 = vmatpush1.bf16.msra.mxu0 0
    %6437 = vmatprep.subr.bf16.mxu0 0
    %6438 = vmatpush1.bf16.msra.mxu0 0
    %6439 = vmatprep.subr.bf16.mxu0 0
    %6440 = vmatpush1.bf16.msra.mxu0 0
    %6441 = vmatprep.subr.bf16.mxu0 0
    %6442 = vmatpush1.bf16.msra.mxu0 0
    %6443 = vmatprep.subr.bf16.mxu0 0
    %6444 = vmatpush1.bf16.msra.mxu0 0
    %6445 = vmatprep.subr.bf16.mxu0 0
    %6446 = vmatpush1.bf16.msra.mxu0 0
    %6447 = vmatprep.subr.bf16.mxu0 0
    %6448 = vmatpush1.bf16.msra.mxu0 0
    %6449 = vmatprep.subr.bf16.mxu0 0
    %6450 = vmatpush1.bf16.msra.mxu0 0
    %6451 = vmatprep.subr.bf16.mxu0 0
    %6452 = vmatpush1.bf16.msra.mxu0 0
    %6453 = vmatprep.subr.bf16.mxu0 0
    %6454 = vmatpush1.bf16.msra.mxu0 0
    %6455 = vmatprep.subr.bf16.mxu0 0
    %6456 = vmatpush1.bf16.msra.mxu0 0
    %6457 = vmatprep.mubr.bf16.mxu0 0
    %6458 = vmatmul.mubr.bf16.gmra.mrb[0].mxu0 %v6408
    %v6459 = vpop.f32.mrb[0].mxu0
    %v6460 = vadd.f32 0.0, %v6459
    %v6461 = vpop.f32.mrb[0].mxu0
    %v6462 = vpop.f32.mrb[0].mxu0
    %v6463 = vadd.f32 0.0, %v6462
    %v6464 = vpop.f32.mrb[0].mxu0
    %6465 = vmatprep.mubr.bf16.mxu0 0
    %6466 = vmatmul.mubr.bf16.gmra.mrb[0].mxu0 %v6411
    %v6467 = vpop.f32.mrb[0].mxu0
    %v6468 = vadd.f32 0.0, %v6467
    %v6469 = vpop.f32.mrb[0].mxu0
    %v6470 = vpop.f32.mrb[0].mxu0
    %v6471 = vadd.f32 0.0, %v6470
    %v6472 = vpop.f32.mrb[0].mxu0
    %6473 = vmatprep.mubr.bf16.mxu0 0
    %6474 = vmatmul.mubr.bf16.gmra.mrb[0].mxu0 %v6414
    %v6475 = vpop.f32.mrb[0].mxu0
    %v6476 = vadd.f32 0.0, %v6475
    %v6477 = vpop.f32.mrb[0].mxu0
    %v6478 = vpop.f32.mrb[0].mxu0
    %v6479 = vadd.f32 0.0, %v6478
    %v6480 = vpop.f32.mrb[0].mxu0
    %6481 = vmatprep.mubr.bf16.mxu0 0
    %6482 = vmatmul.mubr.bf16.gmra.mrb[0].mxu0 %v6417
    %v6483 = vpop.f32.mrb[0].mxu0
    %v6484 = vadd.f32 0.0, %v6483
    %v6485 = vpop.f32.mrb[0].mxu0
    %v6486 = vpop.f32.mrb[0].mxu0
    %v6487 = vadd.f32 0.0, %v6486
    %v6488 = vpop.f32.mrb[0].mxu0
    %6489 = vmatprep.mubr.bf16.mxu0 0
    %6490 = vmatmul.mubr.bf16.gmra.mrb[0].mxu0 %v6420
    %v6491 = vpop.f32.mrb[0].mxu0
    %v6492 = vadd.f32 0.0, %v6491
    %v6493 = vpop.f32.mrb[0].mxu0
    %v6494 = vpop.f32.mrb[0].mxu0
    %v6495 = vadd.f32 0.0, %v6494
    %v6496 = vpop.f32.mrb[0].mxu0
    %6497 = vmatprep.mubr.bf16.mxu0 0
    %6498 = vmatmul.mubr.bf16.gmra.mrb[0].mxu0 %v6423
    %v6499 = vpop.f32.mrb[0].mxu0
    %v6500 = vadd.f32 0.0, %v6499
    %v6501 = vpop.f32.mrb[0].mxu0
    %v6502 = vpop.f32.mrb[0].mxu0
    %v6503 = vpop.f32.mrb[0].mxu0
    %6504 = vdwg.mxu0
    %v6505 = vadd.f32 %v6209, %v6460
    %v6506 = vadd.f32 %v6212, %v6463
    %v6507 = vadd.f32 %v6217, %v6468
    %v6508 = vadd.f32 %v6220, %v6471
    %v6509 = vadd.f32 %v6225, %v6476
    %v6510 = vadd.f32 %v6228, %v6479
    %v6511 = vadd.f32 %v6233, %v6484
    %v6512 = vadd.f32 %v6236, %v6487
    %v6513 = vadd.f32 %v6241, %v6492
    %v6514 = vadd.f32 %v6244, %v6495
    %v6515 = vadd.f32 %v6249, %v6500
    %s6516 = scalar_lea.vmem %s95, 132
    %v6517 = vld [vmem:[%s6516] sm:$0xf]
    %v6518 = vld [vmem:[%s6516 + $0x4] sm:$0xf]
    %v6519 = vld [vmem:[%s6516 + $0x8] sm:$0xf]
    %v6520 = vld [vmem:[%s6516 + $0xc] sm:$0xf]
    %v6521 = vld [vmem:[%s6516 + $0x10] sm:$0xf]
    %v6522 = vld [vmem:[%s6516 + $0x14] sm:$0xf]
    %v6523 = vld [vmem:[%s6516 + $0x18] sm:$0xf]
    %v6524 = vld [vmem:[%s6516 + $0x1c] sm:$0xf]
    %v6525 = vld [vmem:[%s6516 + $0x20] sm:$0xf]
    %v6526 = vld [vmem:[%s6516 + $0x24] sm:$0xf]
    %v6527 = vld [vmem:[%s6516 + $0x28] sm:$0x3]
    %v6539 = vunpack.c.l.b16 %v6517
    %v6540 = vunpack.c.l.b16 %v6518
    %v6541 = vunpack.c.l.b16 %v6519
    %v6542 = vunpack.c.l.b16 %v6520
    %v6543 = vunpack.c.l.b16 %v6521
    %v6544 = vunpack.c.l.b16 %v6522
    %v6545 = vunpack.c.l.b16 %v6523
    %v6546 = vunpack.c.l.b16 %v6524
    %v6547 = vunpack.c.l.b16 %v6525
    %v6548 = vunpack.c.l.b16 %v6526
    %v6549 = vunpack.c.l.b16 %v6527
    %v6550 = vpack.c.b16 %v6540, %v6539
    %v6551 = vpack.c.b16 %v6542, %v6541
    %v6552 = vpack.c.b16 %v6544, %v6543
    %v6553 = vpack.c.b16 %v6546, %v6545
    %v6554 = vpack.c.b16 %v6548, %v6547
    %v6555 = vpack.c.b16 %v6549, %v6549
    %v6557 = vsel %vm1214, %v6550, 0
    %v6560 = vsel %vm1214, %v6551, 0
    %v6563 = vsel %vm1214, %v6552, 0
    %v6566 = vsel %vm1214, %v6553, 0
    %v6569 = vsel %vm1214, %v6554, 0
    %v6572 = vsel %vm1214, %v6555, 0
    %6574 = vmatprep.subr.bf16.mxu0 0
    %6575 = vmatpush1.bf16.msra.mxu0 %v5748
    %6576 = vmatprep.subr.bf16.mxu0 0
    %6577 = vmatpush1.bf16.msra.mxu0 %v5749
    %6578 = vmatprep.subr.bf16.mxu0 0
    %6579 = vmatpush1.bf16.msra.mxu0 %v5809
    %6580 = vmatprep.subr.bf16.mxu0 0
    %6581 = vmatpush1.bf16.msra.mxu0 0
    %6582 = vmatprep.subr.bf16.mxu0 0
    %6583 = vmatpush1.bf16.msra.mxu0 0
    %6584 = vmatprep.subr.bf16.mxu0 0
    %6585 = vmatpush1.bf16.msra.mxu0 0
    %6586 = vmatprep.subr.bf16.mxu0 0
    %6587 = vmatpush1.bf16.msra.mxu0 0
    %6588 = vmatprep.subr.bf16.mxu0 0
    %6589 = vmatpush1.bf16.msra.mxu0 0
    %6590 = vmatprep.subr.bf16.mxu0 0
    %6591 = vmatpush1.bf16.msra.mxu0 0
    %6592 = vmatprep.subr.bf16.mxu0 0
    %6593 = vmatpush1.bf16.msra.mxu0 0
    %6594 = vmatprep.subr.bf16.mxu0 0
    %6595 = vmatpush1.bf16.msra.mxu0 0
    %6596 = vmatprep.subr.bf16.mxu0 0
    %6597 = vmatpush1.bf16.msra.mxu0 0
    %6598 = vmatprep.subr.bf16.mxu0 0
    %6599 = vmatpush1.bf16.msra.mxu0 0
    %6600 = vmatprep.subr.bf16.mxu0 0
    %6601 = vmatpush1.bf16.msra.mxu0 0
    %6602 = vmatprep.subr.bf16.mxu0 0
    %6603 = vmatpush1.bf16.msra.mxu0 0
    %6604 = vmatprep.subr.bf16.mxu0 0
    %6605 = vmatpush1.bf16.msra.mxu0 0
    %6606 = vmatprep.mubr.bf16.mxu0 0
    %6607 = vmatmul.mubr.bf16.gmra.mrb[0].mxu0 %v6557
    %v6608 = vpop.f32.mrb[0].mxu0
    %v6609 = vadd.f32 0.0, %v6608
    %v6610 = vpop.f32.mrb[0].mxu0
    %v6611 = vpop.f32.mrb[0].mxu0
    %v6612 = vadd.f32 0.0, %v6611
    %v6613 = vpop.f32.mrb[0].mxu0
    %6614 = vmatprep.mubr.bf16.mxu0 0
    %6615 = vmatmul.mubr.bf16.gmra.mrb[0].mxu0 %v6560
    %v6616 = vpop.f32.mrb[0].mxu0
    %v6617 = vadd.f32 0.0, %v6616
    %v6618 = vpop.f32.mrb[0].mxu0
    %v6619 = vpop.f32.mrb[0].mxu0
    %v6620 = vadd.f32 0.0, %v6619
    %v6621 = vpop.f32.mrb[0].mxu0
    %6622 = vmatprep.mubr.bf16.mxu0 0
    %6623 = vmatmul.mubr.bf16.gmra.mrb[0].mxu0 %v6563
    %v6624 = vpop.f32.mrb[0].mxu0
    %v6625 = vadd.f32 0.0, %v6624
    %v6626 = vpop.f32.mrb[0].mxu0
    %v6627 = vpop.f32.mrb[0].mxu0
    %v6628 = vadd.f32 0.0, %v6627
    %v6629 = vpop.f32.mrb[0].mxu0
    %6630 = vmatprep.mubr.bf16.mxu0 0
    %6631 = vmatmul.mubr.bf16.gmra.mrb[0].mxu0 %v6566
    %v6632 = vpop.f32.mrb[0].mxu0
    %v6633 = vadd.f32 0.0, %v6632
    %v6634 = vpop.f32.mrb[0].mxu0
    %v6635 = vpop.f32.mrb[0].mxu0
    %v6636 = vadd.f32 0.0, %v6635
    %v6637 = vpop.f32.mrb[0].mxu0
    %6638 = vmatprep.mubr.bf16.mxu0 0
    %6639 = vmatmul.mubr.bf16.gmra.mrb[0].mxu0 %v6569
    %v6640 = vpop.f32.mrb[0].mxu0
    %v6641 = vadd.f32 0.0, %v6640
    %v6642 = vpop.f32.mrb[0].mxu0
    %v6643 = vpop.f32.mrb[0].mxu0
    %v6644 = vadd.f32 0.0, %v6643
    %v6645 = vpop.f32.mrb[0].mxu0
    %6646 = vmatprep.mubr.bf16.mxu0 0
    %6647 = vmatmul.mubr.bf16.gmra.mrb[0].mxu0 %v6572
    %v6648 = vpop.f32.mrb[0].mxu0
    %v6649 = vadd.f32 0.0, %v6648
    %v6650 = vpop.f32.mrb[0].mxu0
    %v6651 = vpop.f32.mrb[0].mxu0
    %v6652 = vpop.f32.mrb[0].mxu0
    %6653 = vdwg.mxu0
    %v6654 = vpack.c.bf16 %v6612, %v6609
    %v6655 = vpack.c.bf16 %v6620, %v6617
    %v6656 = vpack.c.bf16 %v6628, %v6625
    %v6657 = vpack.c.bf16 %v6636, %v6633
    %v6658 = vpack.c.bf16 %v6644, %v6641
    %v6659 = vpack.c.bf16 %v6649, %v6649
    %s6660 = scalar_lea.vmem %s97, 24
    %v6661 = vld [vmem:[%s6660] sm:$0xf]
    %v6662 = vld [vmem:[%s6660 + $0x4] sm:$0xf]
    %v6665 = vunpack.c.l.b16 %v6661
    %v6666 = vunpack.c.l.b16 %v6662
    %v6667 = vpack.c.b16 %v6666, %v6665
    %v6670 = vsel %vm1113, %v6654, 0
    %v6673 = vsel %vm1113, %v6655, 0
    %v6676 = vsel %vm1113, %v6656, 0
    %v6679 = vsel %vm1113, %v6657, 0
    %v6682 = vsel %vm1113, %v6658, 0
    %v6685 = vsel %vm1113, %v6659, 0
    %6687 = vmatprep.subr.bf16.mxu0 0
    %6688 = vmatpush1.bf16.msra.mxu0 %v6667
    %6689 = vmatprep.subr.bf16.mxu0 0
    %6690 = vmatpush1.bf16.msra.mxu0 0
    %6691 = vmatprep.subr.bf16.mxu0 0
    %6692 = vmatpush1.bf16.msra.mxu0 0
    %6693 = vmatprep.subr.bf16.mxu0 0
    %6694 = vmatpush1.bf16.msra.mxu0 0
    %6695 = vmatprep.subr.bf16.mxu0 0
    %6696 = vmatpush1.bf16.msra.mxu0 0
    %6697 = vmatprep.subr.bf16.mxu0 0
    %6698 = vmatpush1.bf16.msra.mxu0 0
    %6699 = vmatprep.subr.bf16.mxu0 0
    %6700 = vmatpush1.bf16.msra.mxu0 0
    %6701 = vmatprep.subr.bf16.mxu0 0
    %6702 = vmatpush1.bf16.msra.mxu0 0
    %6703 = vmatprep.subr.bf16.mxu0 0
    %6704 = vmatpush1.bf16.msra.mxu0 0
    %6705 = vmatprep.subr.bf16.mxu0 0
    %6706 = vmatpush1.bf16.msra.mxu0 0
    %6707 = vmatprep.subr.bf16.mxu0 0
    %6708 = vmatpush1.bf16.msra.mxu0 0
    %6709 = vmatprep.subr.bf16.mxu0 0
    %6710 = vmatpush1.bf16.msra.mxu0 0
    %6711 = vmatprep.subr.bf16.mxu0 0
    %6712 = vmatpush1.bf16.msra.mxu0 0
    %6713 = vmatprep.subr.bf16.mxu0 0
    %6714 = vmatpush1.bf16.msra.mxu0 0
    %6715 = vmatprep.subr.bf16.mxu0 0
    %6716 = vmatpush1.bf16.msra.mxu0 0
    %6717 = vmatprep.subr.bf16.mxu0 0
    %6718 = vmatpush1.bf16.msra.mxu0 0
    %6719 = vmatprep.mubr.bf16.mxu0 0
    %6720 = vmatmul.mubr.bf16.gmra.mrb[0].mxu0 %v6670
    %v6721 = vpop.f32.mrb[0].mxu0
    %v6722 = vadd.f32 0.0, %v6721
    %v6723 = vpop.f32.mrb[0].mxu0
    %v6724 = vpop.f32.mrb[0].mxu0
    %v6725 = vadd.f32 0.0, %v6724
    %v6726 = vpop.f32.mrb[0].mxu0
    %6727 = vmatprep.mubr.bf16.mxu0 0
    %6728 = vmatmul.mubr.bf16.gmra.mrb[0].mxu0 %v6673
    %v6729 = vpop.f32.mrb[0].mxu0
    %v6730 = vadd.f32 0.0, %v6729
    %v6731 = vpop.f32.mrb[0].mxu0
    %v6732 = vpop.f32.mrb[0].mxu0
    %v6733 = vadd.f32 0.0, %v6732
    %v6734 = vpop.f32.mrb[0].mxu0
    %6735 = vmatprep.mubr.bf16.mxu0 0
    %6736 = vmatmul.mubr.bf16.gmra.mrb[0].mxu0 %v6676
    %v6737 = vpop.f32.mrb[0].mxu0
    %v6738 = vadd.f32 0.0, %v6737
    %v6739 = vpop.f32.mrb[0].mxu0
    %v6740 = vpop.f32.mrb[0].mxu0
    %v6741 = vadd.f32 0.0, %v6740
    %v6742 = vpop.f32.mrb[0].mxu0
    %6743 = vmatprep.mubr.bf16.mxu0 0
    %6744 = vmatmul.mubr.bf16.gmra.mrb[0].mxu0 %v6679
    %v6745 = vpop.f32.mrb[0].mxu0
    %v6746 = vadd.f32 0.0, %v6745
    %v6747 = vpop.f32.mrb[0].mxu0
    %v6748 = vpop.f32.mrb[0].mxu0
    %v6749 = vadd.f32 0.0, %v6748
    %v6750 = vpop.f32.mrb[0].mxu0
    %6751 = vmatprep.mubr.bf16.mxu0 0
    %6752 = vmatmul.mubr.bf16.gmra.mrb[0].mxu0 %v6682
    %v6753 = vpop.f32.mrb[0].mxu0
    %v6754 = vadd.f32 0.0, %v6753
    %v6755 = vpop.f32.mrb[0].mxu0
    %v6756 = vpop.f32.mrb[0].mxu0
    %v6757 = vadd.f32 0.0, %v6756
    %v6758 = vpop.f32.mrb[0].mxu0
    %6759 = vmatprep.mubr.bf16.mxu0 0
    %6760 = vmatmul.mubr.bf16.gmra.mrb[0].mxu0 %v6685
    %v6761 = vpop.f32.mrb[0].mxu0
    %v6762 = vadd.f32 0.0, %v6761
    %v6763 = vpop.f32.mrb[0].mxu0
    %v6764 = vpop.f32.mrb[0].mxu0
    %v6765 = vpop.f32.mrb[0].mxu0
    %6766 = vdwg.mxu0
    %v6767 = vadd.f32 %v6505, %v6722
    %v6768 = vadd.f32 %v6506, %v6725
    %v6769 = vadd.f32 %v6507, %v6730
    %v6770 = vadd.f32 %v6508, %v6733
    %v6771 = vadd.f32 %v6509, %v6738
    %v6772 = vadd.f32 %v6510, %v6741
    %v6773 = vadd.f32 %v6511, %v6746
    %v6774 = vadd.f32 %v6512, %v6749
    %v6775 = vadd.f32 %v6513, %v6754
    %v6776 = vadd.f32 %v6514, %v6757
    %v6777 = vadd.f32 %v6515, %v6762
    %v6778 = vld [vmem:[#allocation37] sm:$0x1]
    %v6780 = vlaneseq
    %v6781 = vshrl.u32 %v6780, 7
    %v6782 = vsub.s32 0, %v6781
    %v6783 = vrot.slane %v6778, %v6782
    %v6785 = vadd.f32 %v6767, %v6783
    %v6786 = vadd.f32 %v6768, %v6783
    %v6787 = vadd.f32 %v6769, %v6783
    %v6788 = vadd.f32 %v6770, %v6783
    %v6789 = vadd.f32 %v6771, %v6783
    %v6790 = vadd.f32 %v6772, %v6783
    %v6791 = vadd.f32 %v6773, %v6783
    %v6792 = vadd.f32 %v6774, %v6783
    %v6793 = vadd.f32 %v6775, %v6783
    %v6794 = vadd.f32 %v6776, %v6783
    %v6795 = vadd.f32 %v6777, %v6783
    %v6796 = vmax.f32 %v6785, 0.0
    %v6797 = vmax.f32 %v6786, 0.0
    %v6798 = vmax.f32 %v6787, 0.0
    %v6799 = vmax.f32 %v6788, 0.0
    %v6800 = vmax.f32 %v6789, 0.0
    %v6801 = vmax.f32 %v6790, 0.0
    %v6802 = vmax.f32 %v6791, 0.0
    %v6803 = vmax.f32 %v6792, 0.0
    %v6804 = vmax.f32 %v6793, 0.0
    %v6805 = vmax.f32 %v6794, 0.0
    %v6806 = vmax.f32 %v6795, 0.0
    %v6807 = vsel %vm786, %v6796, 0.0
    %v6808 = vsel %vm786, %v6797, 0.0
    %v6809 = vadd.f32 %v6807, %v6808
    %v6810 = vsel %vm786, %v6798, 0.0
    %v6811 = vadd.f32 %v6809, %v6810
    %v6812 = vsel %vm786, %v6799, 0.0
    %v6813 = vadd.f32 %v6811, %v6812
    %v6814 = vsel %vm786, %v6800, 0.0
    %v6815 = vadd.f32 %v6813, %v6814
    %v6816 = vsel %vm786, %v6801, 0.0
    %v6817 = vadd.f32 %v6815, %v6816
    %v6818 = vsel %vm786, %v6802, 0.0
    %v6819 = vadd.f32 %v6817, %v6818
    %v6820 = vsel %vm786, %v6803, 0.0
    %v6821 = vadd.f32 %v6819, %v6820
    %v6822 = vsel %vm786, %v6804, 0.0
    %v6823 = vadd.f32 %v6821, %v6822
    %v6824 = vsel %vm786, %v6805, 0.0
    %v6825 = vadd.f32 %v6823, %v6824
    %vm6826 = vcmask 60416
    %v6827 = vsel %vm6826, %v6806, 0.0
    %v6828 = vadd.f32 %v6825, %v6827
    %v6829 = vrot.slane %v6828, 4
    %v6830 = vadd.f32 %v6828, %v6829
    %v6831 = vrot.slane %v6830, 2
    %v6832 = vadd.f32 %v6830, %v6831
    %v6833 = vrot.slane %v6832, 1
    %v6834 = vadd.f32 %v6832, %v6833
    %v6835 = vmul.f32 %v6834, 0.011904762
    %v6836 = vmul.f32 %v6796, %v6796
    %v6837 = vmul.f32 %v6797, %v6797
    %v6838 = vmul.f32 %v6798, %v6798
    %v6839 = vmul.f32 %v6799, %v6799
    %v6840 = vmul.f32 %v6800, %v6800
    %v6841 = vmul.f32 %v6801, %v6801
    %v6842 = vmul.f32 %v6802, %v6802
    %v6843 = vmul.f32 %v6803, %v6803
    %v6844 = vmul.f32 %v6804, %v6804
    %v6845 = vmul.f32 %v6805, %v6805
    %v6846 = vmul.f32 %v6806, %v6806
    %v6847 = vsel %vm786, %v6836, 0.0
    %v6848 = vsel %vm786, %v6837, 0.0
    %v6849 = vadd.f32 %v6847, %v6848
    %v6850 = vsel %vm786, %v6838, 0.0
    %v6851 = vadd.f32 %v6849, %v6850
    %v6852 = vsel %vm786, %v6839, 0.0
    %v6853 = vadd.f32 %v6851, %v6852
    %v6854 = vsel %vm786, %v6840, 0.0
    %v6855 = vadd.f32 %v6853, %v6854
    %v6856 = vsel %vm786, %v6841, 0.0
    %v6857 = vadd.f32 %v6855, %v6856
    %v6858 = vsel %vm786, %v6842, 0.0
    %v6859 = vadd.f32 %v6857, %v6858
    %v6860 = vsel %vm786, %v6843, 0.0
    %v6861 = vadd.f32 %v6859, %v6860
    %v6862 = vsel %vm786, %v6844, 0.0
    %v6863 = vadd.f32 %v6861, %v6862
    %v6864 = vsel %vm786, %v6845, 0.0
    %v6865 = vadd.f32 %v6863, %v6864
    %v6866 = vsel %vm6826, %v6846, 0.0
    %v6867 = vadd.f32 %v6865, %v6866
    %v6868 = vrot.slane %v6867, 4
    %v6869 = vadd.f32 %v6867, %v6868
    %v6870 = vrot.slane %v6869, 2
    %v6871 = vadd.f32 %v6869, %v6870
    %v6872 = vrot.slane %v6871, 1
    %v6873 = vadd.f32 %v6871, %v6872
    %v6874 = vmul.f32 %v6873, 0.011904762
    %v6875 = vmul.f32 %v6835, %v6835
    %v6876 = vsub.f32 %v6874, %v6875
    %v6877 = vmax.f32 %v6876, 0.0
    %v6878 = vsub.f32 %v6796, %v6835
    %v6879 = vsub.f32 %v6797, %v6835
    %v6880 = vsub.f32 %v6798, %v6835
    %v6881 = vsub.f32 %v6799, %v6835
    %v6882 = vsub.f32 %v6800, %v6835
    %v6883 = vsub.f32 %v6801, %v6835
    %v6884 = vsub.f32 %v6802, %v6835
    %v6885 = vsub.f32 %v6803, %v6835
    %v6886 = vsub.f32 %v6804, %v6835
    %v6887 = vsub.f32 %v6805, %v6835
    %v6888 = vsub.f32 %v6806, %v6835
    %v6889 = vadd.f32 %v6877, 1e-05
    %v6890 = vrsqrt.pop %v6889
    %v6891 = vmul.f32 %v6878, %v6890
    %v6892 = vmul.f32 %v6879, %v6890
    %v6893 = vmul.f32 %v6880, %v6890
    %v6894 = vmul.f32 %v6881, %v6890
    %v6895 = vmul.f32 %v6882, %v6890
    %v6896 = vmul.f32 %v6883, %v6890
    %v6897 = vmul.f32 %v6884, %v6890
    %v6898 = vmul.f32 %v6885, %v6890
    %v6899 = vmul.f32 %v6886, %v6890
    %v6900 = vmul.f32 %v6887, %v6890
    %v6901 = vmul.f32 %v6888, %v6890
    %v6902 = vld [vmem:[#allocation39] sm:$0x1]
    %v6904 = vlaneseq
    %v6905 = vshrl.u32 %v6904, 7
    %v6906 = vsub.s32 0, %v6905
    %v6907 = vrot.slane %v6902, %v6906
    %v6909 = vmul.f32 %v6891, %v6907
    %v6910 = vmul.f32 %v6892, %v6907
    %v6911 = vmul.f32 %v6893, %v6907
    %v6912 = vmul.f32 %v6894, %v6907
    %v6913 = vmul.f32 %v6895, %v6907
    %v6914 = vmul.f32 %v6896, %v6907
    %v6915 = vmul.f32 %v6897, %v6907
    %v6916 = vmul.f32 %v6898, %v6907
    %v6917 = vmul.f32 %v6899, %v6907
    %v6918 = vmul.f32 %v6900, %v6907
    %v6919 = vmul.f32 %v6901, %v6907
    %v6920 = vld [vmem:[#allocation40] sm:$0x1]
    %v6922 = vlaneseq
    %v6923 = vshrl.u32 %v6922, 7
    %v6924 = vsub.s32 0, %v6923
    %v6925 = vrot.slane %v6920, %v6924
    %v6927 = vadd.f32 %v6909, %v6925
    %v6928 = vadd.f32 %v6910, %v6925
    %v6929 = vadd.f32 %v6911, %v6925
    %v6930 = vadd.f32 %v6912, %v6925
    %v6931 = vadd.f32 %v6913, %v6925
    %v6932 = vadd.f32 %v6914, %v6925
    %v6933 = vadd.f32 %v6915, %v6925
    %v6934 = vadd.f32 %v6916, %v6925
    %v6935 = vadd.f32 %v6917, %v6925
    %v6936 = vadd.f32 %v6918, %v6925
    %v6937 = vadd.f32 %v6919, %v6925
    %v6938 = vpack.c.bf16 %v6928, %v6927
    %v6939 = vpack.c.bf16 %v6930, %v6929
    %v6940 = vpack.c.bf16 %v6932, %v6931
    %v6941 = vpack.c.bf16 %v6934, %v6933
    %v6942 = vpack.c.bf16 %v6936, %v6935
    %v6943 = vpack.c.bf16 %v6937, %v6937
    %v6944 = vld [vmem:[%s105] sm:$0xf]
    %v6945 = vld [vmem:[%s105 + $0x4] sm:$0xf]
    %v6946 = vld [vmem:[%s105 + $0x8] sm:$0xf]
    %v6947 = vld [vmem:[%s105 + $0xc] sm:$0xf]
    %v6948 = vld [vmem:[%s105 + $0x10] sm:$0xf]
    %v6949 = vld [vmem:[%s105 + $0x14] sm:$0xf]
    %v6950 = vld [vmem:[%s105 + $0x18] sm:$0xf]
    %v6951 = vld [vmem:[%s105 + $0x1c] sm:$0xf]
    %v6952 = vld [vmem:[%s105 + $0x20] sm:$0xf]
    %v6953 = vld [vmem:[%s105 + $0x24] sm:$0xf]
    %v6954 = vld [vmem:[%s105 + $0x28] sm:$0x3]
    %v6966 = vunpack.c.l.b16 %v6944
    %v6967 = vunpack.c.l.b16 %v6945
    %v6968 = vunpack.c.l.b16 %v6946
    %v6969 = vunpack.c.l.b16 %v6947
    %v6970 = vunpack.c.l.b16 %v6948
    %v6971 = vunpack.c.l.b16 %v6949
    %v6972 = vunpack.c.l.b16 %v6950
    %v6973 = vunpack.c.l.b16 %v6951
    %v6974 = vunpack.c.l.b16 %v6952
    %v6975 = vunpack.c.l.b16 %v6953
    %v6976 = vunpack.c.l.b16 %v6954
    %v6977 = vpack.c.b16 %v6967, %v6966
    %v6978 = vpack.c.b16 %v6969, %v6968
    %v6979 = vpack.c.b16 %v6971, %v6970
    %v6980 = vpack.c.b16 %v6973, %v6972
    %v6981 = vpack.c.b16 %v6975, %v6974
    %v6982 = vpack.c.b16 %v6976, %v6976
    %v6984 = vsel %vm618, %v6977, 0
    %v6987 = vsel %vm618, %v6978, 0
    %v6990 = vsel %vm618, %v6979, 0
    %v6993 = vsel %vm618, %v6980, 0
    %v6996 = vsel %vm618, %v6981, 0
    %v6999 = vsel %vm618, %v6982, 0
    %v7002 = vsel %vm628, %v6943, 0
    %7004 = vmatprep.subr.bf16.mxu0 0
    %7005 = vmatpush1.bf16.msra.mxu0 %v6938
    %7006 = vmatprep.subr.bf16.mxu0 0
    %7007 = vmatpush1.bf16.msra.mxu0 %v6939
    %7008 = vmatprep.subr.bf16.mxu0 0
    %7009 = vmatpush1.bf16.msra.mxu0 %v6940
    %7010 = vmatprep.subr.bf16.mxu0 0
    %7011 = vmatpush1.bf16.msra.mxu0 %v6941
    %7012 = vmatprep.subr.bf16.mxu0 0
    %7013 = vmatpush1.bf16.msra.mxu0 %v6942
    %7014 = vmatprep.subr.bf16.mxu0 0
    %7015 = vmatpush1.bf16.msra.mxu0 %v7002
    %7016 = vmatprep.subr.bf16.mxu0 0
    %7017 = vmatpush1.bf16.msra.mxu0 0
    %7018 = vmatprep.subr.bf16.mxu0 0
    %7019 = vmatpush1.bf16.msra.mxu0 0
    %7020 = vmatprep.subr.bf16.mxu0 0
    %7021 = vmatpush1.bf16.msra.mxu0 0
    %7022 = vmatprep.subr.bf16.mxu0 0
    %7023 = vmatpush1.bf16.msra.mxu0 0
    %7024 = vmatprep.subr.bf16.mxu0 0
    %7025 = vmatpush1.bf16.msra.mxu0 0
    %7026 = vmatprep.subr.bf16.mxu0 0
    %7027 = vmatpush1.bf16.msra.mxu0 0
    %7028 = vmatprep.subr.bf16.mxu0 0
    %7029 = vmatpush1.bf16.msra.mxu0 0
    %7030 = vmatprep.subr.bf16.mxu0 0
    %7031 = vmatpush1.bf16.msra.mxu0 0
    %7032 = vmatprep.subr.bf16.mxu0 0
    %7033 = vmatpush1.bf16.msra.mxu0 0
    %7034 = vmatprep.subr.bf16.mxu0 0
    %7035 = vmatpush1.bf16.msra.mxu0 0
    %7036 = vmatprep.mubr.bf16.mxu0 0
    %7037 = vmatmul.mubr.bf16.gmra.mrb[0].mxu0 %v6984
    %v7038 = vpop.f32.mrb[0].mxu0
    %v7039 = vadd.f32 0.0, %v7038
    %v7040 = vpop.f32.mrb[0].mxu0
    %v7041 = vpop.f32.mrb[0].mxu0
    %v7042 = vadd.f32 0.0, %v7041
    %v7043 = vpop.f32.mrb[0].mxu0
    %7044 = vmatprep.mubr.bf16.mxu0 0
    %7045 = vmatmul.mubr.bf16.gmra.mrb[0].mxu0 %v6987
    %v7046 = vpop.f32.mrb[0].mxu0
    %v7047 = vadd.f32 0.0, %v7046
    %v7048 = vpop.f32.mrb[0].mxu0
    %v7049 = vpop.f32.mrb[0].mxu0
    %v7050 = vadd.f32 0.0, %v7049
    %v7051 = vpop.f32.mrb[0].mxu0
    %7052 = vmatprep.mubr.bf16.mxu0 0
    %7053 = vmatmul.mubr.bf16.gmra.mrb[0].mxu0 %v6990
    %v7054 = vpop.f32.mrb[0].mxu0
    %v7055 = vadd.f32 0.0, %v7054
    %v7056 = vpop.f32.mrb[0].mxu0
    %v7057 = vpop.f32.mrb[0].mxu0
    %v7058 = vadd.f32 0.0, %v7057
    %v7059 = vpop.f32.mrb[0].mxu0
    %7060 = vmatprep.mubr.bf16.mxu0 0
    %7061 = vmatmul.mubr.bf16.gmra.mrb[0].mxu0 %v6993
    %v7062 = vpop.f32.mrb[0].mxu0
    %v7063 = vadd.f32 0.0, %v7062
    %v7064 = vpop.f32.mrb[0].mxu0
    %v7065 = vpop.f32.mrb[0].mxu0
    %v7066 = vadd.f32 0.0, %v7065
    %v7067 = vpop.f32.mrb[0].mxu0
    %7068 = vmatprep.mubr.bf16.mxu0 0
    %7069 = vmatmul.mubr.bf16.gmra.mrb[0].mxu0 %v6996
    %v7070 = vpop.f32.mrb[0].mxu0
    %v7071 = vadd.f32 0.0, %v7070
    %v7072 = vpop.f32.mrb[0].mxu0
    %v7073 = vpop.f32.mrb[0].mxu0
    %v7074 = vadd.f32 0.0, %v7073
    %v7075 = vpop.f32.mrb[0].mxu0
    %7076 = vmatprep.mubr.bf16.mxu0 0
    %7077 = vmatmul.mubr.bf16.gmra.mrb[0].mxu0 %v6999
    %v7078 = vpop.f32.mrb[0].mxu0
    %v7079 = vadd.f32 0.0, %v7078
    %v7080 = vpop.f32.mrb[0].mxu0
    %v7081 = vpop.f32.mrb[0].mxu0
    %v7082 = vpop.f32.mrb[0].mxu0
    %7083 = vdwg.mxu0
    %v7084 = vpack.c.bf16 %v7042, %v7039
    %v7085 = vpack.c.bf16 %v7050, %v7047
    %v7086 = vpack.c.bf16 %v7058, %v7055
    %v7087 = vpack.c.bf16 %v7066, %v7063
    %v7088 = vpack.c.bf16 %v7074, %v7071
    %v7089 = vpack.c.bf16 %v7079, %v7079
    %v7090 = vld [vmem:[#allocation42] sm:$0xf]
    %s7091 = scalar_lea.vmem %s105, 44
    %v7092 = vld [vmem:[%s7091] sm:$0xf]
    %v7093 = vld [vmem:[%s7091 + $0x4] sm:$0xf]
    %v7094 = vld [vmem:[%s7091 + $0x8] sm:$0xf]
    %v7095 = vld [vmem:[%s7091 + $0xc] sm:$0xf]
    %v7096 = vld [vmem:[%s7091 + $0x10] sm:$0xf]
    %v7097 = vld [vmem:[%s7091 + $0x14] sm:$0xf]
    %v7098 = vld [vmem:[%s7091 + $0x18] sm:$0xf]
    %v7099 = vld [vmem:[%s7091 + $0x1c] sm:$0xf]
    %v7100 = vld [vmem:[%s7091 + $0x20] sm:$0xf]
    %v7101 = vld [vmem:[%s7091 + $0x24] sm:$0xf]
    %v7102 = vld [vmem:[%s7091 + $0x28] sm:$0x3]
    %v7114 = vunpack.c.l.b16 %v7092
    %v7115 = vunpack.c.l.b16 %v7093
    %v7116 = vunpack.c.l.b16 %v7094
    %v7117 = vunpack.c.l.b16 %v7095
    %v7118 = vunpack.c.l.b16 %v7096
    %v7119 = vunpack.c.l.b16 %v7097
    %v7120 = vunpack.c.l.b16 %v7098
    %v7121 = vunpack.c.l.b16 %v7099
    %v7122 = vunpack.c.l.b16 %v7100
    %v7123 = vunpack.c.l.b16 %v7101
    %v7124 = vunpack.c.l.b16 %v7102
    %v7125 = vpack.c.b16 %v7115, %v7114
    %v7126 = vpack.c.b16 %v7117, %v7116
    %v7127 = vpack.c.b16 %v7119, %v7118
    %v7128 = vpack.c.b16 %v7121, %v7120
    %v7129 = vpack.c.b16 %v7123, %v7122
    %v7130 = vpack.c.b16 %v7124, %v7124
    %v7132 = vsel %vm618, %v7125, 0
    %v7135 = vsel %vm618, %v7126, 0
    %v7138 = vsel %vm618, %v7127, 0
    %v7141 = vsel %vm618, %v7128, 0
    %v7144 = vsel %vm618, %v7129, 0
    %v7147 = vsel %vm618, %v7130, 0
    %7149 = vmatprep.subr.bf16.mxu0 0
    %7150 = vmatpush1.bf16.msra.mxu0 %v6938
    %7151 = vmatprep.subr.bf16.mxu0 0
    %7152 = vmatpush1.bf16.msra.mxu0 %v6939
    %7153 = vmatprep.subr.bf16.mxu0 0
    %7154 = vmatpush1.bf16.msra.mxu0 %v6940
    %7155 = vmatprep.subr.bf16.mxu0 0
    %7156 = vmatpush1.bf16.msra.mxu0 %v6941
    %7157 = vmatprep.subr.bf16.mxu0 0
    %7158 = vmatpush1.bf16.msra.mxu0 %v6942
    %7159 = vmatprep.subr.bf16.mxu0 0
    %7160 = vmatpush1.bf16.msra.mxu0 %v7002
    %7161 = vmatprep.subr.bf16.mxu0 0
    %7162 = vmatpush1.bf16.msra.mxu0 0
    %7163 = vmatprep.subr.bf16.mxu0 0
    %7164 = vmatpush1.bf16.msra.mxu0 0
    %7165 = vmatprep.subr.bf16.mxu0 0
    %7166 = vmatpush1.bf16.msra.mxu0 0
    %7167 = vmatprep.subr.bf16.mxu0 0
    %7168 = vmatpush1.bf16.msra.mxu0 0
    %7169 = vmatprep.subr.bf16.mxu0 0
    %7170 = vmatpush1.bf16.msra.mxu0 0
    %7171 = vmatprep.subr.bf16.mxu0 0
    %7172 = vmatpush1.bf16.msra.mxu0 0
    %7173 = vmatprep.subr.bf16.mxu0 0
    %7174 = vmatpush1.bf16.msra.mxu0 0
    %7175 = vmatprep.subr.bf16.mxu0 0
    %7176 = vmatpush1.bf16.msra.mxu0 0
    %7177 = vmatprep.subr.bf16.mxu0 0
    %7178 = vmatpush1.bf16.msra.mxu0 0
    %7179 = vmatprep.subr.bf16.mxu0 0
    %7180 = vmatpush1.bf16.msra.mxu0 0
    %7181 = vmatprep.mubr.bf16.mxu0 0
    %7182 = vmatmul.mubr.bf16.gmra.mrb[0].mxu0 %v7132
    %v7183 = vpop.f32.mrb[0].mxu0
    %v7184 = vadd.f32 0.0, %v7183
    %v7185 = vpop.f32.mrb[0].mxu0
    %v7186 = vpop.f32.mrb[0].mxu0
    %v7187 = vadd.f32 0.0, %v7186
    %v7188 = vpop.f32.mrb[0].mxu0
    %7189 = vmatprep.mubr.bf16.mxu0 0
    %7190 = vmatmul.mubr.bf16.gmra.mrb[0].mxu0 %v7135
    %v7191 = vpop.f32.mrb[0].mxu0
    %v7192 = vadd.f32 0.0, %v7191
    %v7193 = vpop.f32.mrb[0].mxu0
    %v7194 = vpop.f32.mrb[0].mxu0
    %v7195 = vadd.f32 0.0, %v7194
    %v7196 = vpop.f32.mrb[0].mxu0
    %7197 = vmatprep.mubr.bf16.mxu0 0
    %7198 = vmatmul.mubr.bf16.gmra.mrb[0].mxu0 %v7138
    %v7199 = vpop.f32.mrb[0].mxu0
    %v7200 = vadd.f32 0.0, %v7199
    %v7201 = vpop.f32.mrb[0].mxu0
    %v7202 = vpop.f32.mrb[0].mxu0
    %v7203 = vadd.f32 0.0, %v7202
    %v7204 = vpop.f32.mrb[0].mxu0
    %7205 = vmatprep.mubr.bf16.mxu0 0
    %7206 = vmatmul.mubr.bf16.gmra.mrb[0].mxu0 %v7141
    %v7207 = vpop.f32.mrb[0].mxu0
    %v7208 = vadd.f32 0.0, %v7207
    %v7209 = vpop.f32.mrb[0].mxu0
    %v7210 = vpop.f32.mrb[0].mxu0
    %v7211 = vadd.f32 0.0, %v7210
    %v7212 = vpop.f32.mrb[0].mxu0
    %7213 = vmatprep.mubr.bf16.mxu0 0
    %7214 = vmatmul.mubr.bf16.gmra.mrb[0].mxu0 %v7144
    %v7215 = vpop.f32.mrb[0].mxu0
    %v7216 = vadd.f32 0.0, %v7215
    %v7217 = vpop.f32.mrb[0].mxu0
    %v7218 = vpop.f32.mrb[0].mxu0
    %v7219 = vadd.f32 0.0, %v7218
    %v7220 = vpop.f32.mrb[0].mxu0
    %7221 = vmatprep.mubr.bf16.mxu0 0
    %7222 = vmatmul.mubr.bf16.gmra.mrb[0].mxu0 %v7147
    %v7223 = vpop.f32.mrb[0].mxu0
    %v7224 = vadd.f32 0.0, %v7223
    %v7225 = vpop.f32.mrb[0].mxu0
    %v7226 = vpop.f32.mrb[0].mxu0
    %v7227 = vpop.f32.mrb[0].mxu0
    %7228 = vdwg.mxu0
    %v7229 = vpack.c.bf16 %v7187, %v7184
    %v7230 = vpack.c.bf16 %v7195, %v7192
    %v7231 = vpack.c.bf16 %v7203, %v7200
    %v7232 = vpack.c.bf16 %v7211, %v7208
    %v7233 = vpack.c.bf16 %v7219, %v7216
    %v7234 = vpack.c.bf16 %v7224, %v7224
    %s7235 = scalar_lea.vmem [#allocation42], 4
    %v7236 = vld [vmem:[%s7235] sm:$0xf]
    %v7238 = vsel %vm786, %v7229, 0
    %v7241 = vsel %vm786, %v7230, 0
    %v7244 = vsel %vm786, %v7231, 0
    %v7247 = vsel %vm786, %v7232, 0
    %v7250 = vsel %vm786, %v7233, 0
    %v7253 = vsel %vm786, %v7234, 0
    %v7256 = vsel %vm796, %v7236, 0
    %7258 = vmatprep.subr.bf16.mxu0 0
    %7259 = vmatpush1.bf16.msra.mxu0 %v7256
    %7260 = vmatprep.subr.bf16.mxu0 0
    %7261 = vmatpush1.bf16.msra.mxu0 0
    %7262 = vmatprep.subr.bf16.mxu0 0
    %7263 = vmatpush1.bf16.msra.mxu0 0
    %7264 = vmatprep.subr.bf16.mxu0 0
    %7265 = vmatpush1.bf16.msra.mxu0 0
    %7266 = vmatprep.subr.bf16.mxu0 0
    %7267 = vmatpush1.bf16.msra.mxu0 0
    %7268 = vmatprep.subr.bf16.mxu0 0
    %7269 = vmatpush1.bf16.msra.mxu0 0
    %7270 = vmatprep.subr.bf16.mxu0 0
    %7271 = vmatpush1.bf16.msra.mxu0 0
    %7272 = vmatprep.subr.bf16.mxu0 0
    %7273 = vmatpush1.bf16.msra.mxu0 0
    %7274 = vmatprep.subr.bf16.mxu0 0
    %7275 = vmatpush1.bf16.msra.mxu0 0
    %7276 = vmatprep.subr.bf16.mxu0 0
    %7277 = vmatpush1.bf16.msra.mxu0 0
    %7278 = vmatprep.subr.bf16.mxu0 0
    %7279 = vmatpush1.bf16.msra.mxu0 0
    %7280 = vmatprep.subr.bf16.mxu0 0
    %7281 = vmatpush1.bf16.msra.mxu0 0
    %7282 = vmatprep.subr.bf16.mxu0 0
    %7283 = vmatpush1.bf16.msra.mxu0 0
    %7284 = vmatprep.subr.bf16.mxu0 0
    %7285 = vmatpush1.bf16.msra.mxu0 0
    %7286 = vmatprep.subr.bf16.mxu0 0
    %7287 = vmatpush1.bf16.msra.mxu0 0
    %7288 = vmatprep.subr.bf16.mxu0 0
    %7289 = vmatpush1.bf16.msra.mxu0 0
    %7290 = vmatprep.mubr.bf16.mxu0 0
    %7291 = vmatmul.mubr.bf16.gmra.mrb[0].mxu0 %v7238
    %v7292 = vpop.f32.mrb[0].mxu0
    %v7293 = vadd.f32 0.0, %v7292
    %v7294 = vpop.f32.mrb[0].mxu0
    %v7295 = vpop.f32.mrb[0].mxu0
    %v7296 = vadd.f32 0.0, %v7295
    %v7297 = vpop.f32.mrb[0].mxu0
    %7298 = vmatprep.mubr.bf16.mxu0 0
    %7299 = vmatmul.mubr.bf16.gmra.mrb[0].mxu0 %v7241
    %v7300 = vpop.f32.mrb[0].mxu0
    %v7301 = vadd.f32 0.0, %v7300
    %v7302 = vpop.f32.mrb[0].mxu0
    %v7303 = vpop.f32.mrb[0].mxu0
    %v7304 = vadd.f32 0.0, %v7303
    %v7305 = vpop.f32.mrb[0].mxu0
    %7306 = vmatprep.mubr.bf16.mxu0 0
    %7307 = vmatmul.mubr.bf16.gmra.mrb[0].mxu0 %v7244
    %v7308 = vpop.f32.mrb[0].mxu0
    %v7309 = vadd.f32 0.0, %v7308
    %v7310 = vpop.f32.mrb[0].mxu0
    %v7311 = vpop.f32.mrb[0].mxu0
    %v7312 = vadd.f32 0.0, %v7311
    %v7313 = vpop.f32.mrb[0].mxu0
    %7314 = vmatprep.mubr.bf16.mxu0 0
    %7315 = vmatmul.mubr.bf16.gmra.mrb[0].mxu0 %v7247
    %v7316 = vpop.f32.mrb[0].mxu0
    %v7317 = vadd.f32 0.0, %v7316
    %v7318 = vpop.f32.mrb[0].mxu0
    %v7319 = vpop.f32.mrb[0].mxu0
    %v7320 = vadd.f32 0.0, %v7319
    %v7321 = vpop.f32.mrb[0].mxu0
    %7322 = vmatprep.mubr.bf16.mxu0 0
    %7323 = vmatmul.mubr.bf16.gmra.mrb[0].mxu0 %v7250
    %v7324 = vpop.f32.mrb[0].mxu0
    %v7325 = vadd.f32 0.0, %v7324
    %v7326 = vpop.f32.mrb[0].mxu0
    %v7327 = vpop.f32.mrb[0].mxu0
    %v7328 = vadd.f32 0.0, %v7327
    %v7329 = vpop.f32.mrb[0].mxu0
    %7330 = vmatprep.mubr.bf16.mxu0 0
    %7331 = vmatmul.mubr.bf16.gmra.mrb[0].mxu0 %v7253
    %v7332 = vpop.f32.mrb[0].mxu0
    %v7333 = vadd.f32 0.0, %v7332
    %v7334 = vpop.f32.mrb[0].mxu0
    %v7335 = vpop.f32.mrb[0].mxu0
    %v7336 = vpop.f32.mrb[0].mxu0
    %7337 = vdwg.mxu0
    %v7339 = vsel %vm786, %v7084, 0
    %v7342 = vsel %vm786, %v7085, 0
    %v7345 = vsel %vm786, %v7086, 0
    %v7348 = vsel %vm786, %v7087, 0
    %v7351 = vsel %vm786, %v7088, 0
    %v7354 = vsel %vm786, %v7089, 0
    %v7357 = vsel %vm796, %v7090, 0
    %7359 = vmatprep.subr.bf16.mxu0 0
    %7360 = vmatpush1.bf16.msra.mxu0 %v7357
    %7361 = vmatprep.subr.bf16.mxu0 0
    %7362 = vmatpush1.bf16.msra.mxu0 0
    %7363 = vmatprep.subr.bf16.mxu0 0
    %7364 = vmatpush1.bf16.msra.mxu0 0
    %7365 = vmatprep.subr.bf16.mxu0 0
    %7366 = vmatpush1.bf16.msra.mxu0 0
    %7367 = vmatprep.subr.bf16.mxu0 0
    %7368 = vmatpush1.bf16.msra.mxu0 0
    %7369 = vmatprep.subr.bf16.mxu0 0
    %7370 = vmatpush1.bf16.msra.mxu0 0
    %7371 = vmatprep.subr.bf16.mxu0 0
    %7372 = vmatpush1.bf16.msra.mxu0 0
    %7373 = vmatprep.subr.bf16.mxu0 0
    %7374 = vmatpush1.bf16.msra.mxu0 0
    %7375 = vmatprep.subr.bf16.mxu0 0
    %7376 = vmatpush1.bf16.msra.mxu0 0
    %7377 = vmatprep.subr.bf16.mxu0 0
    %7378 = vmatpush1.bf16.msra.mxu0 0
    %7379 = vmatprep.subr.bf16.mxu0 0
    %7380 = vmatpush1.bf16.msra.mxu0 0
    %7381 = vmatprep.subr.bf16.mxu0 0
    %7382 = vmatpush1.bf16.msra.mxu0 0
    %7383 = vmatprep.subr.bf16.mxu0 0
    %7384 = vmatpush1.bf16.msra.mxu0 0
    %7385 = vmatprep.subr.bf16.mxu0 0
    %7386 = vmatpush1.bf16.msra.mxu0 0
    %7387 = vmatprep.subr.bf16.mxu0 0
    %7388 = vmatpush1.bf16.msra.mxu0 0
    %7389 = vmatprep.subr.bf16.mxu0 0
    %7390 = vmatpush1.bf16.msra.mxu0 0
    %7391 = vmatprep.mubr.bf16.mxu0 0
    %7392 = vmatmul.mubr.bf16.gmra.mrb[0].mxu0 %v7339
    %v7393 = vpop.f32.mrb[0].mxu0
    %v7394 = vadd.f32 %v7293, %v7393
    %v7395 = vpop.f32.mrb[0].mxu0
    %v7396 = vpop.f32.mrb[0].mxu0
    %v7397 = vadd.f32 %v7296, %v7396
    %v7398 = vpop.f32.mrb[0].mxu0
    %7399 = vmatprep.mubr.bf16.mxu0 0
    %7400 = vmatmul.mubr.bf16.gmra.mrb[0].mxu0 %v7342
    %v7401 = vpop.f32.mrb[0].mxu0
    %v7402 = vadd.f32 %v7301, %v7401
    %v7403 = vpop.f32.mrb[0].mxu0
    %v7404 = vpop.f32.mrb[0].mxu0
    %v7405 = vadd.f32 %v7304, %v7404
    %v7406 = vpop.f32.mrb[0].mxu0
    %7407 = vmatprep.mubr.bf16.mxu0 0
    %7408 = vmatmul.mubr.bf16.gmra.mrb[0].mxu0 %v7345
    %v7409 = vpop.f32.mrb[0].mxu0
    %v7410 = vadd.f32 %v7309, %v7409
    %v7411 = vpop.f32.mrb[0].mxu0
    %v7412 = vpop.f32.mrb[0].mxu0
    %v7413 = vadd.f32 %v7312, %v7412
    %v7414 = vpop.f32.mrb[0].mxu0
    %7415 = vmatprep.mubr.bf16.mxu0 0
    %7416 = vmatmul.mubr.bf16.gmra.mrb[0].mxu0 %v7348
    %v7417 = vpop.f32.mrb[0].mxu0
    %v7418 = vadd.f32 %v7317, %v7417
    %v7419 = vpop.f32.mrb[0].mxu0
    %v7420 = vpop.f32.mrb[0].mxu0
    %v7421 = vadd.f32 %v7320, %v7420
    %v7422 = vpop.f32.mrb[0].mxu0
    %7423 = vmatprep.mubr.bf16.mxu0 0
    %7424 = vmatmul.mubr.bf16.gmra.mrb[0].mxu0 %v7351
    %v7425 = vpop.f32.mrb[0].mxu0
    %v7426 = vadd.f32 %v7325, %v7425
    %v7427 = vpop.f32.mrb[0].mxu0
    %v7428 = vpop.f32.mrb[0].mxu0
    %v7429 = vadd.f32 %v7328, %v7428
    %v7430 = vpop.f32.mrb[0].mxu0
    %7431 = vmatprep.mubr.bf16.mxu0 0
    %7432 = vmatmul.mubr.bf16.gmra.mrb[0].mxu0 %v7354
    %v7433 = vpop.f32.mrb[0].mxu0
    %v7434 = vadd.f32 %v7333, %v7433
    %v7435 = vpop.f32.mrb[0].mxu0
    %v7436 = vpop.f32.mrb[0].mxu0
    %v7437 = vpop.f32.mrb[0].mxu0
    %7438 = vdwg.mxu0
    %s7439 = scalar_lea.vmem %s105, 88
    %v7440 = vld [vmem:[%s7439] sm:$0xf]
    %v7441 = vld [vmem:[%s7439 + $0x4] sm:$0xf]
    %v7442 = vld [vmem:[%s7439 + $0x8] sm:$0xf]
    %v7443 = vld [vmem:[%s7439 + $0xc] sm:$0xf]
    %v7444 = vld [vmem:[%s7439 + $0x10] sm:$0xf]
    %v7445 = vld [vmem:[%s7439 + $0x14] sm:$0xf]
    %v7446 = vld [vmem:[%s7439 + $0x18] sm:$0xf]
    %v7447 = vld [vmem:[%s7439 + $0x1c] sm:$0xf]
    %v7448 = vld [vmem:[%s7439 + $0x20] sm:$0xf]
    %v7449 = vld [vmem:[%s7439 + $0x24] sm:$0xf]
    %v7450 = vld [vmem:[%s7439 + $0x28] sm:$0x3]
    %v7462 = vunpack.c.l.b16 %v7440
    %v7463 = vunpack.c.l.b16 %v7441
    %v7464 = vunpack.c.l.b16 %v7442
    %v7465 = vunpack.c.l.b16 %v7443
    %v7466 = vunpack.c.l.b16 %v7444
    %v7467 = vunpack.c.l.b16 %v7445
    %v7468 = vunpack.c.l.b16 %v7446
    %v7469 = vunpack.c.l.b16 %v7447
    %v7470 = vunpack.c.l.b16 %v7448
    %v7471 = vunpack.c.l.b16 %v7449
    %v7472 = vunpack.c.l.b16 %v7450
    %v7473 = vpack.c.b16 %v7463, %v7462
    %v7474 = vpack.c.b16 %v7465, %v7464
    %v7475 = vpack.c.b16 %v7467, %v7466
    %v7476 = vpack.c.b16 %v7469, %v7468
    %v7477 = vpack.c.b16 %v7471, %v7470
    %v7478 = vpack.c.b16 %v7472, %v7472
    %v7480 = vsel %vm618, %v7473, 0
    %v7483 = vsel %vm618, %v7474, 0
    %v7486 = vsel %vm618, %v7475, 0
    %v7489 = vsel %vm618, %v7476, 0
    %v7492 = vsel %vm618, %v7477, 0
    %v7495 = vsel %vm618, %v7478, 0
    %7497 = vmatprep.subr.bf16.mxu0 0
    %7498 = vmatpush1.bf16.msra.mxu0 %v6938
    %7499 = vmatprep.subr.bf16.mxu0 0
    %7500 = vmatpush1.bf16.msra.mxu0 %v6939
    %7501 = vmatprep.subr.bf16.mxu0 0
    %7502 = vmatpush1.bf16.msra.mxu0 %v6940
    %7503 = vmatprep.subr.bf16.mxu0 0
    %7504 = vmatpush1.bf16.msra.mxu0 %v6941
    %7505 = vmatprep.subr.bf16.mxu0 0
    %7506 = vmatpush1.bf16.msra.mxu0 %v6942
    %7507 = vmatprep.subr.bf16.mxu0 0
    %7508 = vmatpush1.bf16.msra.mxu0 %v7002
    %7509 = vmatprep.subr.bf16.mxu0 0
    %7510 = vmatpush1.bf16.msra.mxu0 0
    %7511 = vmatprep.subr.bf16.mxu0 0
    %7512 = vmatpush1.bf16.msra.mxu0 0
    %7513 = vmatprep.subr.bf16.mxu0 0
    %7514 = vmatpush1.bf16.msra.mxu0 0
    %7515 = vmatprep.subr.bf16.mxu0 0
    %7516 = vmatpush1.bf16.msra.mxu0 0
    %7517 = vmatprep.subr.bf16.mxu0 0
    %7518 = vmatpush1.bf16.msra.mxu0 0
    %7519 = vmatprep.subr.bf16.mxu0 0
    %7520 = vmatpush1.bf16.msra.mxu0 0
    %7521 = vmatprep.subr.bf16.mxu0 0
    %7522 = vmatpush1.bf16.msra.mxu0 0
    %7523 = vmatprep.subr.bf16.mxu0 0
    %7524 = vmatpush1.bf16.msra.mxu0 0
    %7525 = vmatprep.subr.bf16.mxu0 0
    %7526 = vmatpush1.bf16.msra.mxu0 0
    %7527 = vmatprep.subr.bf16.mxu0 0
    %7528 = vmatpush1.bf16.msra.mxu0 0
    %7529 = vmatprep.mubr.bf16.mxu0 0
    %7530 = vmatmul.mubr.bf16.gmra.mrb[0].mxu0 %v7480
    %v7531 = vpop.f32.mrb[0].mxu0
    %v7532 = vadd.f32 0.0, %v7531
    %v7533 = vpop.f32.mrb[0].mxu0
    %v7534 = vpop.f32.mrb[0].mxu0
    %v7535 = vadd.f32 0.0, %v7534
    %v7536 = vpop.f32.mrb[0].mxu0
    %7537 = vmatprep.mubr.bf16.mxu0 0
    %7538 = vmatmul.mubr.bf16.gmra.mrb[0].mxu0 %v7483
    %v7539 = vpop.f32.mrb[0].mxu0
    %v7540 = vadd.f32 0.0, %v7539
    %v7541 = vpop.f32.mrb[0].mxu0
    %v7542 = vpop.f32.mrb[0].mxu0
    %v7543 = vadd.f32 0.0, %v7542
    %v7544 = vpop.f32.mrb[0].mxu0
    %7545 = vmatprep.mubr.bf16.mxu0 0
    %7546 = vmatmul.mubr.bf16.gmra.mrb[0].mxu0 %v7486
    %v7547 = vpop.f32.mrb[0].mxu0
    %v7548 = vadd.f32 0.0, %v7547
    %v7549 = vpop.f32.mrb[0].mxu0
    %v7550 = vpop.f32.mrb[0].mxu0
    %v7551 = vadd.f32 0.0, %v7550
    %v7552 = vpop.f32.mrb[0].mxu0
    %7553 = vmatprep.mubr.bf16.mxu0 0
    %7554 = vmatmul.mubr.bf16.gmra.mrb[0].mxu0 %v7489
    %v7555 = vpop.f32.mrb[0].mxu0
    %v7556 = vadd.f32 0.0, %v7555
    %v7557 = vpop.f32.mrb[0].mxu0
    %v7558 = vpop.f32.mrb[0].mxu0
    %v7559 = vadd.f32 0.0, %v7558
    %v7560 = vpop.f32.mrb[0].mxu0
    %7561 = vmatprep.mubr.bf16.mxu0 0
    %7562 = vmatmul.mubr.bf16.gmra.mrb[0].mxu0 %v7492
    %v7563 = vpop.f32.mrb[0].mxu0
    %v7564 = vadd.f32 0.0, %v7563
    %v7565 = vpop.f32.mrb[0].mxu0
    %v7566 = vpop.f32.mrb[0].mxu0
    %v7567 = vadd.f32 0.0, %v7566
    %v7568 = vpop.f32.mrb[0].mxu0
    %7569 = vmatprep.mubr.bf16.mxu0 0
    %7570 = vmatmul.mubr.bf16.gmra.mrb[0].mxu0 %v7495
    %v7571 = vpop.f32.mrb[0].mxu0
    %v7572 = vadd.f32 0.0, %v7571
    %v7573 = vpop.f32.mrb[0].mxu0
    %v7574 = vpop.f32.mrb[0].mxu0
    %v7575 = vpop.f32.mrb[0].mxu0
    %7576 = vdwg.mxu0
    %v7577 = vpack.c.bf16 %v7535, %v7532
    %v7578 = vpack.c.bf16 %v7543, %v7540
    %v7579 = vpack.c.bf16 %v7551, %v7548
    %v7580 = vpack.c.bf16 %v7559, %v7556
    %v7581 = vpack.c.bf16 %v7567, %v7564
    %v7582 = vpack.c.bf16 %v7572, %v7572
    %s7583 = scalar_lea.vmem [#allocation42], 8
    %v7584 = vld [vmem:[%s7583] sm:$0xf]
    %v7586 = vsel %vm786, %v7577, 0
    %v7589 = vsel %vm786, %v7578, 0
    %v7592 = vsel %vm786, %v7579, 0
    %v7595 = vsel %vm786, %v7580, 0
    %v7598 = vsel %vm786, %v7581, 0
    %v7601 = vsel %vm786, %v7582, 0
    %v7604 = vsel %vm796, %v7584, 0
    %7606 = vmatprep.subr.bf16.mxu0 0
    %7607 = vmatpush1.bf16.msra.mxu0 %v7604
    %7608 = vmatprep.subr.bf16.mxu0 0
    %7609 = vmatpush1.bf16.msra.mxu0 0
    %7610 = vmatprep.subr.bf16.mxu0 0
    %7611 = vmatpush1.bf16.msra.mxu0 0
    %7612 = vmatprep.subr.bf16.mxu0 0
    %7613 = vmatpush1.bf16.msra.mxu0 0
    %7614 = vmatprep.subr.bf16.mxu0 0
    %7615 = vmatpush1.bf16.msra.mxu0 0
    %7616 = vmatprep.subr.bf16.mxu0 0
    %7617 = vmatpush1.bf16.msra.mxu0 0
    %7618 = vmatprep.subr.bf16.mxu0 0
    %7619 = vmatpush1.bf16.msra.mxu0 0
    %7620 = vmatprep.subr.bf16.mxu0 0
    %7621 = vmatpush1.bf16.msra.mxu0 0
    %7622 = vmatprep.subr.bf16.mxu0 0
    %7623 = vmatpush1.bf16.msra.mxu0 0
    %7624 = vmatprep.subr.bf16.mxu0 0
    %7625 = vmatpush1.bf16.msra.mxu0 0
    %7626 = vmatprep.subr.bf16.mxu0 0
    %7627 = vmatpush1.bf16.msra.mxu0 0
    %7628 = vmatprep.subr.bf16.mxu0 0
    %7629 = vmatpush1.bf16.msra.mxu0 0
    %7630 = vmatprep.subr.bf16.mxu0 0
    %7631 = vmatpush1.bf16.msra.mxu0 0
    %7632 = vmatprep.subr.bf16.mxu0 0
    %7633 = vmatpush1.bf16.msra.mxu0 0
    %7634 = vmatprep.subr.bf16.mxu0 0
    %7635 = vmatpush1.bf16.msra.mxu0 0
    %7636 = vmatprep.subr.bf16.mxu0 0
    %7637 = vmatpush1.bf16.msra.mxu0 0
    %7638 = vmatprep.mubr.bf16.mxu0 0
    %7639 = vmatmul.mubr.bf16.gmra.mrb[0].mxu0 %v7586
    %v7640 = vpop.f32.mrb[0].mxu0
    %v7641 = vadd.f32 0.0, %v7640
    %v7642 = vpop.f32.mrb[0].mxu0
    %v7643 = vpop.f32.mrb[0].mxu0
    %v7644 = vadd.f32 0.0, %v7643
    %v7645 = vpop.f32.mrb[0].mxu0
    %7646 = vmatprep.mubr.bf16.mxu0 0
    %7647 = vmatmul.mubr.bf16.gmra.mrb[0].mxu0 %v7589
    %v7648 = vpop.f32.mrb[0].mxu0
    %v7649 = vadd.f32 0.0, %v7648
    %v7650 = vpop.f32.mrb[0].mxu0
    %v7651 = vpop.f32.mrb[0].mxu0
    %v7652 = vadd.f32 0.0, %v7651
    %v7653 = vpop.f32.mrb[0].mxu0
    %7654 = vmatprep.mubr.bf16.mxu0 0
    %7655 = vmatmul.mubr.bf16.gmra.mrb[0].mxu0 %v7592
    %v7656 = vpop.f32.mrb[0].mxu0
    %v7657 = vadd.f32 0.0, %v7656
    %v7658 = vpop.f32.mrb[0].mxu0
    %v7659 = vpop.f32.mrb[0].mxu0
    %v7660 = vadd.f32 0.0, %v7659
    %v7661 = vpop.f32.mrb[0].mxu0
    %7662 = vmatprep.mubr.bf16.mxu0 0
    %7663 = vmatmul.mubr.bf16.gmra.mrb[0].mxu0 %v7595
    %v7664 = vpop.f32.mrb[0].mxu0
    %v7665 = vadd.f32 0.0, %v7664
    %v7666 = vpop.f32.mrb[0].mxu0
    %v7667 = vpop.f32.mrb[0].mxu0
    %v7668 = vadd.f32 0.0, %v7667
    %v7669 = vpop.f32.mrb[0].mxu0
    %7670 = vmatprep.mubr.bf16.mxu0 0
    %7671 = vmatmul.mubr.bf16.gmra.mrb[0].mxu0 %v7598
    %v7672 = vpop.f32.mrb[0].mxu0
    %v7673 = vadd.f32 0.0, %v7672
    %v7674 = vpop.f32.mrb[0].mxu0
    %v7675 = vpop.f32.mrb[0].mxu0
    %v7676 = vadd.f32 0.0, %v7675
    %v7677 = vpop.f32.mrb[0].mxu0
    %7678 = vmatprep.mubr.bf16.mxu0 0
    %7679 = vmatmul.mubr.bf16.gmra.mrb[0].mxu0 %v7601
    %v7680 = vpop.f32.mrb[0].mxu0
    %v7681 = vadd.f32 0.0, %v7680
    %v7682 = vpop.f32.mrb[0].mxu0
    %v7683 = vpop.f32.mrb[0].mxu0
    %v7684 = vpop.f32.mrb[0].mxu0
    %7685 = vdwg.mxu0
    %v7686 = vadd.f32 %v7394, %v7641
    %v7687 = vadd.f32 %v7397, %v7644
    %v7688 = vadd.f32 %v7402, %v7649
    %v7689 = vadd.f32 %v7405, %v7652
    %v7690 = vadd.f32 %v7410, %v7657
    %v7691 = vadd.f32 %v7413, %v7660
    %v7692 = vadd.f32 %v7418, %v7665
    %v7693 = vadd.f32 %v7421, %v7668
    %v7694 = vadd.f32 %v7426, %v7673
    %v7695 = vadd.f32 %v7429, %v7676
    %v7696 = vadd.f32 %v7434, %v7681
    %v7697 = vld [vmem:[#allocation43] sm:$0x1]
    %v7699 = vlaneseq
    %v7700 = vshrl.u32 %v7699, 7
    %v7701 = vsub.s32 0, %v7700
    %v7702 = vrot.slane %v7697, %v7701
    %v7704 = vadd.f32 %v7686, %v7702
    %v7705 = vadd.f32 %v7687, %v7702
    %v7706 = vadd.f32 %v7688, %v7702
    %v7707 = vadd.f32 %v7689, %v7702
    %v7708 = vadd.f32 %v7690, %v7702
    %v7709 = vadd.f32 %v7691, %v7702
    %v7710 = vadd.f32 %v7692, %v7702
    %v7711 = vadd.f32 %v7693, %v7702
    %v7712 = vadd.f32 %v7694, %v7702
    %v7713 = vadd.f32 %v7695, %v7702
    %v7714 = vadd.f32 %v7696, %v7702
    %7715 = vst.msk [vmem:[%s111] sm:$0xff] %vm786, %v7704
    %7716 = vst.msk [vmem:[%s111 + $0x8] sm:$0xff] %vm786, %v7705
    %7717 = vst.msk [vmem:[%s111 + $0x10] sm:$0xff] %vm786, %v7706
    %7718 = vst.msk [vmem:[%s111 + $0x18] sm:$0xff] %vm786, %v7707
    %7719 = vst.msk [vmem:[%s111 + $0x20] sm:$0xff] %vm786, %v7708
    %7720 = vst.msk [vmem:[%s111 + $0x28] sm:$0xff] %vm786, %v7709
    %7721 = vst.msk [vmem:[%s111 + $0x30] sm:$0xff] %vm786, %v7710
    %7722 = vst.msk [vmem:[%s111 + $0x38] sm:$0xff] %vm786, %v7711
    %7723 = vst.msk [vmem:[%s111 + $0x40] sm:$0xff] %vm786, %v7712
    %7724 = vst.msk [vmem:[%s111 + $0x48] sm:$0xff] %vm786, %v7713
    %7725 = vst.msk [vmem:[%s111 + $0x50] sm:$0xf] %vm6826, %v7714
    // Predicated region
    $region334: #{unet1d_forward.1} parent=1 // pred_check
      _
    $region335: #{unet1d_forward.1} parent=1 // pred_check_branch
      %7727 = sbr.rel (0) target = $region337
    $region336: #{unet1d_forward.1} parent=1 // pred_region
      _
    $region337: #{unet1d_forward.1} parent=1 // pred_fallthru
      _
    // Predicated region
    $region338: #{unet1d_forward.1} parent=1 // pred_check
      _
    $region339: #{unet1d_forward.1} parent=1 // pred_check_branch
      %7729 = sbr.rel (0) target = $region341
    $region340: #{unet1d_forward.1} parent=1 // pred_region
      _
    $region341: #{unet1d_forward.1} parent=1 // pred_fallthru
      _
    %7730 = vsyncpa [#allocation3], 1
    %7731 = vsyncpa [#allocation5], 1
    %7732 = vsyncpa [#allocation8], 1
    %7733 = vsyncpa [#allocation11], 1
    %7734 = vsyncpa [#allocation14], 1
    %7735 = vsyncpa [#allocation17], 1
    %7736 = vsyncpa [#allocation20], 1
    %7737 = vsyncpa [#allocation23], 1
    %7738 = vsyncpa [#allocation26], 1
    %7739 = vsyncpa [#allocation29], 1
    %7740 = vsyncpa [#allocation32], 1
    %7741 = vsyncpa [#allocation35], 1
    %7742 = vsyncpa [#allocation38], 1
    %7743 = vsyncpa [#allocation41], 1
    %7744 = vsyncpa [#allocation44], 1

</llo_original>
